<compile_context>
chip_gen: v6e
topology: v6e:2x2x1
jax: 0.10.0
libtpu: 0.0.40
codegen_flags: <defaults>
</compile_context>

<pallas_src>
import jax
import jax.numpy as jnp
from jax import lax
from jax.experimental import pallas as pl
from jax.experimental.pallas import tpu as pltpu

LEAKY_SLOPE = 0.01   # nn.LeakyReLU default negative_slope
BN_EPS = 1e-5        # nn.BatchNorm1d default eps


def _bn_act(y, gamma, beta):
    """Training-mode BatchNorm1d (biased batch stats) + LeakyReLU, all f32."""
    mean = jnp.mean(y, axis=0, keepdims=True)
    var = jnp.mean((y - mean) ** 2, axis=0, keepdims=True)
    y = (y - mean) * lax.rsqrt(var + BN_EPS)
    y = gamma * y + beta
    return jnp.where(y >= 0, y, LEAKY_SLOPE * y)


# ------------ call #1: fused head (4 LinearMLPs) + layer 4 (1024->3072) ------

def _head_l4_kernel(x_ref,
                    w0_ref, g0_ref, b0_ref,
                    w1_ref, g1_ref, b1_ref,
                    w2_ref, g2_ref, b2_ref,
                    w3_ref, g3_ref, b3_ref,
                    w4_ref, g4_ref, b4_ref,
                    o_ref):
    # Head weights use constant index maps -> VMEM-resident across grid steps
    # (no re-DMA).  The head is recomputed per output tile (negligible at B=4)
    # and overlaps with the streaming of the big 1024 x tn weight tile, which
    # is the only HBM traffic that matters for this call.
    y = x_ref[...]                                            # bf16 (B, z)
    for w_ref, g_ref, b_ref in ((w0_ref, g0_ref, b0_ref),
                                (w1_ref, g1_ref, b1_ref),
                                (w2_ref, g2_ref, b2_ref),
                                (w3_ref, g3_ref, b3_ref)):
        y = jnp.dot(y, w_ref[...], preferred_element_type=jnp.float32)
        y = _bn_act(y, g_ref[...], b_ref[...]).astype(jnp.bfloat16)
    # Layer 4 (1024 -> 3072): one (B, tn) output tile per grid step.
    y = jnp.dot(y, w4_ref[...], preferred_element_type=jnp.float32)
    y = _bn_act(y, g4_ref[...], b4_ref[...])
    o_ref[...] = y.astype(o_ref.dtype)                        # bf16 activations


def head_plus_layer4(x_bf16, head_layers, l4, *, tn):
    B = x_bf16.shape[0]
    K4, N4 = l4["w"].shape
    tn = min(tn, N4)
    assert N4 % tn == 0
    n_tiles = N4 // tn

    def const_spec(arr):                      # whole-array, VMEM-resident block
        return pl.BlockSpec(arr.shape, lambda n: (0, 0))

    args, in_specs = [x_bf16], [const_spec(x_bf16)]
    for p in head_layers:
        for a in (p["w"], p["gamma"], p["beta"]):
            args.append(a)
            in_specs.append(const_spec(a))
    args += [l4["w"], l4["gamma"], l4["beta"]]
    in_specs += [pl.BlockSpec((K4, tn), lambda n: (0, n)),
                 pl.BlockSpec((1, tn), lambda n: (0, n)),
                 pl.BlockSpec((1, tn), lambda n: (0, n))]

    head_flops = 2 * B * sum(int(p["w"].size) for p in head_layers)
    flops = head_flops * n_tiles + 2 * B * K4 * N4
    bytes_accessed = int(sum(int(a.size) * a.dtype.itemsize for a in args)
                         + B * N4 * 2)                        # + bf16 output
    transcendentals = int(n_tiles * sum(int(p["gamma"].size)
                                        for p in head_layers) + N4)

    return pl.pallas_call(
        _head_l4_kernel,
        out_shape=jax.ShapeDtypeStruct((B, N4), jnp.bfloat16),
        grid=(n_tiles,),
        in_specs=in_specs,
        out_specs=pl.BlockSpec((B, tn), lambda n: (0, n)),
        compiler_params=pltpu.CompilerParams(
            dimension_semantics=("parallel",),
            # residents ~1.4 MiB + 2 x 3 MiB weight tile + small I/O tiles
            vmem_limit_bytes=24 * 1024 * 1024),
        cost_estimate=pl.CostEstimate(flops=flops,
                                      transcendentals=transcendentals,
                                      bytes_accessed=bytes_accessed),
    )(*args)


# ---------------- call #2: final plain Linear (3072 -> 3072), N-tiled --------

def _final_linear_kernel(h_ref, w_ref, b_ref, o_ref):
    y = jnp.dot(h_ref[...], w_ref[...], preferred_element_type=jnp.float32)
    o_ref[...] = (y + b_ref[...]).astype(o_ref.dtype)


def final_linear(h_bf16, w, b, *, tn):
    B, K = h_bf16.shape
    K2, N = w.shape
    assert K == K2
    tn = min(tn, N)
    assert N % tn == 0
    flops = 2 * B * K * N
    bytes_accessed = int(int(h_bf16.size) * 2 + int(w.size) * 2
                         + N * 4 + B * N * 4)
    return pl.pallas_call(
        _final_linear_kernel,
        out_shape=jax.ShapeDtypeStruct((B, N), jnp.float32),
        grid=(N // tn,),
        in_specs=[pl.BlockSpec((B, K), lambda n: (0, 0)),   # full-K bf16 LHS
                  pl.BlockSpec((K, tn), lambda n: (0, n)),  # bf16 weight tile
                  pl.BlockSpec((1, tn), lambda n: (0, n))],
        out_specs=pl.BlockSpec((B, tn), lambda n: (0, n)),
        compiler_params=pltpu.CompilerParams(
            dimension_semantics=("parallel",),
            # 2 x 9 MiB double-buffered weight tile + small LHS/out/bias tiles
            vmem_limit_bytes=26 * 1024 * 1024),
        cost_estimate=pl.CostEstimate(flops=flops, transcendentals=0,
                                      bytes_accessed=bytes_accessed),
    )(h_bf16, w, b)


# ----------------------------- parameter setup -------------------------------

def init_decoder_params(key, z_dim):
    dims = [z_dim, 128, 256, 512, 1024, 1024 * 3, 1024 * 3]
    params = []
    for i in range(len(dims) - 1):
        d_in, d_out = dims[i], dims[i + 1]
        key, kw, kb, kg, kbeta = jax.random.split(key, 5)
        scale = 1.0 / jnp.sqrt(jnp.float32(d_in))
        # Weights stored bf16: the big layers are HBM weight-streaming bound,
        # so bf16 halves streamed bytes; accumulation stays f32 in-kernel.
        w = jax.random.uniform(kw, (d_in, d_out), jnp.float32,
                               -scale, scale).astype(jnp.bfloat16)
        has_bn = i < len(dims) - 2          # last layer is a plain nn.Linear
        if has_bn:
            # Linear bias is exactly cancelled by training-mode BatchNorm's
            # batch-mean subtraction -> omitted (dead work / dead DMA).
            gamma = 1.0 + 0.1 * jax.random.normal(kg, (1, d_out), jnp.float32)
            beta = 0.1 * jax.random.normal(kbeta, (1, d_out), jnp.float32)
            params.append(dict(w=w, gamma=gamma, beta=beta, b=None, has_bn=True))
        else:
            b = jax.random.uniform(kb, (1, d_out), jnp.float32, -scale, scale)
            params.append(dict(w=w, gamma=None, beta=None, b=b, has_bn=False))
    return params


def decoder_forward_pallas(x, params, *, tn=1536):
    # tn=1536 -> 2 output tiles per big layer: even split over v7x's 2 TCs,
    # minimal per-step overhead on v6e, and (with the explicit vmem limits)
    # within budget on v5e.
    x_bf16 = x.astype(jnp.bfloat16)
    h = head_plus_layer4(x_bf16, params[:4], params[4], tn=tn)      # z -> 3072
    return final_linear(h, params[5]["w"], params[5]["b"], tn=tn)   # 3072 -> 3072


def decoder_forward_ref(x, params):
    """Pure-JAX reference mirroring the kernels' numerics
    (bf16 matmul operands / bf16 inter-layer activations, f32 accumulation,
    training-mode BatchNorm)."""
    h = x.astype(jnp.bfloat16)
    for p in params:
        y = jnp.dot(h, p["w"], preferred_element_type=jnp.float32)
        if p["has_bn"]:
            h = _bn_act(y, p["gamma"], p["beta"]).astype(jnp.bfloat16)
        else:
            h = y + p["b"]
    return h


if __name__ == "__main__":
    key = jax.random.PRNGKey(0)
    B, Z_DIM = 4, 32

    kx, kp = jax.random.split(key)
    x = jax.random.normal(kx, (B, Z_DIM), jnp.float32)
    params = init_decoder_params(kp, Z_DIM)

    out = jax.block_until_ready(decoder_forward_pallas(x, params))
    assert out.shape == (B, 1024 * 3)

    ref = decoder_forward_ref(x, params)
    assert jnp.allclose(out, ref, rtol=1e-2, atol=1e-2), "mismatch vs reference"

    print("KERNEL_OK")
</pallas_src>

<mosaic_0001>
module attributes {stable_mosaic.version = 11 : i64} {
  func.func @_head_l4_kernel(%arg0: i32, %arg1: memref<4x32xbf16, #tpu.memory_space<vmem>>, %arg2: memref<32x128xbf16, #tpu.memory_space<vmem>>, %arg3: memref<1x128xf32, #tpu.memory_space<vmem>>, %arg4: memref<1x128xf32, #tpu.memory_space<vmem>>, %arg5: memref<128x256xbf16, #tpu.memory_space<vmem>>, %arg6: memref<1x256xf32, #tpu.memory_space<vmem>>, %arg7: memref<1x256xf32, #tpu.memory_space<vmem>>, %arg8: memref<256x512xbf16, #tpu.memory_space<vmem>>, %arg9: memref<1x512xf32, #tpu.memory_space<vmem>>, %arg10: memref<1x512xf32, #tpu.memory_space<vmem>>, %arg11: memref<512x1024xbf16, #tpu.memory_space<vmem>>, %arg12: memref<1x1024xf32, #tpu.memory_space<vmem>>, %arg13: memref<1x1024xf32, #tpu.memory_space<vmem>>, %arg14: memref<1024x1536xbf16, #tpu.memory_space<vmem>>, %arg15: memref<1x1536xf32, #tpu.memory_space<vmem>>, %arg16: memref<1x1536xf32, #tpu.memory_space<vmem>>, %arg17: memref<4x1536xbf16, #tpu.memory_space<vmem>>) attributes {dimension_semantics = [#tpu.dimension_semantics<parallel>], iteration_bounds = array<i64: 2>, scalar_prefetch = 0 : i64, scratch_operands = 0 : i64, tpu.core_type = #tpu.core_type<tc>, window_params = [{pipeline_mode = #tpu.pipeline_mode<synchronous>, transform_indices = @transform_0, window_bounds = array<i64: 4, 32>}, {pipeline_mode = #tpu.pipeline_mode<synchronous>, transform_indices = @transform_1, window_bounds = array<i64: 32, 128>}, {pipeline_mode = #tpu.pipeline_mode<synchronous>, transform_indices = @transform_2, window_bounds = array<i64: 1, 128>}, {pipeline_mode = #tpu.pipeline_mode<synchronous>, transform_indices = @transform_3, window_bounds = array<i64: 1, 128>}, {pipeline_mode = #tpu.pipeline_mode<synchronous>, transform_indices = @transform_4, window_bounds = array<i64: 128, 256>}, {pipeline_mode = #tpu.pipeline_mode<synchronous>, transform_indices = @transform_5, window_bounds = array<i64: 1, 256>}, {pipeline_mode = #tpu.pipeline_mode<synchronous>, transform_indices = @transform_6, window_bounds = array<i64: 1, 256>}, {pipeline_mode = #tpu.pipeline_mode<synchronous>, transform_indices = @transform_7, window_bounds = array<i64: 256, 512>}, {pipeline_mode = #tpu.pipeline_mode<synchronous>, transform_indices = @transform_8, window_bounds = array<i64: 1, 512>}, {pipeline_mode = #tpu.pipeline_mode<synchronous>, transform_indices = @transform_9, window_bounds = array<i64: 1, 512>}, {pipeline_mode = #tpu.pipeline_mode<synchronous>, transform_indices = @transform_10, window_bounds = array<i64: 512, 1024>}, {pipeline_mode = #tpu.pipeline_mode<synchronous>, transform_indices = @transform_11, window_bounds = array<i64: 1, 1024>}, {pipeline_mode = #tpu.pipeline_mode<synchronous>, transform_indices = @transform_12, window_bounds = array<i64: 1, 1024>}, {transform_indices = @transform_13, window_bounds = array<i64: 1024, 1536>}, {transform_indices = @transform_14, window_bounds = array<i64: 1, 1536>}, {transform_indices = @transform_15, window_bounds = array<i64: 1, 1536>}, {transform_indices = @transform_16, window_bounds = array<i64: 4, 1536>}]} {
    %c0 = arith.constant 0 : index
    %c0_0 = arith.constant 0 : index
    %0 = vector.load %arg1[%c0, %c0_0] : memref<4x32xbf16, #tpu.memory_space<vmem>>, vector<4x32xbf16>
    %c0_1 = arith.constant 0 : index
    %c0_2 = arith.constant 0 : index
    %1 = vector.load %arg2[%c0_1, %c0_2] : memref<32x128xbf16, #tpu.memory_space<vmem>>, vector<32x128xbf16>
    %cst = arith.constant dense<0.000000e+00> : vector<4x128xf32>
    %2 = tpu.matmul %0, %1, %cst {dimension_numbers = #tpu.dot_dimension_numbers<[1], [0], [0], [1], [0, 0, 1, 1], [], []>} : vector<4x32xbf16>, vector<32x128xbf16>, vector<4x128xf32> -> vector<4x128xf32>
    %c0_3 = arith.constant 0 : index
    %c0_4 = arith.constant 0 : index
    %3 = vector.load %arg3[%c0_3, %c0_4] : memref<1x128xf32, #tpu.memory_space<vmem>>, vector<1x128xf32>
    %c0_5 = arith.constant 0 : index
    %c0_6 = arith.constant 0 : index
    %4 = vector.load %arg4[%c0_5, %c0_6] : memref<1x128xf32, #tpu.memory_space<vmem>>, vector<1x128xf32>
    %cst_7 = arith.constant dense<0.000000e+00> : vector<128xf32>
    %5 = vector.multi_reduction <add>, %2, %cst_7 [0] : vector<4x128xf32> to vector<128xf32>
    %6 = vector.shape_cast %5 : vector<128xf32> to vector<1x128xf32>
    %cst_8 = arith.constant 4.000000e+00 : f32
    %7 = vector.broadcast %cst_8 : f32 to vector<1x128xf32>
    %8 = arith.divf %6, %7 : vector<1x128xf32>
    %9 = vector.broadcast %8 : vector<1x128xf32> to vector<4x128xf32>
    %10 = arith.subf %2, %9 : vector<4x128xf32>
    %11 = arith.mulf %10, %10 : vector<4x128xf32>
    %cst_9 = arith.constant dense<0.000000e+00> : vector<128xf32>
    %12 = vector.multi_reduction <add>, %11, %cst_9 [0] : vector<4x128xf32> to vector<128xf32>
    %13 = vector.shape_cast %12 : vector<128xf32> to vector<1x128xf32>
    %cst_10 = arith.constant 4.000000e+00 : f32
    %14 = vector.broadcast %cst_10 : f32 to vector<1x128xf32>
    %15 = arith.divf %13, %14 : vector<1x128xf32>
    %16 = vector.broadcast %8 : vector<1x128xf32> to vector<4x128xf32>
    %17 = arith.subf %2, %16 : vector<4x128xf32>
    %cst_11 = arith.constant 9.99999974E-6 : f32
    %18 = vector.broadcast %cst_11 : f32 to vector<1x128xf32>
    %19 = arith.addf %15, %18 : vector<1x128xf32>
    %20 = math.rsqrt %19 : vector<1x128xf32>
    %21 = vector.broadcast %20 : vector<1x128xf32> to vector<4x128xf32>
    %22 = arith.mulf %17, %21 : vector<4x128xf32>
    %23 = vector.broadcast %3 : vector<1x128xf32> to vector<4x128xf32>
    %24 = arith.mulf %23, %22 : vector<4x128xf32>
    %25 = vector.broadcast %4 : vector<1x128xf32> to vector<4x128xf32>
    %26 = arith.addf %24, %25 : vector<4x128xf32>
    %cst_12 = arith.constant 0.000000e+00 : f32
    %27 = vector.broadcast %cst_12 : f32 to vector<4x128xf32>
    %28 = arith.cmpf oge, %26, %27 : vector<4x128xf32>
    %cst_13 = arith.constant 0.00999999977 : f32
    %29 = vector.broadcast %cst_13 : f32 to vector<4x128xf32>
    %30 = arith.mulf %29, %26 : vector<4x128xf32>
    %31 = arith.select %28, %26, %30 : vector<4x128xi1>, vector<4x128xf32>
    %32 = arith.truncf %31 : vector<4x128xf32> to vector<4x128xbf16>
    %c0_14 = arith.constant 0 : index
    %c0_15 = arith.constant 0 : index
    %33 = vector.load %arg5[%c0_14, %c0_15] : memref<128x256xbf16, #tpu.memory_space<vmem>>, vector<128x256xbf16>
    %cst_16 = arith.constant dense<0.000000e+00> : vector<4x256xf32>
    %34 = tpu.matmul %32, %33, %cst_16 {dimension_numbers = #tpu.dot_dimension_numbers<[1], [0], [0], [1], [0, 0, 1, 1], [], []>} : vector<4x128xbf16>, vector<128x256xbf16>, vector<4x256xf32> -> vector<4x256xf32>
    %c0_17 = arith.constant 0 : index
    %c0_18 = arith.constant 0 : index
    %35 = vector.load %arg6[%c0_17, %c0_18] : memref<1x256xf32, #tpu.memory_space<vmem>>, vector<1x256xf32>
    %c0_19 = arith.constant 0 : index
    %c0_20 = arith.constant 0 : index
    %36 = vector.load %arg7[%c0_19, %c0_20] : memref<1x256xf32, #tpu.memory_space<vmem>>, vector<1x256xf32>
    %cst_21 = arith.constant dense<0.000000e+00> : vector<256xf32>
    %37 = vector.multi_reduction <add>, %34, %cst_21 [0] : vector<4x256xf32> to vector<256xf32>
    %38 = vector.shape_cast %37 : vector<256xf32> to vector<1x256xf32>
    %cst_22 = arith.constant 4.000000e+00 : f32
    %39 = vector.broadcast %cst_22 : f32 to vector<1x256xf32>
    %40 = arith.divf %38, %39 : vector<1x256xf32>
    %41 = vector.broadcast %40 : vector<1x256xf32> to vector<4x256xf32>
    %42 = arith.subf %34, %41 : vector<4x256xf32>
    %43 = arith.mulf %42, %42 : vector<4x256xf32>
    %cst_23 = arith.constant dense<0.000000e+00> : vector<256xf32>
    %44 = vector.multi_reduction <add>, %43, %cst_23 [0] : vector<4x256xf32> to vector<256xf32>
    %45 = vector.shape_cast %44 : vector<256xf32> to vector<1x256xf32>
    %cst_24 = arith.constant 4.000000e+00 : f32
    %46 = vector.broadcast %cst_24 : f32 to vector<1x256xf32>
    %47 = arith.divf %45, %46 : vector<1x256xf32>
    %48 = vector.broadcast %40 : vector<1x256xf32> to vector<4x256xf32>
    %49 = arith.subf %34, %48 : vector<4x256xf32>
    %cst_25 = arith.constant 9.99999974E-6 : f32
    %50 = vector.broadcast %cst_25 : f32 to vector<1x256xf32>
    %51 = arith.addf %47, %50 : vector<1x256xf32>
    %52 = math.rsqrt %51 : vector<1x256xf32>
    %53 = vector.broadcast %52 : vector<1x256xf32> to vector<4x256xf32>
    %54 = arith.mulf %49, %53 : vector<4x256xf32>
    %55 = vector.broadcast %35 : vector<1x256xf32> to vector<4x256xf32>
    %56 = arith.mulf %55, %54 : vector<4x256xf32>
    %57 = vector.broadcast %36 : vector<1x256xf32> to vector<4x256xf32>
    %58 = arith.addf %56, %57 : vector<4x256xf32>
    %cst_26 = arith.constant 0.000000e+00 : f32
    %59 = vector.broadcast %cst_26 : f32 to vector<4x256xf32>
    %60 = arith.cmpf oge, %58, %59 : vector<4x256xf32>
    %cst_27 = arith.constant 0.00999999977 : f32
    %61 = vector.broadcast %cst_27 : f32 to vector<4x256xf32>
    %62 = arith.mulf %61, %58 : vector<4x256xf32>
    %63 = arith.select %60, %58, %62 : vector<4x256xi1>, vector<4x256xf32>
    %64 = arith.truncf %63 : vector<4x256xf32> to vector<4x256xbf16>
    %c0_28 = arith.constant 0 : index
    %c0_29 = arith.constant 0 : index
    %65 = vector.load %arg8[%c0_28, %c0_29] : memref<256x512xbf16, #tpu.memory_space<vmem>>, vector<256x512xbf16>
    %cst_30 = arith.constant dense<0.000000e+00> : vector<4x512xf32>
    %66 = tpu.matmul %64, %65, %cst_30 {dimension_numbers = #tpu.dot_dimension_numbers<[1], [0], [0], [1], [0, 0, 1, 1], [], []>} : vector<4x256xbf16>, vector<256x512xbf16>, vector<4x512xf32> -> vector<4x512xf32>
    %c0_31 = arith.constant 0 : index
    %c0_32 = arith.constant 0 : index
    %67 = vector.load %arg9[%c0_31, %c0_32] : memref<1x512xf32, #tpu.memory_space<vmem>>, vector<1x512xf32>
    %c0_33 = arith.constant 0 : index
    %c0_34 = arith.constant 0 : index
    %68 = vector.load %arg10[%c0_33, %c0_34] : memref<1x512xf32, #tpu.memory_space<vmem>>, vector<1x512xf32>
    %cst_35 = arith.constant dense<0.000000e+00> : vector<512xf32>
    %69 = vector.multi_reduction <add>, %66, %cst_35 [0] : vector<4x512xf32> to vector<512xf32>
    %70 = vector.shape_cast %69 : vector<512xf32> to vector<1x512xf32>
    %cst_36 = arith.constant 4.000000e+00 : f32
    %71 = vector.broadcast %cst_36 : f32 to vector<1x512xf32>
    %72 = arith.divf %70, %71 : vector<1x512xf32>
    %73 = vector.broadcast %72 : vector<1x512xf32> to vector<4x512xf32>
    %74 = arith.subf %66, %73 : vector<4x512xf32>
    %75 = arith.mulf %74, %74 : vector<4x512xf32>
    %cst_37 = arith.constant dense<0.000000e+00> : vector<512xf32>
    %76 = vector.multi_reduction <add>, %75, %cst_37 [0] : vector<4x512xf32> to vector<512xf32>
    %77 = vector.shape_cast %76 : vector<512xf32> to vector<1x512xf32>
    %cst_38 = arith.constant 4.000000e+00 : f32
    %78 = vector.broadcast %cst_38 : f32 to vector<1x512xf32>
    %79 = arith.divf %77, %78 : vector<1x512xf32>
    %80 = vector.broadcast %72 : vector<1x512xf32> to vector<4x512xf32>
    %81 = arith.subf %66, %80 : vector<4x512xf32>
    %cst_39 = arith.constant 9.99999974E-6 : f32
    %82 = vector.broadcast %cst_39 : f32 to vector<1x512xf32>
    %83 = arith.addf %79, %82 : vector<1x512xf32>
    %84 = math.rsqrt %83 : vector<1x512xf32>
    %85 = vector.broadcast %84 : vector<1x512xf32> to vector<4x512xf32>
    %86 = arith.mulf %81, %85 : vector<4x512xf32>
    %87 = vector.broadcast %67 : vector<1x512xf32> to vector<4x512xf32>
    %88 = arith.mulf %87, %86 : vector<4x512xf32>
    %89 = vector.broadcast %68 : vector<1x512xf32> to vector<4x512xf32>
    %90 = arith.addf %88, %89 : vector<4x512xf32>
    %cst_40 = arith.constant 0.000000e+00 : f32
    %91 = vector.broadcast %cst_40 : f32 to vector<4x512xf32>
    %92 = arith.cmpf oge, %90, %91 : vector<4x512xf32>
    %cst_41 = arith.constant 0.00999999977 : f32
    %93 = vector.broadcast %cst_41 : f32 to vector<4x512xf32>
    %94 = arith.mulf %93, %90 : vector<4x512xf32>
    %95 = arith.select %92, %90, %94 : vector<4x512xi1>, vector<4x512xf32>
    %96 = arith.truncf %95 : vector<4x512xf32> to vector<4x512xbf16>
    %c0_42 = arith.constant 0 : index
    %c0_43 = arith.constant 0 : index
    %97 = vector.load %arg11[%c0_42, %c0_43] : memref<512x1024xbf16, #tpu.memory_space<vmem>>, vector<512x1024xbf16>
    %cst_44 = arith.constant dense<0.000000e+00> : vector<4x1024xf32>
    %98 = tpu.matmul %96, %97, %cst_44 {dimension_numbers = #tpu.dot_dimension_numbers<[1], [0], [0], [1], [0, 0, 1, 1], [], []>} : vector<4x512xbf16>, vector<512x1024xbf16>, vector<4x1024xf32> -> vector<4x1024xf32>
    %c0_45 = arith.constant 0 : index
    %c0_46 = arith.constant 0 : index
    %99 = vector.load %arg12[%c0_45, %c0_46] : memref<1x1024xf32, #tpu.memory_space<vmem>>, vector<1x1024xf32>
    %c0_47 = arith.constant 0 : index
    %c0_48 = arith.constant 0 : index
    %100 = vector.load %arg13[%c0_47, %c0_48] : memref<1x1024xf32, #tpu.memory_space<vmem>>, vector<1x1024xf32>
    %cst_49 = arith.constant dense<0.000000e+00> : vector<1024xf32>
    %101 = vector.multi_reduction <add>, %98, %cst_49 [0] : vector<4x1024xf32> to vector<1024xf32>
    %102 = vector.shape_cast %101 : vector<1024xf32> to vector<1x1024xf32>
    %cst_50 = arith.constant 4.000000e+00 : f32
    %103 = vector.broadcast %cst_50 : f32 to vector<1x1024xf32>
    %104 = arith.divf %102, %103 : vector<1x1024xf32>
    %105 = vector.broadcast %104 : vector<1x1024xf32> to vector<4x1024xf32>
    %106 = arith.subf %98, %105 : vector<4x1024xf32>
    %107 = arith.mulf %106, %106 : vector<4x1024xf32>
    %cst_51 = arith.constant dense<0.000000e+00> : vector<1024xf32>
    %108 = vector.multi_reduction <add>, %107, %cst_51 [0] : vector<4x1024xf32> to vector<1024xf32>
    %109 = vector.shape_cast %108 : vector<1024xf32> to vector<1x1024xf32>
    %cst_52 = arith.constant 4.000000e+00 : f32
    %110 = vector.broadcast %cst_52 : f32 to vector<1x1024xf32>
    %111 = arith.divf %109, %110 : vector<1x1024xf32>
    %112 = vector.broadcast %104 : vector<1x1024xf32> to vector<4x1024xf32>
    %113 = arith.subf %98, %112 : vector<4x1024xf32>
    %cst_53 = arith.constant 9.99999974E-6 : f32
    %114 = vector.broadcast %cst_53 : f32 to vector<1x1024xf32>
    %115 = arith.addf %111, %114 : vector<1x1024xf32>
    %116 = math.rsqrt %115 : vector<1x1024xf32>
    %117 = vector.broadcast %116 : vector<1x1024xf32> to vector<4x1024xf32>
    %118 = arith.mulf %113, %117 : vector<4x1024xf32>
    %119 = vector.broadcast %99 : vector<1x1024xf32> to vector<4x1024xf32>
    %120 = arith.mulf %119, %118 : vector<4x1024xf32>
    %121 = vector.broadcast %100 : vector<1x1024xf32> to vector<4x1024xf32>
    %122 = arith.addf %120, %121 : vector<4x1024xf32>
    %cst_54 = arith.constant 0.000000e+00 : f32
    %123 = vector.broadcast %cst_54 : f32 to vector<4x1024xf32>
    %124 = arith.cmpf oge, %122, %123 : vector<4x1024xf32>
    %cst_55 = arith.constant 0.00999999977 : f32
    %125 = vector.broadcast %cst_55 : f32 to vector<4x1024xf32>
    %126 = arith.mulf %125, %122 : vector<4x1024xf32>
    %127 = arith.select %124, %122, %126 : vector<4x1024xi1>, vector<4x1024xf32>
    %128 = arith.truncf %127 : vector<4x1024xf32> to vector<4x1024xbf16>
    %c0_56 = arith.constant 0 : index
    %c0_57 = arith.constant 0 : index
    %129 = vector.load %arg14[%c0_56, %c0_57] : memref<1024x1536xbf16, #tpu.memory_space<vmem>>, vector<1024x1536xbf16>
    %cst_58 = arith.constant dense<0.000000e+00> : vector<4x1536xf32>
    %130 = tpu.matmul %128, %129, %cst_58 {dimension_numbers = #tpu.dot_dimension_numbers<[1], [0], [0], [1], [0, 0, 1, 1], [], []>} : vector<4x1024xbf16>, vector<1024x1536xbf16>, vector<4x1536xf32> -> vector<4x1536xf32>
    %c0_59 = arith.constant 0 : index
    %c0_60 = arith.constant 0 : index
    %131 = vector.load %arg15[%c0_59, %c0_60] : memref<1x1536xf32, #tpu.memory_space<vmem>>, vector<1x1536xf32>
    %c0_61 = arith.constant 0 : index
    %c0_62 = arith.constant 0 : index
    %132 = vector.load %arg16[%c0_61, %c0_62] : memref<1x1536xf32, #tpu.memory_space<vmem>>, vector<1x1536xf32>
    %cst_63 = arith.constant dense<0.000000e+00> : vector<1536xf32>
    %133 = vector.multi_reduction <add>, %130, %cst_63 [0] : vector<4x1536xf32> to vector<1536xf32>
    %134 = vector.shape_cast %133 : vector<1536xf32> to vector<1x1536xf32>
    %cst_64 = arith.constant 4.000000e+00 : f32
    %135 = vector.broadcast %cst_64 : f32 to vector<1x1536xf32>
    %136 = arith.divf %134, %135 : vector<1x1536xf32>
    %137 = vector.broadcast %136 : vector<1x1536xf32> to vector<4x1536xf32>
    %138 = arith.subf %130, %137 : vector<4x1536xf32>
    %139 = arith.mulf %138, %138 : vector<4x1536xf32>
    %cst_65 = arith.constant dense<0.000000e+00> : vector<1536xf32>
    %140 = vector.multi_reduction <add>, %139, %cst_65 [0] : vector<4x1536xf32> to vector<1536xf32>
    %141 = vector.shape_cast %140 : vector<1536xf32> to vector<1x1536xf32>
    %cst_66 = arith.constant 4.000000e+00 : f32
    %142 = vector.broadcast %cst_66 : f32 to vector<1x1536xf32>
    %143 = arith.divf %141, %142 : vector<1x1536xf32>
    %144 = vector.broadcast %136 : vector<1x1536xf32> to vector<4x1536xf32>
    %145 = arith.subf %130, %144 : vector<4x1536xf32>
    %cst_67 = arith.constant 9.99999974E-6 : f32
    %146 = vector.broadcast %cst_67 : f32 to vector<1x1536xf32>
    %147 = arith.addf %143, %146 : vector<1x1536xf32>
    %148 = math.rsqrt %147 : vector<1x1536xf32>
    %149 = vector.broadcast %148 : vector<1x1536xf32> to vector<4x1536xf32>
    %150 = arith.mulf %145, %149 : vector<4x1536xf32>
    %151 = vector.broadcast %131 : vector<1x1536xf32> to vector<4x1536xf32>
    %152 = arith.mulf %151, %150 : vector<4x1536xf32>
    %153 = vector.broadcast %132 : vector<1x1536xf32> to vector<4x1536xf32>
    %154 = arith.addf %152, %153 : vector<4x1536xf32>
    %cst_68 = arith.constant 0.000000e+00 : f32
    %155 = vector.broadcast %cst_68 : f32 to vector<4x1536xf32>
    %156 = arith.cmpf oge, %154, %155 : vector<4x1536xf32>
    %cst_69 = arith.constant 0.00999999977 : f32
    %157 = vector.broadcast %cst_69 : f32 to vector<4x1536xf32>
    %158 = arith.mulf %157, %154 : vector<4x1536xf32>
    %159 = arith.select %156, %154, %158 : vector<4x1536xi1>, vector<4x1536xf32>
    %160 = arith.truncf %159 : vector<4x1536xf32> to vector<4x1536xbf16>
    %c0_70 = arith.constant 0 : index
    %c0_71 = arith.constant 0 : index
    %161 = vector.load %arg17[%c0_70, %c0_71] : memref<4x1536xbf16, #tpu.memory_space<vmem>>, vector<4x1536xbf16>
    tpu.vector_store %arg17[%c0_70, %c0_71], %160 {strides = array<i32>} : memref<4x1536xbf16, #tpu.memory_space<vmem>>, vector<4x1536xbf16>,
    return
  }
  func.func @transform_0(%arg0: i32) -> (i32, i32) {
    %c0_i32 = arith.constant 0 : i32
    %c0_i32_0 = arith.constant 0 : i32
    %c0_i32_1 = arith.constant 0 : i32
    return %c0_i32, %c0_i32_0 : i32, i32
  }
  func.func @transform_1(%arg0: i32) -> (i32, i32) {
    %c0_i32 = arith.constant 0 : i32
    %c0_i32_0 = arith.constant 0 : i32
    %c0_i32_1 = arith.constant 0 : i32
    return %c0_i32, %c0_i32_0 : i32, i32
  }
  func.func @transform_2(%arg0: i32) -> (i32, i32) {
    %c0_i32 = arith.constant 0 : i32
    %c0_i32_0 = arith.constant 0 : i32
    %c0_i32_1 = arith.constant 0 : i32
    return %c0_i32, %c0_i32_0 : i32, i32
  }
  func.func @transform_3(%arg0: i32) -> (i32, i32) {
    %c0_i32 = arith.constant 0 : i32
    %c0_i32_0 = arith.constant 0 : i32
    %c0_i32_1 = arith.constant 0 : i32
    return %c0_i32, %c0_i32_0 : i32, i32
  }
  func.func @transform_4(%arg0: i32) -> (i32, i32) {
    %c0_i32 = arith.constant 0 : i32
    %c0_i32_0 = arith.constant 0 : i32
    %c0_i32_1 = arith.constant 0 : i32
    return %c0_i32, %c0_i32_0 : i32, i32
  }
  func.func @transform_5(%arg0: i32) -> (i32, i32) {
    %c0_i32 = arith.constant 0 : i32
    %c0_i32_0 = arith.constant 0 : i32
    %c0_i32_1 = arith.constant 0 : i32
    return %c0_i32, %c0_i32_0 : i32, i32
  }
  func.func @transform_6(%arg0: i32) -> (i32, i32) {
    %c0_i32 = arith.constant 0 : i32
    %c0_i32_0 = arith.constant 0 : i32
    %c0_i32_1 = arith.constant 0 : i32
    return %c0_i32, %c0_i32_0 : i32, i32
  }
  func.func @transform_7(%arg0: i32) -> (i32, i32) {
    %c0_i32 = arith.constant 0 : i32
    %c0_i32_0 = arith.constant 0 : i32
    %c0_i32_1 = arith.constant 0 : i32
    return %c0_i32, %c0_i32_0 : i32, i32
  }
  func.func @transform_8(%arg0: i32) -> (i32, i32) {
    %c0_i32 = arith.constant 0 : i32
    %c0_i32_0 = arith.constant 0 : i32
    %c0_i32_1 = arith.constant 0 : i32
    return %c0_i32, %c0_i32_0 : i32, i32
  }
  func.func @transform_9(%arg0: i32) -> (i32, i32) {
    %c0_i32 = arith.constant 0 : i32
    %c0_i32_0 = arith.constant 0 : i32
    %c0_i32_1 = arith.constant 0 : i32
    return %c0_i32, %c0_i32_0 : i32, i32
  }
  func.func @transform_10(%arg0: i32) -> (i32, i32) {
    %c0_i32 = arith.constant 0 : i32
    %c0_i32_0 = arith.constant 0 : i32
    %c0_i32_1 = arith.constant 0 : i32
    return %c0_i32, %c0_i32_0 : i32, i32
  }
  func.func @transform_11(%arg0: i32) -> (i32, i32) {
    %c0_i32 = arith.constant 0 : i32
    %c0_i32_0 = arith.constant 0 : i32
    %c0_i32_1 = arith.constant 0 : i32
    return %c0_i32, %c0_i32_0 : i32, i32
  }
  func.func @transform_12(%arg0: i32) -> (i32, i32) {
    %c0_i32 = arith.constant 0 : i32
    %c0_i32_0 = arith.constant 0 : i32
    %c0_i32_1 = arith.constant 0 : i32
    return %c0_i32, %c0_i32_0 : i32, i32
  }
  func.func @transform_13(%arg0: i32) -> (i32, i32) {
    %c0_i32 = arith.constant 0 : i32
    %c0_i32_0 = arith.constant 0 : i32
    return %c0_i32, %arg0 : i32, i32
  }
  func.func @transform_14(%arg0: i32) -> (i32, i32) {
    %c0_i32 = arith.constant 0 : i32
    %c0_i32_0 = arith.constant 0 : i32
    return %c0_i32, %arg0 : i32, i32
  }
  func.func @transform_15(%arg0: i32) -> (i32, i32) {
    %c0_i32 = arith.constant 0 : i32
    %c0_i32_0 = arith.constant 0 : i32
    return %c0_i32, %arg0 : i32, i32
  }
  func.func @transform_16(%arg0: i32) -> (i32, i32) {
    %c0_i32 = arith.constant 0 : i32
    %c0_i32_0 = arith.constant 0 : i32
    return %c0_i32, %arg0 : i32, i32
  }
}

</mosaic_0001>

<llo_original>
// kernel: tpu_custom_call.1
$region0: #{tpu_custom_call.1}
  #allocation0 [shape = 'u32[]', space=smem, size = 0x4, offset = 0x4, fixed_abs, tag = 'smem constant byte address 0x4 - core index']
  #allocation1 [shape = 'u32[144,128]{1,0:T(1,128)}', space=vmem, size = 0x12000, scoped, tag = 'internal scratch']
  %s0 = inlined_call_operand.hbm [shape: bf16[4,32], index: 0, kind: input, shape index: {}]
  %s1 = inlined_call_operand.hbm [shape: bf16[32,128], index: 1, kind: input, shape index: {}]
  %s2 = inlined_call_operand.hbm [shape: f32[1,128], index: 2, kind: input, shape index: {}]
  %s3 = inlined_call_operand.hbm [shape: f32[1,128], index: 3, kind: input, shape index: {}]
  %s4 = inlined_call_operand.hbm [shape: bf16[128,256], index: 4, kind: input, shape index: {}]
  %s5 = inlined_call_operand.hbm [shape: f32[1,256], index: 5, kind: input, shape index: {}]
  %s6 = inlined_call_operand.hbm [shape: f32[1,256], index: 6, kind: input, shape index: {}]
  %s7 = inlined_call_operand.hbm [shape: bf16[256,512], index: 7, kind: input, shape index: {}]
  %s8 = inlined_call_operand.hbm [shape: f32[1,512], index: 8, kind: input, shape index: {}]
  %s9 = inlined_call_operand.hbm [shape: f32[1,512], index: 9, kind: input, shape index: {}]
  %s10 = inlined_call_operand.hbm [shape: bf16[512,1024], index: 10, kind: input, shape index: {}]
  %s11 = inlined_call_operand.hbm [shape: f32[1,1024], index: 11, kind: input, shape index: {}]
  %s12 = inlined_call_operand.hbm [shape: f32[1,1024], index: 12, kind: input, shape index: {}]
  %s13 = inlined_call_operand.hbm [shape: bf16[1024,3072], index: 13, kind: input, shape index: {}]
  %s14 = inlined_call_operand.hbm [shape: f32[1,3072], index: 14, kind: input, shape index: {}]
  %s15 = inlined_call_operand.hbm [shape: f32[1,3072], index: 15, kind: input, shape index: {}]
  %s16 = inlined_call_operand.hbm [shape: bf16[4,3072], index: 16, kind: output, shape index: {}]
  %s17 = sld [smem:[#allocation0]]
  $region161: #{tpu_custom_call.1} parent=0
    _
  %s19 = ssub.s32 1, %s17
  %s20 = scalar_select 0, %s19, %s17
  $region1: #{tpu_custom_call.1} parent=0
    #allocation2 [shape = 'u8[1024]{0}', space=vmem, size = 0x400, scoped, tag = 'input window, operand 0, single buffered']
    #allocation3 [shape = 's32[2]{0}', space=sflag, size = 0x8, scoped, tag = 'scoped memory for tpu_custom_call.1']
    #allocation4 [shape = 's32[2]{0}', space=sflag, size = 0x8, scoped, tag = 'scoped memory for tpu_custom_call.1']
    #allocation5 [shape = 'u8[8192]{0}', space=vmem, size = 0x2000, scoped, tag = 'input window, operand 1, single buffered']
    #allocation6 [shape = 's32[1]{0}', space=sflag, size = 0x4, scoped, tag = 'scoped memory for tpu_custom_call.1']
    #allocation7 [shape = 'u8[512]{0}', space=vmem, size = 0x400, scoped, tag = 'input window, operand 2, single buffered']
    #allocation8 [shape = 'u8[512]{0}', space=vmem, size = 0x400, scoped, tag = 'input window, operand 3, single buffered']
    #allocation9 [shape = 's32[1]{0}', space=sflag, size = 0x4, scoped, tag = 'scoped memory for tpu_custom_call.1']
    #allocation10 [shape = 'u8[65536]{0}', space=vmem, size = 0x10000, scoped, tag = 'input window, operand 4, single buffered']
    #allocation11 [shape = 'u8[1024]{0}', space=vmem, size = 0x400, scoped, tag = 'input window, operand 5, single buffered']
    #allocation12 [shape = 's32[1]{0}', space=sflag, size = 0x4, scoped, tag = 'scoped memory for tpu_custom_call.1']
    #allocation13 [shape = 'u8[1024]{0}', space=vmem, size = 0x400, scoped, tag = 'input window, operand 6, single buffered']
    #allocation14 [shape = 'u8[262144]{0}', space=vmem, size = 0x40000, scoped, tag = 'input window, operand 7, single buffered']
    #allocation15 [shape = 's32[1]{0}', space=sflag, size = 0x4, scoped, tag = 'scoped memory for tpu_custom_call.1']
    #allocation16 [shape = 'u8[2048]{0}', space=vmem, size = 0x800, scoped, tag = 'input window, operand 8, single buffered']
    #allocation17 [shape = 'u8[2048]{0}', space=vmem, size = 0x800, scoped, tag = 'input window, operand 9, single buffered']
    #allocation18 [shape = 's32[1]{0}', space=sflag, size = 0x4, scoped, tag = 'scoped memory for tpu_custom_call.1']
    #allocation19 [shape = 'u8[1048576]{0}', space=vmem, size = 0x100000, scoped, tag = 'input window, operand 10, single buffered']
    #allocation20 [shape = 'u8[4096]{0}', space=vmem, size = 0x1000, scoped, tag = 'input window, operand 11, single buffered']
    #allocation21 [shape = 's32[1]{0}', space=sflag, size = 0x4, scoped, tag = 'scoped memory for tpu_custom_call.1']
    #allocation22 [shape = 'u8[4096]{0}', space=vmem, size = 0x1000, scoped, tag = 'input window, operand 12, single buffered']
    #allocation23 [shape = 'u8[6291456]{0}', space=vmem, size = 0x600000, scoped, tag = 'input window, operand 13']
    #allocation24 [shape = 's32[2]{0}', space=sflag, size = 0x8, scoped, tag = 'scoped memory for tpu_custom_call.1']
    #allocation25 [shape = 'u8[12288]{0}', space=vmem, size = 0x3000, scoped, tag = 'input window, operand 14']
    #allocation26 [shape = 'u8[12288]{0}', space=vmem, size = 0x3000, scoped, tag = 'input window, operand 15']
    #allocation27 [shape = 's32[2]{0}', space=sflag, size = 0x8, scoped, tag = 'scoped memory for tpu_custom_call.1']
    #allocation28 [shape = 'u8[24576]{0}', space=vmem, size = 0x6000, scoped, tag = 'output window, operand 0']
    %21 = vsyncpa [#allocation3], 0
    %22 = vsyncpa [#allocation6], 0
    %23 = vsyncpa [#allocation9], 0
    %24 = vsyncpa [#allocation12], 0
    %25 = vsyncpa [#allocation15], 0
    %26 = vsyncpa [#allocation18], 0
    %27 = vsyncpa [#allocation21], 0
    %28 = vsyncpa [#allocation24], 0
    %s29 = scalar_lea.sflag [#allocation24], 1
    %30 = vsyncpa %s29, 0
    %31 = vsyncpa [#allocation27], 0
    %s32 = scalar_lea.sflag [#allocation27], 1
    %33 = vsyncpa %s32, 0
    %34 = vsyncpa [#allocation4], 0
    %s35 = scalar_lea.sflag [#allocation4], 1
    %36 = vsyncpa %s35, 0
    loop: start=0, step=1, limit=4
    $region2: #{tpu_custom_call.1} parent=1 // loop_pre_header
      _
    $region3: #{tpu_custom_call.1} parent=1 // loop_header
      %s38 = sphi 0, %s42
      %p39 = scmp.ge.s32.totalorder %s38, 4
      %s46 = sphi 0, %s46
      %s48 = sphi 0, %s46
      %s49 = sphi 0, %s48
      %s63 = sphi 0, %s49
      %s67 = sphi 0, %s67
      %s69 = sphi 0, %s67
      %s70 = sphi 0, %s69
      %s84 = sphi 0, %s70
      %s88 = sphi 0, %s88
      %s90 = sphi 0, %s88
      %s91 = sphi 0, %s90
      %s105 = sphi 0, %s91
      %s109 = sphi 0, %s109
      %s111 = sphi 0, %s109
      %s112 = sphi 0, %s111
      %s126 = sphi 0, %s112
      %s130 = sphi 0, %s130
      %s132 = sphi 0, %s130
      %s133 = sphi 0, %s132
      %s147 = sphi 0, %s133
      %s151 = sphi 0, %s151
      %s153 = sphi 0, %s151
      %s154 = sphi 0, %s153
      %s168 = sphi 0, %s154
      %s172 = sphi 0, %s172
      %s174 = sphi 0, %s172
      %s175 = sphi 0, %s174
      %s189 = sphi 0, %s175
      %s193 = sphi 0, %s193
      %s195 = sphi 0, %s193
      %s196 = sphi 0, %s195
      %s210 = sphi 0, %s196
      %s214 = sphi 0, %s214
      %s216 = sphi 0, %s214
      %s217 = sphi 0, %s216
      %s231 = sphi 0, %s217
      %s235 = sphi 0, %s235
      %s237 = sphi 0, %s235
      %s238 = sphi 0, %s237
      %s252 = sphi 0, %s238
      %s256 = sphi 0, %s256
      %s258 = sphi 0, %s256
      %s259 = sphi 0, %s258
      %s273 = sphi 0, %s259
      %s277 = sphi 0, %s277
      %s279 = sphi 0, %s277
      %s280 = sphi 0, %s279
      %s294 = sphi 0, %s280
      %s298 = sphi 0, %s298
      %s300 = sphi 0, %s298
      %s301 = sphi 0, %s300
      %s315 = sphi 0, %s301
      %s321 = sphi 0, %s323
      %s324 = sphi 0, %s321
      %s325 = sphi 0, %s324
      %s341 = sphi 0, %s325
      %s347 = sphi 0, %s349
      %s350 = sphi 0, %s347
      %s351 = sphi 0, %s350
      %s367 = sphi 0, %s351
      %s373 = sphi 0, %s375
      %s376 = sphi 0, %s373
      %s377 = sphi 0, %s376
      %s393 = sphi 0, %s377
      %s399 = sphi 0, %s401
      %s402 = sphi 0, %s399
      %s403 = sphi 0, %s402
      %s419 = sphi 0, %s403
    $region4: #{tpu_custom_call.1} parent=1 // loop_header_branch
      %41 = sbr.rel (%p39) target = $region8
    $region5: #{tpu_custom_call.1} parent=1 // loop_body
      %s43 = ssub.s32 %s38, 1
      %s44 = ssub.s32 %s38, 2
      %s45 = sadd.s32 %s38, 1
      %s47 = sadd.s32 %s46, 1
      %p50 = scmp.eq.s32.totalorder %s38, 1
      %p51 = scmp.ne.s32.totalorder %s46, %s48
      %p52 = scmp.eq.s32.totalorder %s38, 0
      %p53 = por %p51, %p52
      %p54 = scmp.ne.s32.totalorder %s46, %s48
      %p55 = scmp.eq.s32.totalorder %s43, 1
      %p56 = por %p54, %p55
      %p57 = scmp.ne.s32.totalorder %s48, %s49
      %p58 = scmp.eq.s32.totalorder %s43, 0
      %p59 = por %p57, %p58
      %p60 = scmp.ne.s32.totalorder %s48, %s49
      %p61 = scmp.eq.s32.totalorder %s44, 1
      %p62 = por %p60, %p61
      %p64 = scmp.ne.s32.totalorder %s49, %s63
      %p65 = scmp.eq.s32.totalorder %s44, 0
      %p66 = por %p64, %p65
      %s68 = sadd.s32 %s67, 1
      %p71 = scmp.eq.s32.totalorder %s38, 1
      %p72 = scmp.ne.s32.totalorder %s67, %s69
      %p73 = scmp.eq.s32.totalorder %s38, 0
      %p74 = por %p72, %p73
      %p75 = scmp.ne.s32.totalorder %s67, %s69
      %p76 = scmp.eq.s32.totalorder %s43, 1
      %p77 = por %p75, %p76
      %p78 = scmp.ne.s32.totalorder %s69, %s70
      %p79 = scmp.eq.s32.totalorder %s43, 0
      %p80 = por %p78, %p79
      %p81 = scmp.ne.s32.totalorder %s69, %s70
      %p82 = scmp.eq.s32.totalorder %s44, 1
      %p83 = por %p81, %p82
      %p85 = scmp.ne.s32.totalorder %s70, %s84
      %p86 = scmp.eq.s32.totalorder %s44, 0
      %p87 = por %p85, %p86
      %s89 = sadd.s32 %s88, 1
      %p92 = scmp.eq.s32.totalorder %s38, 1
      %p93 = scmp.ne.s32.totalorder %s88, %s90
      %p94 = scmp.eq.s32.totalorder %s38, 0
      %p95 = por %p93, %p94
      %p96 = scmp.ne.s32.totalorder %s88, %s90
      %p97 = scmp.eq.s32.totalorder %s43, 1
      %p98 = por %p96, %p97
      %p99 = scmp.ne.s32.totalorder %s90, %s91
      %p100 = scmp.eq.s32.totalorder %s43, 0
      %p101 = por %p99, %p100
      %p102 = scmp.ne.s32.totalorder %s90, %s91
      %p103 = scmp.eq.s32.totalorder %s44, 1
      %p104 = por %p102, %p103
      %p106 = scmp.ne.s32.totalorder %s91, %s105
      %p107 = scmp.eq.s32.totalorder %s44, 0
      %p108 = por %p106, %p107
      %s110 = sadd.s32 %s109, 1
      %p113 = scmp.eq.s32.totalorder %s38, 1
      %p114 = scmp.ne.s32.totalorder %s109, %s111
      %p115 = scmp.eq.s32.totalorder %s38, 0
      %p116 = por %p114, %p115
      %p117 = scmp.ne.s32.totalorder %s109, %s111
      %p118 = scmp.eq.s32.totalorder %s43, 1
      %p119 = por %p117, %p118
      %p120 = scmp.ne.s32.totalorder %s111, %s112
      %p121 = scmp.eq.s32.totalorder %s43, 0
      %p122 = por %p120, %p121
      %p123 = scmp.ne.s32.totalorder %s111, %s112
      %p124 = scmp.eq.s32.totalorder %s44, 1
      %p125 = por %p123, %p124
      %p127 = scmp.ne.s32.totalorder %s112, %s126
      %p128 = scmp.eq.s32.totalorder %s44, 0
      %p129 = por %p127, %p128
      %s131 = sadd.s32 %s130, 1
      %p134 = scmp.eq.s32.totalorder %s38, 1
      %p135 = scmp.ne.s32.totalorder %s130, %s132
      %p136 = scmp.eq.s32.totalorder %s38, 0
      %p137 = por %p135, %p136
      %p138 = scmp.ne.s32.totalorder %s130, %s132
      %p139 = scmp.eq.s32.totalorder %s43, 1
      %p140 = por %p138, %p139
      %p141 = scmp.ne.s32.totalorder %s132, %s133
      %p142 = scmp.eq.s32.totalorder %s43, 0
      %p143 = por %p141, %p142
      %p144 = scmp.ne.s32.totalorder %s132, %s133
      %p145 = scmp.eq.s32.totalorder %s44, 1
      %p146 = por %p144, %p145
      %p148 = scmp.ne.s32.totalorder %s133, %s147
      %p149 = scmp.eq.s32.totalorder %s44, 0
      %p150 = por %p148, %p149
      %s152 = sadd.s32 %s151, 1
      %p155 = scmp.eq.s32.totalorder %s38, 1
      %p156 = scmp.ne.s32.totalorder %s151, %s153
      %p157 = scmp.eq.s32.totalorder %s38, 0
      %p158 = por %p156, %p157
      %p159 = scmp.ne.s32.totalorder %s151, %s153
      %p160 = scmp.eq.s32.totalorder %s43, 1
      %p161 = por %p159, %p160
      %p162 = scmp.ne.s32.totalorder %s153, %s154
      %p163 = scmp.eq.s32.totalorder %s43, 0
      %p164 = por %p162, %p163
      %p165 = scmp.ne.s32.totalorder %s153, %s154
      %p166 = scmp.eq.s32.totalorder %s44, 1
      %p167 = por %p165, %p166
      %p169 = scmp.ne.s32.totalorder %s154, %s168
      %p170 = scmp.eq.s32.totalorder %s44, 0
      %p171 = por %p169, %p170
      %s173 = sadd.s32 %s172, 1
      %p176 = scmp.eq.s32.totalorder %s38, 1
      %p177 = scmp.ne.s32.totalorder %s172, %s174
      %p178 = scmp.eq.s32.totalorder %s38, 0
      %p179 = por %p177, %p178
      %p180 = scmp.ne.s32.totalorder %s172, %s174
      %p181 = scmp.eq.s32.totalorder %s43, 1
      %p182 = por %p180, %p181
      %p183 = scmp.ne.s32.totalorder %s174, %s175
      %p184 = scmp.eq.s32.totalorder %s43, 0
      %p185 = por %p183, %p184
      %p186 = scmp.ne.s32.totalorder %s174, %s175
      %p187 = scmp.eq.s32.totalorder %s44, 1
      %p188 = por %p186, %p187
      %p190 = scmp.ne.s32.totalorder %s175, %s189
      %p191 = scmp.eq.s32.totalorder %s44, 0
      %p192 = por %p190, %p191
      %s194 = sadd.s32 %s193, 1
      %p197 = scmp.eq.s32.totalorder %s38, 1
      %p198 = scmp.ne.s32.totalorder %s193, %s195
      %p199 = scmp.eq.s32.totalorder %s38, 0
      %p200 = por %p198, %p199
      %p201 = scmp.ne.s32.totalorder %s193, %s195
      %p202 = scmp.eq.s32.totalorder %s43, 1
      %p203 = por %p201, %p202
      %p204 = scmp.ne.s32.totalorder %s195, %s196
      %p205 = scmp.eq.s32.totalorder %s43, 0
      %p206 = por %p204, %p205
      %p207 = scmp.ne.s32.totalorder %s195, %s196
      %p208 = scmp.eq.s32.totalorder %s44, 1
      %p209 = por %p207, %p208
      %p211 = scmp.ne.s32.totalorder %s196, %s210
      %p212 = scmp.eq.s32.totalorder %s44, 0
      %p213 = por %p211, %p212
      %s215 = sadd.s32 %s214, 1
      %p218 = scmp.eq.s32.totalorder %s38, 1
      %p219 = scmp.ne.s32.totalorder %s214, %s216
      %p220 = scmp.eq.s32.totalorder %s38, 0
      %p221 = por %p219, %p220
      %p222 = scmp.ne.s32.totalorder %s214, %s216
      %p223 = scmp.eq.s32.totalorder %s43, 1
      %p224 = por %p222, %p223
      %p225 = scmp.ne.s32.totalorder %s216, %s217
      %p226 = scmp.eq.s32.totalorder %s43, 0
      %p227 = por %p225, %p226
      %p228 = scmp.ne.s32.totalorder %s216, %s217
      %p229 = scmp.eq.s32.totalorder %s44, 1
      %p230 = por %p228, %p229
      %p232 = scmp.ne.s32.totalorder %s217, %s231
      %p233 = scmp.eq.s32.totalorder %s44, 0
      %p234 = por %p232, %p233
      %s236 = sadd.s32 %s235, 1
      %p239 = scmp.eq.s32.totalorder %s38, 1
      %p240 = scmp.ne.s32.totalorder %s235, %s237
      %p241 = scmp.eq.s32.totalorder %s38, 0
      %p242 = por %p240, %p241
      %p243 = scmp.ne.s32.totalorder %s235, %s237
      %p244 = scmp.eq.s32.totalorder %s43, 1
      %p245 = por %p243, %p244
      %p246 = scmp.ne.s32.totalorder %s237, %s238
      %p247 = scmp.eq.s32.totalorder %s43, 0
      %p248 = por %p246, %p247
      %p249 = scmp.ne.s32.totalorder %s237, %s238
      %p250 = scmp.eq.s32.totalorder %s44, 1
      %p251 = por %p249, %p250
      %p253 = scmp.ne.s32.totalorder %s238, %s252
      %p254 = scmp.eq.s32.totalorder %s44, 0
      %p255 = por %p253, %p254
      %s257 = sadd.s32 %s256, 1
      %p260 = scmp.eq.s32.totalorder %s38, 1
      %p261 = scmp.ne.s32.totalorder %s256, %s258
      %p262 = scmp.eq.s32.totalorder %s38, 0
      %p263 = por %p261, %p262
      %p264 = scmp.ne.s32.totalorder %s256, %s258
      %p265 = scmp.eq.s32.totalorder %s43, 1
      %p266 = por %p264, %p265
      %p267 = scmp.ne.s32.totalorder %s258, %s259
      %p268 = scmp.eq.s32.totalorder %s43, 0
      %p269 = por %p267, %p268
      %p270 = scmp.ne.s32.totalorder %s258, %s259
      %p271 = scmp.eq.s32.totalorder %s44, 1
      %p272 = por %p270, %p271
      %p274 = scmp.ne.s32.totalorder %s259, %s273
      %p275 = scmp.eq.s32.totalorder %s44, 0
      %p276 = por %p274, %p275
      %s278 = sadd.s32 %s277, 1
      %p281 = scmp.eq.s32.totalorder %s38, 1
      %p282 = scmp.ne.s32.totalorder %s277, %s279
      %p283 = scmp.eq.s32.totalorder %s38, 0
      %p284 = por %p282, %p283
      %p285 = scmp.ne.s32.totalorder %s277, %s279
      %p286 = scmp.eq.s32.totalorder %s43, 1
      %p287 = por %p285, %p286
      %p288 = scmp.ne.s32.totalorder %s279, %s280
      %p289 = scmp.eq.s32.totalorder %s43, 0
      %p290 = por %p288, %p289
      %p291 = scmp.ne.s32.totalorder %s279, %s280
      %p292 = scmp.eq.s32.totalorder %s44, 1
      %p293 = por %p291, %p292
      %p295 = scmp.ne.s32.totalorder %s280, %s294
      %p296 = scmp.eq.s32.totalorder %s44, 0
      %p297 = por %p295, %p296
      %s299 = sadd.s32 %s298, 1
      %p302 = scmp.eq.s32.totalorder %s38, 1
      %p303 = scmp.ne.s32.totalorder %s298, %s300
      %p304 = scmp.eq.s32.totalorder %s38, 0
      %p305 = por %p303, %p304
      %p306 = scmp.ne.s32.totalorder %s298, %s300
      %p307 = scmp.eq.s32.totalorder %s43, 1
      %p308 = por %p306, %p307
      %p309 = scmp.ne.s32.totalorder %s300, %s301
      %p310 = scmp.eq.s32.totalorder %s43, 0
      %p311 = por %p309, %p310
      %p312 = scmp.ne.s32.totalorder %s300, %s301
      %p313 = scmp.eq.s32.totalorder %s44, 1
      %p314 = por %p312, %p313
      %p316 = scmp.ne.s32.totalorder %s301, %s315
      %p317 = scmp.eq.s32.totalorder %s44, 0
      %p318 = por %p316, %p317
      %s319 = ssub.s32 %s38, %s45
      %p320 = scmp.eq.s32.totalorder %s319, 0
      %s322 = sadd.s32 %s321, 1
      %s323 = scalar_select %p320, %s321, %s322
      %p326 = pneg %p320
      %p327 = scmp.eq.s32.totalorder %s38, 1
      %p328 = por %p326, %p327
      %p329 = scmp.ne.s32.totalorder %s321, %s324
      %p330 = scmp.eq.s32.totalorder %s38, 0
      %p331 = por %p329, %p330
      %p332 = scmp.ne.s32.totalorder %s321, %s324
      %p333 = scmp.eq.s32.totalorder %s43, 1
      %p334 = por %p332, %p333
      %p335 = scmp.ne.s32.totalorder %s324, %s325
      %p336 = scmp.eq.s32.totalorder %s43, 0
      %p337 = por %p335, %p336
      %p338 = scmp.ne.s32.totalorder %s324, %s325
      %p339 = scmp.eq.s32.totalorder %s44, 1
      %p340 = por %p338, %p339
      %p342 = scmp.ne.s32.totalorder %s325, %s341
      %p343 = scmp.eq.s32.totalorder %s44, 0
      %p344 = por %p342, %p343
      %s345 = ssub.s32 %s38, %s45
      %p346 = scmp.eq.s32.totalorder %s345, 0
      %s348 = sadd.s32 %s347, 1
      %s349 = scalar_select %p346, %s347, %s348
      %p352 = pneg %p346
      %p353 = scmp.eq.s32.totalorder %s38, 1
      %p354 = por %p352, %p353
      %p355 = scmp.ne.s32.totalorder %s347, %s350
      %p356 = scmp.eq.s32.totalorder %s38, 0
      %p357 = por %p355, %p356
      %p358 = scmp.ne.s32.totalorder %s347, %s350
      %p359 = scmp.eq.s32.totalorder %s43, 1
      %p360 = por %p358, %p359
      %p361 = scmp.ne.s32.totalorder %s350, %s351
      %p362 = scmp.eq.s32.totalorder %s43, 0
      %p363 = por %p361, %p362
      %p364 = scmp.ne.s32.totalorder %s350, %s351
      %p365 = scmp.eq.s32.totalorder %s44, 1
      %p366 = por %p364, %p365
      %p368 = scmp.ne.s32.totalorder %s351, %s367
      %p369 = scmp.eq.s32.totalorder %s44, 0
      %p370 = por %p368, %p369
      %s371 = ssub.s32 %s38, %s45
      %p372 = scmp.eq.s32.totalorder %s371, 0
      %s374 = sadd.s32 %s373, 1
      %s375 = scalar_select %p372, %s373, %s374
      %p378 = pneg %p372
      %p379 = scmp.eq.s32.totalorder %s38, 1
      %p380 = por %p378, %p379
      %p381 = scmp.ne.s32.totalorder %s373, %s376
      %p382 = scmp.eq.s32.totalorder %s38, 0
      %p383 = por %p381, %p382
      %p384 = scmp.ne.s32.totalorder %s373, %s376
      %p385 = scmp.eq.s32.totalorder %s43, 1
      %p386 = por %p384, %p385
      %p387 = scmp.ne.s32.totalorder %s376, %s377
      %p388 = scmp.eq.s32.totalorder %s43, 0
      %p389 = por %p387, %p388
      %p390 = scmp.ne.s32.totalorder %s376, %s377
      %p391 = scmp.eq.s32.totalorder %s44, 1
      %p392 = por %p390, %p391
      %p394 = scmp.ne.s32.totalorder %s377, %s393
      %p395 = scmp.eq.s32.totalorder %s44, 0
      %p396 = por %p394, %p395
      %s397 = ssub.s32 %s38, %s45
      %p398 = scmp.eq.s32.totalorder %s397, 0
      %s400 = sadd.s32 %s399, 1
      %s401 = scalar_select %p398, %s399, %s400
      %p404 = pneg %p398
      %p405 = scmp.eq.s32.totalorder %s38, 1
      %p406 = por %p404, %p405
      %p407 = scmp.ne.s32.totalorder %s399, %s402
      %p408 = scmp.eq.s32.totalorder %s38, 0
      %p409 = por %p407, %p408
      %p410 = scmp.ne.s32.totalorder %s399, %s402
      %p411 = scmp.eq.s32.totalorder %s43, 1
      %p412 = por %p410, %p411
      %p413 = scmp.ne.s32.totalorder %s402, %s403
      %p414 = scmp.eq.s32.totalorder %s43, 0
      %p415 = por %p413, %p414
      %p416 = scmp.ne.s32.totalorder %s402, %s403
      %p417 = scmp.eq.s32.totalorder %s44, 1
      %p418 = por %p416, %p417
      %p420 = scmp.ne.s32.totalorder %s403, %s419
      %p421 = scmp.eq.s32.totalorder %s44, 0
      %p422 = por %p420, %p421
      %p423 = scmp.le.s32.totalorder 1, %s38
      %p424 = scmp.lt.s32.totalorder %s38, 3
      %p425 = pnand %p423, %p424
      %p426 = pneg %p425
      // Predicated region
      $region9: #{tpu_custom_call.1} parent=5 // pred_check
        _
      $region10: #{tpu_custom_call.1} parent=5 // pred_check_branch
        %428 = sbr.rel (%p425) target = $region12
      $region11: #{tpu_custom_call.1} parent=5 // pred_region
        %s429 = ssub.s32 %s38, 1
        // Predicated region
        $region13: #{tpu_custom_call.1} parent=11 // pred_check
          %p430 = pneg %p59
        $region14: #{tpu_custom_call.1} parent=11 // pred_check_branch
          %432 = sbr.rel (%p430) target = $region16
        $region15: #{tpu_custom_call.1} parent=11 // pred_region
          %s434 = ssub.s32 32, 32
          %435 = vsyncadd [#allocation3], %s434
          %s437 = sshll.u32 [#allocation2], 4
          %s438 = int_to_ptr.vmem [resolvable:$true] %s437
          %440 = dma.hbm_to_vmem [thread:$0]  %s0, 32, %s438, [#allocation3]
        $region16: #{tpu_custom_call.1} parent=11 // pred_fallthru
          _
        // Predicated region
        $region17: #{tpu_custom_call.1} parent=11 // pred_check
          %p441 = pneg %p80
        $region18: #{tpu_custom_call.1} parent=11 // pred_check_branch
          %443 = sbr.rel (%p441) target = $region20
        $region19: #{tpu_custom_call.1} parent=11 // pred_region
          %s445 = ssub.s32 256, 256
          %446 = vsyncadd [#allocation6], %s445
          %s447 = sshll.u32 [#allocation5], 4
          %s448 = int_to_ptr.vmem [resolvable:$true] %s447
          %453 = dma.hbm_to_vmem [thread:$0]  %s1, 256, %s448, [#allocation6], 64, 64, 4
        $region20: #{tpu_custom_call.1} parent=11 // pred_fallthru
          _
        // Predicated region
        $region21: #{tpu_custom_call.1} parent=11 // pred_check
          %p454 = pneg %p101
        $region22: #{tpu_custom_call.1} parent=11 // pred_check_branch
          %456 = sbr.rel (%p454) target = $region24
        $region23: #{tpu_custom_call.1} parent=11 // pred_region
          %s458 = ssub.s32 16, 16
          %459 = vsyncadd [#allocation6], %s458
          %s461 = sshll.u32 [#allocation7], 4
          %s462 = int_to_ptr.vmem [resolvable:$true] %s461
          %464 = dma.hbm_to_vmem [thread:$0]  %s2, 16, %s462, [#allocation6]
        $region24: #{tpu_custom_call.1} parent=11 // pred_fallthru
          _
        // Predicated region
        $region25: #{tpu_custom_call.1} parent=11 // pred_check
          %p465 = pneg %p122
        $region26: #{tpu_custom_call.1} parent=11 // pred_check_branch
          %467 = sbr.rel (%p465) target = $region28
        $region27: #{tpu_custom_call.1} parent=11 // pred_region
          %s469 = ssub.s32 16, 16
          %470 = vsyncadd [#allocation9], %s469
          %s472 = sshll.u32 [#allocation8], 4
          %s473 = int_to_ptr.vmem [resolvable:$true] %s472
          %475 = dma.hbm_to_vmem [thread:$0]  %s3, 16, %s473, [#allocation9]
        $region28: #{tpu_custom_call.1} parent=11 // pred_fallthru
          _
        // Predicated region
        $region29: #{tpu_custom_call.1} parent=11 // pred_check
          %p476 = pneg %p143
        $region30: #{tpu_custom_call.1} parent=11 // pred_check_branch
          %478 = sbr.rel (%p476) target = $region32
        $region31: #{tpu_custom_call.1} parent=11 // pred_region
          %s480 = ssub.s32 2048, 2048
          %481 = vsyncadd [#allocation9], %s480
          %s482 = sshll.u32 [#allocation10], 4
          %s483 = int_to_ptr.vmem [resolvable:$true] %s482
          %488 = dma.hbm_to_vmem [thread:$0]  %s4, 2048, %s483, [#allocation9], 128, 128, 8
        $region32: #{tpu_custom_call.1} parent=11 // pred_fallthru
          _
        // Predicated region
        $region33: #{tpu_custom_call.1} parent=11 // pred_check
          %p489 = pneg %p164
        $region34: #{tpu_custom_call.1} parent=11 // pred_check_branch
          %491 = sbr.rel (%p489) target = $region36
        $region35: #{tpu_custom_call.1} parent=11 // pred_region
          %s493 = ssub.s32 32, 32
          %494 = vsyncadd [#allocation12], %s493
          %s496 = sshll.u32 [#allocation11], 4
          %s497 = int_to_ptr.vmem [resolvable:$true] %s496
          %499 = dma.hbm_to_vmem [thread:$0]  %s5, 32, %s497, [#allocation12]
        $region36: #{tpu_custom_call.1} parent=11 // pred_fallthru
          _
        // Predicated region
        $region37: #{tpu_custom_call.1} parent=11 // pred_check
          %p500 = pneg %p185
        $region38: #{tpu_custom_call.1} parent=11 // pred_check_branch
          %502 = sbr.rel (%p500) target = $region40
        $region39: #{tpu_custom_call.1} parent=11 // pred_region
          %s504 = ssub.s32 32, 32
          %505 = vsyncadd [#allocation12], %s504
          %s507 = sshll.u32 [#allocation13], 4
          %s508 = int_to_ptr.vmem [resolvable:$true] %s507
          %510 = dma.hbm_to_vmem [thread:$0]  %s6, 32, %s508, [#allocation12]
        $region40: #{tpu_custom_call.1} parent=11 // pred_fallthru
          _
        // Predicated region
        $region41: #{tpu_custom_call.1} parent=11 // pred_check
          %p511 = pneg %p206
        $region42: #{tpu_custom_call.1} parent=11 // pred_check_branch
          %513 = sbr.rel (%p511) target = $region44
        $region43: #{tpu_custom_call.1} parent=11 // pred_region
          %s515 = ssub.s32 8192, 8192
          %516 = vsyncadd [#allocation15], %s515
          %s517 = sshll.u32 [#allocation14], 4
          %s518 = int_to_ptr.vmem [resolvable:$true] %s517
          %523 = dma.hbm_to_vmem [thread:$0]  %s7, 8192, %s518, [#allocation15], 256, 256, 16
        $region44: #{tpu_custom_call.1} parent=11 // pred_fallthru
          _
        // Predicated region
        $region45: #{tpu_custom_call.1} parent=11 // pred_check
          %p524 = pneg %p227
        $region46: #{tpu_custom_call.1} parent=11 // pred_check_branch
          %526 = sbr.rel (%p524) target = $region48
        $region47: #{tpu_custom_call.1} parent=11 // pred_region
          %s528 = ssub.s32 64, 64
          %529 = vsyncadd [#allocation15], %s528
          %s531 = sshll.u32 [#allocation16], 4
          %s532 = int_to_ptr.vmem [resolvable:$true] %s531
          %534 = dma.hbm_to_vmem [thread:$0]  %s8, 64, %s532, [#allocation15]
        $region48: #{tpu_custom_call.1} parent=11 // pred_fallthru
          _
        // Predicated region
        $region49: #{tpu_custom_call.1} parent=11 // pred_check
          %p535 = pneg %p248
        $region50: #{tpu_custom_call.1} parent=11 // pred_check_branch
          %537 = sbr.rel (%p535) target = $region52
        $region51: #{tpu_custom_call.1} parent=11 // pred_region
          %s539 = ssub.s32 64, 64
          %540 = vsyncadd [#allocation18], %s539
          %s542 = sshll.u32 [#allocation17], 4
          %s543 = int_to_ptr.vmem [resolvable:$true] %s542
          %545 = dma.hbm_to_vmem [thread:$0]  %s9, 64, %s543, [#allocation18]
        $region52: #{tpu_custom_call.1} parent=11 // pred_fallthru
          _
        // Predicated region
        $region53: #{tpu_custom_call.1} parent=11 // pred_check
          %p546 = pneg %p269
        $region54: #{tpu_custom_call.1} parent=11 // pred_check_branch
          %548 = sbr.rel (%p546) target = $region56
        $region55: #{tpu_custom_call.1} parent=11 // pred_region
          %s550 = ssub.s32 32768, 32768
          %551 = vsyncadd [#allocation18], %s550
          %s552 = sshll.u32 [#allocation19], 4
          %s553 = int_to_ptr.vmem [resolvable:$true] %s552
          %558 = dma.hbm_to_vmem [thread:$0]  %s10, 32768, %s553, [#allocation18], 512, 512, 32
        $region56: #{tpu_custom_call.1} parent=11 // pred_fallthru
          _
        // Predicated region
        $region57: #{tpu_custom_call.1} parent=11 // pred_check
          %p559 = pneg %p290
        $region58: #{tpu_custom_call.1} parent=11 // pred_check_branch
          %561 = sbr.rel (%p559) target = $region60
        $region59: #{tpu_custom_call.1} parent=11 // pred_region
          %s563 = ssub.s32 128, 128
          %564 = vsyncadd [#allocation21], %s563
          %s566 = sshll.u32 [#allocation20], 4
          %s567 = int_to_ptr.vmem [resolvable:$true] %s566
          %569 = dma.hbm_to_vmem [thread:$0]  %s11, 128, %s567, [#allocation21]
        $region60: #{tpu_custom_call.1} parent=11 // pred_fallthru
          _
        // Predicated region
        $region61: #{tpu_custom_call.1} parent=11 // pred_check
          %p570 = pneg %p311
        $region62: #{tpu_custom_call.1} parent=11 // pred_check_branch
          %572 = sbr.rel (%p570) target = $region64
        $region63: #{tpu_custom_call.1} parent=11 // pred_region
          %s574 = ssub.s32 128, 128
          %575 = vsyncadd [#allocation21], %s574
          %s577 = sshll.u32 [#allocation22], 4
          %s578 = int_to_ptr.vmem [resolvable:$true] %s577
          %580 = dma.hbm_to_vmem [thread:$0]  %s12, 128, %s578, [#allocation21]
        $region64: #{tpu_custom_call.1} parent=11 // pred_fallthru
          _
      $region12: #{tpu_custom_call.1} parent=5 // pred_fallthru
        _
      %p581 = scmp.lt.s32.totalorder %s38, 2
      // Predicated region
      $region65: #{tpu_custom_call.1} parent=5 // pred_check
        %p582 = pneg %p581
      $region66: #{tpu_custom_call.1} parent=5 // pred_check_branch
        %584 = sbr.rel (%p582) target = $region68
      $region67: #{tpu_custom_call.1} parent=5 // pred_region
        // Predicated region
        $region69: #{tpu_custom_call.1} parent=67 // pred_check
          %p585 = pneg %p331
        $region70: #{tpu_custom_call.1} parent=67 // pred_check_branch
          %587 = sbr.rel (%p585) target = $region72
        $region71: #{tpu_custom_call.1} parent=67 // pred_region
          %s588 = sand.u32 %s38, 1
          %s589 = scalar_lea.sflag [#allocation24], %s588
          %s590 = sand.u32 %s321, 1
          %s591 = smul.addr %s590, 6144
          %s592 = scalar_lea.vmem [#allocation23], %s591
          %s593 = smul.u32 12, %s38
          %s595 = ssub.s32 98304, 98304
          %596 = vsyncadd %s589, %s595
          %s597 = smul.addr %s593, 64
          %s598 = scalar_lea.hbm %s13, %s597
          %s599 = sshll.u32 %s592, 4
          %s600 = int_to_ptr.vmem [resolvable:$true] %s599
          %605 = dma.hbm_to_vmem [thread:$0]  %s598, 98304, %s600, %s589, 1536, 768, 48
        $region72: #{tpu_custom_call.1} parent=67 // pred_fallthru
          _
        // Predicated region
        $region73: #{tpu_custom_call.1} parent=67 // pred_check
          %p606 = pneg %p357
        $region74: #{tpu_custom_call.1} parent=67 // pred_check_branch
          %608 = sbr.rel (%p606) target = $region76
        $region75: #{tpu_custom_call.1} parent=67 // pred_region
          %s609 = sand.u32 %s38, 1
          %s610 = scalar_lea.sflag [#allocation24], %s609
          %s611 = sand.u32 %s347, 1
          %s612 = smul.addr %s611, 12
          %s613 = scalar_lea.vmem [#allocation25], %s612
          %s614 = smul.u32 12, %s38
          %s616 = ssub.s32 192, 192
          %617 = vsyncadd %s610, %s616
          %s618 = smul.addr %s614, 16
          %s619 = scalar_lea.hbm %s14, %s618
          %s621 = sshll.u32 %s613, 4
          %s622 = int_to_ptr.vmem [resolvable:$true] %s621
          %624 = dma.hbm_to_vmem [thread:$0]  %s619, 192, %s622, %s610
        $region76: #{tpu_custom_call.1} parent=67 // pred_fallthru
          _
        // Predicated region
        $region77: #{tpu_custom_call.1} parent=67 // pred_check
          %p625 = pneg %p383
        $region78: #{tpu_custom_call.1} parent=67 // pred_check_branch
          %627 = sbr.rel (%p625) target = $region80
        $region79: #{tpu_custom_call.1} parent=67 // pred_region
          %s628 = sand.u32 %s373, 1
          %s629 = scalar_lea.sflag [#allocation27], %s628
          %s630 = sand.u32 %s373, 1
          %s631 = smul.addr %s630, 12
          %s632 = scalar_lea.vmem [#allocation26], %s631
          %s633 = smul.u32 12, %s38
          %s635 = ssub.s32 192, 192
          %636 = vsyncadd %s629, %s635
          %s637 = smul.addr %s633, 16
          %s638 = scalar_lea.hbm %s15, %s637
          %s640 = sshll.u32 %s632, 4
          %s641 = int_to_ptr.vmem [resolvable:$true] %s640
          %643 = dma.hbm_to_vmem [thread:$0]  %s638, 192, %s641, %s629
        $region80: #{tpu_custom_call.1} parent=67 // pred_fallthru
          _
      $region68: #{tpu_custom_call.1} parent=5 // pred_fallthru
        _
      %p644 = scmp.le.s32.totalorder 1, %s38
      %p645 = scmp.lt.s32.totalorder %s38, 3
      %p646 = pnand %p644, %p645
      %p647 = pneg %p646
      // Predicated region
      $region81: #{tpu_custom_call.1} parent=5 // pred_check
        _
      $region82: #{tpu_custom_call.1} parent=5 // pred_check_branch
        %649 = sbr.rel (%p646) target = $region84
      $region83: #{tpu_custom_call.1} parent=5 // pred_region
        %s650 = ssub.s32 %s38, 1
        // Predicated region
        $region85: #{tpu_custom_call.1} parent=83 // pred_check
          %p651 = pneg %p59
        $region86: #{tpu_custom_call.1} parent=83 // pred_check_branch
          %653 = sbr.rel (%p651) target = $region88
        $region87: #{tpu_custom_call.1} parent=83 // pred_region
          %654 = dma.done [#allocation3], 32
        $region88: #{tpu_custom_call.1} parent=83 // pred_fallthru
          _
        // Predicated region
        $region89: #{tpu_custom_call.1} parent=83 // pred_check
          %p655 = pneg %p80
        $region90: #{tpu_custom_call.1} parent=83 // pred_check_branch
          %657 = sbr.rel (%p655) target = $region92
        $region91: #{tpu_custom_call.1} parent=83 // pred_region
          %658 = dma.done [#allocation6], 256
        $region92: #{tpu_custom_call.1} parent=83 // pred_fallthru
          _
        // Predicated region
        $region93: #{tpu_custom_call.1} parent=83 // pred_check
          %p659 = pneg %p101
        $region94: #{tpu_custom_call.1} parent=83 // pred_check_branch
          %661 = sbr.rel (%p659) target = $region96
        $region95: #{tpu_custom_call.1} parent=83 // pred_region
          %662 = dma.done [#allocation6], 16
        $region96: #{tpu_custom_call.1} parent=83 // pred_fallthru
          _
        // Predicated region
        $region97: #{tpu_custom_call.1} parent=83 // pred_check
          %p663 = pneg %p122
        $region98: #{tpu_custom_call.1} parent=83 // pred_check_branch
          %665 = sbr.rel (%p663) target = $region100
        $region99: #{tpu_custom_call.1} parent=83 // pred_region
          %666 = dma.done [#allocation9], 16
        $region100: #{tpu_custom_call.1} parent=83 // pred_fallthru
          _
        // Predicated region
        $region101: #{tpu_custom_call.1} parent=83 // pred_check
          %p667 = pneg %p143
        $region102: #{tpu_custom_call.1} parent=83 // pred_check_branch
          %669 = sbr.rel (%p667) target = $region104
        $region103: #{tpu_custom_call.1} parent=83 // pred_region
          %670 = dma.done [#allocation9], 2048
        $region104: #{tpu_custom_call.1} parent=83 // pred_fallthru
          _
        // Predicated region
        $region105: #{tpu_custom_call.1} parent=83 // pred_check
          %p671 = pneg %p164
        $region106: #{tpu_custom_call.1} parent=83 // pred_check_branch
          %673 = sbr.rel (%p671) target = $region108
        $region107: #{tpu_custom_call.1} parent=83 // pred_region
          %674 = dma.done [#allocation12], 32
        $region108: #{tpu_custom_call.1} parent=83 // pred_fallthru
          _
        // Predicated region
        $region109: #{tpu_custom_call.1} parent=83 // pred_check
          %p675 = pneg %p185
        $region110: #{tpu_custom_call.1} parent=83 // pred_check_branch
          %677 = sbr.rel (%p675) target = $region112
        $region111: #{tpu_custom_call.1} parent=83 // pred_region
          %678 = dma.done [#allocation12], 32
        $region112: #{tpu_custom_call.1} parent=83 // pred_fallthru
          _
        // Predicated region
        $region113: #{tpu_custom_call.1} parent=83 // pred_check
          %p679 = pneg %p206
        $region114: #{tpu_custom_call.1} parent=83 // pred_check_branch
          %681 = sbr.rel (%p679) target = $region116
        $region115: #{tpu_custom_call.1} parent=83 // pred_region
          %682 = dma.done [#allocation15], 8192
        $region116: #{tpu_custom_call.1} parent=83 // pred_fallthru
          _
        // Predicated region
        $region117: #{tpu_custom_call.1} parent=83 // pred_check
          %p683 = pneg %p227
        $region118: #{tpu_custom_call.1} parent=83 // pred_check_branch
          %685 = sbr.rel (%p683) target = $region120
        $region119: #{tpu_custom_call.1} parent=83 // pred_region
          %686 = dma.done [#allocation15], 64
        $region120: #{tpu_custom_call.1} parent=83 // pred_fallthru
          _
        // Predicated region
        $region121: #{tpu_custom_call.1} parent=83 // pred_check
          %p687 = pneg %p248
        $region122: #{tpu_custom_call.1} parent=83 // pred_check_branch
          %689 = sbr.rel (%p687) target = $region124
        $region123: #{tpu_custom_call.1} parent=83 // pred_region
          %690 = dma.done [#allocation18], 64
        $region124: #{tpu_custom_call.1} parent=83 // pred_fallthru
          _
        // Predicated region
        $region125: #{tpu_custom_call.1} parent=83 // pred_check
          %p691 = pneg %p269
        $region126: #{tpu_custom_call.1} parent=83 // pred_check_branch
          %693 = sbr.rel (%p691) target = $region128
        $region127: #{tpu_custom_call.1} parent=83 // pred_region
          %694 = dma.done [#allocation18], 32768
        $region128: #{tpu_custom_call.1} parent=83 // pred_fallthru
          _
        // Predicated region
        $region129: #{tpu_custom_call.1} parent=83 // pred_check
          %p695 = pneg %p290
        $region130: #{tpu_custom_call.1} parent=83 // pred_check_branch
          %697 = sbr.rel (%p695) target = $region132
        $region131: #{tpu_custom_call.1} parent=83 // pred_region
          %698 = dma.done [#allocation21], 128
        $region132: #{tpu_custom_call.1} parent=83 // pred_fallthru
          _
        // Predicated region
        $region133: #{tpu_custom_call.1} parent=83 // pred_check
          %p699 = pneg %p311
        $region134: #{tpu_custom_call.1} parent=83 // pred_check_branch
          %701 = sbr.rel (%p699) target = $region136
        $region135: #{tpu_custom_call.1} parent=83 // pred_region
          %702 = dma.done [#allocation21], 128
        $region136: #{tpu_custom_call.1} parent=83 // pred_fallthru
          _
        %s703 = sand.u32 %s43, 1
        %s704 = scalar_lea.sflag [#allocation24], %s703
        %s705 = sand.u32 %s324, 1
        %s706 = smul.addr %s705, 6144
        %s707 = scalar_lea.vmem [#allocation23], %s706
        // Predicated region
        $region137: #{tpu_custom_call.1} parent=83 // pred_check
          %p708 = pneg %p337
        $region138: #{tpu_custom_call.1} parent=83 // pred_check_branch
          %710 = sbr.rel (%p708) target = $region140
        $region139: #{tpu_custom_call.1} parent=83 // pred_region
          %711 = dma.done %s704, 98304
        $region140: #{tpu_custom_call.1} parent=83 // pred_fallthru
          _
        %s712 = sand.u32 %s43, 1
        %s713 = scalar_lea.sflag [#allocation24], %s712
        %s714 = sand.u32 %s350, 1
        %s715 = smul.addr %s714, 12
        %s716 = scalar_lea.vmem [#allocation25], %s715
        // Predicated region
        $region141: #{tpu_custom_call.1} parent=83 // pred_check
          %p717 = pneg %p363
        $region142: #{tpu_custom_call.1} parent=83 // pred_check_branch
          %719 = sbr.rel (%p717) target = $region144
        $region143: #{tpu_custom_call.1} parent=83 // pred_region
          %720 = dma.done %s713, 192
        $region144: #{tpu_custom_call.1} parent=83 // pred_fallthru
          _
        %s721 = sand.u32 %s376, 1
        %s722 = scalar_lea.sflag [#allocation27], %s721
        %s723 = sand.u32 %s376, 1
        %s724 = smul.addr %s723, 12
        %s725 = scalar_lea.vmem [#allocation26], %s724
        // Predicated region
        $region145: #{tpu_custom_call.1} parent=83 // pred_check
          %p726 = pneg %p389
        $region146: #{tpu_custom_call.1} parent=83 // pred_check_branch
          %728 = sbr.rel (%p726) target = $region148
        $region147: #{tpu_custom_call.1} parent=83 // pred_region
          %729 = dma.done %s722, 192
        $region148: #{tpu_custom_call.1} parent=83 // pred_fallthru
          _
        %p730 = pneg %p59
        %p731 = pneg %p56
        %p732 = pneg %p80
        %p733 = pneg %p77
        %p734 = pneg %p101
        %p735 = pneg %p98
        %p736 = pneg %p122
        %p737 = pneg %p119
        %p738 = pneg %p143
        %p739 = pneg %p140
        %p740 = pneg %p164
        %p741 = pneg %p161
        %p742 = pneg %p185
        %p743 = pneg %p182
        %p744 = pneg %p206
        %p745 = pneg %p203
        %p746 = pneg %p227
        %p747 = pneg %p224
        %p748 = pneg %p248
        %p749 = pneg %p245
        %p750 = pneg %p269
        %p751 = pneg %p266
        %p752 = pneg %p290
        %p753 = pneg %p287
        %p754 = pneg %p311
        %p755 = pneg %p308
        %s756 = sand.u32 %s43, 1
        %s757 = scalar_lea.sflag [#allocation24], %s756
        %s758 = sand.u32 %s324, 1
        %s759 = smul.addr %s758, 6144
        %s760 = scalar_lea.vmem [#allocation23], %s759
        %p761 = pneg %p337
        %p762 = pneg %p334
        %s763 = sand.u32 %s43, 1
        %s764 = scalar_lea.sflag [#allocation24], %s763
        %s765 = sand.u32 %s350, 1
        %s766 = smul.addr %s765, 12
        %s767 = scalar_lea.vmem [#allocation25], %s766
        %p768 = pneg %p363
        %p769 = pneg %p360
        %s770 = sand.u32 %s376, 1
        %s771 = scalar_lea.sflag [#allocation27], %s770
        %s772 = sand.u32 %s376, 1
        %s773 = smul.addr %s772, 12
        %s774 = scalar_lea.vmem [#allocation26], %s773
        %p775 = pneg %p389
        %p776 = pneg %p386
        %p777 = pneg %p415
        %p778 = pneg %p412
        %s779 = sand.u32 %s402, 1
        %s780 = scalar_lea.sflag [#allocation4], %s779
        %s781 = sand.u32 %s402, 1
        %s782 = smul.addr %s781, 24
        %s783 = scalar_lea.vmem [#allocation28], %s782
        %s784 = smul.u32 12, %s43
        %s785 = smul.u32 12, %s43
        %s786 = smul.u32 12, %s43
        %s787 = smul.u32 12, %s43
        %v789 = vld [vmem:[#allocation2] sm:$0x3]
        %v790 = vld [vmem:[#allocation5] sm:$0xf]
        %v791 = vld [vmem:[#allocation5 + $0x4] sm:$0xf]
        %v792 = vld [vmem:[#allocation5 + $0x8] sm:$0xf]
        %v793 = vld [vmem:[#allocation5 + $0xc] sm:$0xf]
        %v798 = vunpack.c.l.b16 %v790
        %v799 = vunpack.c.l.b16 %v791
        %v800 = vunpack.c.l.b16 %v792
        %v801 = vunpack.c.l.b16 %v793
        %v802 = vpack.c.b16 %v799, %v798
        %v803 = vpack.c.b16 %v801, %v800
        %vm806 = vcmask 261120
        %v808 = vsel %vm806, %v789, 0
        %810 = vmatprep.subr.bf16.mxu0 0
        %811 = vmatpush1.bf16.msra.mxu0 0
        %812 = vmatprep.subr.bf16.mxu0 0
        %813 = vmatpush1.bf16.msra.mxu0 0
        %814 = vmatprep.subr.bf16.mxu0 0
        %815 = vmatpush1.bf16.msra.mxu0 0
        %816 = vmatprep.subr.bf16.mxu0 0
        %817 = vmatpush1.bf16.msra.mxu0 0
        %818 = vmatprep.subr.bf16.mxu0 0
        %819 = vmatpush1.bf16.msra.mxu0 0
        %820 = vmatprep.subr.bf16.mxu0 0
        %821 = vmatpush1.bf16.msra.mxu0 0
        %822 = vmatprep.subr.bf16.mxu0 0
        %823 = vmatpush1.bf16.msra.mxu0 %v803
        %824 = vmatprep.subr.bf16.mxu0 0
        %825 = vmatpush1.bf16.msra.mxu0 %v802
        %826 = vmatprep.subr.bf16.mxu0 0
        %827 = vmatpush2.bf16.msra.mxu0 0
        %828 = vmatprep.subr.bf16.mxu0 0
        %829 = vmatpush2.bf16.msra.mxu0 0
        %830 = vmatprep.subr.bf16.mxu0 0
        %831 = vmatpush2.bf16.msra.mxu0 0
        %832 = vmatprep.subr.bf16.mxu0 0
        %833 = vmatpush2.bf16.msra.mxu0 0
        %834 = vmatprep.subr.bf16.mxu0 0
        %835 = vmatpush2.bf16.msra.mxu0 0
        %836 = vmatprep.subr.bf16.mxu0 0
        %837 = vmatpush2.bf16.msra.mxu0 0
        %838 = vmatprep.subr.bf16.mxu0 0
        %839 = vmatpush2.bf16.msra.mxu0 0
        %840 = vmatprep.subr.bf16.mxu0 0
        %841 = vmatpush2.bf16.msra.mxu0 0
        %842 = vmatprep.mubr.bf16.mxu0 0
        %843 = vmatmul.mubr.bf16.gmra.mxu0 %v808
        %v844 = vpop.f32.mrf.mxu0
        %v845 = vadd.f32 0.0, %v844
        %v846 = vpop.f32.mrf.mxu0
        %v847 = vpop.f32.mrf.mxu0
        %v848 = vpop.f32.mrf.mxu0
        %849 = vdwg.mxu0
        %v850 = vld [vmem:[#allocation7] sm:$0x1]
        %v851 = vld [vmem:[#allocation8] sm:$0x1]
        %vm852 = vcmask 1043456
        %v853 = vsel %vm852, %v845, 0.0
        %v854 = vrot.slane %v853, 4
        %v855 = vadd.f32 %v853, %v854
        %v856 = vrot.slane %v855, 2
        %v857 = vadd.f32 %v855, %v856
        %v858 = vrot.slane %v857, 1
        %v859 = vadd.f32 %v857, %v858
        %v860 = vrcp.pop 4.0
        %v861 = vmul.f32 %v859, %v860
        %v862 = vsub.f32 %v845, %v861
        %v863 = vmul.f32 %v862, %v862
        %v864 = vsel %vm852, %v863, 0.0
        %v865 = vrot.slane %v864, 4
        %v866 = vadd.f32 %v864, %v865
        %v867 = vrot.slane %v866, 2
        %v868 = vadd.f32 %v866, %v867
        %v869 = vrot.slane %v868, 1
        %v870 = vadd.f32 %v868, %v869
        %v871 = vmul.f32 %v870, %v860
        %v872 = vadd.f32 %v871, 1e-05
        %v873 = vrsqrt.pop %v872
        %v874 = vmul.f32 %v862, %v873
        %v876 = vlaneseq
        %v877 = vshrl.u32 %v876, 7
        %v878 = vsub.s32 0, %v877
        %v879 = vrot.slane %v850, %v878
        %v881 = vmul.f32 %v879, %v874
        %v883 = vlaneseq
        %v884 = vshrl.u32 %v883, 7
        %v885 = vsub.s32 0, %v884
        %v886 = vrot.slane %v851, %v885
        %v888 = vadd.f32 %v881, %v886
        %vm889 = vcmp.ge.f32.partialorder %v888, 0.0
        %v890 = vmul.f32 %v888, 0.01
        %v891 = vsel %vm889, %v888, %v890
        %v892 = vpack.c.bf16 %v891, %v891
        %v893 = vld [vmem:[#allocation10] sm:$0xff]
        %v894 = vld [vmem:[#allocation10 + $0x8] sm:$0xff]
        %v895 = vld [vmem:[#allocation10 + $0x10] sm:$0xff]
        %v896 = vld [vmem:[#allocation10 + $0x18] sm:$0xff]
        %v897 = vld [vmem:[#allocation10 + $0x20] sm:$0xff]
        %v898 = vld [vmem:[#allocation10 + $0x28] sm:$0xff]
        %v899 = vld [vmem:[#allocation10 + $0x30] sm:$0xff]
        %v900 = vld [vmem:[#allocation10 + $0x38] sm:$0xff]
        %v901 = vld [vmem:[#allocation10 + $0x40] sm:$0xff]
        %v902 = vld [vmem:[#allocation10 + $0x48] sm:$0xff]
        %v903 = vld [vmem:[#allocation10 + $0x50] sm:$0xff]
        %v904 = vld [vmem:[#allocation10 + $0x58] sm:$0xff]
        %v905 = vld [vmem:[#allocation10 + $0x60] sm:$0xff]
        %v906 = vld [vmem:[#allocation10 + $0x68] sm:$0xff]
        %v907 = vld [vmem:[#allocation10 + $0x70] sm:$0xff]
        %v908 = vld [vmem:[#allocation10 + $0x78] sm:$0xff]
        %v925 = vunpack.c.l.b16 %v893
        %v926 = vunpack.c.h.b16 %v893
        %v927 = vunpack.c.l.b16 %v894
        %v928 = vunpack.c.h.b16 %v894
        %v929 = vunpack.c.l.b16 %v895
        %v930 = vunpack.c.h.b16 %v895
        %v931 = vunpack.c.l.b16 %v896
        %v932 = vunpack.c.h.b16 %v896
        %v933 = vunpack.c.l.b16 %v897
        %v934 = vunpack.c.h.b16 %v897
        %v935 = vunpack.c.l.b16 %v898
        %v936 = vunpack.c.h.b16 %v898
        %v937 = vunpack.c.l.b16 %v899
        %v938 = vunpack.c.h.b16 %v899
        %v939 = vunpack.c.l.b16 %v900
        %v940 = vunpack.c.h.b16 %v900
        %v941 = vunpack.c.l.b16 %v901
        %v942 = vunpack.c.h.b16 %v901
        %v943 = vunpack.c.l.b16 %v902
        %v944 = vunpack.c.h.b16 %v902
        %v945 = vunpack.c.l.b16 %v903
        %v946 = vunpack.c.h.b16 %v903
        %v947 = vunpack.c.l.b16 %v904
        %v948 = vunpack.c.h.b16 %v904
        %v949 = vunpack.c.l.b16 %v905
        %v950 = vunpack.c.h.b16 %v905
        %v951 = vunpack.c.l.b16 %v906
        %v952 = vunpack.c.h.b16 %v906
        %v953 = vunpack.c.l.b16 %v907
        %v954 = vunpack.c.h.b16 %v907
        %v955 = vunpack.c.l.b16 %v908
        %v956 = vunpack.c.h.b16 %v908
        %v957 = vpack.c.b16 %v927, %v925
        %v958 = vpack.c.b16 %v928, %v926
        %v959 = vpack.c.b16 %v931, %v929
        %v960 = vpack.c.b16 %v932, %v930
        %v961 = vpack.c.b16 %v935, %v933
        %v962 = vpack.c.b16 %v936, %v934
        %v963 = vpack.c.b16 %v939, %v937
        %v964 = vpack.c.b16 %v940, %v938
        %v965 = vpack.c.b16 %v943, %v941
        %v966 = vpack.c.b16 %v944, %v942
        %v967 = vpack.c.b16 %v947, %v945
        %v968 = vpack.c.b16 %v948, %v946
        %v969 = vpack.c.b16 %v951, %v949
        %v970 = vpack.c.b16 %v952, %v950
        %v971 = vpack.c.b16 %v955, %v953
        %v972 = vpack.c.b16 %v956, %v954
        %989 = vmatprep.subr.bf16.mxu0 %v972
        %990 = vmatpush1.bf16.msra.mxu0 %v971
        %991 = vmatprep.subr.bf16.mxu0 %v970
        %992 = vmatpush1.bf16.msra.mxu0 %v969
        %993 = vmatprep.subr.bf16.mxu0 %v968
        %994 = vmatpush1.bf16.msra.mxu0 %v967
        %995 = vmatprep.subr.bf16.mxu0 %v966
        %996 = vmatpush1.bf16.msra.mxu0 %v965
        %997 = vmatprep.subr.bf16.mxu0 %v964
        %998 = vmatpush1.bf16.msra.mxu0 %v963
        %999 = vmatprep.subr.bf16.mxu0 %v962
        %1000 = vmatpush1.bf16.msra.mxu0 %v961
        %1001 = vmatprep.subr.bf16.mxu0 %v960
        %1002 = vmatpush1.bf16.msra.mxu0 %v959
        %1003 = vmatprep.subr.bf16.mxu0 %v958
        %1004 = vmatpush1.bf16.msra.mxu0 %v957
        %1005 = vmatprep.subr.bf16.mxu0 0
        %1006 = vmatpush2.bf16.msra.mxu0 0
        %1007 = vmatprep.subr.bf16.mxu0 0
        %1008 = vmatpush2.bf16.msra.mxu0 0
        %1009 = vmatprep.subr.bf16.mxu0 0
        %1010 = vmatpush2.bf16.msra.mxu0 0
        %1011 = vmatprep.subr.bf16.mxu0 0
        %1012 = vmatpush2.bf16.msra.mxu0 0
        %1013 = vmatprep.subr.bf16.mxu0 0
        %1014 = vmatpush2.bf16.msra.mxu0 0
        %1015 = vmatprep.subr.bf16.mxu0 0
        %1016 = vmatpush2.bf16.msra.mxu0 0
        %1017 = vmatprep.subr.bf16.mxu0 0
        %1018 = vmatpush2.bf16.msra.mxu0 0
        %1019 = vmatprep.subr.bf16.mxu0 0
        %1020 = vmatpush2.bf16.msra.mxu0 0
        %1021 = vmatprep.mubr.bf16.mxu0 0
        %1022 = vmatmul.mubr.bf16.gmra.mxu0 %v892
        %v1023 = vpop.f32.mrf.mxu0
        %v1024 = vadd.f32 0.0, %v1023
        %v1025 = vpop.f32.mrf.mxu0
        %v1026 = vadd.f32 0.0, %v1025
        %v1027 = vpop.f32.mrf.mxu0
        %v1028 = vpop.f32.mrf.mxu0
        %1029 = vdwg.mxu0
        %v1030 = vld [vmem:[#allocation11] sm:$0x3]
        %v1031 = vld [vmem:[#allocation13] sm:$0x3]
        %v1032 = vsel %vm852, %v1024, 0.0
        %v1033 = vrot.slane %v1032, 4
        %v1034 = vadd.f32 %v1032, %v1033
        %v1035 = vrot.slane %v1034, 2
        %v1036 = vadd.f32 %v1034, %v1035
        %v1037 = vrot.slane %v1036, 1
        %v1038 = vadd.f32 %v1036, %v1037
        %v1039 = vsel %vm852, %v1026, 0.0
        %v1040 = vrot.slane %v1039, 4
        %v1041 = vadd.f32 %v1039, %v1040
        %v1042 = vrot.slane %v1041, 2
        %v1043 = vadd.f32 %v1041, %v1042
        %v1044 = vrot.slane %v1043, 1
        %v1045 = vadd.f32 %v1043, %v1044
        %v1046 = vmul.f32 %v1038, %v860
        %v1047 = vmul.f32 %v1045, %v860
        %v1048 = vsub.f32 %v1024, %v1046
        %v1049 = vsub.f32 %v1026, %v1047
        %v1050 = vmul.f32 %v1048, %v1048
        %v1051 = vmul.f32 %v1049, %v1049
        %v1052 = vsel %vm852, %v1050, 0.0
        %v1053 = vrot.slane %v1052, 4
        %v1054 = vadd.f32 %v1052, %v1053
        %v1055 = vrot.slane %v1054, 2
        %v1056 = vadd.f32 %v1054, %v1055
        %v1057 = vrot.slane %v1056, 1
        %v1058 = vadd.f32 %v1056, %v1057
        %v1059 = vsel %vm852, %v1051, 0.0
        %v1060 = vrot.slane %v1059, 4
        %v1061 = vadd.f32 %v1059, %v1060
        %v1062 = vrot.slane %v1061, 2
        %v1063 = vadd.f32 %v1061, %v1062
        %v1064 = vrot.slane %v1063, 1
        %v1065 = vadd.f32 %v1063, %v1064
        %v1066 = vmul.f32 %v1058, %v860
        %v1067 = vmul.f32 %v1065, %v860
        %v1068 = vadd.f32 %v1066, 1e-05
        %v1069 = vadd.f32 %v1067, 1e-05
        %v1070 = vrsqrt.pop %v1068
        %v1071 = vrsqrt.pop %v1069
        %v1072 = vmul.f32 %v1048, %v1070
        %v1073 = vmul.f32 %v1049, %v1071
        %v1075 = vlaneseq
        %v1076 = vshrl.u32 %v1075, 7
        %v1077 = vsub.s32 0, %v1076
        %v1078 = vrot.slane %v1030, %v1077
        %v1079 = vlaneseq
        %v1080 = vshrl.u32 %v1079, 7
        %v1081 = vsub.s32 1, %v1080
        %v1082 = vrot.slane %v1030, %v1081
        %v1085 = vmul.f32 %v1078, %v1072
        %v1086 = vmul.f32 %v1082, %v1073
        %v1088 = vlaneseq
        %v1089 = vshrl.u32 %v1088, 7
        %v1090 = vsub.s32 0, %v1089
        %v1091 = vrot.slane %v1031, %v1090
        %v1092 = vlaneseq
        %v1093 = vshrl.u32 %v1092, 7
        %v1094 = vsub.s32 1, %v1093
        %v1095 = vrot.slane %v1031, %v1094
        %v1098 = vadd.f32 %v1085, %v1091
        %v1099 = vadd.f32 %v1086, %v1095
        %vm1100 = vcmp.ge.f32.partialorder %v1098, 0.0
        %vm1101 = vcmp.ge.f32.partialorder %v1099, 0.0
        %v1102 = vmul.f32 %v1098, 0.01
        %v1103 = vmul.f32 %v1099, 0.01
        %v1104 = vsel %vm1100, %v1098, %v1102
        %v1105 = vsel %vm1101, %v1099, %v1103
        %v1106 = vpack.c.bf16 %v1104, %v1104
        %v1107 = vpack.c.bf16 %v1105, %v1105
        %v1108 = vld [vmem:[#allocation14] sm:$0xff]
        %v1109 = vld [vmem:[#allocation14 + $0x8] sm:$0xff]
        %v1110 = vld [vmem:[#allocation14 + $0x10] sm:$0xff]
        %v1111 = vld [vmem:[#allocation14 + $0x18] sm:$0xff]
        %v1112 = vld [vmem:[#allocation14 + $0x20] sm:$0xff]
        %v1113 = vld [vmem:[#allocation14 + $0x28] sm:$0xff]
        %v1114 = vld [vmem:[#allocation14 + $0x30] sm:$0xff]
        %v1115 = vld [vmem:[#allocation14 + $0x38] sm:$0xff]
        %v1116 = vld [vmem:[#allocation14 + $0x40] sm:$0xff]
        %v1117 = vld [vmem:[#allocation14 + $0x48] sm:$0xff]
        %v1118 = vld [vmem:[#allocation14 + $0x50] sm:$0xff]
        %v1119 = vld [vmem:[#allocation14 + $0x58] sm:$0xff]
        %v1120 = vld [vmem:[#allocation14 + $0x60] sm:$0xff]
        %v1121 = vld [vmem:[#allocation14 + $0x68] sm:$0xff]
        %v1122 = vld [vmem:[#allocation14 + $0x70] sm:$0xff]
        %v1123 = vld [vmem:[#allocation14 + $0x78] sm:$0xff]
        %v1124 = vld [vmem:[#allocation14 + $0x80] sm:$0xff]
        %v1125 = vld [vmem:[#allocation14 + $0x88] sm:$0xff]
        %v1126 = vld [vmem:[#allocation14 + $0x90] sm:$0xff]
        %v1127 = vld [vmem:[#allocation14 + $0x98] sm:$0xff]
        %v1128 = vld [vmem:[#allocation14 + $0xa0] sm:$0xff]
        %v1129 = vld [vmem:[#allocation14 + $0xa8] sm:$0xff]
        %v1130 = vld [vmem:[#allocation14 + $0xb0] sm:$0xff]
        %v1131 = vld [vmem:[#allocation14 + $0xb8] sm:$0xff]
        %v1132 = vld [vmem:[#allocation14 + $0xc0] sm:$0xff]
        %v1133 = vld [vmem:[#allocation14 + $0xc8] sm:$0xff]
        %v1134 = vld [vmem:[#allocation14 + $0xd0] sm:$0xff]
        %v1135 = vld [vmem:[#allocation14 + $0xd8] sm:$0xff]
        %v1136 = vld [vmem:[#allocation14 + $0xe0] sm:$0xff]
        %v1137 = vld [vmem:[#allocation14 + $0xe8] sm:$0xff]
        %v1138 = vld [vmem:[#allocation14 + $0xf0] sm:$0xff]
        %v1139 = vld [vmem:[#allocation14 + $0xf8] sm:$0xff]
        %v1140 = vld [vmem:[#allocation14 + $0x100] sm:$0xff]
        %v1141 = vld [vmem:[#allocation14 + $0x108] sm:$0xff]
        %v1142 = vld [vmem:[#allocation14 + $0x110] sm:$0xff]
        %v1143 = vld [vmem:[#allocation14 + $0x118] sm:$0xff]
        %v1144 = vld [vmem:[#allocation14 + $0x120] sm:$0xff]
        %v1145 = vld [vmem:[#allocation14 + $0x128] sm:$0xff]
        %v1146 = vld [vmem:[#allocation14 + $0x130] sm:$0xff]
        %v1147 = vld [vmem:[#allocation14 + $0x138] sm:$0xff]
        %v1148 = vld [vmem:[#allocation14 + $0x140] sm:$0xff]
        %v1149 = vld [vmem:[#allocation14 + $0x148] sm:$0xff]
        %v1150 = vld [vmem:[#allocation14 + $0x150] sm:$0xff]
        %v1151 = vld [vmem:[#allocation14 + $0x158] sm:$0xff]
        %v1152 = vld [vmem:[#allocation14 + $0x160] sm:$0xff]
        %v1153 = vld [vmem:[#allocation14 + $0x168] sm:$0xff]
        %v1154 = vld [vmem:[#allocation14 + $0x170] sm:$0xff]
        %v1155 = vld [vmem:[#allocation14 + $0x178] sm:$0xff]
        %v1156 = vld [vmem:[#allocation14 + $0x180] sm:$0xff]
        %v1157 = vld [vmem:[#allocation14 + $0x188] sm:$0xff]
        %v1158 = vld [vmem:[#allocation14 + $0x190] sm:$0xff]
        %v1159 = vld [vmem:[#allocation14 + $0x198] sm:$0xff]
        %v1160 = vld [vmem:[#allocation14 + $0x1a0] sm:$0xff]
        %v1161 = vld [vmem:[#allocation14 + $0x1a8] sm:$0xff]
        %v1162 = vld [vmem:[#allocation14 + $0x1b0] sm:$0xff]
        %v1163 = vld [vmem:[#allocation14 + $0x1b8] sm:$0xff]
        %v1164 = vld [vmem:[#allocation14 + $0x1c0] sm:$0xff]
        %v1165 = vld [vmem:[#allocation14 + $0x1c8] sm:$0xff]
        %v1166 = vld [vmem:[#allocation14 + $0x1d0] sm:$0xff]
        %v1167 = vld [vmem:[#allocation14 + $0x1d8] sm:$0xff]
        %v1168 = vld [vmem:[#allocation14 + $0x1e0] sm:$0xff]
        %v1169 = vld [vmem:[#allocation14 + $0x1e8] sm:$0xff]
        %v1170 = vld [vmem:[#allocation14 + $0x1f0] sm:$0xff]
        %v1171 = vld [vmem:[#allocation14 + $0x1f8] sm:$0xff]
        %v1236 = vunpack.c.l.b16 %v1108
        %v1237 = vunpack.c.h.b16 %v1108
        %v1238 = vunpack.c.l.b16 %v1109
        %v1239 = vunpack.c.h.b16 %v1109
        %v1240 = vunpack.c.l.b16 %v1110
        %v1241 = vunpack.c.h.b16 %v1110
        %v1242 = vunpack.c.l.b16 %v1111
        %v1243 = vunpack.c.h.b16 %v1111
        %v1244 = vunpack.c.l.b16 %v1112
        %v1245 = vunpack.c.h.b16 %v1112
        %v1246 = vunpack.c.l.b16 %v1113
        %v1247 = vunpack.c.h.b16 %v1113
        %v1248 = vunpack.c.l.b16 %v1114
        %v1249 = vunpack.c.h.b16 %v1114
        %v1250 = vunpack.c.l.b16 %v1115
        %v1251 = vunpack.c.h.b16 %v1115
        %v1252 = vunpack.c.l.b16 %v1116
        %v1253 = vunpack.c.h.b16 %v1116
        %v1254 = vunpack.c.l.b16 %v1117
        %v1255 = vunpack.c.h.b16 %v1117
        %v1256 = vunpack.c.l.b16 %v1118
        %v1257 = vunpack.c.h.b16 %v1118
        %v1258 = vunpack.c.l.b16 %v1119
        %v1259 = vunpack.c.h.b16 %v1119
        %v1260 = vunpack.c.l.b16 %v1120
        %v1261 = vunpack.c.h.b16 %v1120
        %v1262 = vunpack.c.l.b16 %v1121
        %v1263 = vunpack.c.h.b16 %v1121
        %v1264 = vunpack.c.l.b16 %v1122
        %v1265 = vunpack.c.h.b16 %v1122
        %v1266 = vunpack.c.l.b16 %v1123
        %v1267 = vunpack.c.h.b16 %v1123
        %v1268 = vunpack.c.l.b16 %v1124
        %v1269 = vunpack.c.h.b16 %v1124
        %v1270 = vunpack.c.l.b16 %v1125
        %v1271 = vunpack.c.h.b16 %v1125
        %v1272 = vunpack.c.l.b16 %v1126
        %v1273 = vunpack.c.h.b16 %v1126
        %v1274 = vunpack.c.l.b16 %v1127
        %v1275 = vunpack.c.h.b16 %v1127
        %v1276 = vunpack.c.l.b16 %v1128
        %v1277 = vunpack.c.h.b16 %v1128
        %v1278 = vunpack.c.l.b16 %v1129
        %v1279 = vunpack.c.h.b16 %v1129
        %v1280 = vunpack.c.l.b16 %v1130
        %v1281 = vunpack.c.h.b16 %v1130
        %v1282 = vunpack.c.l.b16 %v1131
        %v1283 = vunpack.c.h.b16 %v1131
        %v1284 = vunpack.c.l.b16 %v1132
        %v1285 = vunpack.c.h.b16 %v1132
        %v1286 = vunpack.c.l.b16 %v1133
        %v1287 = vunpack.c.h.b16 %v1133
        %v1288 = vunpack.c.l.b16 %v1134
        %v1289 = vunpack.c.h.b16 %v1134
        %v1290 = vunpack.c.l.b16 %v1135
        %v1291 = vunpack.c.h.b16 %v1135
        %v1292 = vunpack.c.l.b16 %v1136
        %v1293 = vunpack.c.h.b16 %v1136
        %v1294 = vunpack.c.l.b16 %v1137
        %v1295 = vunpack.c.h.b16 %v1137
        %v1296 = vunpack.c.l.b16 %v1138
        %v1297 = vunpack.c.h.b16 %v1138
        %v1298 = vunpack.c.l.b16 %v1139
        %v1299 = vunpack.c.h.b16 %v1139
        %v1300 = vunpack.c.l.b16 %v1140
        %v1301 = vunpack.c.h.b16 %v1140
        %v1302 = vunpack.c.l.b16 %v1141
        %v1303 = vunpack.c.h.b16 %v1141
        %v1304 = vunpack.c.l.b16 %v1142
        %v1305 = vunpack.c.h.b16 %v1142
        %v1306 = vunpack.c.l.b16 %v1143
        %v1307 = vunpack.c.h.b16 %v1143
        %v1308 = vunpack.c.l.b16 %v1144
        %v1309 = vunpack.c.h.b16 %v1144
        %v1310 = vunpack.c.l.b16 %v1145
        %v1311 = vunpack.c.h.b16 %v1145
        %v1312 = vunpack.c.l.b16 %v1146
        %v1313 = vunpack.c.h.b16 %v1146
        %v1314 = vunpack.c.l.b16 %v1147
        %v1315 = vunpack.c.h.b16 %v1147
        %v1316 = vunpack.c.l.b16 %v1148
        %v1317 = vunpack.c.h.b16 %v1148
        %v1318 = vunpack.c.l.b16 %v1149
        %v1319 = vunpack.c.h.b16 %v1149
        %v1320 = vunpack.c.l.b16 %v1150
        %v1321 = vunpack.c.h.b16 %v1150
        %v1322 = vunpack.c.l.b16 %v1151
        %v1323 = vunpack.c.h.b16 %v1151
        %v1324 = vunpack.c.l.b16 %v1152
        %v1325 = vunpack.c.h.b16 %v1152
        %v1326 = vunpack.c.l.b16 %v1153
        %v1327 = vunpack.c.h.b16 %v1153
        %v1328 = vunpack.c.l.b16 %v1154
        %v1329 = vunpack.c.h.b16 %v1154
        %v1330 = vunpack.c.l.b16 %v1155
        %v1331 = vunpack.c.h.b16 %v1155
        %v1332 = vunpack.c.l.b16 %v1156
        %v1333 = vunpack.c.h.b16 %v1156
        %v1334 = vunpack.c.l.b16 %v1157
        %v1335 = vunpack.c.h.b16 %v1157
        %v1336 = vunpack.c.l.b16 %v1158
        %v1337 = vunpack.c.h.b16 %v1158
        %v1338 = vunpack.c.l.b16 %v1159
        %v1339 = vunpack.c.h.b16 %v1159
        %v1340 = vunpack.c.l.b16 %v1160
        %v1341 = vunpack.c.h.b16 %v1160
        %v1342 = vunpack.c.l.b16 %v1161
        %v1343 = vunpack.c.h.b16 %v1161
        %v1344 = vunpack.c.l.b16 %v1162
        %v1345 = vunpack.c.h.b16 %v1162
        %v1346 = vunpack.c.l.b16 %v1163
        %v1347 = vunpack.c.h.b16 %v1163
        %v1348 = vunpack.c.l.b16 %v1164
        %v1349 = vunpack.c.h.b16 %v1164
        %v1350 = vunpack.c.l.b16 %v1165
        %v1351 = vunpack.c.h.b16 %v1165
        %v1352 = vunpack.c.l.b16 %v1166
        %v1353 = vunpack.c.h.b16 %v1166
        %v1354 = vunpack.c.l.b16 %v1167
        %v1355 = vunpack.c.h.b16 %v1167
        %v1356 = vunpack.c.l.b16 %v1168
        %v1357 = vunpack.c.h.b16 %v1168
        %v1358 = vunpack.c.l.b16 %v1169
        %v1359 = vunpack.c.h.b16 %v1169
        %v1360 = vunpack.c.l.b16 %v1170
        %v1361 = vunpack.c.h.b16 %v1170
        %v1362 = vunpack.c.l.b16 %v1171
        %v1363 = vunpack.c.h.b16 %v1171
        %v1364 = vpack.c.b16 %v1240, %v1236
        %v1365 = vpack.c.b16 %v1241, %v1237
        %v1366 = vpack.c.b16 %v1242, %v1238
        %v1367 = vpack.c.b16 %v1243, %v1239
        %v1368 = vpack.c.b16 %v1248, %v1244
        %v1369 = vpack.c.b16 %v1249, %v1245
        %v1370 = vpack.c.b16 %v1250, %v1246
        %v1371 = vpack.c.b16 %v1251, %v1247
        %v1372 = vpack.c.b16 %v1256, %v1252
        %v1373 = vpack.c.b16 %v1257, %v1253
        %v1374 = vpack.c.b16 %v1258, %v1254
        %v1375 = vpack.c.b16 %v1259, %v1255
        %v1376 = vpack.c.b16 %v1264, %v1260
        %v1377 = vpack.c.b16 %v1265, %v1261
        %v1378 = vpack.c.b16 %v1266, %v1262
        %v1379 = vpack.c.b16 %v1267, %v1263
        %v1380 = vpack.c.b16 %v1272, %v1268
        %v1381 = vpack.c.b16 %v1273, %v1269
        %v1382 = vpack.c.b16 %v1274, %v1270
        %v1383 = vpack.c.b16 %v1275, %v1271
        %v1384 = vpack.c.b16 %v1280, %v1276
        %v1385 = vpack.c.b16 %v1281, %v1277
        %v1386 = vpack.c.b16 %v1282, %v1278
        %v1387 = vpack.c.b16 %v1283, %v1279
        %v1388 = vpack.c.b16 %v1288, %v1284
        %v1389 = vpack.c.b16 %v1289, %v1285
        %v1390 = vpack.c.b16 %v1290, %v1286
        %v1391 = vpack.c.b16 %v1291, %v1287
        %v1392 = vpack.c.b16 %v1296, %v1292
        %v1393 = vpack.c.b16 %v1297, %v1293
        %v1394 = vpack.c.b16 %v1298, %v1294
        %v1395 = vpack.c.b16 %v1299, %v1295
        %v1396 = vpack.c.b16 %v1304, %v1300
        %v1397 = vpack.c.b16 %v1305, %v1301
        %v1398 = vpack.c.b16 %v1306, %v1302
        %v1399 = vpack.c.b16 %v1307, %v1303
        %v1400 = vpack.c.b16 %v1312, %v1308
        %v1401 = vpack.c.b16 %v1313, %v1309
        %v1402 = vpack.c.b16 %v1314, %v1310
        %v1403 = vpack.c.b16 %v1315, %v1311
        %v1404 = vpack.c.b16 %v1320, %v1316
        %v1405 = vpack.c.b16 %v1321, %v1317
        %v1406 = vpack.c.b16 %v1322, %v1318
        %v1407 = vpack.c.b16 %v1323, %v1319
        %v1408 = vpack.c.b16 %v1328, %v1324
        %v1409 = vpack.c.b16 %v1329, %v1325
        %v1410 = vpack.c.b16 %v1330, %v1326
        %v1411 = vpack.c.b16 %v1331, %v1327
        %v1412 = vpack.c.b16 %v1336, %v1332
        %v1413 = vpack.c.b16 %v1337, %v1333
        %v1414 = vpack.c.b16 %v1338, %v1334
        %v1415 = vpack.c.b16 %v1339, %v1335
        %v1416 = vpack.c.b16 %v1344, %v1340
        %v1417 = vpack.c.b16 %v1345, %v1341
        %v1418 = vpack.c.b16 %v1346, %v1342
        %v1419 = vpack.c.b16 %v1347, %v1343
        %v1420 = vpack.c.b16 %v1352, %v1348
        %v1421 = vpack.c.b16 %v1353, %v1349
        %v1422 = vpack.c.b16 %v1354, %v1350
        %v1423 = vpack.c.b16 %v1355, %v1351
        %v1424 = vpack.c.b16 %v1360, %v1356
        %v1425 = vpack.c.b16 %v1361, %v1357
        %v1426 = vpack.c.b16 %v1362, %v1358
        %v1427 = vpack.c.b16 %v1363, %v1359
        %1492 = vmatprep.subr.bf16.mxu0 %v1393
        %1493 = vmatpush1.bf16.msra.mxu0 %v1392
        %1494 = vmatprep.subr.bf16.mxu0 %v1389
        %1495 = vmatpush1.bf16.msra.mxu0 %v1388
        %1496 = vmatprep.subr.bf16.mxu0 %v1385
        %1497 = vmatpush1.bf16.msra.mxu0 %v1384
        %1498 = vmatprep.subr.bf16.mxu0 %v1381
        %1499 = vmatpush1.bf16.msra.mxu0 %v1380
        %1500 = vmatprep.subr.bf16.mxu0 %v1377
        %1501 = vmatpush1.bf16.msra.mxu0 %v1376
        %1502 = vmatprep.subr.bf16.mxu0 %v1373
        %1503 = vmatpush1.bf16.msra.mxu0 %v1372
        %1504 = vmatprep.subr.bf16.mxu0 %v1369
        %1505 = vmatpush1.bf16.msra.mxu0 %v1368
        %1506 = vmatprep.subr.bf16.mxu0 %v1365
        %1507 = vmatpush1.bf16.msra.mxu0 %v1364
        %1508 = vmatprep.subr.bf16.mxu0 %v1425
        %1509 = vmatpush2.bf16.msra.mxu0 %v1424
        %1510 = vmatprep.subr.bf16.mxu0 %v1421
        %1511 = vmatpush2.bf16.msra.mxu0 %v1420
        %1512 = vmatprep.subr.bf16.mxu0 %v1417
        %1513 = vmatpush2.bf16.msra.mxu0 %v1416
        %1514 = vmatprep.subr.bf16.mxu0 %v1413
        %1515 = vmatpush2.bf16.msra.mxu0 %v1412
        %1516 = vmatprep.subr.bf16.mxu0 %v1409
        %1517 = vmatpush2.bf16.msra.mxu0 %v1408
        %1518 = vmatprep.subr.bf16.mxu0 %v1405
        %1519 = vmatpush2.bf16.msra.mxu0 %v1404
        %1520 = vmatprep.subr.bf16.mxu0 %v1401
        %1521 = vmatpush2.bf16.msra.mxu0 %v1400
        %1522 = vmatprep.subr.bf16.mxu0 %v1397
        %1523 = vmatpush2.bf16.msra.mxu0 %v1396
        %1524 = vmatprep.mubr.bf16.mxu0 %v1107
        %1525 = vmatmul.mubr.bf16.gmra.mxu0 %v1106
        %v1526 = vpop.f32.mrf.mxu0
        %v1527 = vadd.f32 0.0, %v1526
        %v1528 = vpop.f32.mrf.mxu0
        %v1529 = vadd.f32 0.0, %v1528
        %v1530 = vpop.f32.mrf.mxu0
        %v1531 = vpop.f32.mrf.mxu0
        %1532 = vdwg.mxu0
        %1533 = vmatprep.subr.bf16.mxu0 %v1395
        %1534 = vmatpush1.bf16.msra.mxu0 %v1394
        %1535 = vmatprep.subr.bf16.mxu0 %v1391
        %1536 = vmatpush1.bf16.msra.mxu0 %v1390
        %1537 = vmatprep.subr.bf16.mxu0 %v1387
        %1538 = vmatpush1.bf16.msra.mxu0 %v1386
        %1539 = vmatprep.subr.bf16.mxu0 %v1383
        %1540 = vmatpush1.bf16.msra.mxu0 %v1382
        %1541 = vmatprep.subr.bf16.mxu0 %v1379
        %1542 = vmatpush1.bf16.msra.mxu0 %v1378
        %1543 = vmatprep.subr.bf16.mxu0 %v1375
        %1544 = vmatpush1.bf16.msra.mxu0 %v1374
        %1545 = vmatprep.subr.bf16.mxu0 %v1371
        %1546 = vmatpush1.bf16.msra.mxu0 %v1370
        %1547 = vmatprep.subr.bf16.mxu0 %v1367
        %1548 = vmatpush1.bf16.msra.mxu0 %v1366
        %1549 = vmatprep.subr.bf16.mxu0 %v1427
        %1550 = vmatpush2.bf16.msra.mxu0 %v1426
        %1551 = vmatprep.subr.bf16.mxu0 %v1423
        %1552 = vmatpush2.bf16.msra.mxu0 %v1422
        %1553 = vmatprep.subr.bf16.mxu0 %v1419
        %1554 = vmatpush2.bf16.msra.mxu0 %v1418
        %1555 = vmatprep.subr.bf16.mxu0 %v1415
        %1556 = vmatpush2.bf16.msra.mxu0 %v1414
        %1557 = vmatprep.subr.bf16.mxu0 %v1411
        %1558 = vmatpush2.bf16.msra.mxu0 %v1410
        %1559 = vmatprep.subr.bf16.mxu0 %v1407
        %1560 = vmatpush2.bf16.msra.mxu0 %v1406
        %1561 = vmatprep.subr.bf16.mxu0 %v1403
        %1562 = vmatpush2.bf16.msra.mxu0 %v1402
        %1563 = vmatprep.subr.bf16.mxu0 %v1399
        %1564 = vmatpush2.bf16.msra.mxu0 %v1398
        %1565 = vmatprep.mubr.bf16.mxu0 %v1107
        %1566 = vmatmul.mubr.bf16.gmra.mxu0 %v1106
        %v1567 = vpop.f32.mrf.mxu0
        %v1568 = vadd.f32 0.0, %v1567
        %v1569 = vpop.f32.mrf.mxu0
        %v1570 = vadd.f32 0.0, %v1569
        %v1571 = vpop.f32.mrf.mxu0
        %v1572 = vpop.f32.mrf.mxu0
        %1573 = vdwg.mxu0
        %v1574 = vld [vmem:[#allocation16] sm:$0xf]
        %v1575 = vld [vmem:[#allocation17] sm:$0xf]
        %v1576 = vsel %vm852, %v1527, 0.0
        %v1577 = vrot.slane %v1576, 4
        %v1578 = vadd.f32 %v1576, %v1577
        %v1579 = vrot.slane %v1578, 2
        %v1580 = vadd.f32 %v1578, %v1579
        %v1581 = vrot.slane %v1580, 1
        %v1582 = vadd.f32 %v1580, %v1581
        %v1583 = vsel %vm852, %v1529, 0.0
        %v1584 = vrot.slane %v1583, 4
        %v1585 = vadd.f32 %v1583, %v1584
        %v1586 = vrot.slane %v1585, 2
        %v1587 = vadd.f32 %v1585, %v1586
        %v1588 = vrot.slane %v1587, 1
        %v1589 = vadd.f32 %v1587, %v1588
        %v1590 = vsel %vm852, %v1568, 0.0
        %v1591 = vrot.slane %v1590, 4
        %v1592 = vadd.f32 %v1590, %v1591
        %v1593 = vrot.slane %v1592, 2
        %v1594 = vadd.f32 %v1592, %v1593
        %v1595 = vrot.slane %v1594, 1
        %v1596 = vadd.f32 %v1594, %v1595
        %v1597 = vsel %vm852, %v1570, 0.0
        %v1598 = vrot.slane %v1597, 4
        %v1599 = vadd.f32 %v1597, %v1598
        %v1600 = vrot.slane %v1599, 2
        %v1601 = vadd.f32 %v1599, %v1600
        %v1602 = vrot.slane %v1601, 1
        %v1603 = vadd.f32 %v1601, %v1602
        %v1604 = vmul.f32 %v1582, %v860
        %v1605 = vmul.f32 %v1589, %v860
        %v1606 = vmul.f32 %v1596, %v860
        %v1607 = vmul.f32 %v1603, %v860
        %v1608 = vsub.f32 %v1527, %v1604
        %v1609 = vsub.f32 %v1529, %v1605
        %v1610 = vsub.f32 %v1568, %v1606
        %v1611 = vsub.f32 %v1570, %v1607
        %v1612 = vmul.f32 %v1608, %v1608
        %v1613 = vmul.f32 %v1609, %v1609
        %v1614 = vmul.f32 %v1610, %v1610
        %v1615 = vmul.f32 %v1611, %v1611
        %v1616 = vsel %vm852, %v1612, 0.0
        %v1617 = vrot.slane %v1616, 4
        %v1618 = vadd.f32 %v1616, %v1617
        %v1619 = vrot.slane %v1618, 2
        %v1620 = vadd.f32 %v1618, %v1619
        %v1621 = vrot.slane %v1620, 1
        %v1622 = vadd.f32 %v1620, %v1621
        %v1623 = vsel %vm852, %v1613, 0.0
        %v1624 = vrot.slane %v1623, 4
        %v1625 = vadd.f32 %v1623, %v1624
        %v1626 = vrot.slane %v1625, 2
        %v1627 = vadd.f32 %v1625, %v1626
        %v1628 = vrot.slane %v1627, 1
        %v1629 = vadd.f32 %v1627, %v1628
        %v1630 = vsel %vm852, %v1614, 0.0
        %v1631 = vrot.slane %v1630, 4
        %v1632 = vadd.f32 %v1630, %v1631
        %v1633 = vrot.slane %v1632, 2
        %v1634 = vadd.f32 %v1632, %v1633
        %v1635 = vrot.slane %v1634, 1
        %v1636 = vadd.f32 %v1634, %v1635
        %v1637 = vsel %vm852, %v1615, 0.0
        %v1638 = vrot.slane %v1637, 4
        %v1639 = vadd.f32 %v1637, %v1638
        %v1640 = vrot.slane %v1639, 2
        %v1641 = vadd.f32 %v1639, %v1640
        %v1642 = vrot.slane %v1641, 1
        %v1643 = vadd.f32 %v1641, %v1642
        %v1644 = vmul.f32 %v1622, %v860
        %v1645 = vmul.f32 %v1629, %v860
        %v1646 = vmul.f32 %v1636, %v860
        %v1647 = vmul.f32 %v1643, %v860
        %v1648 = vadd.f32 %v1644, 1e-05
        %v1649 = vadd.f32 %v1645, 1e-05
        %v1650 = vadd.f32 %v1646, 1e-05
        %v1651 = vadd.f32 %v1647, 1e-05
        %v1652 = vrsqrt.pop %v1648
        %v1653 = vrsqrt.pop %v1649
        %v1654 = vrsqrt.pop %v1650
        %v1655 = vrsqrt.pop %v1651
        %v1656 = vmul.f32 %v1608, %v1652
        %v1657 = vmul.f32 %v1609, %v1653
        %v1658 = vmul.f32 %v1610, %v1654
        %v1659 = vmul.f32 %v1611, %v1655
        %v1661 = vlaneseq
        %v1662 = vshrl.u32 %v1661, 7
        %v1663 = vsub.s32 0, %v1662
        %v1664 = vrot.slane %v1574, %v1663
        %v1665 = vlaneseq
        %v1666 = vshrl.u32 %v1665, 7
        %v1667 = vsub.s32 1, %v1666
        %v1668 = vrot.slane %v1574, %v1667
        %v1669 = vlaneseq
        %v1670 = vshrl.u32 %v1669, 7
        %v1671 = vsub.s32 2, %v1670
        %v1672 = vrot.slane %v1574, %v1671
        %v1673 = vlaneseq
        %v1674 = vshrl.u32 %v1673, 7
        %v1675 = vsub.s32 3, %v1674
        %v1676 = vrot.slane %v1574, %v1675
        %v1681 = vmul.f32 %v1664, %v1656
        %v1682 = vmul.f32 %v1668, %v1657
        %v1683 = vmul.f32 %v1672, %v1658
        %v1684 = vmul.f32 %v1676, %v1659
        %v1686 = vlaneseq
        %v1687 = vshrl.u32 %v1686, 7
        %v1688 = vsub.s32 0, %v1687
        %v1689 = vrot.slane %v1575, %v1688
        %v1690 = vlaneseq
        %v1691 = vshrl.u32 %v1690, 7
        %v1692 = vsub.s32 1, %v1691
        %v1693 = vrot.slane %v1575, %v1692
        %v1694 = vlaneseq
        %v1695 = vshrl.u32 %v1694, 7
        %v1696 = vsub.s32 2, %v1695
        %v1697 = vrot.slane %v1575, %v1696
        %v1698 = vlaneseq
        %v1699 = vshrl.u32 %v1698, 7
        %v1700 = vsub.s32 3, %v1699
        %v1701 = vrot.slane %v1575, %v1700
        %v1706 = vadd.f32 %v1681, %v1689
        %v1707 = vadd.f32 %v1682, %v1693
        %v1708 = vadd.f32 %v1683, %v1697
        %v1709 = vadd.f32 %v1684, %v1701
        %vm1710 = vcmp.ge.f32.partialorder %v1706, 0.0
        %vm1711 = vcmp.ge.f32.partialorder %v1707, 0.0
        %vm1712 = vcmp.ge.f32.partialorder %v1708, 0.0
        %vm1713 = vcmp.ge.f32.partialorder %v1709, 0.0
        %v1714 = vmul.f32 %v1706, 0.01
        %v1715 = vmul.f32 %v1707, 0.01
        %v1716 = vmul.f32 %v1708, 0.01
        %v1717 = vmul.f32 %v1709, 0.01
        %v1718 = vsel %vm1710, %v1706, %v1714
        %v1719 = vsel %vm1711, %v1707, %v1715
        %v1720 = vsel %vm1712, %v1708, %v1716
        %v1721 = vsel %vm1713, %v1709, %v1717
        %v1722 = vpack.c.bf16 %v1718, %v1718
        %v1723 = vpack.c.bf16 %v1719, %v1719
        %v1724 = vpack.c.bf16 %v1720, %v1720
        %v1725 = vpack.c.bf16 %v1721, %v1721
        %v1726 = vld [vmem:[#allocation19] sm:$0xff]
        %v1727 = vld [vmem:[#allocation19 + $0x8] sm:$0xff]
        %v1728 = vld [vmem:[#allocation19 + $0x10] sm:$0xff]
        %v1729 = vld [vmem:[#allocation19 + $0x18] sm:$0xff]
        %v1730 = vld [vmem:[#allocation19 + $0x20] sm:$0xff]
        %v1731 = vld [vmem:[#allocation19 + $0x28] sm:$0xff]
        %v1732 = vld [vmem:[#allocation19 + $0x30] sm:$0xff]
        %v1733 = vld [vmem:[#allocation19 + $0x38] sm:$0xff]
        %v1734 = vld [vmem:[#allocation19 + $0x40] sm:$0xff]
        %v1735 = vld [vmem:[#allocation19 + $0x48] sm:$0xff]
        %v1736 = vld [vmem:[#allocation19 + $0x50] sm:$0xff]
        %v1737 = vld [vmem:[#allocation19 + $0x58] sm:$0xff]
        %v1738 = vld [vmem:[#allocation19 + $0x60] sm:$0xff]
        %v1739 = vld [vmem:[#allocation19 + $0x68] sm:$0xff]
        %v1740 = vld [vmem:[#allocation19 + $0x70] sm:$0xff]
        %v1741 = vld [vmem:[#allocation19 + $0x78] sm:$0xff]
        %v1742 = vld [vmem:[#allocation19 + $0x80] sm:$0xff]
        %v1743 = vld [vmem:[#allocation19 + $0x88] sm:$0xff]
        %v1744 = vld [vmem:[#allocation19 + $0x90] sm:$0xff]
        %v1745 = vld [vmem:[#allocation19 + $0x98] sm:$0xff]
        %v1746 = vld [vmem:[#allocation19 + $0xa0] sm:$0xff]
        %v1747 = vld [vmem:[#allocation19 + $0xa8] sm:$0xff]
        %v1748 = vld [vmem:[#allocation19 + $0xb0] sm:$0xff]
        %v1749 = vld [vmem:[#allocation19 + $0xb8] sm:$0xff]
        %v1750 = vld [vmem:[#allocation19 + $0xc0] sm:$0xff]
        %v1751 = vld [vmem:[#allocation19 + $0xc8] sm:$0xff]
        %v1752 = vld [vmem:[#allocation19 + $0xd0] sm:$0xff]
        %v1753 = vld [vmem:[#allocation19 + $0xd8] sm:$0xff]
        %v1754 = vld [vmem:[#allocation19 + $0xe0] sm:$0xff]
        %v1755 = vld [vmem:[#allocation19 + $0xe8] sm:$0xff]
        %v1756 = vld [vmem:[#allocation19 + $0xf0] sm:$0xff]
        %v1757 = vld [vmem:[#allocation19 + $0xf8] sm:$0xff]
        %v1758 = vld [vmem:[#allocation19 + $0x100] sm:$0xff]
        %v1759 = vld [vmem:[#allocation19 + $0x108] sm:$0xff]
        %v1760 = vld [vmem:[#allocation19 + $0x110] sm:$0xff]
        %v1761 = vld [vmem:[#allocation19 + $0x118] sm:$0xff]
        %v1762 = vld [vmem:[#allocation19 + $0x120] sm:$0xff]
        %v1763 = vld [vmem:[#allocation19 + $0x128] sm:$0xff]
        %v1764 = vld [vmem:[#allocation19 + $0x130] sm:$0xff]
        %v1765 = vld [vmem:[#allocation19 + $0x138] sm:$0xff]
        %v1766 = vld [vmem:[#allocation19 + $0x140] sm:$0xff]
        %v1767 = vld [vmem:[#allocation19 + $0x148] sm:$0xff]
        %v1768 = vld [vmem:[#allocation19 + $0x150] sm:$0xff]
        %v1769 = vld [vmem:[#allocation19 + $0x158] sm:$0xff]
        %v1770 = vld [vmem:[#allocation19 + $0x160] sm:$0xff]
        %v1771 = vld [vmem:[#allocation19 + $0x168] sm:$0xff]
        %v1772 = vld [vmem:[#allocation19 + $0x170] sm:$0xff]
        %v1773 = vld [vmem:[#allocation19 + $0x178] sm:$0xff]
        %v1774 = vld [vmem:[#allocation19 + $0x180] sm:$0xff]
        %v1775 = vld [vmem:[#allocation19 + $0x188] sm:$0xff]
        %v1776 = vld [vmem:[#allocation19 + $0x190] sm:$0xff]
        %v1777 = vld [vmem:[#allocation19 + $0x198] sm:$0xff]
        %v1778 = vld [vmem:[#allocation19 + $0x1a0] sm:$0xff]
        %v1779 = vld [vmem:[#allocation19 + $0x1a8] sm:$0xff]
        %v1780 = vld [vmem:[#allocation19 + $0x1b0] sm:$0xff]
        %v1781 = vld [vmem:[#allocation19 + $0x1b8] sm:$0xff]
        %v1782 = vld [vmem:[#allocation19 + $0x1c0] sm:$0xff]
        %v1783 = vld [vmem:[#allocation19 + $0x1c8] sm:$0xff]
        %v1784 = vld [vmem:[#allocation19 + $0x1d0] sm:$0xff]
        %v1785 = vld [vmem:[#allocation19 + $0x1d8] sm:$0xff]
        %v1786 = vld [vmem:[#allocation19 + $0x1e0] sm:$0xff]
        %v1787 = vld [vmem:[#allocation19 + $0x1e8] sm:$0xff]
        %v1788 = vld [vmem:[#allocation19 + $0x1f0] sm:$0xff]
        %v1789 = vld [vmem:[#allocation19 + $0x1f8] sm:$0xff]
        %v1790 = vld [vmem:[#allocation19 + $0x200] sm:$0xff]
        %v1791 = vld [vmem:[#allocation19 + $0x208] sm:$0xff]
        %v1792 = vld [vmem:[#allocation19 + $0x210] sm:$0xff]
        %v1793 = vld [vmem:[#allocation19 + $0x218] sm:$0xff]
        %v1794 = vld [vmem:[#allocation19 + $0x220] sm:$0xff]
        %v1795 = vld [vmem:[#allocation19 + $0x228] sm:$0xff]
        %v1796 = vld [vmem:[#allocation19 + $0x230] sm:$0xff]
        %v1797 = vld [vmem:[#allocation19 + $0x238] sm:$0xff]
        %v1798 = vld [vmem:[#allocation19 + $0x240] sm:$0xff]
        %v1799 = vld [vmem:[#allocation19 + $0x248] sm:$0xff]
        %v1800 = vld [vmem:[#allocation19 + $0x250] sm:$0xff]
        %v1801 = vld [vmem:[#allocation19 + $0x258] sm:$0xff]
        %v1802 = vld [vmem:[#allocation19 + $0x260] sm:$0xff]
        %v1803 = vld [vmem:[#allocation19 + $0x268] sm:$0xff]
        %v1804 = vld [vmem:[#allocation19 + $0x270] sm:$0xff]
        %v1805 = vld [vmem:[#allocation19 + $0x278] sm:$0xff]
        %v1806 = vld [vmem:[#allocation19 + $0x280] sm:$0xff]
        %v1807 = vld [vmem:[#allocation19 + $0x288] sm:$0xff]
        %v1808 = vld [vmem:[#allocation19 + $0x290] sm:$0xff]
        %v1809 = vld [vmem:[#allocation19 + $0x298] sm:$0xff]
        %v1810 = vld [vmem:[#allocation19 + $0x2a0] sm:$0xff]
        %v1811 = vld [vmem:[#allocation19 + $0x2a8] sm:$0xff]
        %v1812 = vld [vmem:[#allocation19 + $0x2b0] sm:$0xff]
        %v1813 = vld [vmem:[#allocation19 + $0x2b8] sm:$0xff]
        %v1814 = vld [vmem:[#allocation19 + $0x2c0] sm:$0xff]
        %v1815 = vld [vmem:[#allocation19 + $0x2c8] sm:$0xff]
        %v1816 = vld [vmem:[#allocation19 + $0x2d0] sm:$0xff]
        %v1817 = vld [vmem:[#allocation19 + $0x2d8] sm:$0xff]
        %v1818 = vld [vmem:[#allocation19 + $0x2e0] sm:$0xff]
        %v1819 = vld [vmem:[#allocation19 + $0x2e8] sm:$0xff]
        %v1820 = vld [vmem:[#allocation19 + $0x2f0] sm:$0xff]
        %v1821 = vld [vmem:[#allocation19 + $0x2f8] sm:$0xff]
        %v1822 = vld [vmem:[#allocation19 + $0x300] sm:$0xff]
        %v1823 = vld [vmem:[#allocation19 + $0x308] sm:$0xff]
        %v1824 = vld [vmem:[#allocation19 + $0x310] sm:$0xff]
        %v1825 = vld [vmem:[#allocation19 + $0x318] sm:$0xff]
        %v1826 = vld [vmem:[#allocation19 + $0x320] sm:$0xff]
        %v1827 = vld [vmem:[#allocation19 + $0x328] sm:$0xff]
        %v1828 = vld [vmem:[#allocation19 + $0x330] sm:$0xff]
        %v1829 = vld [vmem:[#allocation19 + $0x338] sm:$0xff]
        %v1830 = vld [vmem:[#allocation19 + $0x340] sm:$0xff]
        %v1831 = vld [vmem:[#allocation19 + $0x348] sm:$0xff]
        %v1832 = vld [vmem:[#allocation19 + $0x350] sm:$0xff]
        %v1833 = vld [vmem:[#allocation19 + $0x358] sm:$0xff]
        %v1834 = vld [vmem:[#allocation19 + $0x360] sm:$0xff]
        %v1835 = vld [vmem:[#allocation19 + $0x368] sm:$0xff]
        %v1836 = vld [vmem:[#allocation19 + $0x370] sm:$0xff]
        %v1837 = vld [vmem:[#allocation19 + $0x378] sm:$0xff]
        %v1838 = vld [vmem:[#allocation19 + $0x380] sm:$0xff]
        %v1839 = vld [vmem:[#allocation19 + $0x388] sm:$0xff]
        %v1840 = vld [vmem:[#allocation19 + $0x390] sm:$0xff]
        %v1841 = vld [vmem:[#allocation19 + $0x398] sm:$0xff]
        %v1842 = vld [vmem:[#allocation19 + $0x3a0] sm:$0xff]
        %v1843 = vld [vmem:[#allocation19 + $0x3a8] sm:$0xff]
        %v1844 = vld [vmem:[#allocation19 + $0x3b0] sm:$0xff]
        %v1845 = vld [vmem:[#allocation19 + $0x3b8] sm:$0xff]
        %v1846 = vld [vmem:[#allocation19 + $0x3c0] sm:$0xff]
        %v1847 = vld [vmem:[#allocation19 + $0x3c8] sm:$0xff]
        %v1848 = vld [vmem:[#allocation19 + $0x3d0] sm:$0xff]
        %v1849 = vld [vmem:[#allocation19 + $0x3d8] sm:$0xff]
        %v1850 = vld [vmem:[#allocation19 + $0x3e0] sm:$0xff]
        %v1851 = vld [vmem:[#allocation19 + $0x3e8] sm:$0xff]
        %v1852 = vld [vmem:[#allocation19 + $0x3f0] sm:$0xff]
        %v1853 = vld [vmem:[#allocation19 + $0x3f8] sm:$0xff]
        %v1854 = vld [vmem:[#allocation19 + $0x400] sm:$0xff]
        %v1855 = vld [vmem:[#allocation19 + $0x408] sm:$0xff]
        %v1856 = vld [vmem:[#allocation19 + $0x410] sm:$0xff]
        %v1857 = vld [vmem:[#allocation19 + $0x418] sm:$0xff]
        %v1858 = vld [vmem:[#allocation19 + $0x420] sm:$0xff]
        %v1859 = vld [vmem:[#allocation19 + $0x428] sm:$0xff]
        %v1860 = vld [vmem:[#allocation19 + $0x430] sm:$0xff]
        %v1861 = vld [vmem:[#allocation19 + $0x438] sm:$0xff]
        %v1862 = vld [vmem:[#allocation19 + $0x440] sm:$0xff]
        %v1863 = vld [vmem:[#allocation19 + $0x448] sm:$0xff]
        %v1864 = vld [vmem:[#allocation19 + $0x450] sm:$0xff]
        %v1865 = vld [vmem:[#allocation19 + $0x458] sm:$0xff]
        %v1866 = vld [vmem:[#allocation19 + $0x460] sm:$0xff]
        %v1867 = vld [vmem:[#allocation19 + $0x468] sm:$0xff]
        %v1868 = vld [vmem:[#allocation19 + $0x470] sm:$0xff]
        %v1869 = vld [vmem:[#allocation19 + $0x478] sm:$0xff]
        %v1870 = vld [vmem:[#allocation19 + $0x480] sm:$0xff]
        %v1871 = vld [vmem:[#allocation19 + $0x488] sm:$0xff]
        %v1872 = vld [vmem:[#allocation19 + $0x490] sm:$0xff]
        %v1873 = vld [vmem:[#allocation19 + $0x498] sm:$0xff]
        %v1874 = vld [vmem:[#allocation19 + $0x4a0] sm:$0xff]
        %v1875 = vld [vmem:[#allocation19 + $0x4a8] sm:$0xff]
        %v1876 = vld [vmem:[#allocation19 + $0x4b0] sm:$0xff]
        %v1877 = vld [vmem:[#allocation19 + $0x4b8] sm:$0xff]
        %v1878 = vld [vmem:[#allocation19 + $0x4c0] sm:$0xff]
        %v1879 = vld [vmem:[#allocation19 + $0x4c8] sm:$0xff]
        %v1880 = vld [vmem:[#allocation19 + $0x4d0] sm:$0xff]
        %v1881 = vld [vmem:[#allocation19 + $0x4d8] sm:$0xff]
        %v1882 = vld [vmem:[#allocation19 + $0x4e0] sm:$0xff]
        %v1883 = vld [vmem:[#allocation19 + $0x4e8] sm:$0xff]
        %v1884 = vld [vmem:[#allocation19 + $0x4f0] sm:$0xff]
        %v1885 = vld [vmem:[#allocation19 + $0x4f8] sm:$0xff]
        %v1886 = vld [vmem:[#allocation19 + $0x500] sm:$0xff]
        %v1887 = vld [vmem:[#allocation19 + $0x508] sm:$0xff]
        %v1888 = vld [vmem:[#allocation19 + $0x510] sm:$0xff]
        %v1889 = vld [vmem:[#allocation19 + $0x518] sm:$0xff]
        %v1890 = vld [vmem:[#allocation19 + $0x520] sm:$0xff]
        %v1891 = vld [vmem:[#allocation19 + $0x528] sm:$0xff]
        %v1892 = vld [vmem:[#allocation19 + $0x530] sm:$0xff]
        %v1893 = vld [vmem:[#allocation19 + $0x538] sm:$0xff]
        %v1894 = vld [vmem:[#allocation19 + $0x540] sm:$0xff]
        %v1895 = vld [vmem:[#allocation19 + $0x548] sm:$0xff]
        %v1896 = vld [vmem:[#allocation19 + $0x550] sm:$0xff]
        %v1897 = vld [vmem:[#allocation19 + $0x558] sm:$0xff]
        %v1898 = vld [vmem:[#allocation19 + $0x560] sm:$0xff]
        %v1899 = vld [vmem:[#allocation19 + $0x568] sm:$0xff]
        %v1900 = vld [vmem:[#allocation19 + $0x570] sm:$0xff]
        %v1901 = vld [vmem:[#allocation19 + $0x578] sm:$0xff]
        %v1902 = vld [vmem:[#allocation19 + $0x580] sm:$0xff]
        %v1903 = vld [vmem:[#allocation19 + $0x588] sm:$0xff]
        %v1904 = vld [vmem:[#allocation19 + $0x590] sm:$0xff]
        %v1905 = vld [vmem:[#allocation19 + $0x598] sm:$0xff]
        %v1906 = vld [vmem:[#allocation19 + $0x5a0] sm:$0xff]
        %v1907 = vld [vmem:[#allocation19 + $0x5a8] sm:$0xff]
        %v1908 = vld [vmem:[#allocation19 + $0x5b0] sm:$0xff]
        %v1909 = vld [vmem:[#allocation19 + $0x5b8] sm:$0xff]
        %v1910 = vld [vmem:[#allocation19 + $0x5c0] sm:$0xff]
        %v1911 = vld [vmem:[#allocation19 + $0x5c8] sm:$0xff]
        %v1912 = vld [vmem:[#allocation19 + $0x5d0] sm:$0xff]
        %v1913 = vld [vmem:[#allocation19 + $0x5d8] sm:$0xff]
        %v1914 = vld [vmem:[#allocation19 + $0x5e0] sm:$0xff]
        %v1915 = vld [vmem:[#allocation19 + $0x5e8] sm:$0xff]
        %v1916 = vld [vmem:[#allocation19 + $0x5f0] sm:$0xff]
        %v1917 = vld [vmem:[#allocation19 + $0x5f8] sm:$0xff]
        %v1918 = vld [vmem:[#allocation19 + $0x600] sm:$0xff]
        %v1919 = vld [vmem:[#allocation19 + $0x608] sm:$0xff]
        %v1920 = vld [vmem:[#allocation19 + $0x610] sm:$0xff]
        %v1921 = vld [vmem:[#allocation19 + $0x618] sm:$0xff]
        %v1922 = vld [vmem:[#allocation19 + $0x620] sm:$0xff]
        %v1923 = vld [vmem:[#allocation19 + $0x628] sm:$0xff]
        %v1924 = vld [vmem:[#allocation19 + $0x630] sm:$0xff]
        %v1925 = vld [vmem:[#allocation19 + $0x638] sm:$0xff]
        %v1926 = vld [vmem:[#allocation19 + $0x640] sm:$0xff]
        %v1927 = vld [vmem:[#allocation19 + $0x648] sm:$0xff]
        %v1928 = vld [vmem:[#allocation19 + $0x650] sm:$0xff]
        %v1929 = vld [vmem:[#allocation19 + $0x658] sm:$0xff]
        %v1930 = vld [vmem:[#allocation19 + $0x660] sm:$0xff]
        %v1931 = vld [vmem:[#allocation19 + $0x668] sm:$0xff]
        %v1932 = vld [vmem:[#allocation19 + $0x670] sm:$0xff]
        %v1933 = vld [vmem:[#allocation19 + $0x678] sm:$0xff]
        %v1934 = vld [vmem:[#allocation19 + $0x680] sm:$0xff]
        %v1935 = vld [vmem:[#allocation19 + $0x688] sm:$0xff]
        %v1936 = vld [vmem:[#allocation19 + $0x690] sm:$0xff]
        %v1937 = vld [vmem:[#allocation19 + $0x698] sm:$0xff]
        %v1938 = vld [vmem:[#allocation19 + $0x6a0] sm:$0xff]
        %v1939 = vld [vmem:[#allocation19 + $0x6a8] sm:$0xff]
        %v1940 = vld [vmem:[#allocation19 + $0x6b0] sm:$0xff]
        %v1941 = vld [vmem:[#allocation19 + $0x6b8] sm:$0xff]
        %v1942 = vld [vmem:[#allocation19 + $0x6c0] sm:$0xff]
        %v1943 = vld [vmem:[#allocation19 + $0x6c8] sm:$0xff]
        %v1944 = vld [vmem:[#allocation19 + $0x6d0] sm:$0xff]
        %v1945 = vld [vmem:[#allocation19 + $0x6d8] sm:$0xff]
        %v1946 = vld [vmem:[#allocation19 + $0x6e0] sm:$0xff]
        %v1947 = vld [vmem:[#allocation19 + $0x6e8] sm:$0xff]
        %v1948 = vld [vmem:[#allocation19 + $0x6f0] sm:$0xff]
        %v1949 = vld [vmem:[#allocation19 + $0x6f8] sm:$0xff]
        %v1950 = vld [vmem:[#allocation19 + $0x700] sm:$0xff]
        %v1951 = vld [vmem:[#allocation19 + $0x708] sm:$0xff]
        %v1952 = vld [vmem:[#allocation19 + $0x710] sm:$0xff]
        %v1953 = vld [vmem:[#allocation19 + $0x718] sm:$0xff]
        %v1954 = vld [vmem:[#allocation19 + $0x720] sm:$0xff]
        %v1955 = vld [vmem:[#allocation19 + $0x728] sm:$0xff]
        %v1956 = vld [vmem:[#allocation19 + $0x730] sm:$0xff]
        %v1957 = vld [vmem:[#allocation19 + $0x738] sm:$0xff]
        %v1958 = vld [vmem:[#allocation19 + $0x740] sm:$0xff]
        %v1959 = vld [vmem:[#allocation19 + $0x748] sm:$0xff]
        %v1960 = vld [vmem:[#allocation19 + $0x750] sm:$0xff]
        %v1961 = vld [vmem:[#allocation19 + $0x758] sm:$0xff]
        %v1962 = vld [vmem:[#allocation19 + $0x760] sm:$0xff]
        %v1963 = vld [vmem:[#allocation19 + $0x768] sm:$0xff]
        %v1964 = vld [vmem:[#allocation19 + $0x770] sm:$0xff]
        %v1965 = vld [vmem:[#allocation19 + $0x778] sm:$0xff]
        %v1966 = vld [vmem:[#allocation19 + $0x780] sm:$0xff]
        %v1967 = vld [vmem:[#allocation19 + $0x788] sm:$0xff]
        %v1968 = vld [vmem:[#allocation19 + $0x790] sm:$0xff]
        %v1969 = vld [vmem:[#allocation19 + $0x798] sm:$0xff]
        %v1970 = vld [vmem:[#allocation19 + $0x7a0] sm:$0xff]
        %v1971 = vld [vmem:[#allocation19 + $0x7a8] sm:$0xff]
        %v1972 = vld [vmem:[#allocation19 + $0x7b0] sm:$0xff]
        %v1973 = vld [vmem:[#allocation19 + $0x7b8] sm:$0xff]
        %v1974 = vld [vmem:[#allocation19 + $0x7c0] sm:$0xff]
        %v1975 = vld [vmem:[#allocation19 + $0x7c8] sm:$0xff]
        %v1976 = vld [vmem:[#allocation19 + $0x7d0] sm:$0xff]
        %v1977 = vld [vmem:[#allocation19 + $0x7d8] sm:$0xff]
        %v1978 = vld [vmem:[#allocation19 + $0x7e0] sm:$0xff]
        %v1979 = vld [vmem:[#allocation19 + $0x7e8] sm:$0xff]
        %v1980 = vld [vmem:[#allocation19 + $0x7f0] sm:$0xff]
        %v1981 = vld [vmem:[#allocation19 + $0x7f8] sm:$0xff]
        %v2238 = vunpack.c.l.b16 %v1726
        %v2239 = vunpack.c.h.b16 %v1726
        %v2240 = vunpack.c.l.b16 %v1727
        %v2241 = vunpack.c.h.b16 %v1727
        %v2242 = vunpack.c.l.b16 %v1728
        %v2243 = vunpack.c.h.b16 %v1728
        %v2244 = vunpack.c.l.b16 %v1729
        %v2245 = vunpack.c.h.b16 %v1729
        %v2246 = vunpack.c.l.b16 %v1730
        %v2247 = vunpack.c.h.b16 %v1730
        %v2248 = vunpack.c.l.b16 %v1731
        %v2249 = vunpack.c.h.b16 %v1731
        %v2250 = vunpack.c.l.b16 %v1732
        %v2251 = vunpack.c.h.b16 %v1732
        %v2252 = vunpack.c.l.b16 %v1733
        %v2253 = vunpack.c.h.b16 %v1733
        %v2254 = vunpack.c.l.b16 %v1734
        %v2255 = vunpack.c.h.b16 %v1734
        %v2256 = vunpack.c.l.b16 %v1735
        %v2257 = vunpack.c.h.b16 %v1735
        %v2258 = vunpack.c.l.b16 %v1736
        %v2259 = vunpack.c.h.b16 %v1736
        %v2260 = vunpack.c.l.b16 %v1737
        %v2261 = vunpack.c.h.b16 %v1737
        %v2262 = vunpack.c.l.b16 %v1738
        %v2263 = vunpack.c.h.b16 %v1738
        %v2264 = vunpack.c.l.b16 %v1739
        %v2265 = vunpack.c.h.b16 %v1739
        %v2266 = vunpack.c.l.b16 %v1740
        %v2267 = vunpack.c.h.b16 %v1740
        %v2268 = vunpack.c.l.b16 %v1741
        %v2269 = vunpack.c.h.b16 %v1741
        %v2270 = vunpack.c.l.b16 %v1742
        %v2271 = vunpack.c.h.b16 %v1742
        %v2272 = vunpack.c.l.b16 %v1743
        %v2273 = vunpack.c.h.b16 %v1743
        %v2274 = vunpack.c.l.b16 %v1744
        %v2275 = vunpack.c.h.b16 %v1744
        %v2276 = vunpack.c.l.b16 %v1745
        %v2277 = vunpack.c.h.b16 %v1745
        %v2278 = vunpack.c.l.b16 %v1746
        %v2279 = vunpack.c.h.b16 %v1746
        %v2280 = vunpack.c.l.b16 %v1747
        %v2281 = vunpack.c.h.b16 %v1747
        %v2282 = vunpack.c.l.b16 %v1748
        %v2283 = vunpack.c.h.b16 %v1748
        %v2284 = vunpack.c.l.b16 %v1749
        %v2285 = vunpack.c.h.b16 %v1749
        %v2286 = vunpack.c.l.b16 %v1750
        %v2287 = vunpack.c.h.b16 %v1750
        %v2288 = vunpack.c.l.b16 %v1751
        %v2289 = vunpack.c.h.b16 %v1751
        %v2290 = vunpack.c.l.b16 %v1752
        %v2291 = vunpack.c.h.b16 %v1752
        %v2292 = vunpack.c.l.b16 %v1753
        %v2293 = vunpack.c.h.b16 %v1753
        %v2294 = vunpack.c.l.b16 %v1754
        %v2295 = vunpack.c.h.b16 %v1754
        %v2296 = vunpack.c.l.b16 %v1755
        %v2297 = vunpack.c.h.b16 %v1755
        %v2298 = vunpack.c.l.b16 %v1756
        %v2299 = vunpack.c.h.b16 %v1756
        %v2300 = vunpack.c.l.b16 %v1757
        %v2301 = vunpack.c.h.b16 %v1757
        %v2302 = vunpack.c.l.b16 %v1758
        %v2303 = vunpack.c.h.b16 %v1758
        %v2304 = vunpack.c.l.b16 %v1759
        %v2305 = vunpack.c.h.b16 %v1759
        %v2306 = vunpack.c.l.b16 %v1760
        %v2307 = vunpack.c.h.b16 %v1760
        %v2308 = vunpack.c.l.b16 %v1761
        %v2309 = vunpack.c.h.b16 %v1761
        %v2310 = vunpack.c.l.b16 %v1762
        %v2311 = vunpack.c.h.b16 %v1762
        %v2312 = vunpack.c.l.b16 %v1763
        %v2313 = vunpack.c.h.b16 %v1763
        %v2314 = vunpack.c.l.b16 %v1764
        %v2315 = vunpack.c.h.b16 %v1764
        %v2316 = vunpack.c.l.b16 %v1765
        %v2317 = vunpack.c.h.b16 %v1765
        %v2318 = vunpack.c.l.b16 %v1766
        %v2319 = vunpack.c.h.b16 %v1766
        %v2320 = vunpack.c.l.b16 %v1767
        %v2321 = vunpack.c.h.b16 %v1767
        %v2322 = vunpack.c.l.b16 %v1768
        %v2323 = vunpack.c.h.b16 %v1768
        %v2324 = vunpack.c.l.b16 %v1769
        %v2325 = vunpack.c.h.b16 %v1769
        %v2326 = vunpack.c.l.b16 %v1770
        %v2327 = vunpack.c.h.b16 %v1770
        %v2328 = vunpack.c.l.b16 %v1771
        %v2329 = vunpack.c.h.b16 %v1771
        %v2330 = vunpack.c.l.b16 %v1772
        %v2331 = vunpack.c.h.b16 %v1772
        %v2332 = vunpack.c.l.b16 %v1773
        %v2333 = vunpack.c.h.b16 %v1773
        %v2334 = vunpack.c.l.b16 %v1774
        %v2335 = vunpack.c.h.b16 %v1774
        %v2336 = vunpack.c.l.b16 %v1775
        %v2337 = vunpack.c.h.b16 %v1775
        %v2338 = vunpack.c.l.b16 %v1776
        %v2339 = vunpack.c.h.b16 %v1776
        %v2340 = vunpack.c.l.b16 %v1777
        %v2341 = vunpack.c.h.b16 %v1777
        %v2342 = vunpack.c.l.b16 %v1778
        %v2343 = vunpack.c.h.b16 %v1778
        %v2344 = vunpack.c.l.b16 %v1779
        %v2345 = vunpack.c.h.b16 %v1779
        %v2346 = vunpack.c.l.b16 %v1780
        %v2347 = vunpack.c.h.b16 %v1780
        %v2348 = vunpack.c.l.b16 %v1781
        %v2349 = vunpack.c.h.b16 %v1781
        %v2350 = vunpack.c.l.b16 %v1782
        %v2351 = vunpack.c.h.b16 %v1782
        %v2352 = vunpack.c.l.b16 %v1783
        %v2353 = vunpack.c.h.b16 %v1783
        %v2354 = vunpack.c.l.b16 %v1784
        %v2355 = vunpack.c.h.b16 %v1784
        %v2356 = vunpack.c.l.b16 %v1785
        %v2357 = vunpack.c.h.b16 %v1785
        %v2358 = vunpack.c.l.b16 %v1786
        %v2359 = vunpack.c.h.b16 %v1786
        %v2360 = vunpack.c.l.b16 %v1787
        %v2361 = vunpack.c.h.b16 %v1787
        %v2362 = vunpack.c.l.b16 %v1788
        %v2363 = vunpack.c.h.b16 %v1788
        %v2364 = vunpack.c.l.b16 %v1789
        %v2365 = vunpack.c.h.b16 %v1789
        %v2366 = vunpack.c.l.b16 %v1790
        %v2367 = vunpack.c.h.b16 %v1790
        %v2368 = vunpack.c.l.b16 %v1791
        %v2369 = vunpack.c.h.b16 %v1791
        %v2370 = vunpack.c.l.b16 %v1792
        %v2371 = vunpack.c.h.b16 %v1792
        %v2372 = vunpack.c.l.b16 %v1793
        %v2373 = vunpack.c.h.b16 %v1793
        %v2374 = vunpack.c.l.b16 %v1794
        %v2375 = vunpack.c.h.b16 %v1794
        %v2376 = vunpack.c.l.b16 %v1795
        %v2377 = vunpack.c.h.b16 %v1795
        %v2378 = vunpack.c.l.b16 %v1796
        %v2379 = vunpack.c.h.b16 %v1796
        %v2380 = vunpack.c.l.b16 %v1797
        %v2381 = vunpack.c.h.b16 %v1797
        %v2382 = vunpack.c.l.b16 %v1798
        %v2383 = vunpack.c.h.b16 %v1798
        %v2384 = vunpack.c.l.b16 %v1799
        %v2385 = vunpack.c.h.b16 %v1799
        %v2386 = vunpack.c.l.b16 %v1800
        %v2387 = vunpack.c.h.b16 %v1800
        %v2388 = vunpack.c.l.b16 %v1801
        %v2389 = vunpack.c.h.b16 %v1801
        %v2390 = vunpack.c.l.b16 %v1802
        %v2391 = vunpack.c.h.b16 %v1802
        %v2392 = vunpack.c.l.b16 %v1803
        %v2393 = vunpack.c.h.b16 %v1803
        %v2394 = vunpack.c.l.b16 %v1804
        %v2395 = vunpack.c.h.b16 %v1804
        %v2396 = vunpack.c.l.b16 %v1805
        %v2397 = vunpack.c.h.b16 %v1805
        %v2398 = vunpack.c.l.b16 %v1806
        %v2399 = vunpack.c.h.b16 %v1806
        %v2400 = vunpack.c.l.b16 %v1807
        %v2401 = vunpack.c.h.b16 %v1807
        %v2402 = vunpack.c.l.b16 %v1808
        %v2403 = vunpack.c.h.b16 %v1808
        %v2404 = vunpack.c.l.b16 %v1809
        %v2405 = vunpack.c.h.b16 %v1809
        %v2406 = vunpack.c.l.b16 %v1810
        %v2407 = vunpack.c.h.b16 %v1810
        %v2408 = vunpack.c.l.b16 %v1811
        %v2409 = vunpack.c.h.b16 %v1811
        %v2410 = vunpack.c.l.b16 %v1812
        %v2411 = vunpack.c.h.b16 %v1812
        %v2412 = vunpack.c.l.b16 %v1813
        %v2413 = vunpack.c.h.b16 %v1813
        %v2414 = vunpack.c.l.b16 %v1814
        %v2415 = vunpack.c.h.b16 %v1814
        %v2416 = vunpack.c.l.b16 %v1815
        %v2417 = vunpack.c.h.b16 %v1815
        %v2418 = vunpack.c.l.b16 %v1816
        %v2419 = vunpack.c.h.b16 %v1816
        %v2420 = vunpack.c.l.b16 %v1817
        %v2421 = vunpack.c.h.b16 %v1817
        %v2422 = vunpack.c.l.b16 %v1818
        %v2423 = vunpack.c.h.b16 %v1818
        %v2424 = vunpack.c.l.b16 %v1819
        %v2425 = vunpack.c.h.b16 %v1819
        %v2426 = vunpack.c.l.b16 %v1820
        %v2427 = vunpack.c.h.b16 %v1820
        %v2428 = vunpack.c.l.b16 %v1821
        %v2429 = vunpack.c.h.b16 %v1821
        %v2430 = vunpack.c.l.b16 %v1822
        %v2431 = vunpack.c.h.b16 %v1822
        %v2432 = vunpack.c.l.b16 %v1823
        %v2433 = vunpack.c.h.b16 %v1823
        %v2434 = vunpack.c.l.b16 %v1824
        %v2435 = vunpack.c.h.b16 %v1824
        %v2436 = vunpack.c.l.b16 %v1825
        %v2437 = vunpack.c.h.b16 %v1825
        %v2438 = vunpack.c.l.b16 %v1826
        %v2439 = vunpack.c.h.b16 %v1826
        %v2440 = vunpack.c.l.b16 %v1827
        %v2441 = vunpack.c.h.b16 %v1827
        %v2442 = vunpack.c.l.b16 %v1828
        %v2443 = vunpack.c.h.b16 %v1828
        %v2444 = vunpack.c.l.b16 %v1829
        %v2445 = vunpack.c.h.b16 %v1829
        %v2446 = vunpack.c.l.b16 %v1830
        %v2447 = vunpack.c.h.b16 %v1830
        %v2448 = vunpack.c.l.b16 %v1831
        %v2449 = vunpack.c.h.b16 %v1831
        %v2450 = vunpack.c.l.b16 %v1832
        %v2451 = vunpack.c.h.b16 %v1832
        %v2452 = vunpack.c.l.b16 %v1833
        %v2453 = vunpack.c.h.b16 %v1833
        %v2454 = vunpack.c.l.b16 %v1834
        %v2455 = vunpack.c.h.b16 %v1834
        %v2456 = vunpack.c.l.b16 %v1835
        %v2457 = vunpack.c.h.b16 %v1835
        %v2458 = vunpack.c.l.b16 %v1836
        %v2459 = vunpack.c.h.b16 %v1836
        %v2460 = vunpack.c.l.b16 %v1837
        %v2461 = vunpack.c.h.b16 %v1837
        %v2462 = vunpack.c.l.b16 %v1838
        %v2463 = vunpack.c.h.b16 %v1838
        %v2464 = vunpack.c.l.b16 %v1839
        %v2465 = vunpack.c.h.b16 %v1839
        %v2466 = vunpack.c.l.b16 %v1840
        %v2467 = vunpack.c.h.b16 %v1840
        %v2468 = vunpack.c.l.b16 %v1841
        %v2469 = vunpack.c.h.b16 %v1841
        %v2470 = vunpack.c.l.b16 %v1842
        %v2471 = vunpack.c.h.b16 %v1842
        %v2472 = vunpack.c.l.b16 %v1843
        %v2473 = vunpack.c.h.b16 %v1843
        %v2474 = vunpack.c.l.b16 %v1844
        %v2475 = vunpack.c.h.b16 %v1844
        %v2476 = vunpack.c.l.b16 %v1845
        %v2477 = vunpack.c.h.b16 %v1845
        %v2478 = vunpack.c.l.b16 %v1846
        %v2479 = vunpack.c.h.b16 %v1846
        %v2480 = vunpack.c.l.b16 %v1847
        %v2481 = vunpack.c.h.b16 %v1847
        %v2482 = vunpack.c.l.b16 %v1848
        %v2483 = vunpack.c.h.b16 %v1848
        %v2484 = vunpack.c.l.b16 %v1849
        %v2485 = vunpack.c.h.b16 %v1849
        %v2486 = vunpack.c.l.b16 %v1850
        %v2487 = vunpack.c.h.b16 %v1850
        %v2488 = vunpack.c.l.b16 %v1851
        %v2489 = vunpack.c.h.b16 %v1851
        %v2490 = vunpack.c.l.b16 %v1852
        %v2491 = vunpack.c.h.b16 %v1852
        %v2492 = vunpack.c.l.b16 %v1853
        %v2493 = vunpack.c.h.b16 %v1853
        %v2494 = vunpack.c.l.b16 %v1854
        %v2495 = vunpack.c.h.b16 %v1854
        %v2496 = vunpack.c.l.b16 %v1855
        %v2497 = vunpack.c.h.b16 %v1855
        %v2498 = vunpack.c.l.b16 %v1856
        %v2499 = vunpack.c.h.b16 %v1856
        %v2500 = vunpack.c.l.b16 %v1857
        %v2501 = vunpack.c.h.b16 %v1857
        %v2502 = vunpack.c.l.b16 %v1858
        %v2503 = vunpack.c.h.b16 %v1858
        %v2504 = vunpack.c.l.b16 %v1859
        %v2505 = vunpack.c.h.b16 %v1859
        %v2506 = vunpack.c.l.b16 %v1860
        %v2507 = vunpack.c.h.b16 %v1860
        %v2508 = vunpack.c.l.b16 %v1861
        %v2509 = vunpack.c.h.b16 %v1861
        %v2510 = vunpack.c.l.b16 %v1862
        %v2511 = vunpack.c.h.b16 %v1862
        %v2512 = vunpack.c.l.b16 %v1863
        %v2513 = vunpack.c.h.b16 %v1863
        %v2514 = vunpack.c.l.b16 %v1864
        %v2515 = vunpack.c.h.b16 %v1864
        %v2516 = vunpack.c.l.b16 %v1865
        %v2517 = vunpack.c.h.b16 %v1865
        %v2518 = vunpack.c.l.b16 %v1866
        %v2519 = vunpack.c.h.b16 %v1866
        %v2520 = vunpack.c.l.b16 %v1867
        %v2521 = vunpack.c.h.b16 %v1867
        %v2522 = vunpack.c.l.b16 %v1868
        %v2523 = vunpack.c.h.b16 %v1868
        %v2524 = vunpack.c.l.b16 %v1869
        %v2525 = vunpack.c.h.b16 %v1869
        %v2526 = vunpack.c.l.b16 %v1870
        %v2527 = vunpack.c.h.b16 %v1870
        %v2528 = vunpack.c.l.b16 %v1871
        %v2529 = vunpack.c.h.b16 %v1871
        %v2530 = vunpack.c.l.b16 %v1872
        %v2531 = vunpack.c.h.b16 %v1872
        %v2532 = vunpack.c.l.b16 %v1873
        %v2533 = vunpack.c.h.b16 %v1873
        %v2534 = vunpack.c.l.b16 %v1874
        %v2535 = vunpack.c.h.b16 %v1874
        %v2536 = vunpack.c.l.b16 %v1875
        %v2537 = vunpack.c.h.b16 %v1875
        %v2538 = vunpack.c.l.b16 %v1876
        %v2539 = vunpack.c.h.b16 %v1876
        %v2540 = vunpack.c.l.b16 %v1877
        %v2541 = vunpack.c.h.b16 %v1877
        %v2542 = vunpack.c.l.b16 %v1878
        %v2543 = vunpack.c.h.b16 %v1878
        %v2544 = vunpack.c.l.b16 %v1879
        %v2545 = vunpack.c.h.b16 %v1879
        %v2546 = vunpack.c.l.b16 %v1880
        %v2547 = vunpack.c.h.b16 %v1880
        %v2548 = vunpack.c.l.b16 %v1881
        %v2549 = vunpack.c.h.b16 %v1881
        %v2550 = vunpack.c.l.b16 %v1882
        %v2551 = vunpack.c.h.b16 %v1882
        %v2552 = vunpack.c.l.b16 %v1883
        %v2553 = vunpack.c.h.b16 %v1883
        %v2554 = vunpack.c.l.b16 %v1884
        %v2555 = vunpack.c.h.b16 %v1884
        %v2556 = vunpack.c.l.b16 %v1885
        %v2557 = vunpack.c.h.b16 %v1885
        %v2558 = vunpack.c.l.b16 %v1886
        %v2559 = vunpack.c.h.b16 %v1886
        %v2560 = vunpack.c.l.b16 %v1887
        %v2561 = vunpack.c.h.b16 %v1887
        %v2562 = vunpack.c.l.b16 %v1888
        %v2563 = vunpack.c.h.b16 %v1888
        %v2564 = vunpack.c.l.b16 %v1889
        %v2565 = vunpack.c.h.b16 %v1889
        %v2566 = vunpack.c.l.b16 %v1890
        %v2567 = vunpack.c.h.b16 %v1890
        %v2568 = vunpack.c.l.b16 %v1891
        %v2569 = vunpack.c.h.b16 %v1891
        %v2570 = vunpack.c.l.b16 %v1892
        %v2571 = vunpack.c.h.b16 %v1892
        %v2572 = vunpack.c.l.b16 %v1893
        %v2573 = vunpack.c.h.b16 %v1893
        %v2574 = vunpack.c.l.b16 %v1894
        %v2575 = vunpack.c.h.b16 %v1894
        %v2576 = vunpack.c.l.b16 %v1895
        %v2577 = vunpack.c.h.b16 %v1895
        %v2578 = vunpack.c.l.b16 %v1896
        %v2579 = vunpack.c.h.b16 %v1896
        %v2580 = vunpack.c.l.b16 %v1897
        %v2581 = vunpack.c.h.b16 %v1897
        %v2582 = vunpack.c.l.b16 %v1898
        %v2583 = vunpack.c.h.b16 %v1898
        %v2584 = vunpack.c.l.b16 %v1899
        %v2585 = vunpack.c.h.b16 %v1899
        %v2586 = vunpack.c.l.b16 %v1900
        %v2587 = vunpack.c.h.b16 %v1900
        %v2588 = vunpack.c.l.b16 %v1901
        %v2589 = vunpack.c.h.b16 %v1901
        %v2590 = vunpack.c.l.b16 %v1902
        %v2591 = vunpack.c.h.b16 %v1902
        %v2592 = vunpack.c.l.b16 %v1903
        %v2593 = vunpack.c.h.b16 %v1903
        %v2594 = vunpack.c.l.b16 %v1904
        %v2595 = vunpack.c.h.b16 %v1904
        %v2596 = vunpack.c.l.b16 %v1905
        %v2597 = vunpack.c.h.b16 %v1905
        %v2598 = vunpack.c.l.b16 %v1906
        %v2599 = vunpack.c.h.b16 %v1906
        %v2600 = vunpack.c.l.b16 %v1907
        %v2601 = vunpack.c.h.b16 %v1907
        %v2602 = vunpack.c.l.b16 %v1908
        %v2603 = vunpack.c.h.b16 %v1908
        %v2604 = vunpack.c.l.b16 %v1909
        %v2605 = vunpack.c.h.b16 %v1909
        %v2606 = vunpack.c.l.b16 %v1910
        %v2607 = vunpack.c.h.b16 %v1910
        %v2608 = vunpack.c.l.b16 %v1911
        %v2609 = vunpack.c.h.b16 %v1911
        %v2610 = vunpack.c.l.b16 %v1912
        %v2611 = vunpack.c.h.b16 %v1912
        %v2612 = vunpack.c.l.b16 %v1913
        %v2613 = vunpack.c.h.b16 %v1913
        %v2614 = vunpack.c.l.b16 %v1914
        %v2615 = vunpack.c.h.b16 %v1914
        %v2616 = vunpack.c.l.b16 %v1915
        %v2617 = vunpack.c.h.b16 %v1915
        %v2618 = vunpack.c.l.b16 %v1916
        %v2619 = vunpack.c.h.b16 %v1916
        %v2620 = vunpack.c.l.b16 %v1917
        %v2621 = vunpack.c.h.b16 %v1917
        %v2622 = vunpack.c.l.b16 %v1918
        %v2623 = vunpack.c.h.b16 %v1918
        %v2624 = vunpack.c.l.b16 %v1919
        %v2625 = vunpack.c.h.b16 %v1919
        %v2626 = vunpack.c.l.b16 %v1920
        %v2627 = vunpack.c.h.b16 %v1920
        %v2628 = vunpack.c.l.b16 %v1921
        %v2629 = vunpack.c.h.b16 %v1921
        %v2630 = vunpack.c.l.b16 %v1922
        %v2631 = vunpack.c.h.b16 %v1922
        %v2632 = vunpack.c.l.b16 %v1923
        %v2633 = vunpack.c.h.b16 %v1923
        %v2634 = vunpack.c.l.b16 %v1924
        %v2635 = vunpack.c.h.b16 %v1924
        %v2636 = vunpack.c.l.b16 %v1925
        %v2637 = vunpack.c.h.b16 %v1925
        %v2638 = vunpack.c.l.b16 %v1926
        %v2639 = vunpack.c.h.b16 %v1926
        %v2640 = vunpack.c.l.b16 %v1927
        %v2641 = vunpack.c.h.b16 %v1927
        %v2642 = vunpack.c.l.b16 %v1928
        %v2643 = vunpack.c.h.b16 %v1928
        %v2644 = vunpack.c.l.b16 %v1929
        %v2645 = vunpack.c.h.b16 %v1929
        %v2646 = vunpack.c.l.b16 %v1930
        %v2647 = vunpack.c.h.b16 %v1930
        %v2648 = vunpack.c.l.b16 %v1931
        %v2649 = vunpack.c.h.b16 %v1931
        %v2650 = vunpack.c.l.b16 %v1932
        %v2651 = vunpack.c.h.b16 %v1932
        %v2652 = vunpack.c.l.b16 %v1933
        %v2653 = vunpack.c.h.b16 %v1933
        %v2654 = vunpack.c.l.b16 %v1934
        %v2655 = vunpack.c.h.b16 %v1934
        %v2656 = vunpack.c.l.b16 %v1935
        %v2657 = vunpack.c.h.b16 %v1935
        %v2658 = vunpack.c.l.b16 %v1936
        %v2659 = vunpack.c.h.b16 %v1936
        %v2660 = vunpack.c.l.b16 %v1937
        %v2661 = vunpack.c.h.b16 %v1937
        %v2662 = vunpack.c.l.b16 %v1938
        %v2663 = vunpack.c.h.b16 %v1938
        %v2664 = vunpack.c.l.b16 %v1939
        %v2665 = vunpack.c.h.b16 %v1939
        %v2666 = vunpack.c.l.b16 %v1940
        %v2667 = vunpack.c.h.b16 %v1940
        %v2668 = vunpack.c.l.b16 %v1941
        %v2669 = vunpack.c.h.b16 %v1941
        %v2670 = vunpack.c.l.b16 %v1942
        %v2671 = vunpack.c.h.b16 %v1942
        %v2672 = vunpack.c.l.b16 %v1943
        %v2673 = vunpack.c.h.b16 %v1943
        %v2674 = vunpack.c.l.b16 %v1944
        %v2675 = vunpack.c.h.b16 %v1944
        %v2676 = vunpack.c.l.b16 %v1945
        %v2677 = vunpack.c.h.b16 %v1945
        %v2678 = vunpack.c.l.b16 %v1946
        %v2679 = vunpack.c.h.b16 %v1946
        %v2680 = vunpack.c.l.b16 %v1947
        %v2681 = vunpack.c.h.b16 %v1947
        %v2682 = vunpack.c.l.b16 %v1948
        %v2683 = vunpack.c.h.b16 %v1948
        %v2684 = vunpack.c.l.b16 %v1949
        %v2685 = vunpack.c.h.b16 %v1949
        %v2686 = vunpack.c.l.b16 %v1950
        %v2687 = vunpack.c.h.b16 %v1950
        %v2688 = vunpack.c.l.b16 %v1951
        %v2689 = vunpack.c.h.b16 %v1951
        %v2690 = vunpack.c.l.b16 %v1952
        %v2691 = vunpack.c.h.b16 %v1952
        %v2692 = vunpack.c.l.b16 %v1953
        %v2693 = vunpack.c.h.b16 %v1953
        %v2694 = vunpack.c.l.b16 %v1954
        %v2695 = vunpack.c.h.b16 %v1954
        %v2696 = vunpack.c.l.b16 %v1955
        %v2697 = vunpack.c.h.b16 %v1955
        %v2698 = vunpack.c.l.b16 %v1956
        %v2699 = vunpack.c.h.b16 %v1956
        %v2700 = vunpack.c.l.b16 %v1957
        %v2701 = vunpack.c.h.b16 %v1957
        %v2702 = vunpack.c.l.b16 %v1958
        %v2703 = vunpack.c.h.b16 %v1958
        %v2704 = vunpack.c.l.b16 %v1959
        %v2705 = vunpack.c.h.b16 %v1959
        %v2706 = vunpack.c.l.b16 %v1960
        %v2707 = vunpack.c.h.b16 %v1960
        %v2708 = vunpack.c.l.b16 %v1961
        %v2709 = vunpack.c.h.b16 %v1961
        %v2710 = vunpack.c.l.b16 %v1962
        %v2711 = vunpack.c.h.b16 %v1962
        %v2712 = vunpack.c.l.b16 %v1963
        %v2713 = vunpack.c.h.b16 %v1963
        %v2714 = vunpack.c.l.b16 %v1964
        %v2715 = vunpack.c.h.b16 %v1964
        %v2716 = vunpack.c.l.b16 %v1965
        %v2717 = vunpack.c.h.b16 %v1965
        %v2718 = vunpack.c.l.b16 %v1966
        %v2719 = vunpack.c.h.b16 %v1966
        %v2720 = vunpack.c.l.b16 %v1967
        %v2721 = vunpack.c.h.b16 %v1967
        %v2722 = vunpack.c.l.b16 %v1968
        %v2723 = vunpack.c.h.b16 %v1968
        %v2724 = vunpack.c.l.b16 %v1969
        %v2725 = vunpack.c.h.b16 %v1969
        %v2726 = vunpack.c.l.b16 %v1970
        %v2727 = vunpack.c.h.b16 %v1970
        %v2728 = vunpack.c.l.b16 %v1971
        %v2729 = vunpack.c.h.b16 %v1971
        %v2730 = vunpack.c.l.b16 %v1972
        %v2731 = vunpack.c.h.b16 %v1972
        %v2732 = vunpack.c.l.b16 %v1973
        %v2733 = vunpack.c.h.b16 %v1973
        %v2734 = vunpack.c.l.b16 %v1974
        %v2735 = vunpack.c.h.b16 %v1974
        %v2736 = vunpack.c.l.b16 %v1975
        %v2737 = vunpack.c.h.b16 %v1975
        %v2738 = vunpack.c.l.b16 %v1976
        %v2739 = vunpack.c.h.b16 %v1976
        %v2740 = vunpack.c.l.b16 %v1977
        %v2741 = vunpack.c.h.b16 %v1977
        %v2742 = vunpack.c.l.b16 %v1978
        %v2743 = vunpack.c.h.b16 %v1978
        %v2744 = vunpack.c.l.b16 %v1979
        %v2745 = vunpack.c.h.b16 %v1979
        %v2746 = vunpack.c.l.b16 %v1980
        %v2747 = vunpack.c.h.b16 %v1980
        %v2748 = vunpack.c.l.b16 %v1981
        %v2749 = vunpack.c.h.b16 %v1981
        %v2750 = vpack.c.b16 %v2246, %v2238
        %v2751 = vpack.c.b16 %v2247, %v2239
        %v2752 = vpack.c.b16 %v2248, %v2240
        %v2753 = vpack.c.b16 %v2249, %v2241
        %v2754 = vpack.c.b16 %v2250, %v2242
        %v2755 = vpack.c.b16 %v2251, %v2243
        %v2756 = vpack.c.b16 %v2252, %v2244
        %v2757 = vpack.c.b16 %v2253, %v2245
        %v2758 = vpack.c.b16 %v2262, %v2254
        %v2759 = vpack.c.b16 %v2263, %v2255
        %v2760 = vpack.c.b16 %v2264, %v2256
        %v2761 = vpack.c.b16 %v2265, %v2257
        %v2762 = vpack.c.b16 %v2266, %v2258
        %v2763 = vpack.c.b16 %v2267, %v2259
        %v2764 = vpack.c.b16 %v2268, %v2260
        %v2765 = vpack.c.b16 %v2269, %v2261
        %v2766 = vpack.c.b16 %v2278, %v2270
        %v2767 = vpack.c.b16 %v2279, %v2271
        %v2768 = vpack.c.b16 %v2280, %v2272
        %v2769 = vpack.c.b16 %v2281, %v2273
        %v2770 = vpack.c.b16 %v2282, %v2274
        %v2771 = vpack.c.b16 %v2283, %v2275
        %v2772 = vpack.c.b16 %v2284, %v2276
        %v2773 = vpack.c.b16 %v2285, %v2277
        %v2774 = vpack.c.b16 %v2294, %v2286
        %v2775 = vpack.c.b16 %v2295, %v2287
        %v2776 = vpack.c.b16 %v2296, %v2288
        %v2777 = vpack.c.b16 %v2297, %v2289
        %v2778 = vpack.c.b16 %v2298, %v2290
        %v2779 = vpack.c.b16 %v2299, %v2291
        %v2780 = vpack.c.b16 %v2300, %v2292
        %v2781 = vpack.c.b16 %v2301, %v2293
        %v2782 = vpack.c.b16 %v2310, %v2302
        %v2783 = vpack.c.b16 %v2311, %v2303
        %v2784 = vpack.c.b16 %v2312, %v2304
        %v2785 = vpack.c.b16 %v2313, %v2305
        %v2786 = vpack.c.b16 %v2314, %v2306
        %v2787 = vpack.c.b16 %v2315, %v2307
        %v2788 = vpack.c.b16 %v2316, %v2308
        %v2789 = vpack.c.b16 %v2317, %v2309
        %v2790 = vpack.c.b16 %v2326, %v2318
        %v2791 = vpack.c.b16 %v2327, %v2319
        %v2792 = vpack.c.b16 %v2328, %v2320
        %v2793 = vpack.c.b16 %v2329, %v2321
        %v2794 = vpack.c.b16 %v2330, %v2322
        %v2795 = vpack.c.b16 %v2331, %v2323
        %v2796 = vpack.c.b16 %v2332, %v2324
        %v2797 = vpack.c.b16 %v2333, %v2325
        %v2798 = vpack.c.b16 %v2342, %v2334
        %v2799 = vpack.c.b16 %v2343, %v2335
        %v2800 = vpack.c.b16 %v2344, %v2336
        %v2801 = vpack.c.b16 %v2345, %v2337
        %v2802 = vpack.c.b16 %v2346, %v2338
        %v2803 = vpack.c.b16 %v2347, %v2339
        %v2804 = vpack.c.b16 %v2348, %v2340
        %v2805 = vpack.c.b16 %v2349, %v2341
        %v2806 = vpack.c.b16 %v2358, %v2350
        %v2807 = vpack.c.b16 %v2359, %v2351
        %v2808 = vpack.c.b16 %v2360, %v2352
        %v2809 = vpack.c.b16 %v2361, %v2353
        %v2810 = vpack.c.b16 %v2362, %v2354
        %v2811 = vpack.c.b16 %v2363, %v2355
        %v2812 = vpack.c.b16 %v2364, %v2356
        %v2813 = vpack.c.b16 %v2365, %v2357
        %v2814 = vpack.c.b16 %v2374, %v2366
        %v2815 = vpack.c.b16 %v2375, %v2367
        %v2816 = vpack.c.b16 %v2376, %v2368
        %v2817 = vpack.c.b16 %v2377, %v2369
        %v2818 = vpack.c.b16 %v2378, %v2370
        %v2819 = vpack.c.b16 %v2379, %v2371
        %v2820 = vpack.c.b16 %v2380, %v2372
        %v2821 = vpack.c.b16 %v2381, %v2373
        %v2822 = vpack.c.b16 %v2390, %v2382
        %v2823 = vpack.c.b16 %v2391, %v2383
        %v2824 = vpack.c.b16 %v2392, %v2384
        %v2825 = vpack.c.b16 %v2393, %v2385
        %v2826 = vpack.c.b16 %v2394, %v2386
        %v2827 = vpack.c.b16 %v2395, %v2387
        %v2828 = vpack.c.b16 %v2396, %v2388
        %v2829 = vpack.c.b16 %v2397, %v2389
        %v2830 = vpack.c.b16 %v2406, %v2398
        %v2831 = vpack.c.b16 %v2407, %v2399
        %v2832 = vpack.c.b16 %v2408, %v2400
        %v2833 = vpack.c.b16 %v2409, %v2401
        %v2834 = vpack.c.b16 %v2410, %v2402
        %v2835 = vpack.c.b16 %v2411, %v2403
        %v2836 = vpack.c.b16 %v2412, %v2404
        %v2837 = vpack.c.b16 %v2413, %v2405
        %v2838 = vpack.c.b16 %v2422, %v2414
        %v2839 = vpack.c.b16 %v2423, %v2415
        %v2840 = vpack.c.b16 %v2424, %v2416
        %v2841 = vpack.c.b16 %v2425, %v2417
        %v2842 = vpack.c.b16 %v2426, %v2418
        %v2843 = vpack.c.b16 %v2427, %v2419
        %v2844 = vpack.c.b16 %v2428, %v2420
        %v2845 = vpack.c.b16 %v2429, %v2421
        %v2846 = vpack.c.b16 %v2438, %v2430
        %v2847 = vpack.c.b16 %v2439, %v2431
        %v2848 = vpack.c.b16 %v2440, %v2432
        %v2849 = vpack.c.b16 %v2441, %v2433
        %v2850 = vpack.c.b16 %v2442, %v2434
        %v2851 = vpack.c.b16 %v2443, %v2435
        %v2852 = vpack.c.b16 %v2444, %v2436
        %v2853 = vpack.c.b16 %v2445, %v2437
        %v2854 = vpack.c.b16 %v2454, %v2446
        %v2855 = vpack.c.b16 %v2455, %v2447
        %v2856 = vpack.c.b16 %v2456, %v2448
        %v2857 = vpack.c.b16 %v2457, %v2449
        %v2858 = vpack.c.b16 %v2458, %v2450
        %v2859 = vpack.c.b16 %v2459, %v2451
        %v2860 = vpack.c.b16 %v2460, %v2452
        %v2861 = vpack.c.b16 %v2461, %v2453
        %v2862 = vpack.c.b16 %v2470, %v2462
        %v2863 = vpack.c.b16 %v2471, %v2463
        %v2864 = vpack.c.b16 %v2472, %v2464
        %v2865 = vpack.c.b16 %v2473, %v2465
        %v2866 = vpack.c.b16 %v2474, %v2466
        %v2867 = vpack.c.b16 %v2475, %v2467
        %v2868 = vpack.c.b16 %v2476, %v2468
        %v2869 = vpack.c.b16 %v2477, %v2469
        %v2870 = vpack.c.b16 %v2486, %v2478
        %v2871 = vpack.c.b16 %v2487, %v2479
        %v2872 = vpack.c.b16 %v2488, %v2480
        %v2873 = vpack.c.b16 %v2489, %v2481
        %v2874 = vpack.c.b16 %v2490, %v2482
        %v2875 = vpack.c.b16 %v2491, %v2483
        %v2876 = vpack.c.b16 %v2492, %v2484
        %v2877 = vpack.c.b16 %v2493, %v2485
        %v2878 = vpack.c.b16 %v2502, %v2494
        %v2879 = vpack.c.b16 %v2503, %v2495
        %v2880 = vpack.c.b16 %v2504, %v2496
        %v2881 = vpack.c.b16 %v2505, %v2497
        %v2882 = vpack.c.b16 %v2506, %v2498
        %v2883 = vpack.c.b16 %v2507, %v2499
        %v2884 = vpack.c.b16 %v2508, %v2500
        %v2885 = vpack.c.b16 %v2509, %v2501
        %v2886 = vpack.c.b16 %v2518, %v2510
        %v2887 = vpack.c.b16 %v2519, %v2511
        %v2888 = vpack.c.b16 %v2520, %v2512
        %v2889 = vpack.c.b16 %v2521, %v2513
        %v2890 = vpack.c.b16 %v2522, %v2514
        %v2891 = vpack.c.b16 %v2523, %v2515
        %v2892 = vpack.c.b16 %v2524, %v2516
        %v2893 = vpack.c.b16 %v2525, %v2517
        %v2894 = vpack.c.b16 %v2534, %v2526
        %v2895 = vpack.c.b16 %v2535, %v2527
        %v2896 = vpack.c.b16 %v2536, %v2528
        %v2897 = vpack.c.b16 %v2537, %v2529
        %v2898 = vpack.c.b16 %v2538, %v2530
        %v2899 = vpack.c.b16 %v2539, %v2531
        %v2900 = vpack.c.b16 %v2540, %v2532
        %v2901 = vpack.c.b16 %v2541, %v2533
        %v2902 = vpack.c.b16 %v2550, %v2542
        %v2903 = vpack.c.b16 %v2551, %v2543
        %v2904 = vpack.c.b16 %v2552, %v2544
        %v2905 = vpack.c.b16 %v2553, %v2545
        %v2906 = vpack.c.b16 %v2554, %v2546
        %v2907 = vpack.c.b16 %v2555, %v2547
        %v2908 = vpack.c.b16 %v2556, %v2548
        %v2909 = vpack.c.b16 %v2557, %v2549
        %v2910 = vpack.c.b16 %v2566, %v2558
        %v2911 = vpack.c.b16 %v2567, %v2559
        %v2912 = vpack.c.b16 %v2568, %v2560
        %v2913 = vpack.c.b16 %v2569, %v2561
        %v2914 = vpack.c.b16 %v2570, %v2562
        %v2915 = vpack.c.b16 %v2571, %v2563
        %v2916 = vpack.c.b16 %v2572, %v2564
        %v2917 = vpack.c.b16 %v2573, %v2565
        %v2918 = vpack.c.b16 %v2582, %v2574
        %v2919 = vpack.c.b16 %v2583, %v2575
        %v2920 = vpack.c.b16 %v2584, %v2576
        %v2921 = vpack.c.b16 %v2585, %v2577
        %v2922 = vpack.c.b16 %v2586, %v2578
        %v2923 = vpack.c.b16 %v2587, %v2579
        %v2924 = vpack.c.b16 %v2588, %v2580
        %v2925 = vpack.c.b16 %v2589, %v2581
        %v2926 = vpack.c.b16 %v2598, %v2590
        %v2927 = vpack.c.b16 %v2599, %v2591
        %v2928 = vpack.c.b16 %v2600, %v2592
        %v2929 = vpack.c.b16 %v2601, %v2593
        %v2930 = vpack.c.b16 %v2602, %v2594
        %v2931 = vpack.c.b16 %v2603, %v2595
        %v2932 = vpack.c.b16 %v2604, %v2596
        %v2933 = vpack.c.b16 %v2605, %v2597
        %v2934 = vpack.c.b16 %v2614, %v2606
        %v2935 = vpack.c.b16 %v2615, %v2607
        %v2936 = vpack.c.b16 %v2616, %v2608
        %v2937 = vpack.c.b16 %v2617, %v2609
        %v2938 = vpack.c.b16 %v2618, %v2610
        %v2939 = vpack.c.b16 %v2619, %v2611
        %v2940 = vpack.c.b16 %v2620, %v2612
        %v2941 = vpack.c.b16 %v2621, %v2613
        %v2942 = vpack.c.b16 %v2630, %v2622
        %v2943 = vpack.c.b16 %v2631, %v2623
        %v2944 = vpack.c.b16 %v2632, %v2624
        %v2945 = vpack.c.b16 %v2633, %v2625
        %v2946 = vpack.c.b16 %v2634, %v2626
        %v2947 = vpack.c.b16 %v2635, %v2627
        %v2948 = vpack.c.b16 %v2636, %v2628
        %v2949 = vpack.c.b16 %v2637, %v2629
        %v2950 = vpack.c.b16 %v2646, %v2638
        %v2951 = vpack.c.b16 %v2647, %v2639
        %v2952 = vpack.c.b16 %v2648, %v2640
        %v2953 = vpack.c.b16 %v2649, %v2641
        %v2954 = vpack.c.b16 %v2650, %v2642
        %v2955 = vpack.c.b16 %v2651, %v2643
        %v2956 = vpack.c.b16 %v2652, %v2644
        %v2957 = vpack.c.b16 %v2653, %v2645
        %v2958 = vpack.c.b16 %v2662, %v2654
        %v2959 = vpack.c.b16 %v2663, %v2655
        %v2960 = vpack.c.b16 %v2664, %v2656
        %v2961 = vpack.c.b16 %v2665, %v2657
        %v2962 = vpack.c.b16 %v2666, %v2658
        %v2963 = vpack.c.b16 %v2667, %v2659
        %v2964 = vpack.c.b16 %v2668, %v2660
        %v2965 = vpack.c.b16 %v2669, %v2661
        %v2966 = vpack.c.b16 %v2678, %v2670
        %v2967 = vpack.c.b16 %v2679, %v2671
        %v2968 = vpack.c.b16 %v2680, %v2672
        %v2969 = vpack.c.b16 %v2681, %v2673
        %v2970 = vpack.c.b16 %v2682, %v2674
        %v2971 = vpack.c.b16 %v2683, %v2675
        %v2972 = vpack.c.b16 %v2684, %v2676
        %v2973 = vpack.c.b16 %v2685, %v2677
        %v2974 = vpack.c.b16 %v2694, %v2686
        %v2975 = vpack.c.b16 %v2695, %v2687
        %v2976 = vpack.c.b16 %v2696, %v2688
        %v2977 = vpack.c.b16 %v2697, %v2689
        %v2978 = vpack.c.b16 %v2698, %v2690
        %v2979 = vpack.c.b16 %v2699, %v2691
        %v2980 = vpack.c.b16 %v2700, %v2692
        %v2981 = vpack.c.b16 %v2701, %v2693
        %v2982 = vpack.c.b16 %v2710, %v2702
        %v2983 = vpack.c.b16 %v2711, %v2703
        %v2984 = vpack.c.b16 %v2712, %v2704
        %v2985 = vpack.c.b16 %v2713, %v2705
        %v2986 = vpack.c.b16 %v2714, %v2706
        %v2987 = vpack.c.b16 %v2715, %v2707
        %v2988 = vpack.c.b16 %v2716, %v2708
        %v2989 = vpack.c.b16 %v2717, %v2709
        %v2990 = vpack.c.b16 %v2726, %v2718
        %v2991 = vpack.c.b16 %v2727, %v2719
        %v2992 = vpack.c.b16 %v2728, %v2720
        %v2993 = vpack.c.b16 %v2729, %v2721
        %v2994 = vpack.c.b16 %v2730, %v2722
        %v2995 = vpack.c.b16 %v2731, %v2723
        %v2996 = vpack.c.b16 %v2732, %v2724
        %v2997 = vpack.c.b16 %v2733, %v2725
        %v2998 = vpack.c.b16 %v2742, %v2734
        %v2999 = vpack.c.b16 %v2743, %v2735
        %v3000 = vpack.c.b16 %v2744, %v2736
        %v3001 = vpack.c.b16 %v2745, %v2737
        %v3002 = vpack.c.b16 %v2746, %v2738
        %v3003 = vpack.c.b16 %v2747, %v2739
        %v3004 = vpack.c.b16 %v2748, %v2740
        %v3005 = vpack.c.b16 %v2749, %v2741
        %3262 = vmatprep.subr.bf16.mxu0 %v2807
        %3263 = vmatpush1.bf16.msra.mxu0 %v2806
        %3264 = vmatprep.subr.bf16.mxu0 %v2799
        %3265 = vmatpush1.bf16.msra.mxu0 %v2798
        %3266 = vmatprep.subr.bf16.mxu0 %v2791
        %3267 = vmatpush1.bf16.msra.mxu0 %v2790
        %3268 = vmatprep.subr.bf16.mxu0 %v2783
        %3269 = vmatpush1.bf16.msra.mxu0 %v2782
        %3270 = vmatprep.subr.bf16.mxu0 %v2775
        %3271 = vmatpush1.bf16.msra.mxu0 %v2774
        %3272 = vmatprep.subr.bf16.mxu0 %v2767
        %3273 = vmatpush1.bf16.msra.mxu0 %v2766
        %3274 = vmatprep.subr.bf16.mxu0 %v2759
        %3275 = vmatpush1.bf16.msra.mxu0 %v2758
        %3276 = vmatprep.subr.bf16.mxu0 %v2751
        %3277 = vmatpush1.bf16.msra.mxu0 %v2750
        %3278 = vmatprep.subr.bf16.mxu0 %v2871
        %3279 = vmatpush2.bf16.msra.mxu0 %v2870
        %3280 = vmatprep.subr.bf16.mxu0 %v2863
        %3281 = vmatpush2.bf16.msra.mxu0 %v2862
        %3282 = vmatprep.subr.bf16.mxu0 %v2855
        %3283 = vmatpush2.bf16.msra.mxu0 %v2854
        %3284 = vmatprep.subr.bf16.mxu0 %v2847
        %3285 = vmatpush2.bf16.msra.mxu0 %v2846
        %3286 = vmatprep.subr.bf16.mxu0 %v2839
        %3287 = vmatpush2.bf16.msra.mxu0 %v2838
        %3288 = vmatprep.subr.bf16.mxu0 %v2831
        %3289 = vmatpush2.bf16.msra.mxu0 %v2830
        %3290 = vmatprep.subr.bf16.mxu0 %v2823
        %3291 = vmatpush2.bf16.msra.mxu0 %v2822
        %3292 = vmatprep.subr.bf16.mxu0 %v2815
        %3293 = vmatpush2.bf16.msra.mxu0 %v2814
        %3294 = vmatprep.mubr.bf16.mxu0 %v1723
        %3295 = vmatmul.mubr.bf16.gmra.mxu0 %v1722
        %v3296 = vpop.f32.mrf.mxu0
        %v3297 = vadd.f32 0.0, %v3296
        %v3298 = vpop.f32.mrf.mxu0
        %v3299 = vadd.f32 0.0, %v3298
        %v3300 = vpop.f32.mrf.mxu0
        %v3301 = vpop.f32.mrf.mxu0
        %3302 = vdwg.mxu0
        %3303 = vmatprep.subr.bf16.mxu0 %v2935
        %3304 = vmatpush1.bf16.msra.mxu0 %v2934
        %3305 = vmatprep.subr.bf16.mxu0 %v2927
        %3306 = vmatpush1.bf16.msra.mxu0 %v2926
        %3307 = vmatprep.subr.bf16.mxu0 %v2919
        %3308 = vmatpush1.bf16.msra.mxu0 %v2918
        %3309 = vmatprep.subr.bf16.mxu0 %v2911
        %3310 = vmatpush1.bf16.msra.mxu0 %v2910
        %3311 = vmatprep.subr.bf16.mxu0 %v2903
        %3312 = vmatpush1.bf16.msra.mxu0 %v2902
        %3313 = vmatprep.subr.bf16.mxu0 %v2895
        %3314 = vmatpush1.bf16.msra.mxu0 %v2894
        %3315 = vmatprep.subr.bf16.mxu0 %v2887
        %3316 = vmatpush1.bf16.msra.mxu0 %v2886
        %3317 = vmatprep.subr.bf16.mxu0 %v2879
        %3318 = vmatpush1.bf16.msra.mxu0 %v2878
        %3319 = vmatprep.subr.bf16.mxu0 %v2999
        %3320 = vmatpush2.bf16.msra.mxu0 %v2998
        %3321 = vmatprep.subr.bf16.mxu0 %v2991
        %3322 = vmatpush2.bf16.msra.mxu0 %v2990
        %3323 = vmatprep.subr.bf16.mxu0 %v2983
        %3324 = vmatpush2.bf16.msra.mxu0 %v2982
        %3325 = vmatprep.subr.bf16.mxu0 %v2975
        %3326 = vmatpush2.bf16.msra.mxu0 %v2974
        %3327 = vmatprep.subr.bf16.mxu0 %v2967
        %3328 = vmatpush2.bf16.msra.mxu0 %v2966
        %3329 = vmatprep.subr.bf16.mxu0 %v2959
        %3330 = vmatpush2.bf16.msra.mxu0 %v2958
        %3331 = vmatprep.subr.bf16.mxu0 %v2951
        %3332 = vmatpush2.bf16.msra.mxu0 %v2950
        %3333 = vmatprep.subr.bf16.mxu0 %v2943
        %3334 = vmatpush2.bf16.msra.mxu0 %v2942
        %3335 = vmatprep.mubr.bf16.mxu0 %v1725
        %3336 = vmatmul.mubr.bf16.gmra.mxu0 %v1724
        %v3337 = vpop.f32.mrf.mxu0
        %v3338 = vadd.f32 %v3297, %v3337
        %v3339 = vpop.f32.mrf.mxu0
        %v3340 = vadd.f32 %v3299, %v3339
        %v3341 = vpop.f32.mrf.mxu0
        %v3342 = vpop.f32.mrf.mxu0
        %3343 = vdwg.mxu0
        %3344 = vmatprep.subr.bf16.mxu0 %v2809
        %3345 = vmatpush1.bf16.msra.mxu0 %v2808
        %3346 = vmatprep.subr.bf16.mxu0 %v2801
        %3347 = vmatpush1.bf16.msra.mxu0 %v2800
        %3348 = vmatprep.subr.bf16.mxu0 %v2793
        %3349 = vmatpush1.bf16.msra.mxu0 %v2792
        %3350 = vmatprep.subr.bf16.mxu0 %v2785
        %3351 = vmatpush1.bf16.msra.mxu0 %v2784
        %3352 = vmatprep.subr.bf16.mxu0 %v2777
        %3353 = vmatpush1.bf16.msra.mxu0 %v2776
        %3354 = vmatprep.subr.bf16.mxu0 %v2769
        %3355 = vmatpush1.bf16.msra.mxu0 %v2768
        %3356 = vmatprep.subr.bf16.mxu0 %v2761
        %3357 = vmatpush1.bf16.msra.mxu0 %v2760
        %3358 = vmatprep.subr.bf16.mxu0 %v2753
        %3359 = vmatpush1.bf16.msra.mxu0 %v2752
        %3360 = vmatprep.subr.bf16.mxu0 %v2873
        %3361 = vmatpush2.bf16.msra.mxu0 %v2872
        %3362 = vmatprep.subr.bf16.mxu0 %v2865
        %3363 = vmatpush2.bf16.msra.mxu0 %v2864
        %3364 = vmatprep.subr.bf16.mxu0 %v2857
        %3365 = vmatpush2.bf16.msra.mxu0 %v2856
        %3366 = vmatprep.subr.bf16.mxu0 %v2849
        %3367 = vmatpush2.bf16.msra.mxu0 %v2848
        %3368 = vmatprep.subr.bf16.mxu0 %v2841
        %3369 = vmatpush2.bf16.msra.mxu0 %v2840
        %3370 = vmatprep.subr.bf16.mxu0 %v2833
        %3371 = vmatpush2.bf16.msra.mxu0 %v2832
        %3372 = vmatprep.subr.bf16.mxu0 %v2825
        %3373 = vmatpush2.bf16.msra.mxu0 %v2824
        %3374 = vmatprep.subr.bf16.mxu0 %v2817
        %3375 = vmatpush2.bf16.msra.mxu0 %v2816
        %3376 = vmatprep.mubr.bf16.mxu0 %v1723
        %3377 = vmatmul.mubr.bf16.gmra.mxu0 %v1722
        %v3378 = vpop.f32.mrf.mxu0
        %v3379 = vadd.f32 0.0, %v3378
        %v3380 = vpop.f32.mrf.mxu0
        %v3381 = vadd.f32 0.0, %v3380
        %v3382 = vpop.f32.mrf.mxu0
        %v3383 = vpop.f32.mrf.mxu0
        %3384 = vdwg.mxu0
        %3385 = vmatprep.subr.bf16.mxu0 %v2937
        %3386 = vmatpush1.bf16.msra.mxu0 %v2936
        %3387 = vmatprep.subr.bf16.mxu0 %v2929
        %3388 = vmatpush1.bf16.msra.mxu0 %v2928
        %3389 = vmatprep.subr.bf16.mxu0 %v2921
        %3390 = vmatpush1.bf16.msra.mxu0 %v2920
        %3391 = vmatprep.subr.bf16.mxu0 %v2913
        %3392 = vmatpush1.bf16.msra.mxu0 %v2912
        %3393 = vmatprep.subr.bf16.mxu0 %v2905
        %3394 = vmatpush1.bf16.msra.mxu0 %v2904
        %3395 = vmatprep.subr.bf16.mxu0 %v2897
        %3396 = vmatpush1.bf16.msra.mxu0 %v2896
        %3397 = vmatprep.subr.bf16.mxu0 %v2889
        %3398 = vmatpush1.bf16.msra.mxu0 %v2888
        %3399 = vmatprep.subr.bf16.mxu0 %v2881
        %3400 = vmatpush1.bf16.msra.mxu0 %v2880
        %3401 = vmatprep.subr.bf16.mxu0 %v3001
        %3402 = vmatpush2.bf16.msra.mxu0 %v3000
        %3403 = vmatprep.subr.bf16.mxu0 %v2993
        %3404 = vmatpush2.bf16.msra.mxu0 %v2992
        %3405 = vmatprep.subr.bf16.mxu0 %v2985
        %3406 = vmatpush2.bf16.msra.mxu0 %v2984
        %3407 = vmatprep.subr.bf16.mxu0 %v2977
        %3408 = vmatpush2.bf16.msra.mxu0 %v2976
        %3409 = vmatprep.subr.bf16.mxu0 %v2969
        %3410 = vmatpush2.bf16.msra.mxu0 %v2968
        %3411 = vmatprep.subr.bf16.mxu0 %v2961
        %3412 = vmatpush2.bf16.msra.mxu0 %v2960
        %3413 = vmatprep.subr.bf16.mxu0 %v2953
        %3414 = vmatpush2.bf16.msra.mxu0 %v2952
        %3415 = vmatprep.subr.bf16.mxu0 %v2945
        %3416 = vmatpush2.bf16.msra.mxu0 %v2944
        %3417 = vmatprep.mubr.bf16.mxu0 %v1725
        %3418 = vmatmul.mubr.bf16.gmra.mxu0 %v1724
        %v3419 = vpop.f32.mrf.mxu0
        %v3420 = vadd.f32 %v3379, %v3419
        %v3421 = vpop.f32.mrf.mxu0
        %v3422 = vadd.f32 %v3381, %v3421
        %v3423 = vpop.f32.mrf.mxu0
        %v3424 = vpop.f32.mrf.mxu0
        %3425 = vdwg.mxu0
        %3426 = vmatprep.subr.bf16.mxu0 %v2811
        %3427 = vmatpush1.bf16.msra.mxu0 %v2810
        %3428 = vmatprep.subr.bf16.mxu0 %v2803
        %3429 = vmatpush1.bf16.msra.mxu0 %v2802
        %3430 = vmatprep.subr.bf16.mxu0 %v2795
        %3431 = vmatpush1.bf16.msra.mxu0 %v2794
        %3432 = vmatprep.subr.bf16.mxu0 %v2787
        %3433 = vmatpush1.bf16.msra.mxu0 %v2786
        %3434 = vmatprep.subr.bf16.mxu0 %v2779
        %3435 = vmatpush1.bf16.msra.mxu0 %v2778
        %3436 = vmatprep.subr.bf16.mxu0 %v2771
        %3437 = vmatpush1.bf16.msra.mxu0 %v2770
        %3438 = vmatprep.subr.bf16.mxu0 %v2763
        %3439 = vmatpush1.bf16.msra.mxu0 %v2762
        %3440 = vmatprep.subr.bf16.mxu0 %v2755
        %3441 = vmatpush1.bf16.msra.mxu0 %v2754
        %3442 = vmatprep.subr.bf16.mxu0 %v2875
        %3443 = vmatpush2.bf16.msra.mxu0 %v2874
        %3444 = vmatprep.subr.bf16.mxu0 %v2867
        %3445 = vmatpush2.bf16.msra.mxu0 %v2866
        %3446 = vmatprep.subr.bf16.mxu0 %v2859
        %3447 = vmatpush2.bf16.msra.mxu0 %v2858
        %3448 = vmatprep.subr.bf16.mxu0 %v2851
        %3449 = vmatpush2.bf16.msra.mxu0 %v2850
        %3450 = vmatprep.subr.bf16.mxu0 %v2843
        %3451 = vmatpush2.bf16.msra.mxu0 %v2842
        %3452 = vmatprep.subr.bf16.mxu0 %v2835
        %3453 = vmatpush2.bf16.msra.mxu0 %v2834
        %3454 = vmatprep.subr.bf16.mxu0 %v2827
        %3455 = vmatpush2.bf16.msra.mxu0 %v2826
        %3456 = vmatprep.subr.bf16.mxu0 %v2819
        %3457 = vmatpush2.bf16.msra.mxu0 %v2818
        %3458 = vmatprep.mubr.bf16.mxu0 %v1723
        %3459 = vmatmul.mubr.bf16.gmra.mxu0 %v1722
        %v3460 = vpop.f32.mrf.mxu0
        %v3461 = vadd.f32 0.0, %v3460
        %v3462 = vpop.f32.mrf.mxu0
        %v3463 = vadd.f32 0.0, %v3462
        %v3464 = vpop.f32.mrf.mxu0
        %v3465 = vpop.f32.mrf.mxu0
        %3466 = vdwg.mxu0
        %3467 = vmatprep.subr.bf16.mxu0 %v2939
        %3468 = vmatpush1.bf16.msra.mxu0 %v2938
        %3469 = vmatprep.subr.bf16.mxu0 %v2931
        %3470 = vmatpush1.bf16.msra.mxu0 %v2930
        %3471 = vmatprep.subr.bf16.mxu0 %v2923
        %3472 = vmatpush1.bf16.msra.mxu0 %v2922
        %3473 = vmatprep.subr.bf16.mxu0 %v2915
        %3474 = vmatpush1.bf16.msra.mxu0 %v2914
        %3475 = vmatprep.subr.bf16.mxu0 %v2907
        %3476 = vmatpush1.bf16.msra.mxu0 %v2906
        %3477 = vmatprep.subr.bf16.mxu0 %v2899
        %3478 = vmatpush1.bf16.msra.mxu0 %v2898
        %3479 = vmatprep.subr.bf16.mxu0 %v2891
        %3480 = vmatpush1.bf16.msra.mxu0 %v2890
        %3481 = vmatprep.subr.bf16.mxu0 %v2883
        %3482 = vmatpush1.bf16.msra.mxu0 %v2882
        %3483 = vmatprep.subr.bf16.mxu0 %v3003
        %3484 = vmatpush2.bf16.msra.mxu0 %v3002
        %3485 = vmatprep.subr.bf16.mxu0 %v2995
        %3486 = vmatpush2.bf16.msra.mxu0 %v2994
        %3487 = vmatprep.subr.bf16.mxu0 %v2987
        %3488 = vmatpush2.bf16.msra.mxu0 %v2986
        %3489 = vmatprep.subr.bf16.mxu0 %v2979
        %3490 = vmatpush2.bf16.msra.mxu0 %v2978
        %3491 = vmatprep.subr.bf16.mxu0 %v2971
        %3492 = vmatpush2.bf16.msra.mxu0 %v2970
        %3493 = vmatprep.subr.bf16.mxu0 %v2963
        %3494 = vmatpush2.bf16.msra.mxu0 %v2962
        %3495 = vmatprep.subr.bf16.mxu0 %v2955
        %3496 = vmatpush2.bf16.msra.mxu0 %v2954
        %3497 = vmatprep.subr.bf16.mxu0 %v2947
        %3498 = vmatpush2.bf16.msra.mxu0 %v2946
        %3499 = vmatprep.mubr.bf16.mxu0 %v1725
        %3500 = vmatmul.mubr.bf16.gmra.mxu0 %v1724
        %v3501 = vpop.f32.mrf.mxu0
        %v3502 = vadd.f32 %v3461, %v3501
        %v3503 = vpop.f32.mrf.mxu0
        %v3504 = vadd.f32 %v3463, %v3503
        %v3505 = vpop.f32.mrf.mxu0
        %v3506 = vpop.f32.mrf.mxu0
        %3507 = vdwg.mxu0
        %3508 = vmatprep.subr.bf16.mxu0 %v2813
        %3509 = vmatpush1.bf16.msra.mxu0 %v2812
        %3510 = vmatprep.subr.bf16.mxu0 %v2805
        %3511 = vmatpush1.bf16.msra.mxu0 %v2804
        %3512 = vmatprep.subr.bf16.mxu0 %v2797
        %3513 = vmatpush1.bf16.msra.mxu0 %v2796
        %3514 = vmatprep.subr.bf16.mxu0 %v2789
        %3515 = vmatpush1.bf16.msra.mxu0 %v2788
        %3516 = vmatprep.subr.bf16.mxu0 %v2781
        %3517 = vmatpush1.bf16.msra.mxu0 %v2780
        %3518 = vmatprep.subr.bf16.mxu0 %v2773
        %3519 = vmatpush1.bf16.msra.mxu0 %v2772
        %3520 = vmatprep.subr.bf16.mxu0 %v2765
        %3521 = vmatpush1.bf16.msra.mxu0 %v2764
        %3522 = vmatprep.subr.bf16.mxu0 %v2757
        %3523 = vmatpush1.bf16.msra.mxu0 %v2756
        %3524 = vmatprep.subr.bf16.mxu0 %v2877
        %3525 = vmatpush2.bf16.msra.mxu0 %v2876
        %3526 = vmatprep.subr.bf16.mxu0 %v2869
        %3527 = vmatpush2.bf16.msra.mxu0 %v2868
        %3528 = vmatprep.subr.bf16.mxu0 %v2861
        %3529 = vmatpush2.bf16.msra.mxu0 %v2860
        %3530 = vmatprep.subr.bf16.mxu0 %v2853
        %3531 = vmatpush2.bf16.msra.mxu0 %v2852
        %3532 = vmatprep.subr.bf16.mxu0 %v2845
        %3533 = vmatpush2.bf16.msra.mxu0 %v2844
        %3534 = vmatprep.subr.bf16.mxu0 %v2837
        %3535 = vmatpush2.bf16.msra.mxu0 %v2836
        %3536 = vmatprep.subr.bf16.mxu0 %v2829
        %3537 = vmatpush2.bf16.msra.mxu0 %v2828
        %3538 = vmatprep.subr.bf16.mxu0 %v2821
        %3539 = vmatpush2.bf16.msra.mxu0 %v2820
        %3540 = vmatprep.mubr.bf16.mxu0 %v1723
        %3541 = vmatmul.mubr.bf16.gmra.mxu0 %v1722
        %v3542 = vpop.f32.mrf.mxu0
        %v3543 = vadd.f32 0.0, %v3542
        %v3544 = vpop.f32.mrf.mxu0
        %v3545 = vadd.f32 0.0, %v3544
        %v3546 = vpop.f32.mrf.mxu0
        %v3547 = vpop.f32.mrf.mxu0
        %3548 = vdwg.mxu0
        %3549 = vmatprep.subr.bf16.mxu0 %v2941
        %3550 = vmatpush1.bf16.msra.mxu0 %v2940
        %3551 = vmatprep.subr.bf16.mxu0 %v2933
        %3552 = vmatpush1.bf16.msra.mxu0 %v2932
        %3553 = vmatprep.subr.bf16.mxu0 %v2925
        %3554 = vmatpush1.bf16.msra.mxu0 %v2924
        %3555 = vmatprep.subr.bf16.mxu0 %v2917
        %3556 = vmatpush1.bf16.msra.mxu0 %v2916
        %3557 = vmatprep.subr.bf16.mxu0 %v2909
        %3558 = vmatpush1.bf16.msra.mxu0 %v2908
        %3559 = vmatprep.subr.bf16.mxu0 %v2901
        %3560 = vmatpush1.bf16.msra.mxu0 %v2900
        %3561 = vmatprep.subr.bf16.mxu0 %v2893
        %3562 = vmatpush1.bf16.msra.mxu0 %v2892
        %3563 = vmatprep.subr.bf16.mxu0 %v2885
        %3564 = vmatpush1.bf16.msra.mxu0 %v2884
        %3565 = vmatprep.subr.bf16.mxu0 %v3005
        %3566 = vmatpush2.bf16.msra.mxu0 %v3004
        %3567 = vmatprep.subr.bf16.mxu0 %v2997
        %3568 = vmatpush2.bf16.msra.mxu0 %v2996
        %3569 = vmatprep.subr.bf16.mxu0 %v2989
        %3570 = vmatpush2.bf16.msra.mxu0 %v2988
        %3571 = vmatprep.subr.bf16.mxu0 %v2981
        %3572 = vmatpush2.bf16.msra.mxu0 %v2980
        %3573 = vmatprep.subr.bf16.mxu0 %v2973
        %3574 = vmatpush2.bf16.msra.mxu0 %v2972
        %3575 = vmatprep.subr.bf16.mxu0 %v2965
        %3576 = vmatpush2.bf16.msra.mxu0 %v2964
        %3577 = vmatprep.subr.bf16.mxu0 %v2957
        %3578 = vmatpush2.bf16.msra.mxu0 %v2956
        %3579 = vmatprep.subr.bf16.mxu0 %v2949
        %3580 = vmatpush2.bf16.msra.mxu0 %v2948
        %3581 = vmatprep.mubr.bf16.mxu0 %v1725
        %3582 = vmatmul.mubr.bf16.gmra.mxu0 %v1724
        %v3583 = vpop.f32.mrf.mxu0
        %v3584 = vadd.f32 %v3543, %v3583
        %v3585 = vpop.f32.mrf.mxu0
        %v3586 = vadd.f32 %v3545, %v3585
        %v3587 = vpop.f32.mrf.mxu0
        %v3588 = vpop.f32.mrf.mxu0
        %3589 = vdwg.mxu0
        %v3590 = vld [vmem:[#allocation20] sm:$0xff]
        %v3591 = vld [vmem:[#allocation22] sm:$0xff]
        %v3592 = vsel %vm852, %v3338, 0.0
        %v3593 = vrot.slane %v3592, 4
        %v3594 = vadd.f32 %v3592, %v3593
        %v3595 = vrot.slane %v3594, 2
        %v3596 = vadd.f32 %v3594, %v3595
        %v3597 = vrot.slane %v3596, 1
        %v3598 = vadd.f32 %v3596, %v3597
        %v3599 = vsel %vm852, %v3340, 0.0
        %v3600 = vrot.slane %v3599, 4
        %v3601 = vadd.f32 %v3599, %v3600
        %v3602 = vrot.slane %v3601, 2
        %v3603 = vadd.f32 %v3601, %v3602
        %v3604 = vrot.slane %v3603, 1
        %v3605 = vadd.f32 %v3603, %v3604
        %v3606 = vsel %vm852, %v3420, 0.0
        %v3607 = vrot.slane %v3606, 4
        %v3608 = vadd.f32 %v3606, %v3607
        %v3609 = vrot.slane %v3608, 2
        %v3610 = vadd.f32 %v3608, %v3609
        %v3611 = vrot.slane %v3610, 1
        %v3612 = vadd.f32 %v3610, %v3611
        %v3613 = vsel %vm852, %v3422, 0.0
        %v3614 = vrot.slane %v3613, 4
        %v3615 = vadd.f32 %v3613, %v3614
        %v3616 = vrot.slane %v3615, 2
        %v3617 = vadd.f32 %v3615, %v3616
        %v3618 = vrot.slane %v3617, 1
        %v3619 = vadd.f32 %v3617, %v3618
        %v3620 = vsel %vm852, %v3502, 0.0
        %v3621 = vrot.slane %v3620, 4
        %v3622 = vadd.f32 %v3620, %v3621
        %v3623 = vrot.slane %v3622, 2
        %v3624 = vadd.f32 %v3622, %v3623
        %v3625 = vrot.slane %v3624, 1
        %v3626 = vadd.f32 %v3624, %v3625
        %v3627 = vsel %vm852, %v3504, 0.0
        %v3628 = vrot.slane %v3627, 4
        %v3629 = vadd.f32 %v3627, %v3628
        %v3630 = vrot.slane %v3629, 2
        %v3631 = vadd.f32 %v3629, %v3630
        %v3632 = vrot.slane %v3631, 1
        %v3633 = vadd.f32 %v3631, %v3632
        %v3634 = vsel %vm852, %v3584, 0.0
        %v3635 = vrot.slane %v3634, 4
        %v3636 = vadd.f32 %v3634, %v3635
        %v3637 = vrot.slane %v3636, 2
        %v3638 = vadd.f32 %v3636, %v3637
        %v3639 = vrot.slane %v3638, 1
        %v3640 = vadd.f32 %v3638, %v3639
        %v3641 = vsel %vm852, %v3586, 0.0
        %v3642 = vrot.slane %v3641, 4
        %v3643 = vadd.f32 %v3641, %v3642
        %v3644 = vrot.slane %v3643, 2
        %v3645 = vadd.f32 %v3643, %v3644
        %v3646 = vrot.slane %v3645, 1
        %v3647 = vadd.f32 %v3645, %v3646
        %v3648 = vmul.f32 %v3598, %v860
        %v3649 = vmul.f32 %v3605, %v860
        %v3650 = vmul.f32 %v3612, %v860
        %v3651 = vmul.f32 %v3619, %v860
        %v3652 = vmul.f32 %v3626, %v860
        %v3653 = vmul.f32 %v3633, %v860
        %v3654 = vmul.f32 %v3640, %v860
        %v3655 = vmul.f32 %v3647, %v860
        %v3656 = vsub.f32 %v3338, %v3648
        %v3657 = vsub.f32 %v3340, %v3649
        %v3658 = vsub.f32 %v3420, %v3650
        %v3659 = vsub.f32 %v3422, %v3651
        %v3660 = vsub.f32 %v3502, %v3652
        %v3661 = vsub.f32 %v3504, %v3653
        %v3662 = vsub.f32 %v3584, %v3654
        %v3663 = vsub.f32 %v3586, %v3655
        %v3664 = vmul.f32 %v3656, %v3656
        %v3665 = vmul.f32 %v3657, %v3657
        %v3666 = vmul.f32 %v3658, %v3658
        %v3667 = vmul.f32 %v3659, %v3659
        %v3668 = vmul.f32 %v3660, %v3660
        %v3669 = vmul.f32 %v3661, %v3661
        %v3670 = vmul.f32 %v3662, %v3662
        %v3671 = vmul.f32 %v3663, %v3663
        %v3672 = vsel %vm852, %v3664, 0.0
        %v3673 = vrot.slane %v3672, 4
        %v3674 = vadd.f32 %v3672, %v3673
        %v3675 = vrot.slane %v3674, 2
        %v3676 = vadd.f32 %v3674, %v3675
        %v3677 = vrot.slane %v3676, 1
        %v3678 = vadd.f32 %v3676, %v3677
        %v3679 = vsel %vm852, %v3665, 0.0
        %v3680 = vrot.slane %v3679, 4
        %v3681 = vadd.f32 %v3679, %v3680
        %v3682 = vrot.slane %v3681, 2
        %v3683 = vadd.f32 %v3681, %v3682
        %v3684 = vrot.slane %v3683, 1
        %v3685 = vadd.f32 %v3683, %v3684
        %v3686 = vsel %vm852, %v3666, 0.0
        %v3687 = vrot.slane %v3686, 4
        %v3688 = vadd.f32 %v3686, %v3687
        %v3689 = vrot.slane %v3688, 2
        %v3690 = vadd.f32 %v3688, %v3689
        %v3691 = vrot.slane %v3690, 1
        %v3692 = vadd.f32 %v3690, %v3691
        %v3693 = vsel %vm852, %v3667, 0.0
        %v3694 = vrot.slane %v3693, 4
        %v3695 = vadd.f32 %v3693, %v3694
        %v3696 = vrot.slane %v3695, 2
        %v3697 = vadd.f32 %v3695, %v3696
        %v3698 = vrot.slane %v3697, 1
        %v3699 = vadd.f32 %v3697, %v3698
        %v3700 = vsel %vm852, %v3668, 0.0
        %v3701 = vrot.slane %v3700, 4
        %v3702 = vadd.f32 %v3700, %v3701
        %v3703 = vrot.slane %v3702, 2
        %v3704 = vadd.f32 %v3702, %v3703
        %v3705 = vrot.slane %v3704, 1
        %v3706 = vadd.f32 %v3704, %v3705
        %v3707 = vsel %vm852, %v3669, 0.0
        %v3708 = vrot.slane %v3707, 4
        %v3709 = vadd.f32 %v3707, %v3708
        %v3710 = vrot.slane %v3709, 2
        %v3711 = vadd.f32 %v3709, %v3710
        %v3712 = vrot.slane %v3711, 1
        %v3713 = vadd.f32 %v3711, %v3712
        %v3714 = vsel %vm852, %v3670, 0.0
        %v3715 = vrot.slane %v3714, 4
        %v3716 = vadd.f32 %v3714, %v3715
        %v3717 = vrot.slane %v3716, 2
        %v3718 = vadd.f32 %v3716, %v3717
        %v3719 = vrot.slane %v3718, 1
        %v3720 = vadd.f32 %v3718, %v3719
        %v3721 = vsel %vm852, %v3671, 0.0
        %v3722 = vrot.slane %v3721, 4
        %v3723 = vadd.f32 %v3721, %v3722
        %v3724 = vrot.slane %v3723, 2
        %v3725 = vadd.f32 %v3723, %v3724
        %v3726 = vrot.slane %v3725, 1
        %v3727 = vadd.f32 %v3725, %v3726
        %v3728 = vmul.f32 %v3678, %v860
        %v3729 = vmul.f32 %v3685, %v860
        %v3730 = vmul.f32 %v3692, %v860
        %v3731 = vmul.f32 %v3699, %v860
        %v3732 = vmul.f32 %v3706, %v860
        %v3733 = vmul.f32 %v3713, %v860
        %v3734 = vmul.f32 %v3720, %v860
        %v3735 = vmul.f32 %v3727, %v860
        %v3736 = vadd.f32 %v3728, 1e-05
        %v3737 = vadd.f32 %v3729, 1e-05
        %v3738 = vadd.f32 %v3730, 1e-05
        %v3739 = vadd.f32 %v3731, 1e-05
        %v3740 = vadd.f32 %v3732, 1e-05
        %v3741 = vadd.f32 %v3733, 1e-05
        %v3742 = vadd.f32 %v3734, 1e-05
        %v3743 = vadd.f32 %v3735, 1e-05
        %v3744 = vrsqrt.pop %v3736
        %v3745 = vrsqrt.pop %v3737
        %v3746 = vrsqrt.pop %v3738
        %v3747 = vrsqrt.pop %v3739
        %v3748 = vrsqrt.pop %v3740
        %v3749 = vrsqrt.pop %v3741
        %v3750 = vrsqrt.pop %v3742
        %v3751 = vrsqrt.pop %v3743
        %v3752 = vmul.f32 %v3656, %v3744
        %v3753 = vmul.f32 %v3657, %v3745
        %v3754 = vmul.f32 %v3658, %v3746
        %v3755 = vmul.f32 %v3659, %v3747
        %v3756 = vmul.f32 %v3660, %v3748
        %v3757 = vmul.f32 %v3661, %v3749
        %v3758 = vmul.f32 %v3662, %v3750
        %v3759 = vmul.f32 %v3663, %v3751
        %v3761 = vlaneseq
        %v3762 = vshrl.u32 %v3761, 7
        %v3763 = vsub.s32 0, %v3762
        %v3764 = vrot.slane %v3590, %v3763
        %v3765 = vlaneseq
        %v3766 = vshrl.u32 %v3765, 7
        %v3767 = vsub.s32 1, %v3766
        %v3768 = vrot.slane %v3590, %v3767
        %v3769 = vlaneseq
        %v3770 = vshrl.u32 %v3769, 7
        %v3771 = vsub.s32 2, %v3770
        %v3772 = vrot.slane %v3590, %v3771
        %v3773 = vlaneseq
        %v3774 = vshrl.u32 %v3773, 7
        %v3775 = vsub.s32 3, %v3774
        %v3776 = vrot.slane %v3590, %v3775
        %v3777 = vlaneseq
        %v3778 = vshrl.u32 %v3777, 7
        %v3779 = vsub.s32 4, %v3778
        %v3780 = vrot.slane %v3590, %v3779
        %v3781 = vlaneseq
        %v3782 = vshrl.u32 %v3781, 7
        %v3783 = vsub.s32 5, %v3782
        %v3784 = vrot.slane %v3590, %v3783
        %v3785 = vlaneseq
        %v3786 = vshrl.u32 %v3785, 7
        %v3787 = vsub.s32 6, %v3786
        %v3788 = vrot.slane %v3590, %v3787
        %v3789 = vlaneseq
        %v3790 = vshrl.u32 %v3789, 7
        %v3791 = vsub.s32 7, %v3790
        %v3792 = vrot.slane %v3590, %v3791
        %v3801 = vmul.f32 %v3764, %v3752
        %v3802 = vmul.f32 %v3768, %v3753
        %v3803 = vmul.f32 %v3772, %v3754
        %v3804 = vmul.f32 %v3776, %v3755
        %v3805 = vmul.f32 %v3780, %v3756
        %v3806 = vmul.f32 %v3784, %v3757
        %v3807 = vmul.f32 %v3788, %v3758
        %v3808 = vmul.f32 %v3792, %v3759
        %v3810 = vlaneseq
        %v3811 = vshrl.u32 %v3810, 7
        %v3812 = vsub.s32 0, %v3811
        %v3813 = vrot.slane %v3591, %v3812
        %v3814 = vlaneseq
        %v3815 = vshrl.u32 %v3814, 7
        %v3816 = vsub.s32 1, %v3815
        %v3817 = vrot.slane %v3591, %v3816
        %v3818 = vlaneseq
        %v3819 = vshrl.u32 %v3818, 7
        %v3820 = vsub.s32 2, %v3819
        %v3821 = vrot.slane %v3591, %v3820
        %v3822 = vlaneseq
        %v3823 = vshrl.u32 %v3822, 7
        %v3824 = vsub.s32 3, %v3823
        %v3825 = vrot.slane %v3591, %v3824
        %v3826 = vlaneseq
        %v3827 = vshrl.u32 %v3826, 7
        %v3828 = vsub.s32 4, %v3827
        %v3829 = vrot.slane %v3591, %v3828
        %v3830 = vlaneseq
        %v3831 = vshrl.u32 %v3830, 7
        %v3832 = vsub.s32 5, %v3831
        %v3833 = vrot.slane %v3591, %v3832
        %v3834 = vlaneseq
        %v3835 = vshrl.u32 %v3834, 7
        %v3836 = vsub.s32 6, %v3835
        %v3837 = vrot.slane %v3591, %v3836
        %v3838 = vlaneseq
        %v3839 = vshrl.u32 %v3838, 7
        %v3840 = vsub.s32 7, %v3839
        %v3841 = vrot.slane %v3591, %v3840
        %v3850 = vadd.f32 %v3801, %v3813
        %v3851 = vadd.f32 %v3802, %v3817
        %v3852 = vadd.f32 %v3803, %v3821
        %v3853 = vadd.f32 %v3804, %v3825
        %v3854 = vadd.f32 %v3805, %v3829
        %v3855 = vadd.f32 %v3806, %v3833
        %v3856 = vadd.f32 %v3807, %v3837
        %v3857 = vadd.f32 %v3808, %v3841
        %vm3858 = vcmp.ge.f32.partialorder %v3850, 0.0
        %vm3859 = vcmp.ge.f32.partialorder %v3851, 0.0
        %vm3860 = vcmp.ge.f32.partialorder %v3852, 0.0
        %vm3861 = vcmp.ge.f32.partialorder %v3853, 0.0
        %vm3862 = vcmp.ge.f32.partialorder %v3854, 0.0
        %vm3863 = vcmp.ge.f32.partialorder %v3855, 0.0
        %vm3864 = vcmp.ge.f32.partialorder %v3856, 0.0
        %vm3865 = vcmp.ge.f32.partialorder %v3857, 0.0
        %v3866 = vmul.f32 %v3850, 0.01
        %v3867 = vmul.f32 %v3851, 0.01
        %v3868 = vmul.f32 %v3852, 0.01
        %v3869 = vmul.f32 %v3853, 0.01
        %v3870 = vmul.f32 %v3854, 0.01
        %v3871 = vmul.f32 %v3855, 0.01
        %v3872 = vmul.f32 %v3856, 0.01
        %v3873 = vmul.f32 %v3857, 0.01
        %v3874 = vsel %vm3858, %v3850, %v3866
        %v3875 = vsel %vm3859, %v3851, %v3867
        %v3876 = vsel %vm3860, %v3852, %v3868
        %v3877 = vsel %vm3861, %v3853, %v3869
        %v3878 = vsel %vm3862, %v3854, %v3870
        %v3879 = vsel %vm3863, %v3855, %v3871
        %v3880 = vsel %vm3864, %v3856, %v3872
        %v3881 = vsel %vm3865, %v3857, %v3873
        %v3882 = vpack.c.bf16 %v3874, %v3874
        %v3883 = vpack.c.bf16 %v3875, %v3875
        %v3884 = vpack.c.bf16 %v3876, %v3876
        %v3885 = vpack.c.bf16 %v3877, %v3877
        %v3886 = vpack.c.bf16 %v3878, %v3878
        %v3887 = vpack.c.bf16 %v3879, %v3879
        %v3888 = vpack.c.bf16 %v3880, %v3880
        %v3889 = vpack.c.bf16 %v3881, %v3881
        %v3890 = vld [vmem:[%s707] sm:$0xff]
        %v3891 = vld [vmem:[%s707 + $0x8] sm:$0xff]
        %v3892 = vld [vmem:[%s707 + $0x10] sm:$0xff]
        %v3893 = vld [vmem:[%s707 + $0x18] sm:$0xff]
        %v3894 = vld [vmem:[%s707 + $0x20] sm:$0xff]
        %v3895 = vld [vmem:[%s707 + $0x28] sm:$0xff]
        %v3896 = vld [vmem:[%s707 + $0x30] sm:$0xff]
        %v3897 = vld [vmem:[%s707 + $0x38] sm:$0xff]
        %v3898 = vld [vmem:[%s707 + $0x40] sm:$0xff]
        %v3899 = vld [vmem:[%s707 + $0x48] sm:$0xff]
        %v3900 = vld [vmem:[%s707 + $0x50] sm:$0xff]
        %v3901 = vld [vmem:[%s707 + $0x58] sm:$0xff]
        %v3902 = vld [vmem:[%s707 + $0x60] sm:$0xff]
        %v3903 = vld [vmem:[%s707 + $0x68] sm:$0xff]
        %v3904 = vld [vmem:[%s707 + $0x70] sm:$0xff]
        %v3905 = vld [vmem:[%s707 + $0x78] sm:$0xff]
        %v3906 = vld [vmem:[%s707 + $0x80] sm:$0xff]
        %v3907 = vld [vmem:[%s707 + $0x88] sm:$0xff]
        %v3908 = vld [vmem:[%s707 + $0x90] sm:$0xff]
        %v3909 = vld [vmem:[%s707 + $0x98] sm:$0xff]
        %v3910 = vld [vmem:[%s707 + $0xa0] sm:$0xff]
        %v3911 = vld [vmem:[%s707 + $0xa8] sm:$0xff]
        %v3912 = vld [vmem:[%s707 + $0xb0] sm:$0xff]
        %v3913 = vld [vmem:[%s707 + $0xb8] sm:$0xff]
        %v3914 = vld [vmem:[%s707 + $0xc0] sm:$0xff]
        %v3915 = vld [vmem:[%s707 + $0xc8] sm:$0xff]
        %v3916 = vld [vmem:[%s707 + $0xd0] sm:$0xff]
        %v3917 = vld [vmem:[%s707 + $0xd8] sm:$0xff]
        %v3918 = vld [vmem:[%s707 + $0xe0] sm:$0xff]
        %v3919 = vld [vmem:[%s707 + $0xe8] sm:$0xff]
        %v3920 = vld [vmem:[%s707 + $0xf0] sm:$0xff]
        %v3921 = vld [vmem:[%s707 + $0xf8] sm:$0xff]
        %v3922 = vld [vmem:[%s707 + $0x100] sm:$0xff]
        %v3923 = vld [vmem:[%s707 + $0x108] sm:$0xff]
        %v3924 = vld [vmem:[%s707 + $0x110] sm:$0xff]
        %v3925 = vld [vmem:[%s707 + $0x118] sm:$0xff]
        %v3926 = vld [vmem:[%s707 + $0x120] sm:$0xff]
        %v3927 = vld [vmem:[%s707 + $0x128] sm:$0xff]
        %v3928 = vld [vmem:[%s707 + $0x130] sm:$0xff]
        %v3929 = vld [vmem:[%s707 + $0x138] sm:$0xff]
        %v3930 = vld [vmem:[%s707 + $0x140] sm:$0xff]
        %v3931 = vld [vmem:[%s707 + $0x148] sm:$0xff]
        %v3932 = vld [vmem:[%s707 + $0x150] sm:$0xff]
        %v3933 = vld [vmem:[%s707 + $0x158] sm:$0xff]
        %v3934 = vld [vmem:[%s707 + $0x160] sm:$0xff]
        %v3935 = vld [vmem:[%s707 + $0x168] sm:$0xff]
        %v3936 = vld [vmem:[%s707 + $0x170] sm:$0xff]
        %v3937 = vld [vmem:[%s707 + $0x178] sm:$0xff]
        %v3938 = vld [vmem:[%s707 + $0x180] sm:$0xff]
        %v3939 = vld [vmem:[%s707 + $0x188] sm:$0xff]
        %v3940 = vld [vmem:[%s707 + $0x190] sm:$0xff]
        %v3941 = vld [vmem:[%s707 + $0x198] sm:$0xff]
        %v3942 = vld [vmem:[%s707 + $0x1a0] sm:$0xff]
        %v3943 = vld [vmem:[%s707 + $0x1a8] sm:$0xff]
        %v3944 = vld [vmem:[%s707 + $0x1b0] sm:$0xff]
        %v3945 = vld [vmem:[%s707 + $0x1b8] sm:$0xff]
        %v3946 = vld [vmem:[%s707 + $0x1c0] sm:$0xff]
        %v3947 = vld [vmem:[%s707 + $0x1c8] sm:$0xff]
        %v3948 = vld [vmem:[%s707 + $0x1d0] sm:$0xff]
        %v3949 = vld [vmem:[%s707 + $0x1d8] sm:$0xff]
        %v3950 = vld [vmem:[%s707 + $0x1e0] sm:$0xff]
        %v3951 = vld [vmem:[%s707 + $0x1e8] sm:$0xff]
        %v3952 = vld [vmem:[%s707 + $0x1f0] sm:$0xff]
        %v3953 = vld [vmem:[%s707 + $0x1f8] sm:$0xff]
        %v3954 = vld [vmem:[%s707 + $0x200] sm:$0xff]
        %v3955 = vld [vmem:[%s707 + $0x208] sm:$0xff]
        %v3956 = vld [vmem:[%s707 + $0x210] sm:$0xff]
        %v3957 = vld [vmem:[%s707 + $0x218] sm:$0xff]
        %v3958 = vld [vmem:[%s707 + $0x220] sm:$0xff]
        %v3959 = vld [vmem:[%s707 + $0x228] sm:$0xff]
        %v3960 = vld [vmem:[%s707 + $0x230] sm:$0xff]
        %v3961 = vld [vmem:[%s707 + $0x238] sm:$0xff]
        %v3962 = vld [vmem:[%s707 + $0x240] sm:$0xff]
        %v3963 = vld [vmem:[%s707 + $0x248] sm:$0xff]
        %v3964 = vld [vmem:[%s707 + $0x250] sm:$0xff]
        %v3965 = vld [vmem:[%s707 + $0x258] sm:$0xff]
        %v3966 = vld [vmem:[%s707 + $0x260] sm:$0xff]
        %v3967 = vld [vmem:[%s707 + $0x268] sm:$0xff]
        %v3968 = vld [vmem:[%s707 + $0x270] sm:$0xff]
        %v3969 = vld [vmem:[%s707 + $0x278] sm:$0xff]
        %v3970 = vld [vmem:[%s707 + $0x280] sm:$0xff]
        %v3971 = vld [vmem:[%s707 + $0x288] sm:$0xff]
        %v3972 = vld [vmem:[%s707 + $0x290] sm:$0xff]
        %v3973 = vld [vmem:[%s707 + $0x298] sm:$0xff]
        %v3974 = vld [vmem:[%s707 + $0x2a0] sm:$0xff]
        %v3975 = vld [vmem:[%s707 + $0x2a8] sm:$0xff]
        %v3976 = vld [vmem:[%s707 + $0x2b0] sm:$0xff]
        %v3977 = vld [vmem:[%s707 + $0x2b8] sm:$0xff]
        %v3978 = vld [vmem:[%s707 + $0x2c0] sm:$0xff]
        %v3979 = vld [vmem:[%s707 + $0x2c8] sm:$0xff]
        %v3980 = vld [vmem:[%s707 + $0x2d0] sm:$0xff]
        %v3981 = vld [vmem:[%s707 + $0x2d8] sm:$0xff]
        %v3982 = vld [vmem:[%s707 + $0x2e0] sm:$0xff]
        %v3983 = vld [vmem:[%s707 + $0x2e8] sm:$0xff]
        %v3984 = vld [vmem:[%s707 + $0x2f0] sm:$0xff]
        %v3985 = vld [vmem:[%s707 + $0x2f8] sm:$0xff]
        %v3986 = vld [vmem:[%s707 + $0x300] sm:$0xff]
        %v3987 = vld [vmem:[%s707 + $0x308] sm:$0xff]
        %v3988 = vld [vmem:[%s707 + $0x310] sm:$0xff]
        %v3989 = vld [vmem:[%s707 + $0x318] sm:$0xff]
        %v3990 = vld [vmem:[%s707 + $0x320] sm:$0xff]
        %v3991 = vld [vmem:[%s707 + $0x328] sm:$0xff]
        %v3992 = vld [vmem:[%s707 + $0x330] sm:$0xff]
        %v3993 = vld [vmem:[%s707 + $0x338] sm:$0xff]
        %v3994 = vld [vmem:[%s707 + $0x340] sm:$0xff]
        %v3995 = vld [vmem:[%s707 + $0x348] sm:$0xff]
        %v3996 = vld [vmem:[%s707 + $0x350] sm:$0xff]
        %v3997 = vld [vmem:[%s707 + $0x358] sm:$0xff]
        %v3998 = vld [vmem:[%s707 + $0x360] sm:$0xff]
        %v3999 = vld [vmem:[%s707 + $0x368] sm:$0xff]
        %v4000 = vld [vmem:[%s707 + $0x370] sm:$0xff]
        %v4001 = vld [vmem:[%s707 + $0x378] sm:$0xff]
        %v4002 = vld [vmem:[%s707 + $0x380] sm:$0xff]
        %v4003 = vld [vmem:[%s707 + $0x388] sm:$0xff]
        %v4004 = vld [vmem:[%s707 + $0x390] sm:$0xff]
        %v4005 = vld [vmem:[%s707 + $0x398] sm:$0xff]
        %v4006 = vld [vmem:[%s707 + $0x3a0] sm:$0xff]
        %v4007 = vld [vmem:[%s707 + $0x3a8] sm:$0xff]
        %v4008 = vld [vmem:[%s707 + $0x3b0] sm:$0xff]
        %v4009 = vld [vmem:[%s707 + $0x3b8] sm:$0xff]
        %v4010 = vld [vmem:[%s707 + $0x3c0] sm:$0xff]
        %v4011 = vld [vmem:[%s707 + $0x3c8] sm:$0xff]
        %v4012 = vld [vmem:[%s707 + $0x3d0] sm:$0xff]
        %v4013 = vld [vmem:[%s707 + $0x3d8] sm:$0xff]
        %v4014 = vld [vmem:[%s707 + $0x3e0] sm:$0xff]
        %v4015 = vld [vmem:[%s707 + $0x3e8] sm:$0xff]
        %v4016 = vld [vmem:[%s707 + $0x3f0] sm:$0xff]
        %v4017 = vld [vmem:[%s707 + $0x3f8] sm:$0xff]
        %v4018 = vld [vmem:[%s707 + $0x400] sm:$0xff]
        %v4019 = vld [vmem:[%s707 + $0x408] sm:$0xff]
        %v4020 = vld [vmem:[%s707 + $0x410] sm:$0xff]
        %v4021 = vld [vmem:[%s707 + $0x418] sm:$0xff]
        %v4022 = vld [vmem:[%s707 + $0x420] sm:$0xff]
        %v4023 = vld [vmem:[%s707 + $0x428] sm:$0xff]
        %v4024 = vld [vmem:[%s707 + $0x430] sm:$0xff]
        %v4025 = vld [vmem:[%s707 + $0x438] sm:$0xff]
        %v4026 = vld [vmem:[%s707 + $0x440] sm:$0xff]
        %v4027 = vld [vmem:[%s707 + $0x448] sm:$0xff]
        %v4028 = vld [vmem:[%s707 + $0x450] sm:$0xff]
        %v4029 = vld [vmem:[%s707 + $0x458] sm:$0xff]
        %v4030 = vld [vmem:[%s707 + $0x460] sm:$0xff]
        %v4031 = vld [vmem:[%s707 + $0x468] sm:$0xff]
        %v4032 = vld [vmem:[%s707 + $0x470] sm:$0xff]
        %v4033 = vld [vmem:[%s707 + $0x478] sm:$0xff]
        %v4034 = vld [vmem:[%s707 + $0x480] sm:$0xff]
        %v4035 = vld [vmem:[%s707 + $0x488] sm:$0xff]
        %v4036 = vld [vmem:[%s707 + $0x490] sm:$0xff]
        %v4037 = vld [vmem:[%s707 + $0x498] sm:$0xff]
        %v4038 = vld [vmem:[%s707 + $0x4a0] sm:$0xff]
        %v4039 = vld [vmem:[%s707 + $0x4a8] sm:$0xff]
        %v4040 = vld [vmem:[%s707 + $0x4b0] sm:$0xff]
        %v4041 = vld [vmem:[%s707 + $0x4b8] sm:$0xff]
        %v4042 = vld [vmem:[%s707 + $0x4c0] sm:$0xff]
        %v4043 = vld [vmem:[%s707 + $0x4c8] sm:$0xff]
        %v4044 = vld [vmem:[%s707 + $0x4d0] sm:$0xff]
        %v4045 = vld [vmem:[%s707 + $0x4d8] sm:$0xff]
        %v4046 = vld [vmem:[%s707 + $0x4e0] sm:$0xff]
        %v4047 = vld [vmem:[%s707 + $0x4e8] sm:$0xff]
        %v4048 = vld [vmem:[%s707 + $0x4f0] sm:$0xff]
        %v4049 = vld [vmem:[%s707 + $0x4f8] sm:$0xff]
        %v4050 = vld [vmem:[%s707 + $0x500] sm:$0xff]
        %v4051 = vld [vmem:[%s707 + $0x508] sm:$0xff]
        %v4052 = vld [vmem:[%s707 + $0x510] sm:$0xff]
        %v4053 = vld [vmem:[%s707 + $0x518] sm:$0xff]
        %v4054 = vld [vmem:[%s707 + $0x520] sm:$0xff]
        %v4055 = vld [vmem:[%s707 + $0x528] sm:$0xff]
        %v4056 = vld [vmem:[%s707 + $0x530] sm:$0xff]
        %v4057 = vld [vmem:[%s707 + $0x538] sm:$0xff]
        %v4058 = vld [vmem:[%s707 + $0x540] sm:$0xff]
        %v4059 = vld [vmem:[%s707 + $0x548] sm:$0xff]
        %v4060 = vld [vmem:[%s707 + $0x550] sm:$0xff]
        %v4061 = vld [vmem:[%s707 + $0x558] sm:$0xff]
        %v4062 = vld [vmem:[%s707 + $0x560] sm:$0xff]
        %v4063 = vld [vmem:[%s707 + $0x568] sm:$0xff]
        %v4064 = vld [vmem:[%s707 + $0x570] sm:$0xff]
        %v4065 = vld [vmem:[%s707 + $0x578] sm:$0xff]
        %v4066 = vld [vmem:[%s707 + $0x580] sm:$0xff]
        %v4067 = vld [vmem:[%s707 + $0x588] sm:$0xff]
        %v4068 = vld [vmem:[%s707 + $0x590] sm:$0xff]
        %v4069 = vld [vmem:[%s707 + $0x598] sm:$0xff]
        %v4070 = vld [vmem:[%s707 + $0x5a0] sm:$0xff]
        %v4071 = vld [vmem:[%s707 + $0x5a8] sm:$0xff]
        %v4072 = vld [vmem:[%s707 + $0x5b0] sm:$0xff]
        %v4073 = vld [vmem:[%s707 + $0x5b8] sm:$0xff]
        %v4074 = vld [vmem:[%s707 + $0x5c0] sm:$0xff]
        %v4075 = vld [vmem:[%s707 + $0x5c8] sm:$0xff]
        %v4076 = vld [vmem:[%s707 + $0x5d0] sm:$0xff]
        %v4077 = vld [vmem:[%s707 + $0x5d8] sm:$0xff]
        %v4078 = vld [vmem:[%s707 + $0x5e0] sm:$0xff]
        %v4079 = vld [vmem:[%s707 + $0x5e8] sm:$0xff]
        %v4080 = vld [vmem:[%s707 + $0x5f0] sm:$0xff]
        %v4081 = vld [vmem:[%s707 + $0x5f8] sm:$0xff]
        %v4082 = vld [vmem:[%s707 + $0x600] sm:$0xff]
        %v4083 = vld [vmem:[%s707 + $0x608] sm:$0xff]
        %v4084 = vld [vmem:[%s707 + $0x610] sm:$0xff]
        %v4085 = vld [vmem:[%s707 + $0x618] sm:$0xff]
        %v4086 = vld [vmem:[%s707 + $0x620] sm:$0xff]
        %v4087 = vld [vmem:[%s707 + $0x628] sm:$0xff]
        %v4088 = vld [vmem:[%s707 + $0x630] sm:$0xff]
        %v4089 = vld [vmem:[%s707 + $0x638] sm:$0xff]
        %v4090 = vld [vmem:[%s707 + $0x640] sm:$0xff]
        %v4091 = vld [vmem:[%s707 + $0x648] sm:$0xff]
        %v4092 = vld [vmem:[%s707 + $0x650] sm:$0xff]
        %v4093 = vld [vmem:[%s707 + $0x658] sm:$0xff]
        %v4094 = vld [vmem:[%s707 + $0x660] sm:$0xff]
        %v4095 = vld [vmem:[%s707 + $0x668] sm:$0xff]
        %v4096 = vld [vmem:[%s707 + $0x670] sm:$0xff]
        %v4097 = vld [vmem:[%s707 + $0x678] sm:$0xff]
        %v4098 = vld [vmem:[%s707 + $0x680] sm:$0xff]
        %v4099 = vld [vmem:[%s707 + $0x688] sm:$0xff]
        %v4100 = vld [vmem:[%s707 + $0x690] sm:$0xff]
        %v4101 = vld [vmem:[%s707 + $0x698] sm:$0xff]
        %v4102 = vld [vmem:[%s707 + $0x6a0] sm:$0xff]
        %v4103 = vld [vmem:[%s707 + $0x6a8] sm:$0xff]
        %v4104 = vld [vmem:[%s707 + $0x6b0] sm:$0xff]
        %v4105 = vld [vmem:[%s707 + $0x6b8] sm:$0xff]
        %v4106 = vld [vmem:[%s707 + $0x6c0] sm:$0xff]
        %v4107 = vld [vmem:[%s707 + $0x6c8] sm:$0xff]
        %v4108 = vld [vmem:[%s707 + $0x6d0] sm:$0xff]
        %v4109 = vld [vmem:[%s707 + $0x6d8] sm:$0xff]
        %v4110 = vld [vmem:[%s707 + $0x6e0] sm:$0xff]
        %v4111 = vld [vmem:[%s707 + $0x6e8] sm:$0xff]
        %v4112 = vld [vmem:[%s707 + $0x6f0] sm:$0xff]
        %v4113 = vld [vmem:[%s707 + $0x6f8] sm:$0xff]
        %v4114 = vld [vmem:[%s707 + $0x700] sm:$0xff]
        %v4115 = vld [vmem:[%s707 + $0x708] sm:$0xff]
        %v4116 = vld [vmem:[%s707 + $0x710] sm:$0xff]
        %v4117 = vld [vmem:[%s707 + $0x718] sm:$0xff]
        %v4118 = vld [vmem:[%s707 + $0x720] sm:$0xff]
        %v4119 = vld [vmem:[%s707 + $0x728] sm:$0xff]
        %v4120 = vld [vmem:[%s707 + $0x730] sm:$0xff]
        %v4121 = vld [vmem:[%s707 + $0x738] sm:$0xff]
        %v4122 = vld [vmem:[%s707 + $0x740] sm:$0xff]
        %v4123 = vld [vmem:[%s707 + $0x748] sm:$0xff]
        %v4124 = vld [vmem:[%s707 + $0x750] sm:$0xff]
        %v4125 = vld [vmem:[%s707 + $0x758] sm:$0xff]
        %v4126 = vld [vmem:[%s707 + $0x760] sm:$0xff]
        %v4127 = vld [vmem:[%s707 + $0x768] sm:$0xff]
        %v4128 = vld [vmem:[%s707 + $0x770] sm:$0xff]
        %v4129 = vld [vmem:[%s707 + $0x778] sm:$0xff]
        %v4130 = vld [vmem:[%s707 + $0x780] sm:$0xff]
        %v4131 = vld [vmem:[%s707 + $0x788] sm:$0xff]
        %v4132 = vld [vmem:[%s707 + $0x790] sm:$0xff]
        %v4133 = vld [vmem:[%s707 + $0x798] sm:$0xff]
        %v4134 = vld [vmem:[%s707 + $0x7a0] sm:$0xff]
        %v4135 = vld [vmem:[%s707 + $0x7a8] sm:$0xff]
        %v4136 = vld [vmem:[%s707 + $0x7b0] sm:$0xff]
        %v4137 = vld [vmem:[%s707 + $0x7b8] sm:$0xff]
        %v4138 = vld [vmem:[%s707 + $0x7c0] sm:$0xff]
        %v4139 = vld [vmem:[%s707 + $0x7c8] sm:$0xff]
        %v4140 = vld [vmem:[%s707 + $0x7d0] sm:$0xff]
        %v4141 = vld [vmem:[%s707 + $0x7d8] sm:$0xff]
        %v4142 = vld [vmem:[%s707 + $0x7e0] sm:$0xff]
        %v4143 = vld [vmem:[%s707 + $0x7e8] sm:$0xff]
        %v4144 = vld [vmem:[%s707 + $0x7f0] sm:$0xff]
        %v4145 = vld [vmem:[%s707 + $0x7f8] sm:$0xff]
        %v4146 = vld [vmem:[%s707 + $0x800] sm:$0xff]
        %v4147 = vld [vmem:[%s707 + $0x808] sm:$0xff]
        %v4148 = vld [vmem:[%s707 + $0x810] sm:$0xff]
        %v4149 = vld [vmem:[%s707 + $0x818] sm:$0xff]
        %v4150 = vld [vmem:[%s707 + $0x820] sm:$0xff]
        %v4151 = vld [vmem:[%s707 + $0x828] sm:$0xff]
        %v4152 = vld [vmem:[%s707 + $0x830] sm:$0xff]
        %v4153 = vld [vmem:[%s707 + $0x838] sm:$0xff]
        %v4154 = vld [vmem:[%s707 + $0x840] sm:$0xff]
        %v4155 = vld [vmem:[%s707 + $0x848] sm:$0xff]
        %v4156 = vld [vmem:[%s707 + $0x850] sm:$0xff]
        %v4157 = vld [vmem:[%s707 + $0x858] sm:$0xff]
        %v4158 = vld [vmem:[%s707 + $0x860] sm:$0xff]
        %v4159 = vld [vmem:[%s707 + $0x868] sm:$0xff]
        %v4160 = vld [vmem:[%s707 + $0x870] sm:$0xff]
        %v4161 = vld [vmem:[%s707 + $0x878] sm:$0xff]
        %v4162 = vld [vmem:[%s707 + $0x880] sm:$0xff]
        %v4163 = vld [vmem:[%s707 + $0x888] sm:$0xff]
        %v4164 = vld [vmem:[%s707 + $0x890] sm:$0xff]
        %v4165 = vld [vmem:[%s707 + $0x898] sm:$0xff]
        %v4166 = vld [vmem:[%s707 + $0x8a0] sm:$0xff]
        %v4167 = vld [vmem:[%s707 + $0x8a8] sm:$0xff]
        %v4168 = vld [vmem:[%s707 + $0x8b0] sm:$0xff]
        %v4169 = vld [vmem:[%s707 + $0x8b8] sm:$0xff]
        %v4170 = vld [vmem:[%s707 + $0x8c0] sm:$0xff]
        %v4171 = vld [vmem:[%s707 + $0x8c8] sm:$0xff]
        %v4172 = vld [vmem:[%s707 + $0x8d0] sm:$0xff]
        %v4173 = vld [vmem:[%s707 + $0x8d8] sm:$0xff]
        %v4174 = vld [vmem:[%s707 + $0x8e0] sm:$0xff]
        %v4175 = vld [vmem:[%s707 + $0x8e8] sm:$0xff]
        %v4176 = vld [vmem:[%s707 + $0x8f0] sm:$0xff]
        %v4177 = vld [vmem:[%s707 + $0x8f8] sm:$0xff]
        %v4178 = vld [vmem:[%s707 + $0x900] sm:$0xff]
        %v4179 = vld [vmem:[%s707 + $0x908] sm:$0xff]
        %v4180 = vld [vmem:[%s707 + $0x910] sm:$0xff]
        %v4181 = vld [vmem:[%s707 + $0x918] sm:$0xff]
        %v4182 = vld [vmem:[%s707 + $0x920] sm:$0xff]
        %v4183 = vld [vmem:[%s707 + $0x928] sm:$0xff]
        %v4184 = vld [vmem:[%s707 + $0x930] sm:$0xff]
        %v4185 = vld [vmem:[%s707 + $0x938] sm:$0xff]
        %v4186 = vld [vmem:[%s707 + $0x940] sm:$0xff]
        %v4187 = vld [vmem:[%s707 + $0x948] sm:$0xff]
        %v4188 = vld [vmem:[%s707 + $0x950] sm:$0xff]
        %v4189 = vld [vmem:[%s707 + $0x958] sm:$0xff]
        %v4190 = vld [vmem:[%s707 + $0x960] sm:$0xff]
        %v4191 = vld [vmem:[%s707 + $0x968] sm:$0xff]
        %v4192 = vld [vmem:[%s707 + $0x970] sm:$0xff]
        %v4193 = vld [vmem:[%s707 + $0x978] sm:$0xff]
        %v4194 = vld [vmem:[%s707 + $0x980] sm:$0xff]
        %v4195 = vld [vmem:[%s707 + $0x988] sm:$0xff]
        %v4196 = vld [vmem:[%s707 + $0x990] sm:$0xff]
        %v4197 = vld [vmem:[%s707 + $0x998] sm:$0xff]
        %v4198 = vld [vmem:[%s707 + $0x9a0] sm:$0xff]
        %v4199 = vld [vmem:[%s707 + $0x9a8] sm:$0xff]
        %v4200 = vld [vmem:[%s707 + $0x9b0] sm:$0xff]
        %v4201 = vld [vmem:[%s707 + $0x9b8] sm:$0xff]
        %v4202 = vld [vmem:[%s707 + $0x9c0] sm:$0xff]
        %v4203 = vld [vmem:[%s707 + $0x9c8] sm:$0xff]
        %v4204 = vld [vmem:[%s707 + $0x9d0] sm:$0xff]
        %v4205 = vld [vmem:[%s707 + $0x9d8] sm:$0xff]
        %v4206 = vld [vmem:[%s707 + $0x9e0] sm:$0xff]
        %v4207 = vld [vmem:[%s707 + $0x9e8] sm:$0xff]
        %v4208 = vld [vmem:[%s707 + $0x9f0] sm:$0xff]
        %v4209 = vld [vmem:[%s707 + $0x9f8] sm:$0xff]
        %v4210 = vld [vmem:[%s707 + $0xa00] sm:$0xff]
        %v4211 = vld [vmem:[%s707 + $0xa08] sm:$0xff]
        %v4212 = vld [vmem:[%s707 + $0xa10] sm:$0xff]
        %v4213 = vld [vmem:[%s707 + $0xa18] sm:$0xff]
        %v4214 = vld [vmem:[%s707 + $0xa20] sm:$0xff]
        %v4215 = vld [vmem:[%s707 + $0xa28] sm:$0xff]
        %v4216 = vld [vmem:[%s707 + $0xa30] sm:$0xff]
        %v4217 = vld [vmem:[%s707 + $0xa38] sm:$0xff]
        %v4218 = vld [vmem:[%s707 + $0xa40] sm:$0xff]
        %v4219 = vld [vmem:[%s707 + $0xa48] sm:$0xff]
        %v4220 = vld [vmem:[%s707 + $0xa50] sm:$0xff]
        %v4221 = vld [vmem:[%s707 + $0xa58] sm:$0xff]
        %v4222 = vld [vmem:[%s707 + $0xa60] sm:$0xff]
        %v4223 = vld [vmem:[%s707 + $0xa68] sm:$0xff]
        %v4224 = vld [vmem:[%s707 + $0xa70] sm:$0xff]
        %v4225 = vld [vmem:[%s707 + $0xa78] sm:$0xff]
        %v4226 = vld [vmem:[%s707 + $0xa80] sm:$0xff]
        %v4227 = vld [vmem:[%s707 + $0xa88] sm:$0xff]
        %v4228 = vld [vmem:[%s707 + $0xa90] sm:$0xff]
        %v4229 = vld [vmem:[%s707 + $0xa98] sm:$0xff]
        %v4230 = vld [vmem:[%s707 + $0xaa0] sm:$0xff]
        %v4231 = vld [vmem:[%s707 + $0xaa8] sm:$0xff]
        %v4232 = vld [vmem:[%s707 + $0xab0] sm:$0xff]
        %v4233 = vld [vmem:[%s707 + $0xab8] sm:$0xff]
        %v4234 = vld [vmem:[%s707 + $0xac0] sm:$0xff]
        %v4235 = vld [vmem:[%s707 + $0xac8] sm:$0xff]
        %v4236 = vld [vmem:[%s707 + $0xad0] sm:$0xff]
        %v4237 = vld [vmem:[%s707 + $0xad8] sm:$0xff]
        %v4238 = vld [vmem:[%s707 + $0xae0] sm:$0xff]
        %v4239 = vld [vmem:[%s707 + $0xae8] sm:$0xff]
        %v4240 = vld [vmem:[%s707 + $0xaf0] sm:$0xff]
        %v4241 = vld [vmem:[%s707 + $0xaf8] sm:$0xff]
        %v4242 = vld [vmem:[%s707 + $0xb00] sm:$0xff]
        %v4243 = vld [vmem:[%s707 + $0xb08] sm:$0xff]
        %v4244 = vld [vmem:[%s707 + $0xb10] sm:$0xff]
        %v4245 = vld [vmem:[%s707 + $0xb18] sm:$0xff]
        %v4246 = vld [vmem:[%s707 + $0xb20] sm:$0xff]
        %v4247 = vld [vmem:[%s707 + $0xb28] sm:$0xff]
        %v4248 = vld [vmem:[%s707 + $0xb30] sm:$0xff]
        %v4249 = vld [vmem:[%s707 + $0xb38] sm:$0xff]
        %v4250 = vld [vmem:[%s707 + $0xb40] sm:$0xff]
        %v4251 = vld [vmem:[%s707 + $0xb48] sm:$0xff]
        %v4252 = vld [vmem:[%s707 + $0xb50] sm:$0xff]
        %v4253 = vld [vmem:[%s707 + $0xb58] sm:$0xff]
        %v4254 = vld [vmem:[%s707 + $0xb60] sm:$0xff]
        %v4255 = vld [vmem:[%s707 + $0xb68] sm:$0xff]
        %v4256 = vld [vmem:[%s707 + $0xb70] sm:$0xff]
        %v4257 = vld [vmem:[%s707 + $0xb78] sm:$0xff]
        %v4258 = vld [vmem:[%s707 + $0xb80] sm:$0xff]
        %v4259 = vld [vmem:[%s707 + $0xb88] sm:$0xff]
        %v4260 = vld [vmem:[%s707 + $0xb90] sm:$0xff]
        %v4261 = vld [vmem:[%s707 + $0xb98] sm:$0xff]
        %v4262 = vld [vmem:[%s707 + $0xba0] sm:$0xff]
        %v4263 = vld [vmem:[%s707 + $0xba8] sm:$0xff]
        %v4264 = vld [vmem:[%s707 + $0xbb0] sm:$0xff]
        %v4265 = vld [vmem:[%s707 + $0xbb8] sm:$0xff]
        %v4266 = vld [vmem:[%s707 + $0xbc0] sm:$0xff]
        %v4267 = vld [vmem:[%s707 + $0xbc8] sm:$0xff]
        %v4268 = vld [vmem:[%s707 + $0xbd0] sm:$0xff]
        %v4269 = vld [vmem:[%s707 + $0xbd8] sm:$0xff]
        %v4270 = vld [vmem:[%s707 + $0xbe0] sm:$0xff]
        %v4271 = vld [vmem:[%s707 + $0xbe8] sm:$0xff]
        %v4272 = vld [vmem:[%s707 + $0xbf0] sm:$0xff]
        %v4273 = vld [vmem:[%s707 + $0xbf8] sm:$0xff]
        %v4274 = vld [vmem:[%s707 + $0xc00] sm:$0xff]
        %v4275 = vld [vmem:[%s707 + $0xc08] sm:$0xff]
        %v4276 = vld [vmem:[%s707 + $0xc10] sm:$0xff]
        %v4277 = vld [vmem:[%s707 + $0xc18] sm:$0xff]
        %v4278 = vld [vmem:[%s707 + $0xc20] sm:$0xff]
        %v4279 = vld [vmem:[%s707 + $0xc28] sm:$0xff]
        %v4280 = vld [vmem:[%s707 + $0xc30] sm:$0xff]
        %v4281 = vld [vmem:[%s707 + $0xc38] sm:$0xff]
        %v4282 = vld [vmem:[%s707 + $0xc40] sm:$0xff]
        %v4283 = vld [vmem:[%s707 + $0xc48] sm:$0xff]
        %v4284 = vld [vmem:[%s707 + $0xc50] sm:$0xff]
        %v4285 = vld [vmem:[%s707 + $0xc58] sm:$0xff]
        %v4286 = vld [vmem:[%s707 + $0xc60] sm:$0xff]
        %v4287 = vld [vmem:[%s707 + $0xc68] sm:$0xff]
        %v4288 = vld [vmem:[%s707 + $0xc70] sm:$0xff]
        %v4289 = vld [vmem:[%s707 + $0xc78] sm:$0xff]
        %v4290 = vld [vmem:[%s707 + $0xc80] sm:$0xff]
        %v4291 = vld [vmem:[%s707 + $0xc88] sm:$0xff]
        %v4292 = vld [vmem:[%s707 + $0xc90] sm:$0xff]
        %v4293 = vld [vmem:[%s707 + $0xc98] sm:$0xff]
        %v4294 = vld [vmem:[%s707 + $0xca0] sm:$0xff]
        %v4295 = vld [vmem:[%s707 + $0xca8] sm:$0xff]
        %v4296 = vld [vmem:[%s707 + $0xcb0] sm:$0xff]
        %v4297 = vld [vmem:[%s707 + $0xcb8] sm:$0xff]
        %v4298 = vld [vmem:[%s707 + $0xcc0] sm:$0xff]
        %v4299 = vld [vmem:[%s707 + $0xcc8] sm:$0xff]
        %v4300 = vld [vmem:[%s707 + $0xcd0] sm:$0xff]
        %v4301 = vld [vmem:[%s707 + $0xcd8] sm:$0xff]
        %v4302 = vld [vmem:[%s707 + $0xce0] sm:$0xff]
        %v4303 = vld [vmem:[%s707 + $0xce8] sm:$0xff]
        %v4304 = vld [vmem:[%s707 + $0xcf0] sm:$0xff]
        %v4305 = vld [vmem:[%s707 + $0xcf8] sm:$0xff]
        %v4306 = vld [vmem:[%s707 + $0xd00] sm:$0xff]
        %v4307 = vld [vmem:[%s707 + $0xd08] sm:$0xff]
        %v4308 = vld [vmem:[%s707 + $0xd10] sm:$0xff]
        %v4309 = vld [vmem:[%s707 + $0xd18] sm:$0xff]
        %v4310 = vld [vmem:[%s707 + $0xd20] sm:$0xff]
        %v4311 = vld [vmem:[%s707 + $0xd28] sm:$0xff]
        %v4312 = vld [vmem:[%s707 + $0xd30] sm:$0xff]
        %v4313 = vld [vmem:[%s707 + $0xd38] sm:$0xff]
        %v4314 = vld [vmem:[%s707 + $0xd40] sm:$0xff]
        %v4315 = vld [vmem:[%s707 + $0xd48] sm:$0xff]
        %v4316 = vld [vmem:[%s707 + $0xd50] sm:$0xff]
        %v4317 = vld [vmem:[%s707 + $0xd58] sm:$0xff]
        %v4318 = vld [vmem:[%s707 + $0xd60] sm:$0xff]
        %v4319 = vld [vmem:[%s707 + $0xd68] sm:$0xff]
        %v4320 = vld [vmem:[%s707 + $0xd70] sm:$0xff]
        %v4321 = vld [vmem:[%s707 + $0xd78] sm:$0xff]
        %v4322 = vld [vmem:[%s707 + $0xd80] sm:$0xff]
        %v4323 = vld [vmem:[%s707 + $0xd88] sm:$0xff]
        %v4324 = vld [vmem:[%s707 + $0xd90] sm:$0xff]
        %v4325 = vld [vmem:[%s707 + $0xd98] sm:$0xff]
        %v4326 = vld [vmem:[%s707 + $0xda0] sm:$0xff]
        %v4327 = vld [vmem:[%s707 + $0xda8] sm:$0xff]
        %v4328 = vld [vmem:[%s707 + $0xdb0] sm:$0xff]
        %v4329 = vld [vmem:[%s707 + $0xdb8] sm:$0xff]
        %v4330 = vld [vmem:[%s707 + $0xdc0] sm:$0xff]
        %v4331 = vld [vmem:[%s707 + $0xdc8] sm:$0xff]
        %v4332 = vld [vmem:[%s707 + $0xdd0] sm:$0xff]
        %v4333 = vld [vmem:[%s707 + $0xdd8] sm:$0xff]
        %v4334 = vld [vmem:[%s707 + $0xde0] sm:$0xff]
        %v4335 = vld [vmem:[%s707 + $0xde8] sm:$0xff]
        %v4336 = vld [vmem:[%s707 + $0xdf0] sm:$0xff]
        %v4337 = vld [vmem:[%s707 + $0xdf8] sm:$0xff]
        %v4338 = vld [vmem:[%s707 + $0xe00] sm:$0xff]
        %v4339 = vld [vmem:[%s707 + $0xe08] sm:$0xff]
        %v4340 = vld [vmem:[%s707 + $0xe10] sm:$0xff]
        %v4341 = vld [vmem:[%s707 + $0xe18] sm:$0xff]
        %v4342 = vld [vmem:[%s707 + $0xe20] sm:$0xff]
        %v4343 = vld [vmem:[%s707 + $0xe28] sm:$0xff]
        %v4344 = vld [vmem:[%s707 + $0xe30] sm:$0xff]
        %v4345 = vld [vmem:[%s707 + $0xe38] sm:$0xff]
        %v4346 = vld [vmem:[%s707 + $0xe40] sm:$0xff]
        %v4347 = vld [vmem:[%s707 + $0xe48] sm:$0xff]
        %v4348 = vld [vmem:[%s707 + $0xe50] sm:$0xff]
        %v4349 = vld [vmem:[%s707 + $0xe58] sm:$0xff]
        %v4350 = vld [vmem:[%s707 + $0xe60] sm:$0xff]
        %v4351 = vld [vmem:[%s707 + $0xe68] sm:$0xff]
        %v4352 = vld [vmem:[%s707 + $0xe70] sm:$0xff]
        %v4353 = vld [vmem:[%s707 + $0xe78] sm:$0xff]
        %v4354 = vld [vmem:[%s707 + $0xe80] sm:$0xff]
        %v4355 = vld [vmem:[%s707 + $0xe88] sm:$0xff]
        %v4356 = vld [vmem:[%s707 + $0xe90] sm:$0xff]
        %v4357 = vld [vmem:[%s707 + $0xe98] sm:$0xff]
        %v4358 = vld [vmem:[%s707 + $0xea0] sm:$0xff]
        %v4359 = vld [vmem:[%s707 + $0xea8] sm:$0xff]
        %v4360 = vld [vmem:[%s707 + $0xeb0] sm:$0xff]
        %v4361 = vld [vmem:[%s707 + $0xeb8] sm:$0xff]
        %v4362 = vld [vmem:[%s707 + $0xec0] sm:$0xff]
        %v4363 = vld [vmem:[%s707 + $0xec8] sm:$0xff]
        %v4364 = vld [vmem:[%s707 + $0xed0] sm:$0xff]
        %v4365 = vld [vmem:[%s707 + $0xed8] sm:$0xff]
        %v4366 = vld [vmem:[%s707 + $0xee0] sm:$0xff]
        %v4367 = vld [vmem:[%s707 + $0xee8] sm:$0xff]
        %v4368 = vld [vmem:[%s707 + $0xef0] sm:$0xff]
        %v4369 = vld [vmem:[%s707 + $0xef8] sm:$0xff]
        %v4370 = vld [vmem:[%s707 + $0xf00] sm:$0xff]
        %v4371 = vld [vmem:[%s707 + $0xf08] sm:$0xff]
        %v4372 = vld [vmem:[%s707 + $0xf10] sm:$0xff]
        %v4373 = vld [vmem:[%s707 + $0xf18] sm:$0xff]
        %v4374 = vld [vmem:[%s707 + $0xf20] sm:$0xff]
        %v4375 = vld [vmem:[%s707 + $0xf28] sm:$0xff]
        %v4376 = vld [vmem:[%s707 + $0xf30] sm:$0xff]
        %v4377 = vld [vmem:[%s707 + $0xf38] sm:$0xff]
        %v4378 = vld [vmem:[%s707 + $0xf40] sm:$0xff]
        %v4379 = vld [vmem:[%s707 + $0xf48] sm:$0xff]
        %v4380 = vld [vmem:[%s707 + $0xf50] sm:$0xff]
        %v4381 = vld [vmem:[%s707 + $0xf58] sm:$0xff]
        %v4382 = vld [vmem:[%s707 + $0xf60] sm:$0xff]
        %v4383 = vld [vmem:[%s707 + $0xf68] sm:$0xff]
        %v4384 = vld [vmem:[%s707 + $0xf70] sm:$0xff]
        %v4385 = vld [vmem:[%s707 + $0xf78] sm:$0xff]
        %v4386 = vld [vmem:[%s707 + $0xf80] sm:$0xff]
        %v4387 = vld [vmem:[%s707 + $0xf88] sm:$0xff]
        %v4388 = vld [vmem:[%s707 + $0xf90] sm:$0xff]
        %v4389 = vld [vmem:[%s707 + $0xf98] sm:$0xff]
        %v4390 = vld [vmem:[%s707 + $0xfa0] sm:$0xff]
        %v4391 = vld [vmem:[%s707 + $0xfa8] sm:$0xff]
        %v4392 = vld [vmem:[%s707 + $0xfb0] sm:$0xff]
        %v4393 = vld [vmem:[%s707 + $0xfb8] sm:$0xff]
        %v4394 = vld [vmem:[%s707 + $0xfc0] sm:$0xff]
        %v4395 = vld [vmem:[%s707 + $0xfc8] sm:$0xff]
        %v4396 = vld [vmem:[%s707 + $0xfd0] sm:$0xff]
        %v4397 = vld [vmem:[%s707 + $0xfd8] sm:$0xff]
        %v4398 = vld [vmem:[%s707 + $0xfe0] sm:$0xff]
        %v4399 = vld [vmem:[%s707 + $0xfe8] sm:$0xff]
        %v4400 = vld [vmem:[%s707 + $0xff0] sm:$0xff]
        %v4401 = vld [vmem:[%s707 + $0xff8] sm:$0xff]
        %v4402 = vld [vmem:[%s707 + $0x1000] sm:$0xff]
        %v4403 = vld [vmem:[%s707 + $0x1008] sm:$0xff]
        %v4404 = vld [vmem:[%s707 + $0x1010] sm:$0xff]
        %v4405 = vld [vmem:[%s707 + $0x1018] sm:$0xff]
        %v4406 = vld [vmem:[%s707 + $0x1020] sm:$0xff]
        %v4407 = vld [vmem:[%s707 + $0x1028] sm:$0xff]
        %v4408 = vld [vmem:[%s707 + $0x1030] sm:$0xff]
        %v4409 = vld [vmem:[%s707 + $0x1038] sm:$0xff]
        %v4410 = vld [vmem:[%s707 + $0x1040] sm:$0xff]
        %v4411 = vld [vmem:[%s707 + $0x1048] sm:$0xff]
        %v4412 = vld [vmem:[%s707 + $0x1050] sm:$0xff]
        %v4413 = vld [vmem:[%s707 + $0x1058] sm:$0xff]
        %v4414 = vld [vmem:[%s707 + $0x1060] sm:$0xff]
        %v4415 = vld [vmem:[%s707 + $0x1068] sm:$0xff]
        %v4416 = vld [vmem:[%s707 + $0x1070] sm:$0xff]
        %v4417 = vld [vmem:[%s707 + $0x1078] sm:$0xff]
        %v4418 = vld [vmem:[%s707 + $0x1080] sm:$0xff]
        %v4419 = vld [vmem:[%s707 + $0x1088] sm:$0xff]
        %v4420 = vld [vmem:[%s707 + $0x1090] sm:$0xff]
        %v4421 = vld [vmem:[%s707 + $0x1098] sm:$0xff]
        %v4422 = vld [vmem:[%s707 + $0x10a0] sm:$0xff]
        %v4423 = vld [vmem:[%s707 + $0x10a8] sm:$0xff]
        %v4424 = vld [vmem:[%s707 + $0x10b0] sm:$0xff]
        %v4425 = vld [vmem:[%s707 + $0x10b8] sm:$0xff]
        %v4426 = vld [vmem:[%s707 + $0x10c0] sm:$0xff]
        %v4427 = vld [vmem:[%s707 + $0x10c8] sm:$0xff]
        %v4428 = vld [vmem:[%s707 + $0x10d0] sm:$0xff]
        %v4429 = vld [vmem:[%s707 + $0x10d8] sm:$0xff]
        %v4430 = vld [vmem:[%s707 + $0x10e0] sm:$0xff]
        %v4431 = vld [vmem:[%s707 + $0x10e8] sm:$0xff]
        %v4432 = vld [vmem:[%s707 + $0x10f0] sm:$0xff]
        %v4433 = vld [vmem:[%s707 + $0x10f8] sm:$0xff]
        %v4434 = vld [vmem:[%s707 + $0x1100] sm:$0xff]
        %v4435 = vld [vmem:[%s707 + $0x1108] sm:$0xff]
        %v4436 = vld [vmem:[%s707 + $0x1110] sm:$0xff]
        %v4437 = vld [vmem:[%s707 + $0x1118] sm:$0xff]
        %v4438 = vld [vmem:[%s707 + $0x1120] sm:$0xff]
        %v4439 = vld [vmem:[%s707 + $0x1128] sm:$0xff]
        %v4440 = vld [vmem:[%s707 + $0x1130] sm:$0xff]
        %v4441 = vld [vmem:[%s707 + $0x1138] sm:$0xff]
        %v4442 = vld [vmem:[%s707 + $0x1140] sm:$0xff]
        %v4443 = vld [vmem:[%s707 + $0x1148] sm:$0xff]
        %v4444 = vld [vmem:[%s707 + $0x1150] sm:$0xff]
        %v4445 = vld [vmem:[%s707 + $0x1158] sm:$0xff]
        %v4446 = vld [vmem:[%s707 + $0x1160] sm:$0xff]
        %v4447 = vld [vmem:[%s707 + $0x1168] sm:$0xff]
        %v4448 = vld [vmem:[%s707 + $0x1170] sm:$0xff]
        %v4449 = vld [vmem:[%s707 + $0x1178] sm:$0xff]
        %v4450 = vld [vmem:[%s707 + $0x1180] sm:$0xff]
        %v4451 = vld [vmem:[%s707 + $0x1188] sm:$0xff]
        %v4452 = vld [vmem:[%s707 + $0x1190] sm:$0xff]
        %v4453 = vld [vmem:[%s707 + $0x1198] sm:$0xff]
        %v4454 = vld [vmem:[%s707 + $0x11a0] sm:$0xff]
        %v4455 = vld [vmem:[%s707 + $0x11a8] sm:$0xff]
        %v4456 = vld [vmem:[%s707 + $0x11b0] sm:$0xff]
        %v4457 = vld [vmem:[%s707 + $0x11b8] sm:$0xff]
        %v4458 = vld [vmem:[%s707 + $0x11c0] sm:$0xff]
        %v4459 = vld [vmem:[%s707 + $0x11c8] sm:$0xff]
        %v4460 = vld [vmem:[%s707 + $0x11d0] sm:$0xff]
        %v4461 = vld [vmem:[%s707 + $0x11d8] sm:$0xff]
        %v4462 = vld [vmem:[%s707 + $0x11e0] sm:$0xff]
        %v4463 = vld [vmem:[%s707 + $0x11e8] sm:$0xff]
        %v4464 = vld [vmem:[%s707 + $0x11f0] sm:$0xff]
        %v4465 = vld [vmem:[%s707 + $0x11f8] sm:$0xff]
        %v4466 = vld [vmem:[%s707 + $0x1200] sm:$0xff]
        %v4467 = vld [vmem:[%s707 + $0x1208] sm:$0xff]
        %v4468 = vld [vmem:[%s707 + $0x1210] sm:$0xff]
        %v4469 = vld [vmem:[%s707 + $0x1218] sm:$0xff]
        %v4470 = vld [vmem:[%s707 + $0x1220] sm:$0xff]
        %v4471 = vld [vmem:[%s707 + $0x1228] sm:$0xff]
        %v4472 = vld [vmem:[%s707 + $0x1230] sm:$0xff]
        %v4473 = vld [vmem:[%s707 + $0x1238] sm:$0xff]
        %v4474 = vld [vmem:[%s707 + $0x1240] sm:$0xff]
        %v4475 = vld [vmem:[%s707 + $0x1248] sm:$0xff]
        %v4476 = vld [vmem:[%s707 + $0x1250] sm:$0xff]
        %v4477 = vld [vmem:[%s707 + $0x1258] sm:$0xff]
        %v4478 = vld [vmem:[%s707 + $0x1260] sm:$0xff]
        %v4479 = vld [vmem:[%s707 + $0x1268] sm:$0xff]
        %v4480 = vld [vmem:[%s707 + $0x1270] sm:$0xff]
        %v4481 = vld [vmem:[%s707 + $0x1278] sm:$0xff]
        %v4482 = vld [vmem:[%s707 + $0x1280] sm:$0xff]
        %v4483 = vld [vmem:[%s707 + $0x1288] sm:$0xff]
        %v4484 = vld [vmem:[%s707 + $0x1290] sm:$0xff]
        %v4485 = vld [vmem:[%s707 + $0x1298] sm:$0xff]
        %v4486 = vld [vmem:[%s707 + $0x12a0] sm:$0xff]
        %v4487 = vld [vmem:[%s707 + $0x12a8] sm:$0xff]
        %v4488 = vld [vmem:[%s707 + $0x12b0] sm:$0xff]
        %v4489 = vld [vmem:[%s707 + $0x12b8] sm:$0xff]
        %v4490 = vld [vmem:[%s707 + $0x12c0] sm:$0xff]
        %v4491 = vld [vmem:[%s707 + $0x12c8] sm:$0xff]
        %v4492 = vld [vmem:[%s707 + $0x12d0] sm:$0xff]
        %v4493 = vld [vmem:[%s707 + $0x12d8] sm:$0xff]
        %v4494 = vld [vmem:[%s707 + $0x12e0] sm:$0xff]
        %v4495 = vld [vmem:[%s707 + $0x12e8] sm:$0xff]
        %v4496 = vld [vmem:[%s707 + $0x12f0] sm:$0xff]
        %v4497 = vld [vmem:[%s707 + $0x12f8] sm:$0xff]
        %v4498 = vld [vmem:[%s707 + $0x1300] sm:$0xff]
        %v4499 = vld [vmem:[%s707 + $0x1308] sm:$0xff]
        %v4500 = vld [vmem:[%s707 + $0x1310] sm:$0xff]
        %v4501 = vld [vmem:[%s707 + $0x1318] sm:$0xff]
        %v4502 = vld [vmem:[%s707 + $0x1320] sm:$0xff]
        %v4503 = vld [vmem:[%s707 + $0x1328] sm:$0xff]
        %v4504 = vld [vmem:[%s707 + $0x1330] sm:$0xff]
        %v4505 = vld [vmem:[%s707 + $0x1338] sm:$0xff]
        %v4506 = vld [vmem:[%s707 + $0x1340] sm:$0xff]
        %v4507 = vld [vmem:[%s707 + $0x1348] sm:$0xff]
        %v4508 = vld [vmem:[%s707 + $0x1350] sm:$0xff]
        %v4509 = vld [vmem:[%s707 + $0x1358] sm:$0xff]
        %v4510 = vld [vmem:[%s707 + $0x1360] sm:$0xff]
        %v4511 = vld [vmem:[%s707 + $0x1368] sm:$0xff]
        %v4512 = vld [vmem:[%s707 + $0x1370] sm:$0xff]
        %v4513 = vld [vmem:[%s707 + $0x1378] sm:$0xff]
        %v4514 = vld [vmem:[%s707 + $0x1380] sm:$0xff]
        %v4515 = vld [vmem:[%s707 + $0x1388] sm:$0xff]
        %v4516 = vld [vmem:[%s707 + $0x1390] sm:$0xff]
        %v4517 = vld [vmem:[%s707 + $0x1398] sm:$0xff]
        %v4518 = vld [vmem:[%s707 + $0x13a0] sm:$0xff]
        %v4519 = vld [vmem:[%s707 + $0x13a8] sm:$0xff]
        %v4520 = vld [vmem:[%s707 + $0x13b0] sm:$0xff]
        %v4521 = vld [vmem:[%s707 + $0x13b8] sm:$0xff]
        %v4522 = vld [vmem:[%s707 + $0x13c0] sm:$0xff]
        %v4523 = vld [vmem:[%s707 + $0x13c8] sm:$0xff]
        %v4524 = vld [vmem:[%s707 + $0x13d0] sm:$0xff]
        %v4525 = vld [vmem:[%s707 + $0x13d8] sm:$0xff]
        %v4526 = vld [vmem:[%s707 + $0x13e0] sm:$0xff]
        %v4527 = vld [vmem:[%s707 + $0x13e8] sm:$0xff]
        %v4528 = vld [vmem:[%s707 + $0x13f0] sm:$0xff]
        %v4529 = vld [vmem:[%s707 + $0x13f8] sm:$0xff]
        %v4530 = vld [vmem:[%s707 + $0x1400] sm:$0xff]
        %v4531 = vld [vmem:[%s707 + $0x1408] sm:$0xff]
        %v4532 = vld [vmem:[%s707 + $0x1410] sm:$0xff]
        %v4533 = vld [vmem:[%s707 + $0x1418] sm:$0xff]
        %v4534 = vld [vmem:[%s707 + $0x1420] sm:$0xff]
        %v4535 = vld [vmem:[%s707 + $0x1428] sm:$0xff]
        %v4536 = vld [vmem:[%s707 + $0x1430] sm:$0xff]
        %v4537 = vld [vmem:[%s707 + $0x1438] sm:$0xff]
        %v4538 = vld [vmem:[%s707 + $0x1440] sm:$0xff]
        %v4539 = vld [vmem:[%s707 + $0x1448] sm:$0xff]
        %v4540 = vld [vmem:[%s707 + $0x1450] sm:$0xff]
        %v4541 = vld [vmem:[%s707 + $0x1458] sm:$0xff]
        %v4542 = vld [vmem:[%s707 + $0x1460] sm:$0xff]
        %v4543 = vld [vmem:[%s707 + $0x1468] sm:$0xff]
        %v4544 = vld [vmem:[%s707 + $0x1470] sm:$0xff]
        %v4545 = vld [vmem:[%s707 + $0x1478] sm:$0xff]
        %v4546 = vld [vmem:[%s707 + $0x1480] sm:$0xff]
        %v4547 = vld [vmem:[%s707 + $0x1488] sm:$0xff]
        %v4548 = vld [vmem:[%s707 + $0x1490] sm:$0xff]
        %v4549 = vld [vmem:[%s707 + $0x1498] sm:$0xff]
        %v4550 = vld [vmem:[%s707 + $0x14a0] sm:$0xff]
        %v4551 = vld [vmem:[%s707 + $0x14a8] sm:$0xff]
        %v4552 = vld [vmem:[%s707 + $0x14b0] sm:$0xff]
        %v4553 = vld [vmem:[%s707 + $0x14b8] sm:$0xff]
        %v4554 = vld [vmem:[%s707 + $0x14c0] sm:$0xff]
        %v4555 = vld [vmem:[%s707 + $0x14c8] sm:$0xff]
        %v4556 = vld [vmem:[%s707 + $0x14d0] sm:$0xff]
        %v4557 = vld [vmem:[%s707 + $0x14d8] sm:$0xff]
        %v4558 = vld [vmem:[%s707 + $0x14e0] sm:$0xff]
        %v4559 = vld [vmem:[%s707 + $0x14e8] sm:$0xff]
        %v4560 = vld [vmem:[%s707 + $0x14f0] sm:$0xff]
        %v4561 = vld [vmem:[%s707 + $0x14f8] sm:$0xff]
        %v4562 = vld [vmem:[%s707 + $0x1500] sm:$0xff]
        %v4563 = vld [vmem:[%s707 + $0x1508] sm:$0xff]
        %v4564 = vld [vmem:[%s707 + $0x1510] sm:$0xff]
        %v4565 = vld [vmem:[%s707 + $0x1518] sm:$0xff]
        %v4566 = vld [vmem:[%s707 + $0x1520] sm:$0xff]
        %v4567 = vld [vmem:[%s707 + $0x1528] sm:$0xff]
        %v4568 = vld [vmem:[%s707 + $0x1530] sm:$0xff]
        %v4569 = vld [vmem:[%s707 + $0x1538] sm:$0xff]
        %v4570 = vld [vmem:[%s707 + $0x1540] sm:$0xff]
        %v4571 = vld [vmem:[%s707 + $0x1548] sm:$0xff]
        %v4572 = vld [vmem:[%s707 + $0x1550] sm:$0xff]
        %v4573 = vld [vmem:[%s707 + $0x1558] sm:$0xff]
        %v4574 = vld [vmem:[%s707 + $0x1560] sm:$0xff]
        %v4575 = vld [vmem:[%s707 + $0x1568] sm:$0xff]
        %v4576 = vld [vmem:[%s707 + $0x1570] sm:$0xff]
        %v4577 = vld [vmem:[%s707 + $0x1578] sm:$0xff]
        %v4578 = vld [vmem:[%s707 + $0x1580] sm:$0xff]
        %v4579 = vld [vmem:[%s707 + $0x1588] sm:$0xff]
        %v4580 = vld [vmem:[%s707 + $0x1590] sm:$0xff]
        %v4581 = vld [vmem:[%s707 + $0x1598] sm:$0xff]
        %v4582 = vld [vmem:[%s707 + $0x15a0] sm:$0xff]
        %v4583 = vld [vmem:[%s707 + $0x15a8] sm:$0xff]
        %v4584 = vld [vmem:[%s707 + $0x15b0] sm:$0xff]
        %v4585 = vld [vmem:[%s707 + $0x15b8] sm:$0xff]
        %v4586 = vld [vmem:[%s707 + $0x15c0] sm:$0xff]
        %v4587 = vld [vmem:[%s707 + $0x15c8] sm:$0xff]
        %v4588 = vld [vmem:[%s707 + $0x15d0] sm:$0xff]
        %v4589 = vld [vmem:[%s707 + $0x15d8] sm:$0xff]
        %v4590 = vld [vmem:[%s707 + $0x15e0] sm:$0xff]
        %v4591 = vld [vmem:[%s707 + $0x15e8] sm:$0xff]
        %v4592 = vld [vmem:[%s707 + $0x15f0] sm:$0xff]
        %v4593 = vld [vmem:[%s707 + $0x15f8] sm:$0xff]
        %v4594 = vld [vmem:[%s707 + $0x1600] sm:$0xff]
        %v4595 = vld [vmem:[%s707 + $0x1608] sm:$0xff]
        %v4596 = vld [vmem:[%s707 + $0x1610] sm:$0xff]
        %v4597 = vld [vmem:[%s707 + $0x1618] sm:$0xff]
        %v4598 = vld [vmem:[%s707 + $0x1620] sm:$0xff]
        %v4599 = vld [vmem:[%s707 + $0x1628] sm:$0xff]
        %v4600 = vld [vmem:[%s707 + $0x1630] sm:$0xff]
        %v4601 = vld [vmem:[%s707 + $0x1638] sm:$0xff]
        %v4602 = vld [vmem:[%s707 + $0x1640] sm:$0xff]
        %v4603 = vld [vmem:[%s707 + $0x1648] sm:$0xff]
        %v4604 = vld [vmem:[%s707 + $0x1650] sm:$0xff]
        %v4605 = vld [vmem:[%s707 + $0x1658] sm:$0xff]
        %v4606 = vld [vmem:[%s707 + $0x1660] sm:$0xff]
        %v4607 = vld [vmem:[%s707 + $0x1668] sm:$0xff]
        %v4608 = vld [vmem:[%s707 + $0x1670] sm:$0xff]
        %v4609 = vld [vmem:[%s707 + $0x1678] sm:$0xff]
        %v4610 = vld [vmem:[%s707 + $0x1680] sm:$0xff]
        %v4611 = vld [vmem:[%s707 + $0x1688] sm:$0xff]
        %v4612 = vld [vmem:[%s707 + $0x1690] sm:$0xff]
        %v4613 = vld [vmem:[%s707 + $0x1698] sm:$0xff]
        %v4614 = vld [vmem:[%s707 + $0x16a0] sm:$0xff]
        %v4615 = vld [vmem:[%s707 + $0x16a8] sm:$0xff]
        %v4616 = vld [vmem:[%s707 + $0x16b0] sm:$0xff]
        %v4617 = vld [vmem:[%s707 + $0x16b8] sm:$0xff]
        %v4618 = vld [vmem:[%s707 + $0x16c0] sm:$0xff]
        %v4619 = vld [vmem:[%s707 + $0x16c8] sm:$0xff]
        %v4620 = vld [vmem:[%s707 + $0x16d0] sm:$0xff]
        %v4621 = vld [vmem:[%s707 + $0x16d8] sm:$0xff]
        %v4622 = vld [vmem:[%s707 + $0x16e0] sm:$0xff]
        %v4623 = vld [vmem:[%s707 + $0x16e8] sm:$0xff]
        %v4624 = vld [vmem:[%s707 + $0x16f0] sm:$0xff]
        %v4625 = vld [vmem:[%s707 + $0x16f8] sm:$0xff]
        %v4626 = vld [vmem:[%s707 + $0x1700] sm:$0xff]
        %v4627 = vld [vmem:[%s707 + $0x1708] sm:$0xff]
        %v4628 = vld [vmem:[%s707 + $0x1710] sm:$0xff]
        %v4629 = vld [vmem:[%s707 + $0x1718] sm:$0xff]
        %v4630 = vld [vmem:[%s707 + $0x1720] sm:$0xff]
        %v4631 = vld [vmem:[%s707 + $0x1728] sm:$0xff]
        %v4632 = vld [vmem:[%s707 + $0x1730] sm:$0xff]
        %v4633 = vld [vmem:[%s707 + $0x1738] sm:$0xff]
        %v4634 = vld [vmem:[%s707 + $0x1740] sm:$0xff]
        %v4635 = vld [vmem:[%s707 + $0x1748] sm:$0xff]
        %v4636 = vld [vmem:[%s707 + $0x1750] sm:$0xff]
        %v4637 = vld [vmem:[%s707 + $0x1758] sm:$0xff]
        %v4638 = vld [vmem:[%s707 + $0x1760] sm:$0xff]
        %v4639 = vld [vmem:[%s707 + $0x1768] sm:$0xff]
        %v4640 = vld [vmem:[%s707 + $0x1770] sm:$0xff]
        %v4641 = vld [vmem:[%s707 + $0x1778] sm:$0xff]
        %v4642 = vld [vmem:[%s707 + $0x1780] sm:$0xff]
        %v4643 = vld [vmem:[%s707 + $0x1788] sm:$0xff]
        %v4644 = vld [vmem:[%s707 + $0x1790] sm:$0xff]
        %v4645 = vld [vmem:[%s707 + $0x1798] sm:$0xff]
        %v4646 = vld [vmem:[%s707 + $0x17a0] sm:$0xff]
        %v4647 = vld [vmem:[%s707 + $0x17a8] sm:$0xff]
        %v4648 = vld [vmem:[%s707 + $0x17b0] sm:$0xff]
        %v4649 = vld [vmem:[%s707 + $0x17b8] sm:$0xff]
        %v4650 = vld [vmem:[%s707 + $0x17c0] sm:$0xff]
        %v4651 = vld [vmem:[%s707 + $0x17c8] sm:$0xff]
        %v4652 = vld [vmem:[%s707 + $0x17d0] sm:$0xff]
        %v4653 = vld [vmem:[%s707 + $0x17d8] sm:$0xff]
        %v4654 = vld [vmem:[%s707 + $0x17e0] sm:$0xff]
        %v4655 = vld [vmem:[%s707 + $0x17e8] sm:$0xff]
        %v4656 = vld [vmem:[%s707 + $0x17f0] sm:$0xff]
        %v4657 = vld [vmem:[%s707 + $0x17f8] sm:$0xff]
        %v5426 = vunpack.c.l.b16 %v3890
        %v5427 = vunpack.c.h.b16 %v3890
        %v5428 = vunpack.c.l.b16 %v3891
        %v5429 = vunpack.c.h.b16 %v3891
        %v5430 = vunpack.c.l.b16 %v3892
        %v5431 = vunpack.c.h.b16 %v3892
        %v5432 = vunpack.c.l.b16 %v3893
        %v5433 = vunpack.c.h.b16 %v3893
        %v5434 = vunpack.c.l.b16 %v3894
        %v5435 = vunpack.c.h.b16 %v3894
        %v5436 = vunpack.c.l.b16 %v3895
        %v5437 = vunpack.c.h.b16 %v3895
        %v5438 = vunpack.c.l.b16 %v3896
        %v5439 = vunpack.c.h.b16 %v3896
        %v5440 = vunpack.c.l.b16 %v3897
        %v5441 = vunpack.c.h.b16 %v3897
        %v5442 = vunpack.c.l.b16 %v3898
        %v5443 = vunpack.c.h.b16 %v3898
        %v5444 = vunpack.c.l.b16 %v3899
        %v5445 = vunpack.c.h.b16 %v3899
        %v5446 = vunpack.c.l.b16 %v3900
        %v5447 = vunpack.c.h.b16 %v3900
        %v5448 = vunpack.c.l.b16 %v3901
        %v5449 = vunpack.c.h.b16 %v3901
        %v5450 = vunpack.c.l.b16 %v3902
        %v5451 = vunpack.c.h.b16 %v3902
        %v5452 = vunpack.c.l.b16 %v3903
        %v5453 = vunpack.c.h.b16 %v3903
        %v5454 = vunpack.c.l.b16 %v3904
        %v5455 = vunpack.c.h.b16 %v3904
        %v5456 = vunpack.c.l.b16 %v3905
        %v5457 = vunpack.c.h.b16 %v3905
        %v5458 = vunpack.c.l.b16 %v3906
        %v5459 = vunpack.c.h.b16 %v3906
        %v5460 = vunpack.c.l.b16 %v3907
        %v5461 = vunpack.c.h.b16 %v3907
        %v5462 = vunpack.c.l.b16 %v3908
        %v5463 = vunpack.c.h.b16 %v3908
        %v5464 = vunpack.c.l.b16 %v3909
        %v5465 = vunpack.c.h.b16 %v3909
        %v5466 = vunpack.c.l.b16 %v3910
        %v5467 = vunpack.c.h.b16 %v3910
        %v5468 = vunpack.c.l.b16 %v3911
        %v5469 = vunpack.c.h.b16 %v3911
        %v5470 = vunpack.c.l.b16 %v3912
        %v5471 = vunpack.c.h.b16 %v3912
        %v5472 = vunpack.c.l.b16 %v3913
        %v5473 = vunpack.c.h.b16 %v3913
        %v5474 = vunpack.c.l.b16 %v3914
        %v5475 = vunpack.c.h.b16 %v3914
        %v5476 = vunpack.c.l.b16 %v3915
        %v5477 = vunpack.c.h.b16 %v3915
        %v5478 = vunpack.c.l.b16 %v3916
        %v5479 = vunpack.c.h.b16 %v3916
        %v5480 = vunpack.c.l.b16 %v3917
        %v5481 = vunpack.c.h.b16 %v3917
        %v5482 = vunpack.c.l.b16 %v3918
        %v5483 = vunpack.c.h.b16 %v3918
        %v5484 = vunpack.c.l.b16 %v3919
        %v5485 = vunpack.c.h.b16 %v3919
        %v5486 = vunpack.c.l.b16 %v3920
        %v5487 = vunpack.c.h.b16 %v3920
        %v5488 = vunpack.c.l.b16 %v3921
        %v5489 = vunpack.c.h.b16 %v3921
        %v5490 = vunpack.c.l.b16 %v3922
        %v5491 = vunpack.c.h.b16 %v3922
        %v5492 = vunpack.c.l.b16 %v3923
        %v5493 = vunpack.c.h.b16 %v3923
        %v5494 = vunpack.c.l.b16 %v3924
        %v5495 = vunpack.c.h.b16 %v3924
        %v5496 = vunpack.c.l.b16 %v3925
        %v5497 = vunpack.c.h.b16 %v3925
        %v5498 = vunpack.c.l.b16 %v3926
        %v5499 = vunpack.c.h.b16 %v3926
        %v5500 = vunpack.c.l.b16 %v3927
        %v5501 = vunpack.c.h.b16 %v3927
        %v5502 = vunpack.c.l.b16 %v3928
        %v5503 = vunpack.c.h.b16 %v3928
        %v5504 = vunpack.c.l.b16 %v3929
        %v5505 = vunpack.c.h.b16 %v3929
        %v5506 = vunpack.c.l.b16 %v3930
        %v5507 = vunpack.c.h.b16 %v3930
        %v5508 = vunpack.c.l.b16 %v3931
        %v5509 = vunpack.c.h.b16 %v3931
        %v5510 = vunpack.c.l.b16 %v3932
        %v5511 = vunpack.c.h.b16 %v3932
        %v5512 = vunpack.c.l.b16 %v3933
        %v5513 = vunpack.c.h.b16 %v3933
        %v5514 = vunpack.c.l.b16 %v3934
        %v5515 = vunpack.c.h.b16 %v3934
        %v5516 = vunpack.c.l.b16 %v3935
        %v5517 = vunpack.c.h.b16 %v3935
        %v5518 = vunpack.c.l.b16 %v3936
        %v5519 = vunpack.c.h.b16 %v3936
        %v5520 = vunpack.c.l.b16 %v3937
        %v5521 = vunpack.c.h.b16 %v3937
        %v5522 = vunpack.c.l.b16 %v3938
        %v5523 = vunpack.c.h.b16 %v3938
        %v5524 = vunpack.c.l.b16 %v3939
        %v5525 = vunpack.c.h.b16 %v3939
        %v5526 = vunpack.c.l.b16 %v3940
        %v5527 = vunpack.c.h.b16 %v3940
        %v5528 = vunpack.c.l.b16 %v3941
        %v5529 = vunpack.c.h.b16 %v3941
        %v5530 = vunpack.c.l.b16 %v3942
        %v5531 = vunpack.c.h.b16 %v3942
        %v5532 = vunpack.c.l.b16 %v3943
        %v5533 = vunpack.c.h.b16 %v3943
        %v5534 = vunpack.c.l.b16 %v3944
        %v5535 = vunpack.c.h.b16 %v3944
        %v5536 = vunpack.c.l.b16 %v3945
        %v5537 = vunpack.c.h.b16 %v3945
        %v5538 = vunpack.c.l.b16 %v3946
        %v5539 = vunpack.c.h.b16 %v3946
        %v5540 = vunpack.c.l.b16 %v3947
        %v5541 = vunpack.c.h.b16 %v3947
        %v5542 = vunpack.c.l.b16 %v3948
        %v5543 = vunpack.c.h.b16 %v3948
        %v5544 = vunpack.c.l.b16 %v3949
        %v5545 = vunpack.c.h.b16 %v3949
        %v5546 = vunpack.c.l.b16 %v3950
        %v5547 = vunpack.c.h.b16 %v3950
        %v5548 = vunpack.c.l.b16 %v3951
        %v5549 = vunpack.c.h.b16 %v3951
        %v5550 = vunpack.c.l.b16 %v3952
        %v5551 = vunpack.c.h.b16 %v3952
        %v5552 = vunpack.c.l.b16 %v3953
        %v5553 = vunpack.c.h.b16 %v3953
        %v5554 = vunpack.c.l.b16 %v3954
        %v5555 = vunpack.c.h.b16 %v3954
        %v5556 = vunpack.c.l.b16 %v3955
        %v5557 = vunpack.c.h.b16 %v3955
        %v5558 = vunpack.c.l.b16 %v3956
        %v5559 = vunpack.c.h.b16 %v3956
        %v5560 = vunpack.c.l.b16 %v3957
        %v5561 = vunpack.c.h.b16 %v3957
        %v5562 = vunpack.c.l.b16 %v3958
        %v5563 = vunpack.c.h.b16 %v3958
        %v5564 = vunpack.c.l.b16 %v3959
        %v5565 = vunpack.c.h.b16 %v3959
        %v5566 = vunpack.c.l.b16 %v3960
        %v5567 = vunpack.c.h.b16 %v3960
        %v5568 = vunpack.c.l.b16 %v3961
        %v5569 = vunpack.c.h.b16 %v3961
        %v5570 = vunpack.c.l.b16 %v3962
        %v5571 = vunpack.c.h.b16 %v3962
        %v5572 = vunpack.c.l.b16 %v3963
        %v5573 = vunpack.c.h.b16 %v3963
        %v5574 = vunpack.c.l.b16 %v3964
        %v5575 = vunpack.c.h.b16 %v3964
        %v5576 = vunpack.c.l.b16 %v3965
        %v5577 = vunpack.c.h.b16 %v3965
        %v5578 = vunpack.c.l.b16 %v3966
        %v5579 = vunpack.c.h.b16 %v3966
        %v5580 = vunpack.c.l.b16 %v3967
        %v5581 = vunpack.c.h.b16 %v3967
        %v5582 = vunpack.c.l.b16 %v3968
        %v5583 = vunpack.c.h.b16 %v3968
        %v5584 = vunpack.c.l.b16 %v3969
        %v5585 = vunpack.c.h.b16 %v3969
        %v5586 = vunpack.c.l.b16 %v3970
        %v5587 = vunpack.c.h.b16 %v3970
        %v5588 = vunpack.c.l.b16 %v3971
        %v5589 = vunpack.c.h.b16 %v3971
        %v5590 = vunpack.c.l.b16 %v3972
        %v5591 = vunpack.c.h.b16 %v3972
        %v5592 = vunpack.c.l.b16 %v3973
        %v5593 = vunpack.c.h.b16 %v3973
        %v5594 = vunpack.c.l.b16 %v3974
        %v5595 = vunpack.c.h.b16 %v3974
        %v5596 = vunpack.c.l.b16 %v3975
        %v5597 = vunpack.c.h.b16 %v3975
        %v5598 = vunpack.c.l.b16 %v3976
        %v5599 = vunpack.c.h.b16 %v3976
        %v5600 = vunpack.c.l.b16 %v3977
        %v5601 = vunpack.c.h.b16 %v3977
        %v5602 = vunpack.c.l.b16 %v3978
        %v5603 = vunpack.c.h.b16 %v3978
        %v5604 = vunpack.c.l.b16 %v3979
        %v5605 = vunpack.c.h.b16 %v3979
        %v5606 = vunpack.c.l.b16 %v3980
        %v5607 = vunpack.c.h.b16 %v3980
        %v5608 = vunpack.c.l.b16 %v3981
        %v5609 = vunpack.c.h.b16 %v3981
        %v5610 = vunpack.c.l.b16 %v3982
        %v5611 = vunpack.c.h.b16 %v3982
        %v5612 = vunpack.c.l.b16 %v3983
        %v5613 = vunpack.c.h.b16 %v3983
        %v5614 = vunpack.c.l.b16 %v3984
        %v5615 = vunpack.c.h.b16 %v3984
        %v5616 = vunpack.c.l.b16 %v3985
        %v5617 = vunpack.c.h.b16 %v3985
        %v5618 = vunpack.c.l.b16 %v3986
        %v5619 = vunpack.c.h.b16 %v3986
        %v5620 = vunpack.c.l.b16 %v3987
        %v5621 = vunpack.c.h.b16 %v3987
        %v5622 = vunpack.c.l.b16 %v3988
        %v5623 = vunpack.c.h.b16 %v3988
        %v5624 = vunpack.c.l.b16 %v3989
        %v5625 = vunpack.c.h.b16 %v3989
        %v5626 = vunpack.c.l.b16 %v3990
        %v5627 = vunpack.c.h.b16 %v3990
        %v5628 = vunpack.c.l.b16 %v3991
        %v5629 = vunpack.c.h.b16 %v3991
        %v5630 = vunpack.c.l.b16 %v3992
        %v5631 = vunpack.c.h.b16 %v3992
        %v5632 = vunpack.c.l.b16 %v3993
        %v5633 = vunpack.c.h.b16 %v3993
        %v5634 = vunpack.c.l.b16 %v3994
        %v5635 = vunpack.c.h.b16 %v3994
        %v5636 = vunpack.c.l.b16 %v3995
        %v5637 = vunpack.c.h.b16 %v3995
        %v5638 = vunpack.c.l.b16 %v3996
        %v5639 = vunpack.c.h.b16 %v3996
        %v5640 = vunpack.c.l.b16 %v3997
        %v5641 = vunpack.c.h.b16 %v3997
        %v5642 = vunpack.c.l.b16 %v3998
        %v5643 = vunpack.c.h.b16 %v3998
        %v5644 = vunpack.c.l.b16 %v3999
        %v5645 = vunpack.c.h.b16 %v3999
        %v5646 = vunpack.c.l.b16 %v4000
        %v5647 = vunpack.c.h.b16 %v4000
        %v5648 = vunpack.c.l.b16 %v4001
        %v5649 = vunpack.c.h.b16 %v4001
        %v5650 = vunpack.c.l.b16 %v4002
        %v5651 = vunpack.c.h.b16 %v4002
        %v5652 = vunpack.c.l.b16 %v4003
        %v5653 = vunpack.c.h.b16 %v4003
        %v5654 = vunpack.c.l.b16 %v4004
        %v5655 = vunpack.c.h.b16 %v4004
        %v5656 = vunpack.c.l.b16 %v4005
        %v5657 = vunpack.c.h.b16 %v4005
        %v5658 = vunpack.c.l.b16 %v4006
        %v5659 = vunpack.c.h.b16 %v4006
        %v5660 = vunpack.c.l.b16 %v4007
        %v5661 = vunpack.c.h.b16 %v4007
        %v5662 = vunpack.c.l.b16 %v4008
        %v5663 = vunpack.c.h.b16 %v4008
        %v5664 = vunpack.c.l.b16 %v4009
        %v5665 = vunpack.c.h.b16 %v4009
        %v5666 = vunpack.c.l.b16 %v4010
        %v5667 = vunpack.c.h.b16 %v4010
        %v5668 = vunpack.c.l.b16 %v4011
        %v5669 = vunpack.c.h.b16 %v4011
        %v5670 = vunpack.c.l.b16 %v4012
        %v5671 = vunpack.c.h.b16 %v4012
        %v5672 = vunpack.c.l.b16 %v4013
        %v5673 = vunpack.c.h.b16 %v4013
        %v5674 = vunpack.c.l.b16 %v4014
        %v5675 = vunpack.c.h.b16 %v4014
        %v5676 = vunpack.c.l.b16 %v4015
        %v5677 = vunpack.c.h.b16 %v4015
        %v5678 = vunpack.c.l.b16 %v4016
        %v5679 = vunpack.c.h.b16 %v4016
        %v5680 = vunpack.c.l.b16 %v4017
        %v5681 = vunpack.c.h.b16 %v4017
        %v5682 = vunpack.c.l.b16 %v4018
        %v5683 = vunpack.c.h.b16 %v4018
        %v5684 = vunpack.c.l.b16 %v4019
        %v5685 = vunpack.c.h.b16 %v4019
        %v5686 = vunpack.c.l.b16 %v4020
        %v5687 = vunpack.c.h.b16 %v4020
        %v5688 = vunpack.c.l.b16 %v4021
        %v5689 = vunpack.c.h.b16 %v4021
        %v5690 = vunpack.c.l.b16 %v4022
        %v5691 = vunpack.c.h.b16 %v4022
        %v5692 = vunpack.c.l.b16 %v4023
        %v5693 = vunpack.c.h.b16 %v4023
        %v5694 = vunpack.c.l.b16 %v4024
        %v5695 = vunpack.c.h.b16 %v4024
        %v5696 = vunpack.c.l.b16 %v4025
        %v5697 = vunpack.c.h.b16 %v4025
        %v5698 = vunpack.c.l.b16 %v4026
        %v5699 = vunpack.c.h.b16 %v4026
        %v5700 = vunpack.c.l.b16 %v4027
        %v5701 = vunpack.c.h.b16 %v4027
        %v5702 = vunpack.c.l.b16 %v4028
        %v5703 = vunpack.c.h.b16 %v4028
        %v5704 = vunpack.c.l.b16 %v4029
        %v5705 = vunpack.c.h.b16 %v4029
        %v5706 = vunpack.c.l.b16 %v4030
        %v5707 = vunpack.c.h.b16 %v4030
        %v5708 = vunpack.c.l.b16 %v4031
        %v5709 = vunpack.c.h.b16 %v4031
        %v5710 = vunpack.c.l.b16 %v4032
        %v5711 = vunpack.c.h.b16 %v4032
        %v5712 = vunpack.c.l.b16 %v4033
        %v5713 = vunpack.c.h.b16 %v4033
        %v5714 = vunpack.c.l.b16 %v4034
        %v5715 = vunpack.c.h.b16 %v4034
        %v5716 = vunpack.c.l.b16 %v4035
        %v5717 = vunpack.c.h.b16 %v4035
        %v5718 = vunpack.c.l.b16 %v4036
        %v5719 = vunpack.c.h.b16 %v4036
        %v5720 = vunpack.c.l.b16 %v4037
        %v5721 = vunpack.c.h.b16 %v4037
        %v5722 = vunpack.c.l.b16 %v4038
        %v5723 = vunpack.c.h.b16 %v4038
        %v5724 = vunpack.c.l.b16 %v4039
        %v5725 = vunpack.c.h.b16 %v4039
        %v5726 = vunpack.c.l.b16 %v4040
        %v5727 = vunpack.c.h.b16 %v4040
        %v5728 = vunpack.c.l.b16 %v4041
        %v5729 = vunpack.c.h.b16 %v4041
        %v5730 = vunpack.c.l.b16 %v4042
        %v5731 = vunpack.c.h.b16 %v4042
        %v5732 = vunpack.c.l.b16 %v4043
        %v5733 = vunpack.c.h.b16 %v4043
        %v5734 = vunpack.c.l.b16 %v4044
        %v5735 = vunpack.c.h.b16 %v4044
        %v5736 = vunpack.c.l.b16 %v4045
        %v5737 = vunpack.c.h.b16 %v4045
        %v5738 = vunpack.c.l.b16 %v4046
        %v5739 = vunpack.c.h.b16 %v4046
        %v5740 = vunpack.c.l.b16 %v4047
        %v5741 = vunpack.c.h.b16 %v4047
        %v5742 = vunpack.c.l.b16 %v4048
        %v5743 = vunpack.c.h.b16 %v4048
        %v5744 = vunpack.c.l.b16 %v4049
        %v5745 = vunpack.c.h.b16 %v4049
        %v5746 = vunpack.c.l.b16 %v4050
        %v5747 = vunpack.c.h.b16 %v4050
        %v5748 = vunpack.c.l.b16 %v4051
        %v5749 = vunpack.c.h.b16 %v4051
        %v5750 = vunpack.c.l.b16 %v4052
        %v5751 = vunpack.c.h.b16 %v4052
        %v5752 = vunpack.c.l.b16 %v4053
        %v5753 = vunpack.c.h.b16 %v4053
        %v5754 = vunpack.c.l.b16 %v4054
        %v5755 = vunpack.c.h.b16 %v4054
        %v5756 = vunpack.c.l.b16 %v4055
        %v5757 = vunpack.c.h.b16 %v4055
        %v5758 = vunpack.c.l.b16 %v4056
        %v5759 = vunpack.c.h.b16 %v4056
        %v5760 = vunpack.c.l.b16 %v4057
        %v5761 = vunpack.c.h.b16 %v4057
        %v5762 = vunpack.c.l.b16 %v4058
        %v5763 = vunpack.c.h.b16 %v4058
        %v5764 = vunpack.c.l.b16 %v4059
        %v5765 = vunpack.c.h.b16 %v4059
        %v5766 = vunpack.c.l.b16 %v4060
        %v5767 = vunpack.c.h.b16 %v4060
        %v5768 = vunpack.c.l.b16 %v4061
        %v5769 = vunpack.c.h.b16 %v4061
        %v5770 = vunpack.c.l.b16 %v4062
        %v5771 = vunpack.c.h.b16 %v4062
        %v5772 = vunpack.c.l.b16 %v4063
        %v5773 = vunpack.c.h.b16 %v4063
        %v5774 = vunpack.c.l.b16 %v4064
        %v5775 = vunpack.c.h.b16 %v4064
        %v5776 = vunpack.c.l.b16 %v4065
        %v5777 = vunpack.c.h.b16 %v4065
        %v5778 = vunpack.c.l.b16 %v4066
        %v5779 = vunpack.c.h.b16 %v4066
        %v5780 = vunpack.c.l.b16 %v4067
        %v5781 = vunpack.c.h.b16 %v4067
        %v5782 = vunpack.c.l.b16 %v4068
        %v5783 = vunpack.c.h.b16 %v4068
        %v5784 = vunpack.c.l.b16 %v4069
        %v5785 = vunpack.c.h.b16 %v4069
        %v5786 = vunpack.c.l.b16 %v4070
        %v5787 = vunpack.c.h.b16 %v4070
        %v5788 = vunpack.c.l.b16 %v4071
        %v5789 = vunpack.c.h.b16 %v4071
        %v5790 = vunpack.c.l.b16 %v4072
        %v5791 = vunpack.c.h.b16 %v4072
        %v5792 = vunpack.c.l.b16 %v4073
        %v5793 = vunpack.c.h.b16 %v4073
        %v5794 = vunpack.c.l.b16 %v4074
        %v5795 = vunpack.c.h.b16 %v4074
        %v5796 = vunpack.c.l.b16 %v4075
        %v5797 = vunpack.c.h.b16 %v4075
        %v5798 = vunpack.c.l.b16 %v4076
        %v5799 = vunpack.c.h.b16 %v4076
        %v5800 = vunpack.c.l.b16 %v4077
        %v5801 = vunpack.c.h.b16 %v4077
        %v5802 = vunpack.c.l.b16 %v4078
        %v5803 = vunpack.c.h.b16 %v4078
        %v5804 = vunpack.c.l.b16 %v4079
        %v5805 = vunpack.c.h.b16 %v4079
        %v5806 = vunpack.c.l.b16 %v4080
        %v5807 = vunpack.c.h.b16 %v4080
        %v5808 = vunpack.c.l.b16 %v4081
        %v5809 = vunpack.c.h.b16 %v4081
        %v5810 = vunpack.c.l.b16 %v4082
        %v5811 = vunpack.c.h.b16 %v4082
        %v5812 = vunpack.c.l.b16 %v4083
        %v5813 = vunpack.c.h.b16 %v4083
        %v5814 = vunpack.c.l.b16 %v4084
        %v5815 = vunpack.c.h.b16 %v4084
        %v5816 = vunpack.c.l.b16 %v4085
        %v5817 = vunpack.c.h.b16 %v4085
        %v5818 = vunpack.c.l.b16 %v4086
        %v5819 = vunpack.c.h.b16 %v4086
        %v5820 = vunpack.c.l.b16 %v4087
        %v5821 = vunpack.c.h.b16 %v4087
        %v5822 = vunpack.c.l.b16 %v4088
        %v5823 = vunpack.c.h.b16 %v4088
        %v5824 = vunpack.c.l.b16 %v4089
        %v5825 = vunpack.c.h.b16 %v4089
        %v5826 = vunpack.c.l.b16 %v4090
        %v5827 = vunpack.c.h.b16 %v4090
        %v5828 = vunpack.c.l.b16 %v4091
        %v5829 = vunpack.c.h.b16 %v4091
        %v5830 = vunpack.c.l.b16 %v4092
        %v5831 = vunpack.c.h.b16 %v4092
        %v5832 = vunpack.c.l.b16 %v4093
        %v5833 = vunpack.c.h.b16 %v4093
        %v5834 = vunpack.c.l.b16 %v4094
        %v5835 = vunpack.c.h.b16 %v4094
        %v5836 = vunpack.c.l.b16 %v4095
        %v5837 = vunpack.c.h.b16 %v4095
        %v5838 = vunpack.c.l.b16 %v4096
        %v5839 = vunpack.c.h.b16 %v4096
        %v5840 = vunpack.c.l.b16 %v4097
        %v5841 = vunpack.c.h.b16 %v4097
        %v5842 = vunpack.c.l.b16 %v4098
        %v5843 = vunpack.c.h.b16 %v4098
        %v5844 = vunpack.c.l.b16 %v4099
        %v5845 = vunpack.c.h.b16 %v4099
        %v5846 = vunpack.c.l.b16 %v4100
        %v5847 = vunpack.c.h.b16 %v4100
        %v5848 = vunpack.c.l.b16 %v4101
        %v5849 = vunpack.c.h.b16 %v4101
        %v5850 = vunpack.c.l.b16 %v4102
        %v5851 = vunpack.c.h.b16 %v4102
        %v5852 = vunpack.c.l.b16 %v4103
        %v5853 = vunpack.c.h.b16 %v4103
        %v5854 = vunpack.c.l.b16 %v4104
        %v5855 = vunpack.c.h.b16 %v4104
        %v5856 = vunpack.c.l.b16 %v4105
        %v5857 = vunpack.c.h.b16 %v4105
        %v5858 = vunpack.c.l.b16 %v4106
        %v5859 = vunpack.c.h.b16 %v4106
        %v5860 = vunpack.c.l.b16 %v4107
        %v5861 = vunpack.c.h.b16 %v4107
        %v5862 = vunpack.c.l.b16 %v4108
        %v5863 = vunpack.c.h.b16 %v4108
        %v5864 = vunpack.c.l.b16 %v4109
        %v5865 = vunpack.c.h.b16 %v4109
        %v5866 = vunpack.c.l.b16 %v4110
        %v5867 = vunpack.c.h.b16 %v4110
        %v5868 = vunpack.c.l.b16 %v4111
        %v5869 = vunpack.c.h.b16 %v4111
        %v5870 = vunpack.c.l.b16 %v4112
        %v5871 = vunpack.c.h.b16 %v4112
        %v5872 = vunpack.c.l.b16 %v4113
        %v5873 = vunpack.c.h.b16 %v4113
        %v5874 = vunpack.c.l.b16 %v4114
        %v5875 = vunpack.c.h.b16 %v4114
        %v5876 = vunpack.c.l.b16 %v4115
        %v5877 = vunpack.c.h.b16 %v4115
        %v5878 = vunpack.c.l.b16 %v4116
        %v5879 = vunpack.c.h.b16 %v4116
        %v5880 = vunpack.c.l.b16 %v4117
        %v5881 = vunpack.c.h.b16 %v4117
        %v5882 = vunpack.c.l.b16 %v4118
        %v5883 = vunpack.c.h.b16 %v4118
        %v5884 = vunpack.c.l.b16 %v4119
        %v5885 = vunpack.c.h.b16 %v4119
        %v5886 = vunpack.c.l.b16 %v4120
        %v5887 = vunpack.c.h.b16 %v4120
        %v5888 = vunpack.c.l.b16 %v4121
        %v5889 = vunpack.c.h.b16 %v4121
        %v5890 = vunpack.c.l.b16 %v4122
        %v5891 = vunpack.c.h.b16 %v4122
        %v5892 = vunpack.c.l.b16 %v4123
        %v5893 = vunpack.c.h.b16 %v4123
        %v5894 = vunpack.c.l.b16 %v4124
        %v5895 = vunpack.c.h.b16 %v4124
        %v5896 = vunpack.c.l.b16 %v4125
        %v5897 = vunpack.c.h.b16 %v4125
        %v5898 = vunpack.c.l.b16 %v4126
        %v5899 = vunpack.c.h.b16 %v4126
        %v5900 = vunpack.c.l.b16 %v4127
        %v5901 = vunpack.c.h.b16 %v4127
        %v5902 = vunpack.c.l.b16 %v4128
        %v5903 = vunpack.c.h.b16 %v4128
        %v5904 = vunpack.c.l.b16 %v4129
        %v5905 = vunpack.c.h.b16 %v4129
        %v5906 = vunpack.c.l.b16 %v4130
        %v5907 = vunpack.c.h.b16 %v4130
        %v5908 = vunpack.c.l.b16 %v4131
        %v5909 = vunpack.c.h.b16 %v4131
        %v5910 = vunpack.c.l.b16 %v4132
        %v5911 = vunpack.c.h.b16 %v4132
        %v5912 = vunpack.c.l.b16 %v4133
        %v5913 = vunpack.c.h.b16 %v4133
        %v5914 = vunpack.c.l.b16 %v4134
        %v5915 = vunpack.c.h.b16 %v4134
        %v5916 = vunpack.c.l.b16 %v4135
        %v5917 = vunpack.c.h.b16 %v4135
        %v5918 = vunpack.c.l.b16 %v4136
        %v5919 = vunpack.c.h.b16 %v4136
        %v5920 = vunpack.c.l.b16 %v4137
        %v5921 = vunpack.c.h.b16 %v4137
        %v5922 = vunpack.c.l.b16 %v4138
        %v5923 = vunpack.c.h.b16 %v4138
        %v5924 = vunpack.c.l.b16 %v4139
        %v5925 = vunpack.c.h.b16 %v4139
        %v5926 = vunpack.c.l.b16 %v4140
        %v5927 = vunpack.c.h.b16 %v4140
        %v5928 = vunpack.c.l.b16 %v4141
        %v5929 = vunpack.c.h.b16 %v4141
        %v5930 = vunpack.c.l.b16 %v4142
        %v5931 = vunpack.c.h.b16 %v4142
        %v5932 = vunpack.c.l.b16 %v4143
        %v5933 = vunpack.c.h.b16 %v4143
        %v5934 = vunpack.c.l.b16 %v4144
        %v5935 = vunpack.c.h.b16 %v4144
        %v5936 = vunpack.c.l.b16 %v4145
        %v5937 = vunpack.c.h.b16 %v4145
        %v5938 = vunpack.c.l.b16 %v4146
        %v5939 = vunpack.c.h.b16 %v4146
        %v5940 = vunpack.c.l.b16 %v4147
        %v5941 = vunpack.c.h.b16 %v4147
        %v5942 = vunpack.c.l.b16 %v4148
        %v5943 = vunpack.c.h.b16 %v4148
        %v5944 = vunpack.c.l.b16 %v4149
        %v5945 = vunpack.c.h.b16 %v4149
        %v5946 = vunpack.c.l.b16 %v4150
        %v5947 = vunpack.c.h.b16 %v4150
        %v5948 = vunpack.c.l.b16 %v4151
        %v5949 = vunpack.c.h.b16 %v4151
        %v5950 = vunpack.c.l.b16 %v4152
        %v5951 = vunpack.c.h.b16 %v4152
        %v5952 = vunpack.c.l.b16 %v4153
        %v5953 = vunpack.c.h.b16 %v4153
        %v5954 = vunpack.c.l.b16 %v4154
        %v5955 = vunpack.c.h.b16 %v4154
        %v5956 = vunpack.c.l.b16 %v4155
        %v5957 = vunpack.c.h.b16 %v4155
        %v5958 = vunpack.c.l.b16 %v4156
        %v5959 = vunpack.c.h.b16 %v4156
        %v5960 = vunpack.c.l.b16 %v4157
        %v5961 = vunpack.c.h.b16 %v4157
        %v5962 = vunpack.c.l.b16 %v4158
        %v5963 = vunpack.c.h.b16 %v4158
        %v5964 = vunpack.c.l.b16 %v4159
        %v5965 = vunpack.c.h.b16 %v4159
        %v5966 = vunpack.c.l.b16 %v4160
        %v5967 = vunpack.c.h.b16 %v4160
        %v5968 = vunpack.c.l.b16 %v4161
        %v5969 = vunpack.c.h.b16 %v4161
        %v5970 = vunpack.c.l.b16 %v4162
        %v5971 = vunpack.c.h.b16 %v4162
        %v5972 = vunpack.c.l.b16 %v4163
        %v5973 = vunpack.c.h.b16 %v4163
        %v5974 = vunpack.c.l.b16 %v4164
        %v5975 = vunpack.c.h.b16 %v4164
        %v5976 = vunpack.c.l.b16 %v4165
        %v5977 = vunpack.c.h.b16 %v4165
        %v5978 = vunpack.c.l.b16 %v4166
        %v5979 = vunpack.c.h.b16 %v4166
        %v5980 = vunpack.c.l.b16 %v4167
        %v5981 = vunpack.c.h.b16 %v4167
        %v5982 = vunpack.c.l.b16 %v4168
        %v5983 = vunpack.c.h.b16 %v4168
        %v5984 = vunpack.c.l.b16 %v4169
        %v5985 = vunpack.c.h.b16 %v4169
        %v5986 = vunpack.c.l.b16 %v4170
        %v5987 = vunpack.c.h.b16 %v4170
        %v5988 = vunpack.c.l.b16 %v4171
        %v5989 = vunpack.c.h.b16 %v4171
        %v5990 = vunpack.c.l.b16 %v4172
        %v5991 = vunpack.c.h.b16 %v4172
        %v5992 = vunpack.c.l.b16 %v4173
        %v5993 = vunpack.c.h.b16 %v4173
        %v5994 = vunpack.c.l.b16 %v4174
        %v5995 = vunpack.c.h.b16 %v4174
        %v5996 = vunpack.c.l.b16 %v4175
        %v5997 = vunpack.c.h.b16 %v4175
        %v5998 = vunpack.c.l.b16 %v4176
        %v5999 = vunpack.c.h.b16 %v4176
        %v6000 = vunpack.c.l.b16 %v4177
        %v6001 = vunpack.c.h.b16 %v4177
        %v6002 = vunpack.c.l.b16 %v4178
        %v6003 = vunpack.c.h.b16 %v4178
        %v6004 = vunpack.c.l.b16 %v4179
        %v6005 = vunpack.c.h.b16 %v4179
        %v6006 = vunpack.c.l.b16 %v4180
        %v6007 = vunpack.c.h.b16 %v4180
        %v6008 = vunpack.c.l.b16 %v4181
        %v6009 = vunpack.c.h.b16 %v4181
        %v6010 = vunpack.c.l.b16 %v4182
        %v6011 = vunpack.c.h.b16 %v4182
        %v6012 = vunpack.c.l.b16 %v4183
        %v6013 = vunpack.c.h.b16 %v4183
        %v6014 = vunpack.c.l.b16 %v4184
        %v6015 = vunpack.c.h.b16 %v4184
        %v6016 = vunpack.c.l.b16 %v4185
        %v6017 = vunpack.c.h.b16 %v4185
        %v6018 = vunpack.c.l.b16 %v4186
        %v6019 = vunpack.c.h.b16 %v4186
        %v6020 = vunpack.c.l.b16 %v4187
        %v6021 = vunpack.c.h.b16 %v4187
        %v6022 = vunpack.c.l.b16 %v4188
        %v6023 = vunpack.c.h.b16 %v4188
        %v6024 = vunpack.c.l.b16 %v4189
        %v6025 = vunpack.c.h.b16 %v4189
        %v6026 = vunpack.c.l.b16 %v4190
        %v6027 = vunpack.c.h.b16 %v4190
        %v6028 = vunpack.c.l.b16 %v4191
        %v6029 = vunpack.c.h.b16 %v4191
        %v6030 = vunpack.c.l.b16 %v4192
        %v6031 = vunpack.c.h.b16 %v4192
        %v6032 = vunpack.c.l.b16 %v4193
        %v6033 = vunpack.c.h.b16 %v4193
        %v6034 = vunpack.c.l.b16 %v4194
        %v6035 = vunpack.c.h.b16 %v4194
        %v6036 = vunpack.c.l.b16 %v4195
        %v6037 = vunpack.c.h.b16 %v4195
        %v6038 = vunpack.c.l.b16 %v4196
        %v6039 = vunpack.c.h.b16 %v4196
        %v6040 = vunpack.c.l.b16 %v4197
        %v6041 = vunpack.c.h.b16 %v4197
        %v6042 = vunpack.c.l.b16 %v4198
        %v6043 = vunpack.c.h.b16 %v4198
        %v6044 = vunpack.c.l.b16 %v4199
        %v6045 = vunpack.c.h.b16 %v4199
        %v6046 = vunpack.c.l.b16 %v4200
        %v6047 = vunpack.c.h.b16 %v4200
        %v6048 = vunpack.c.l.b16 %v4201
        %v6049 = vunpack.c.h.b16 %v4201
        %v6050 = vunpack.c.l.b16 %v4202
        %v6051 = vunpack.c.h.b16 %v4202
        %v6052 = vunpack.c.l.b16 %v4203
        %v6053 = vunpack.c.h.b16 %v4203
        %v6054 = vunpack.c.l.b16 %v4204
        %v6055 = vunpack.c.h.b16 %v4204
        %v6056 = vunpack.c.l.b16 %v4205
        %v6057 = vunpack.c.h.b16 %v4205
        %v6058 = vunpack.c.l.b16 %v4206
        %v6059 = vunpack.c.h.b16 %v4206
        %v6060 = vunpack.c.l.b16 %v4207
        %v6061 = vunpack.c.h.b16 %v4207
        %v6062 = vunpack.c.l.b16 %v4208
        %v6063 = vunpack.c.h.b16 %v4208
        %v6064 = vunpack.c.l.b16 %v4209
        %v6065 = vunpack.c.h.b16 %v4209
        %v6066 = vunpack.c.l.b16 %v4210
        %v6067 = vunpack.c.h.b16 %v4210
        %v6068 = vunpack.c.l.b16 %v4211
        %v6069 = vunpack.c.h.b16 %v4211
        %v6070 = vunpack.c.l.b16 %v4212
        %v6071 = vunpack.c.h.b16 %v4212
        %v6072 = vunpack.c.l.b16 %v4213
        %v6073 = vunpack.c.h.b16 %v4213
        %v6074 = vunpack.c.l.b16 %v4214
        %v6075 = vunpack.c.h.b16 %v4214
        %v6076 = vunpack.c.l.b16 %v4215
        %v6077 = vunpack.c.h.b16 %v4215
        %v6078 = vunpack.c.l.b16 %v4216
        %v6079 = vunpack.c.h.b16 %v4216
        %v6080 = vunpack.c.l.b16 %v4217
        %v6081 = vunpack.c.h.b16 %v4217
        %v6082 = vunpack.c.l.b16 %v4218
        %v6083 = vunpack.c.h.b16 %v4218
        %v6084 = vunpack.c.l.b16 %v4219
        %v6085 = vunpack.c.h.b16 %v4219
        %v6086 = vunpack.c.l.b16 %v4220
        %v6087 = vunpack.c.h.b16 %v4220
        %v6088 = vunpack.c.l.b16 %v4221
        %v6089 = vunpack.c.h.b16 %v4221
        %v6090 = vunpack.c.l.b16 %v4222
        %v6091 = vunpack.c.h.b16 %v4222
        %v6092 = vunpack.c.l.b16 %v4223
        %v6093 = vunpack.c.h.b16 %v4223
        %v6094 = vunpack.c.l.b16 %v4224
        %v6095 = vunpack.c.h.b16 %v4224
        %v6096 = vunpack.c.l.b16 %v4225
        %v6097 = vunpack.c.h.b16 %v4225
        %v6098 = vunpack.c.l.b16 %v4226
        %v6099 = vunpack.c.h.b16 %v4226
        %v6100 = vunpack.c.l.b16 %v4227
        %v6101 = vunpack.c.h.b16 %v4227
        %v6102 = vunpack.c.l.b16 %v4228
        %v6103 = vunpack.c.h.b16 %v4228
        %v6104 = vunpack.c.l.b16 %v4229
        %v6105 = vunpack.c.h.b16 %v4229
        %v6106 = vunpack.c.l.b16 %v4230
        %v6107 = vunpack.c.h.b16 %v4230
        %v6108 = vunpack.c.l.b16 %v4231
        %v6109 = vunpack.c.h.b16 %v4231
        %v6110 = vunpack.c.l.b16 %v4232
        %v6111 = vunpack.c.h.b16 %v4232
        %v6112 = vunpack.c.l.b16 %v4233
        %v6113 = vunpack.c.h.b16 %v4233
        %v6114 = vunpack.c.l.b16 %v4234
        %v6115 = vunpack.c.h.b16 %v4234
        %v6116 = vunpack.c.l.b16 %v4235
        %v6117 = vunpack.c.h.b16 %v4235
        %v6118 = vunpack.c.l.b16 %v4236
        %v6119 = vunpack.c.h.b16 %v4236
        %v6120 = vunpack.c.l.b16 %v4237
        %v6121 = vunpack.c.h.b16 %v4237
        %v6122 = vunpack.c.l.b16 %v4238
        %v6123 = vunpack.c.h.b16 %v4238
        %v6124 = vunpack.c.l.b16 %v4239
        %v6125 = vunpack.c.h.b16 %v4239
        %v6126 = vunpack.c.l.b16 %v4240
        %v6127 = vunpack.c.h.b16 %v4240
        %v6128 = vunpack.c.l.b16 %v4241
        %v6129 = vunpack.c.h.b16 %v4241
        %v6130 = vunpack.c.l.b16 %v4242
        %v6131 = vunpack.c.h.b16 %v4242
        %v6132 = vunpack.c.l.b16 %v4243
        %v6133 = vunpack.c.h.b16 %v4243
        %v6134 = vunpack.c.l.b16 %v4244
        %v6135 = vunpack.c.h.b16 %v4244
        %v6136 = vunpack.c.l.b16 %v4245
        %v6137 = vunpack.c.h.b16 %v4245
        %v6138 = vunpack.c.l.b16 %v4246
        %v6139 = vunpack.c.h.b16 %v4246
        %v6140 = vunpack.c.l.b16 %v4247
        %v6141 = vunpack.c.h.b16 %v4247
        %v6142 = vunpack.c.l.b16 %v4248
        %v6143 = vunpack.c.h.b16 %v4248
        %v6144 = vunpack.c.l.b16 %v4249
        %v6145 = vunpack.c.h.b16 %v4249
        %v6146 = vunpack.c.l.b16 %v4250
        %v6147 = vunpack.c.h.b16 %v4250
        %v6148 = vunpack.c.l.b16 %v4251
        %v6149 = vunpack.c.h.b16 %v4251
        %v6150 = vunpack.c.l.b16 %v4252
        %v6151 = vunpack.c.h.b16 %v4252
        %v6152 = vunpack.c.l.b16 %v4253
        %v6153 = vunpack.c.h.b16 %v4253
        %v6154 = vunpack.c.l.b16 %v4254
        %v6155 = vunpack.c.h.b16 %v4254
        %v6156 = vunpack.c.l.b16 %v4255
        %v6157 = vunpack.c.h.b16 %v4255
        %v6158 = vunpack.c.l.b16 %v4256
        %v6159 = vunpack.c.h.b16 %v4256
        %v6160 = vunpack.c.l.b16 %v4257
        %v6161 = vunpack.c.h.b16 %v4257
        %v6162 = vunpack.c.l.b16 %v4258
        %v6163 = vunpack.c.h.b16 %v4258
        %v6164 = vunpack.c.l.b16 %v4259
        %v6165 = vunpack.c.h.b16 %v4259
        %v6166 = vunpack.c.l.b16 %v4260
        %v6167 = vunpack.c.h.b16 %v4260
        %v6168 = vunpack.c.l.b16 %v4261
        %v6169 = vunpack.c.h.b16 %v4261
        %v6170 = vunpack.c.l.b16 %v4262
        %v6171 = vunpack.c.h.b16 %v4262
        %v6172 = vunpack.c.l.b16 %v4263
        %v6173 = vunpack.c.h.b16 %v4263
        %v6174 = vunpack.c.l.b16 %v4264
        %v6175 = vunpack.c.h.b16 %v4264
        %v6176 = vunpack.c.l.b16 %v4265
        %v6177 = vunpack.c.h.b16 %v4265
        %v6178 = vunpack.c.l.b16 %v4266
        %v6179 = vunpack.c.h.b16 %v4266
        %v6180 = vunpack.c.l.b16 %v4267
        %v6181 = vunpack.c.h.b16 %v4267
        %v6182 = vunpack.c.l.b16 %v4268
        %v6183 = vunpack.c.h.b16 %v4268
        %v6184 = vunpack.c.l.b16 %v4269
        %v6185 = vunpack.c.h.b16 %v4269
        %v6186 = vunpack.c.l.b16 %v4270
        %v6187 = vunpack.c.h.b16 %v4270
        %v6188 = vunpack.c.l.b16 %v4271
        %v6189 = vunpack.c.h.b16 %v4271
        %v6190 = vunpack.c.l.b16 %v4272
        %v6191 = vunpack.c.h.b16 %v4272
        %v6192 = vunpack.c.l.b16 %v4273
        %v6193 = vunpack.c.h.b16 %v4273
        %v6194 = vunpack.c.l.b16 %v4274
        %v6195 = vunpack.c.h.b16 %v4274
        %v6196 = vunpack.c.l.b16 %v4275
        %v6197 = vunpack.c.h.b16 %v4275
        %v6198 = vunpack.c.l.b16 %v4276
        %v6199 = vunpack.c.h.b16 %v4276
        %v6200 = vunpack.c.l.b16 %v4277
        %v6201 = vunpack.c.h.b16 %v4277
        %v6202 = vunpack.c.l.b16 %v4278
        %v6203 = vunpack.c.h.b16 %v4278
        %v6204 = vunpack.c.l.b16 %v4279
        %v6205 = vunpack.c.h.b16 %v4279
        %v6206 = vunpack.c.l.b16 %v4280
        %v6207 = vunpack.c.h.b16 %v4280
        %v6208 = vunpack.c.l.b16 %v4281
        %v6209 = vunpack.c.h.b16 %v4281
        %v6210 = vunpack.c.l.b16 %v4282
        %v6211 = vunpack.c.h.b16 %v4282
        %v6212 = vunpack.c.l.b16 %v4283
        %v6213 = vunpack.c.h.b16 %v4283
        %v6214 = vunpack.c.l.b16 %v4284
        %v6215 = vunpack.c.h.b16 %v4284
        %v6216 = vunpack.c.l.b16 %v4285
        %v6217 = vunpack.c.h.b16 %v4285
        %v6218 = vunpack.c.l.b16 %v4286
        %v6219 = vunpack.c.h.b16 %v4286
        %v6220 = vunpack.c.l.b16 %v4287
        %v6221 = vunpack.c.h.b16 %v4287
        %v6222 = vunpack.c.l.b16 %v4288
        %v6223 = vunpack.c.h.b16 %v4288
        %v6224 = vunpack.c.l.b16 %v4289
        %v6225 = vunpack.c.h.b16 %v4289
        %v6226 = vunpack.c.l.b16 %v4290
        %v6227 = vunpack.c.h.b16 %v4290
        %v6228 = vunpack.c.l.b16 %v4291
        %v6229 = vunpack.c.h.b16 %v4291
        %v6230 = vunpack.c.l.b16 %v4292
        %v6231 = vunpack.c.h.b16 %v4292
        %v6232 = vunpack.c.l.b16 %v4293
        %v6233 = vunpack.c.h.b16 %v4293
        %v6234 = vunpack.c.l.b16 %v4294
        %v6235 = vunpack.c.h.b16 %v4294
        %v6236 = vunpack.c.l.b16 %v4295
        %v6237 = vunpack.c.h.b16 %v4295
        %v6238 = vunpack.c.l.b16 %v4296
        %v6239 = vunpack.c.h.b16 %v4296
        %v6240 = vunpack.c.l.b16 %v4297
        %v6241 = vunpack.c.h.b16 %v4297
        %v6242 = vunpack.c.l.b16 %v4298
        %v6243 = vunpack.c.h.b16 %v4298
        %v6244 = vunpack.c.l.b16 %v4299
        %v6245 = vunpack.c.h.b16 %v4299
        %v6246 = vunpack.c.l.b16 %v4300
        %v6247 = vunpack.c.h.b16 %v4300
        %v6248 = vunpack.c.l.b16 %v4301
        %v6249 = vunpack.c.h.b16 %v4301
        %v6250 = vunpack.c.l.b16 %v4302
        %v6251 = vunpack.c.h.b16 %v4302
        %v6252 = vunpack.c.l.b16 %v4303
        %v6253 = vunpack.c.h.b16 %v4303
        %v6254 = vunpack.c.l.b16 %v4304
        %v6255 = vunpack.c.h.b16 %v4304
        %v6256 = vunpack.c.l.b16 %v4305
        %v6257 = vunpack.c.h.b16 %v4305
        %v6258 = vunpack.c.l.b16 %v4306
        %v6259 = vunpack.c.h.b16 %v4306
        %v6260 = vunpack.c.l.b16 %v4307
        %v6261 = vunpack.c.h.b16 %v4307
        %v6262 = vunpack.c.l.b16 %v4308
        %v6263 = vunpack.c.h.b16 %v4308
        %v6264 = vunpack.c.l.b16 %v4309
        %v6265 = vunpack.c.h.b16 %v4309
        %v6266 = vunpack.c.l.b16 %v4310
        %v6267 = vunpack.c.h.b16 %v4310
        %v6268 = vunpack.c.l.b16 %v4311
        %v6269 = vunpack.c.h.b16 %v4311
        %v6270 = vunpack.c.l.b16 %v4312
        %v6271 = vunpack.c.h.b16 %v4312
        %v6272 = vunpack.c.l.b16 %v4313
        %v6273 = vunpack.c.h.b16 %v4313
        %v6274 = vunpack.c.l.b16 %v4314
        %v6275 = vunpack.c.h.b16 %v4314
        %v6276 = vunpack.c.l.b16 %v4315
        %v6277 = vunpack.c.h.b16 %v4315
        %v6278 = vunpack.c.l.b16 %v4316
        %v6279 = vunpack.c.h.b16 %v4316
        %v6280 = vunpack.c.l.b16 %v4317
        %v6281 = vunpack.c.h.b16 %v4317
        %v6282 = vunpack.c.l.b16 %v4318
        %v6283 = vunpack.c.h.b16 %v4318
        %v6284 = vunpack.c.l.b16 %v4319
        %v6285 = vunpack.c.h.b16 %v4319
        %v6286 = vunpack.c.l.b16 %v4320
        %v6287 = vunpack.c.h.b16 %v4320
        %v6288 = vunpack.c.l.b16 %v4321
        %v6289 = vunpack.c.h.b16 %v4321
        %v6290 = vunpack.c.l.b16 %v4322
        %v6291 = vunpack.c.h.b16 %v4322
        %v6292 = vunpack.c.l.b16 %v4323
        %v6293 = vunpack.c.h.b16 %v4323
        %v6294 = vunpack.c.l.b16 %v4324
        %v6295 = vunpack.c.h.b16 %v4324
        %v6296 = vunpack.c.l.b16 %v4325
        %v6297 = vunpack.c.h.b16 %v4325
        %v6298 = vunpack.c.l.b16 %v4326
        %v6299 = vunpack.c.h.b16 %v4326
        %v6300 = vunpack.c.l.b16 %v4327
        %v6301 = vunpack.c.h.b16 %v4327
        %v6302 = vunpack.c.l.b16 %v4328
        %v6303 = vunpack.c.h.b16 %v4328
        %v6304 = vunpack.c.l.b16 %v4329
        %v6305 = vunpack.c.h.b16 %v4329
        %v6306 = vunpack.c.l.b16 %v4330
        %v6307 = vunpack.c.h.b16 %v4330
        %v6308 = vunpack.c.l.b16 %v4331
        %v6309 = vunpack.c.h.b16 %v4331
        %v6310 = vunpack.c.l.b16 %v4332
        %v6311 = vunpack.c.h.b16 %v4332
        %v6312 = vunpack.c.l.b16 %v4333
        %v6313 = vunpack.c.h.b16 %v4333
        %v6314 = vunpack.c.l.b16 %v4334
        %v6315 = vunpack.c.h.b16 %v4334
        %v6316 = vunpack.c.l.b16 %v4335
        %v6317 = vunpack.c.h.b16 %v4335
        %v6318 = vunpack.c.l.b16 %v4336
        %v6319 = vunpack.c.h.b16 %v4336
        %v6320 = vunpack.c.l.b16 %v4337
        %v6321 = vunpack.c.h.b16 %v4337
        %v6322 = vunpack.c.l.b16 %v4338
        %v6323 = vunpack.c.h.b16 %v4338
        %v6324 = vunpack.c.l.b16 %v4339
        %v6325 = vunpack.c.h.b16 %v4339
        %v6326 = vunpack.c.l.b16 %v4340
        %v6327 = vunpack.c.h.b16 %v4340
        %v6328 = vunpack.c.l.b16 %v4341
        %v6329 = vunpack.c.h.b16 %v4341
        %v6330 = vunpack.c.l.b16 %v4342
        %v6331 = vunpack.c.h.b16 %v4342
        %v6332 = vunpack.c.l.b16 %v4343
        %v6333 = vunpack.c.h.b16 %v4343
        %v6334 = vunpack.c.l.b16 %v4344
        %v6335 = vunpack.c.h.b16 %v4344
        %v6336 = vunpack.c.l.b16 %v4345
        %v6337 = vunpack.c.h.b16 %v4345
        %v6338 = vunpack.c.l.b16 %v4346
        %v6339 = vunpack.c.h.b16 %v4346
        %v6340 = vunpack.c.l.b16 %v4347
        %v6341 = vunpack.c.h.b16 %v4347
        %v6342 = vunpack.c.l.b16 %v4348
        %v6343 = vunpack.c.h.b16 %v4348
        %v6344 = vunpack.c.l.b16 %v4349
        %v6345 = vunpack.c.h.b16 %v4349
        %v6346 = vunpack.c.l.b16 %v4350
        %v6347 = vunpack.c.h.b16 %v4350
        %v6348 = vunpack.c.l.b16 %v4351
        %v6349 = vunpack.c.h.b16 %v4351
        %v6350 = vunpack.c.l.b16 %v4352
        %v6351 = vunpack.c.h.b16 %v4352
        %v6352 = vunpack.c.l.b16 %v4353
        %v6353 = vunpack.c.h.b16 %v4353
        %v6354 = vunpack.c.l.b16 %v4354
        %v6355 = vunpack.c.h.b16 %v4354
        %v6356 = vunpack.c.l.b16 %v4355
        %v6357 = vunpack.c.h.b16 %v4355
        %v6358 = vunpack.c.l.b16 %v4356
        %v6359 = vunpack.c.h.b16 %v4356
        %v6360 = vunpack.c.l.b16 %v4357
        %v6361 = vunpack.c.h.b16 %v4357
        %v6362 = vunpack.c.l.b16 %v4358
        %v6363 = vunpack.c.h.b16 %v4358
        %v6364 = vunpack.c.l.b16 %v4359
        %v6365 = vunpack.c.h.b16 %v4359
        %v6366 = vunpack.c.l.b16 %v4360
        %v6367 = vunpack.c.h.b16 %v4360
        %v6368 = vunpack.c.l.b16 %v4361
        %v6369 = vunpack.c.h.b16 %v4361
        %v6370 = vunpack.c.l.b16 %v4362
        %v6371 = vunpack.c.h.b16 %v4362
        %v6372 = vunpack.c.l.b16 %v4363
        %v6373 = vunpack.c.h.b16 %v4363
        %v6374 = vunpack.c.l.b16 %v4364
        %v6375 = vunpack.c.h.b16 %v4364
        %v6376 = vunpack.c.l.b16 %v4365
        %v6377 = vunpack.c.h.b16 %v4365
        %v6378 = vunpack.c.l.b16 %v4366
        %v6379 = vunpack.c.h.b16 %v4366
        %v6380 = vunpack.c.l.b16 %v4367
        %v6381 = vunpack.c.h.b16 %v4367
        %v6382 = vunpack.c.l.b16 %v4368
        %v6383 = vunpack.c.h.b16 %v4368
        %v6384 = vunpack.c.l.b16 %v4369
        %v6385 = vunpack.c.h.b16 %v4369
        %v6386 = vunpack.c.l.b16 %v4370
        %v6387 = vunpack.c.h.b16 %v4370
        %v6388 = vunpack.c.l.b16 %v4371
        %v6389 = vunpack.c.h.b16 %v4371
        %v6390 = vunpack.c.l.b16 %v4372
        %v6391 = vunpack.c.h.b16 %v4372
        %v6392 = vunpack.c.l.b16 %v4373
        %v6393 = vunpack.c.h.b16 %v4373
        %v6394 = vunpack.c.l.b16 %v4374
        %v6395 = vunpack.c.h.b16 %v4374
        %v6396 = vunpack.c.l.b16 %v4375
        %v6397 = vunpack.c.h.b16 %v4375
        %v6398 = vunpack.c.l.b16 %v4376
        %v6399 = vunpack.c.h.b16 %v4376
        %v6400 = vunpack.c.l.b16 %v4377
        %v6401 = vunpack.c.h.b16 %v4377
        %v6402 = vunpack.c.l.b16 %v4378
        %v6403 = vunpack.c.h.b16 %v4378
        %v6404 = vunpack.c.l.b16 %v4379
        %v6405 = vunpack.c.h.b16 %v4379
        %v6406 = vunpack.c.l.b16 %v4380
        %v6407 = vunpack.c.h.b16 %v4380
        %v6408 = vunpack.c.l.b16 %v4381
        %v6409 = vunpack.c.h.b16 %v4381
        %v6410 = vunpack.c.l.b16 %v4382
        %v6411 = vunpack.c.h.b16 %v4382
        %v6412 = vunpack.c.l.b16 %v4383
        %v6413 = vunpack.c.h.b16 %v4383
        %v6414 = vunpack.c.l.b16 %v4384
        %v6415 = vunpack.c.h.b16 %v4384
        %v6416 = vunpack.c.l.b16 %v4385
        %v6417 = vunpack.c.h.b16 %v4385
        %v6418 = vunpack.c.l.b16 %v4386
        %v6419 = vunpack.c.h.b16 %v4386
        %v6420 = vunpack.c.l.b16 %v4387
        %v6421 = vunpack.c.h.b16 %v4387
        %v6422 = vunpack.c.l.b16 %v4388
        %v6423 = vunpack.c.h.b16 %v4388
        %v6424 = vunpack.c.l.b16 %v4389
        %v6425 = vunpack.c.h.b16 %v4389
        %v6426 = vunpack.c.l.b16 %v4390
        %v6427 = vunpack.c.h.b16 %v4390
        %v6428 = vunpack.c.l.b16 %v4391
        %v6429 = vunpack.c.h.b16 %v4391
        %v6430 = vunpack.c.l.b16 %v4392
        %v6431 = vunpack.c.h.b16 %v4392
        %v6432 = vunpack.c.l.b16 %v4393
        %v6433 = vunpack.c.h.b16 %v4393
        %v6434 = vunpack.c.l.b16 %v4394
        %v6435 = vunpack.c.h.b16 %v4394
        %v6436 = vunpack.c.l.b16 %v4395
        %v6437 = vunpack.c.h.b16 %v4395
        %v6438 = vunpack.c.l.b16 %v4396
        %v6439 = vunpack.c.h.b16 %v4396
        %v6440 = vunpack.c.l.b16 %v4397
        %v6441 = vunpack.c.h.b16 %v4397
        %v6442 = vunpack.c.l.b16 %v4398
        %v6443 = vunpack.c.h.b16 %v4398
        %v6444 = vunpack.c.l.b16 %v4399
        %v6445 = vunpack.c.h.b16 %v4399
        %v6446 = vunpack.c.l.b16 %v4400
        %v6447 = vunpack.c.h.b16 %v4400
        %v6448 = vunpack.c.l.b16 %v4401
        %v6449 = vunpack.c.h.b16 %v4401
        %v6450 = vunpack.c.l.b16 %v4402
        %v6451 = vunpack.c.h.b16 %v4402
        %v6452 = vunpack.c.l.b16 %v4403
        %v6453 = vunpack.c.h.b16 %v4403
        %v6454 = vunpack.c.l.b16 %v4404
        %v6455 = vunpack.c.h.b16 %v4404
        %v6456 = vunpack.c.l.b16 %v4405
        %v6457 = vunpack.c.h.b16 %v4405
        %v6458 = vunpack.c.l.b16 %v4406
        %v6459 = vunpack.c.h.b16 %v4406
        %v6460 = vunpack.c.l.b16 %v4407
        %v6461 = vunpack.c.h.b16 %v4407
        %v6462 = vunpack.c.l.b16 %v4408
        %v6463 = vunpack.c.h.b16 %v4408
        %v6464 = vunpack.c.l.b16 %v4409
        %v6465 = vunpack.c.h.b16 %v4409
        %v6466 = vunpack.c.l.b16 %v4410
        %v6467 = vunpack.c.h.b16 %v4410
        %v6468 = vunpack.c.l.b16 %v4411
        %v6469 = vunpack.c.h.b16 %v4411
        %v6470 = vunpack.c.l.b16 %v4412
        %v6471 = vunpack.c.h.b16 %v4412
        %v6472 = vunpack.c.l.b16 %v4413
        %v6473 = vunpack.c.h.b16 %v4413
        %v6474 = vunpack.c.l.b16 %v4414
        %v6475 = vunpack.c.h.b16 %v4414
        %v6476 = vunpack.c.l.b16 %v4415
        %v6477 = vunpack.c.h.b16 %v4415
        %v6478 = vunpack.c.l.b16 %v4416
        %v6479 = vunpack.c.h.b16 %v4416
        %v6480 = vunpack.c.l.b16 %v4417
        %v6481 = vunpack.c.h.b16 %v4417
        %v6482 = vunpack.c.l.b16 %v4418
        %v6483 = vunpack.c.h.b16 %v4418
        %v6484 = vunpack.c.l.b16 %v4419
        %v6485 = vunpack.c.h.b16 %v4419
        %v6486 = vunpack.c.l.b16 %v4420
        %v6487 = vunpack.c.h.b16 %v4420
        %v6488 = vunpack.c.l.b16 %v4421
        %v6489 = vunpack.c.h.b16 %v4421
        %v6490 = vunpack.c.l.b16 %v4422
        %v6491 = vunpack.c.h.b16 %v4422
        %v6492 = vunpack.c.l.b16 %v4423
        %v6493 = vunpack.c.h.b16 %v4423
        %v6494 = vunpack.c.l.b16 %v4424
        %v6495 = vunpack.c.h.b16 %v4424
        %v6496 = vunpack.c.l.b16 %v4425
        %v6497 = vunpack.c.h.b16 %v4425
        %v6498 = vunpack.c.l.b16 %v4426
        %v6499 = vunpack.c.h.b16 %v4426
        %v6500 = vunpack.c.l.b16 %v4427
        %v6501 = vunpack.c.h.b16 %v4427
        %v6502 = vunpack.c.l.b16 %v4428
        %v6503 = vunpack.c.h.b16 %v4428
        %v6504 = vunpack.c.l.b16 %v4429
        %v6505 = vunpack.c.h.b16 %v4429
        %v6506 = vunpack.c.l.b16 %v4430
        %v6507 = vunpack.c.h.b16 %v4430
        %v6508 = vunpack.c.l.b16 %v4431
        %v6509 = vunpack.c.h.b16 %v4431
        %v6510 = vunpack.c.l.b16 %v4432
        %v6511 = vunpack.c.h.b16 %v4432
        %v6512 = vunpack.c.l.b16 %v4433
        %v6513 = vunpack.c.h.b16 %v4433
        %v6514 = vunpack.c.l.b16 %v4434
        %v6515 = vunpack.c.h.b16 %v4434
        %v6516 = vunpack.c.l.b16 %v4435
        %v6517 = vunpack.c.h.b16 %v4435
        %v6518 = vunpack.c.l.b16 %v4436
        %v6519 = vunpack.c.h.b16 %v4436
        %v6520 = vunpack.c.l.b16 %v4437
        %v6521 = vunpack.c.h.b16 %v4437
        %v6522 = vunpack.c.l.b16 %v4438
        %v6523 = vunpack.c.h.b16 %v4438
        %v6524 = vunpack.c.l.b16 %v4439
        %v6525 = vunpack.c.h.b16 %v4439
        %v6526 = vunpack.c.l.b16 %v4440
        %v6527 = vunpack.c.h.b16 %v4440
        %v6528 = vunpack.c.l.b16 %v4441
        %v6529 = vunpack.c.h.b16 %v4441
        %v6530 = vunpack.c.l.b16 %v4442
        %v6531 = vunpack.c.h.b16 %v4442
        %v6532 = vunpack.c.l.b16 %v4443
        %v6533 = vunpack.c.h.b16 %v4443
        %v6534 = vunpack.c.l.b16 %v4444
        %v6535 = vunpack.c.h.b16 %v4444
        %v6536 = vunpack.c.l.b16 %v4445
        %v6537 = vunpack.c.h.b16 %v4445
        %v6538 = vunpack.c.l.b16 %v4446
        %v6539 = vunpack.c.h.b16 %v4446
        %v6540 = vunpack.c.l.b16 %v4447
        %v6541 = vunpack.c.h.b16 %v4447
        %v6542 = vunpack.c.l.b16 %v4448
        %v6543 = vunpack.c.h.b16 %v4448
        %v6544 = vunpack.c.l.b16 %v4449
        %v6545 = vunpack.c.h.b16 %v4449
        %v6546 = vunpack.c.l.b16 %v4450
        %v6547 = vunpack.c.h.b16 %v4450
        %v6548 = vunpack.c.l.b16 %v4451
        %v6549 = vunpack.c.h.b16 %v4451
        %v6550 = vunpack.c.l.b16 %v4452
        %v6551 = vunpack.c.h.b16 %v4452
        %v6552 = vunpack.c.l.b16 %v4453
        %v6553 = vunpack.c.h.b16 %v4453
        %v6554 = vunpack.c.l.b16 %v4454
        %v6555 = vunpack.c.h.b16 %v4454
        %v6556 = vunpack.c.l.b16 %v4455
        %v6557 = vunpack.c.h.b16 %v4455
        %v6558 = vunpack.c.l.b16 %v4456
        %v6559 = vunpack.c.h.b16 %v4456
        %v6560 = vunpack.c.l.b16 %v4457
        %v6561 = vunpack.c.h.b16 %v4457
        %v6562 = vunpack.c.l.b16 %v4458
        %v6563 = vunpack.c.h.b16 %v4458
        %v6564 = vunpack.c.l.b16 %v4459
        %v6565 = vunpack.c.h.b16 %v4459
        %v6566 = vunpack.c.l.b16 %v4460
        %v6567 = vunpack.c.h.b16 %v4460
        %v6568 = vunpack.c.l.b16 %v4461
        %v6569 = vunpack.c.h.b16 %v4461
        %v6570 = vunpack.c.l.b16 %v4462
        %v6571 = vunpack.c.h.b16 %v4462
        %v6572 = vunpack.c.l.b16 %v4463
        %v6573 = vunpack.c.h.b16 %v4463
        %v6574 = vunpack.c.l.b16 %v4464
        %v6575 = vunpack.c.h.b16 %v4464
        %v6576 = vunpack.c.l.b16 %v4465
        %v6577 = vunpack.c.h.b16 %v4465
        %v6578 = vunpack.c.l.b16 %v4466
        %v6579 = vunpack.c.h.b16 %v4466
        %v6580 = vunpack.c.l.b16 %v4467
        %v6581 = vunpack.c.h.b16 %v4467
        %v6582 = vunpack.c.l.b16 %v4468
        %v6583 = vunpack.c.h.b16 %v4468
        %v6584 = vunpack.c.l.b16 %v4469
        %v6585 = vunpack.c.h.b16 %v4469
        %v6586 = vunpack.c.l.b16 %v4470
        %v6587 = vunpack.c.h.b16 %v4470
        %v6588 = vunpack.c.l.b16 %v4471
        %v6589 = vunpack.c.h.b16 %v4471
        %v6590 = vunpack.c.l.b16 %v4472
        %v6591 = vunpack.c.h.b16 %v4472
        %v6592 = vunpack.c.l.b16 %v4473
        %v6593 = vunpack.c.h.b16 %v4473
        %v6594 = vunpack.c.l.b16 %v4474
        %v6595 = vunpack.c.h.b16 %v4474
        %v6596 = vunpack.c.l.b16 %v4475
        %v6597 = vunpack.c.h.b16 %v4475
        %v6598 = vunpack.c.l.b16 %v4476
        %v6599 = vunpack.c.h.b16 %v4476
        %v6600 = vunpack.c.l.b16 %v4477
        %v6601 = vunpack.c.h.b16 %v4477
        %v6602 = vunpack.c.l.b16 %v4478
        %v6603 = vunpack.c.h.b16 %v4478
        %v6604 = vunpack.c.l.b16 %v4479
        %v6605 = vunpack.c.h.b16 %v4479
        %v6606 = vunpack.c.l.b16 %v4480
        %v6607 = vunpack.c.h.b16 %v4480
        %v6608 = vunpack.c.l.b16 %v4481
        %v6609 = vunpack.c.h.b16 %v4481
        %v6610 = vunpack.c.l.b16 %v4482
        %v6611 = vunpack.c.h.b16 %v4482
        %v6612 = vunpack.c.l.b16 %v4483
        %v6613 = vunpack.c.h.b16 %v4483
        %v6614 = vunpack.c.l.b16 %v4484
        %v6615 = vunpack.c.h.b16 %v4484
        %v6616 = vunpack.c.l.b16 %v4485
        %v6617 = vunpack.c.h.b16 %v4485
        %v6618 = vunpack.c.l.b16 %v4486
        %v6619 = vunpack.c.h.b16 %v4486
        %v6620 = vunpack.c.l.b16 %v4487
        %v6621 = vunpack.c.h.b16 %v4487
        %v6622 = vunpack.c.l.b16 %v4488
        %v6623 = vunpack.c.h.b16 %v4488
        %v6624 = vunpack.c.l.b16 %v4489
        %v6625 = vunpack.c.h.b16 %v4489
        %v6626 = vunpack.c.l.b16 %v4490
        %v6627 = vunpack.c.h.b16 %v4490
        %v6628 = vunpack.c.l.b16 %v4491
        %v6629 = vunpack.c.h.b16 %v4491
        %v6630 = vunpack.c.l.b16 %v4492
        %v6631 = vunpack.c.h.b16 %v4492
        %v6632 = vunpack.c.l.b16 %v4493
        %v6633 = vunpack.c.h.b16 %v4493
        %v6634 = vunpack.c.l.b16 %v4494
        %v6635 = vunpack.c.h.b16 %v4494
        %v6636 = vunpack.c.l.b16 %v4495
        %v6637 = vunpack.c.h.b16 %v4495
        %v6638 = vunpack.c.l.b16 %v4496
        %v6639 = vunpack.c.h.b16 %v4496
        %v6640 = vunpack.c.l.b16 %v4497
        %v6641 = vunpack.c.h.b16 %v4497
        %v6642 = vunpack.c.l.b16 %v4498
        %v6643 = vunpack.c.h.b16 %v4498
        %v6644 = vunpack.c.l.b16 %v4499
        %v6645 = vunpack.c.h.b16 %v4499
        %v6646 = vunpack.c.l.b16 %v4500
        %v6647 = vunpack.c.h.b16 %v4500
        %v6648 = vunpack.c.l.b16 %v4501
        %v6649 = vunpack.c.h.b16 %v4501
        %v6650 = vunpack.c.l.b16 %v4502
        %v6651 = vunpack.c.h.b16 %v4502
        %v6652 = vunpack.c.l.b16 %v4503
        %v6653 = vunpack.c.h.b16 %v4503
        %v6654 = vunpack.c.l.b16 %v4504
        %v6655 = vunpack.c.h.b16 %v4504
        %v6656 = vunpack.c.l.b16 %v4505
        %v6657 = vunpack.c.h.b16 %v4505
        %v6658 = vunpack.c.l.b16 %v4506
        %v6659 = vunpack.c.h.b16 %v4506
        %v6660 = vunpack.c.l.b16 %v4507
        %v6661 = vunpack.c.h.b16 %v4507
        %v6662 = vunpack.c.l.b16 %v4508
        %v6663 = vunpack.c.h.b16 %v4508
        %v6664 = vunpack.c.l.b16 %v4509
        %v6665 = vunpack.c.h.b16 %v4509
        %v6666 = vunpack.c.l.b16 %v4510
        %v6667 = vunpack.c.h.b16 %v4510
        %v6668 = vunpack.c.l.b16 %v4511
        %v6669 = vunpack.c.h.b16 %v4511
        %v6670 = vunpack.c.l.b16 %v4512
        %v6671 = vunpack.c.h.b16 %v4512
        %v6672 = vunpack.c.l.b16 %v4513
        %v6673 = vunpack.c.h.b16 %v4513
        %v6674 = vunpack.c.l.b16 %v4514
        %v6675 = vunpack.c.h.b16 %v4514
        %v6676 = vunpack.c.l.b16 %v4515
        %v6677 = vunpack.c.h.b16 %v4515
        %v6678 = vunpack.c.l.b16 %v4516
        %v6679 = vunpack.c.h.b16 %v4516
        %v6680 = vunpack.c.l.b16 %v4517
        %v6681 = vunpack.c.h.b16 %v4517
        %v6682 = vunpack.c.l.b16 %v4518
        %v6683 = vunpack.c.h.b16 %v4518
        %v6684 = vunpack.c.l.b16 %v4519
        %v6685 = vunpack.c.h.b16 %v4519
        %v6686 = vunpack.c.l.b16 %v4520
        %v6687 = vunpack.c.h.b16 %v4520
        %v6688 = vunpack.c.l.b16 %v4521
        %v6689 = vunpack.c.h.b16 %v4521
        %v6690 = vunpack.c.l.b16 %v4522
        %v6691 = vunpack.c.h.b16 %v4522
        %v6692 = vunpack.c.l.b16 %v4523
        %v6693 = vunpack.c.h.b16 %v4523
        %v6694 = vunpack.c.l.b16 %v4524
        %v6695 = vunpack.c.h.b16 %v4524
        %v6696 = vunpack.c.l.b16 %v4525
        %v6697 = vunpack.c.h.b16 %v4525
        %v6698 = vunpack.c.l.b16 %v4526
        %v6699 = vunpack.c.h.b16 %v4526
        %v6700 = vunpack.c.l.b16 %v4527
        %v6701 = vunpack.c.h.b16 %v4527
        %v6702 = vunpack.c.l.b16 %v4528
        %v6703 = vunpack.c.h.b16 %v4528
        %v6704 = vunpack.c.l.b16 %v4529
        %v6705 = vunpack.c.h.b16 %v4529
        %v6706 = vunpack.c.l.b16 %v4530
        %v6707 = vunpack.c.h.b16 %v4530
        %v6708 = vunpack.c.l.b16 %v4531
        %v6709 = vunpack.c.h.b16 %v4531
        %v6710 = vunpack.c.l.b16 %v4532
        %v6711 = vunpack.c.h.b16 %v4532
        %v6712 = vunpack.c.l.b16 %v4533
        %v6713 = vunpack.c.h.b16 %v4533
        %v6714 = vunpack.c.l.b16 %v4534
        %v6715 = vunpack.c.h.b16 %v4534
        %v6716 = vunpack.c.l.b16 %v4535
        %v6717 = vunpack.c.h.b16 %v4535
        %v6718 = vunpack.c.l.b16 %v4536
        %v6719 = vunpack.c.h.b16 %v4536
        %v6720 = vunpack.c.l.b16 %v4537
        %v6721 = vunpack.c.h.b16 %v4537
        %v6722 = vunpack.c.l.b16 %v4538
        %v6723 = vunpack.c.h.b16 %v4538
        %v6724 = vunpack.c.l.b16 %v4539
        %v6725 = vunpack.c.h.b16 %v4539
        %v6726 = vunpack.c.l.b16 %v4540
        %v6727 = vunpack.c.h.b16 %v4540
        %v6728 = vunpack.c.l.b16 %v4541
        %v6729 = vunpack.c.h.b16 %v4541
        %v6730 = vunpack.c.l.b16 %v4542
        %v6731 = vunpack.c.h.b16 %v4542
        %v6732 = vunpack.c.l.b16 %v4543
        %v6733 = vunpack.c.h.b16 %v4543
        %v6734 = vunpack.c.l.b16 %v4544
        %v6735 = vunpack.c.h.b16 %v4544
        %v6736 = vunpack.c.l.b16 %v4545
        %v6737 = vunpack.c.h.b16 %v4545
        %v6738 = vunpack.c.l.b16 %v4546
        %v6739 = vunpack.c.h.b16 %v4546
        %v6740 = vunpack.c.l.b16 %v4547
        %v6741 = vunpack.c.h.b16 %v4547
        %v6742 = vunpack.c.l.b16 %v4548
        %v6743 = vunpack.c.h.b16 %v4548
        %v6744 = vunpack.c.l.b16 %v4549
        %v6745 = vunpack.c.h.b16 %v4549
        %v6746 = vunpack.c.l.b16 %v4550
        %v6747 = vunpack.c.h.b16 %v4550
        %v6748 = vunpack.c.l.b16 %v4551
        %v6749 = vunpack.c.h.b16 %v4551
        %v6750 = vunpack.c.l.b16 %v4552
        %v6751 = vunpack.c.h.b16 %v4552
        %v6752 = vunpack.c.l.b16 %v4553
        %v6753 = vunpack.c.h.b16 %v4553
        %v6754 = vunpack.c.l.b16 %v4554
        %v6755 = vunpack.c.h.b16 %v4554
        %v6756 = vunpack.c.l.b16 %v4555
        %v6757 = vunpack.c.h.b16 %v4555
        %v6758 = vunpack.c.l.b16 %v4556
        %v6759 = vunpack.c.h.b16 %v4556
        %v6760 = vunpack.c.l.b16 %v4557
        %v6761 = vunpack.c.h.b16 %v4557
        %v6762 = vunpack.c.l.b16 %v4558
        %v6763 = vunpack.c.h.b16 %v4558
        %v6764 = vunpack.c.l.b16 %v4559
        %v6765 = vunpack.c.h.b16 %v4559
        %v6766 = vunpack.c.l.b16 %v4560
        %v6767 = vunpack.c.h.b16 %v4560
        %v6768 = vunpack.c.l.b16 %v4561
        %v6769 = vunpack.c.h.b16 %v4561
        %v6770 = vunpack.c.l.b16 %v4562
        %v6771 = vunpack.c.h.b16 %v4562
        %v6772 = vunpack.c.l.b16 %v4563
        %v6773 = vunpack.c.h.b16 %v4563
        %v6774 = vunpack.c.l.b16 %v4564
        %v6775 = vunpack.c.h.b16 %v4564
        %v6776 = vunpack.c.l.b16 %v4565
        %v6777 = vunpack.c.h.b16 %v4565
        %v6778 = vunpack.c.l.b16 %v4566
        %v6779 = vunpack.c.h.b16 %v4566
        %v6780 = vunpack.c.l.b16 %v4567
        %v6781 = vunpack.c.h.b16 %v4567
        %v6782 = vunpack.c.l.b16 %v4568
        %v6783 = vunpack.c.h.b16 %v4568
        %v6784 = vunpack.c.l.b16 %v4569
        %v6785 = vunpack.c.h.b16 %v4569
        %v6786 = vunpack.c.l.b16 %v4570
        %v6787 = vunpack.c.h.b16 %v4570
        %v6788 = vunpack.c.l.b16 %v4571
        %v6789 = vunpack.c.h.b16 %v4571
        %v6790 = vunpack.c.l.b16 %v4572
        %v6791 = vunpack.c.h.b16 %v4572
        %v6792 = vunpack.c.l.b16 %v4573
        %v6793 = vunpack.c.h.b16 %v4573
        %v6794 = vunpack.c.l.b16 %v4574
        %v6795 = vunpack.c.h.b16 %v4574
        %v6796 = vunpack.c.l.b16 %v4575
        %v6797 = vunpack.c.h.b16 %v4575
        %v6798 = vunpack.c.l.b16 %v4576
        %v6799 = vunpack.c.h.b16 %v4576
        %v6800 = vunpack.c.l.b16 %v4577
        %v6801 = vunpack.c.h.b16 %v4577
        %v6802 = vunpack.c.l.b16 %v4578
        %v6803 = vunpack.c.h.b16 %v4578
        %v6804 = vunpack.c.l.b16 %v4579
        %v6805 = vunpack.c.h.b16 %v4579
        %v6806 = vunpack.c.l.b16 %v4580
        %v6807 = vunpack.c.h.b16 %v4580
        %v6808 = vunpack.c.l.b16 %v4581
        %v6809 = vunpack.c.h.b16 %v4581
        %v6810 = vunpack.c.l.b16 %v4582
        %v6811 = vunpack.c.h.b16 %v4582
        %v6812 = vunpack.c.l.b16 %v4583
        %v6813 = vunpack.c.h.b16 %v4583
        %v6814 = vunpack.c.l.b16 %v4584
        %v6815 = vunpack.c.h.b16 %v4584
        %v6816 = vunpack.c.l.b16 %v4585
        %v6817 = vunpack.c.h.b16 %v4585
        %v6818 = vunpack.c.l.b16 %v4586
        %v6819 = vunpack.c.h.b16 %v4586
        %v6820 = vunpack.c.l.b16 %v4587
        %v6821 = vunpack.c.h.b16 %v4587
        %v6822 = vunpack.c.l.b16 %v4588
        %v6823 = vunpack.c.h.b16 %v4588
        %v6824 = vunpack.c.l.b16 %v4589
        %v6825 = vunpack.c.h.b16 %v4589
        %v6826 = vunpack.c.l.b16 %v4590
        %v6827 = vunpack.c.h.b16 %v4590
        %v6828 = vunpack.c.l.b16 %v4591
        %v6829 = vunpack.c.h.b16 %v4591
        %v6830 = vunpack.c.l.b16 %v4592
        %v6831 = vunpack.c.h.b16 %v4592
        %v6832 = vunpack.c.l.b16 %v4593
        %v6833 = vunpack.c.h.b16 %v4593
        %v6834 = vunpack.c.l.b16 %v4594
        %v6835 = vunpack.c.h.b16 %v4594
        %v6836 = vunpack.c.l.b16 %v4595
        %v6837 = vunpack.c.h.b16 %v4595
        %v6838 = vunpack.c.l.b16 %v4596
        %v6839 = vunpack.c.h.b16 %v4596
        %v6840 = vunpack.c.l.b16 %v4597
        %v6841 = vunpack.c.h.b16 %v4597
        %v6842 = vunpack.c.l.b16 %v4598
        %v6843 = vunpack.c.h.b16 %v4598
        %v6844 = vunpack.c.l.b16 %v4599
        %v6845 = vunpack.c.h.b16 %v4599
        %v6846 = vunpack.c.l.b16 %v4600
        %v6847 = vunpack.c.h.b16 %v4600
        %v6848 = vunpack.c.l.b16 %v4601
        %v6849 = vunpack.c.h.b16 %v4601
        %v6850 = vunpack.c.l.b16 %v4602
        %v6851 = vunpack.c.h.b16 %v4602
        %v6852 = vunpack.c.l.b16 %v4603
        %v6853 = vunpack.c.h.b16 %v4603
        %v6854 = vunpack.c.l.b16 %v4604
        %v6855 = vunpack.c.h.b16 %v4604
        %v6856 = vunpack.c.l.b16 %v4605
        %v6857 = vunpack.c.h.b16 %v4605
        %v6858 = vunpack.c.l.b16 %v4606
        %v6859 = vunpack.c.h.b16 %v4606
        %v6860 = vunpack.c.l.b16 %v4607
        %v6861 = vunpack.c.h.b16 %v4607
        %v6862 = vunpack.c.l.b16 %v4608
        %v6863 = vunpack.c.h.b16 %v4608
        %v6864 = vunpack.c.l.b16 %v4609
        %v6865 = vunpack.c.h.b16 %v4609
        %v6866 = vunpack.c.l.b16 %v4610
        %v6867 = vunpack.c.h.b16 %v4610
        %v6868 = vunpack.c.l.b16 %v4611
        %v6869 = vunpack.c.h.b16 %v4611
        %v6870 = vunpack.c.l.b16 %v4612
        %v6871 = vunpack.c.h.b16 %v4612
        %v6872 = vunpack.c.l.b16 %v4613
        %v6873 = vunpack.c.h.b16 %v4613
        %v6874 = vunpack.c.l.b16 %v4614
        %v6875 = vunpack.c.h.b16 %v4614
        %v6876 = vunpack.c.l.b16 %v4615
        %v6877 = vunpack.c.h.b16 %v4615
        %v6878 = vunpack.c.l.b16 %v4616
        %v6879 = vunpack.c.h.b16 %v4616
        %v6880 = vunpack.c.l.b16 %v4617
        %v6881 = vunpack.c.h.b16 %v4617
        %v6882 = vunpack.c.l.b16 %v4618
        %v6883 = vunpack.c.h.b16 %v4618
        %v6884 = vunpack.c.l.b16 %v4619
        %v6885 = vunpack.c.h.b16 %v4619
        %v6886 = vunpack.c.l.b16 %v4620
        %v6887 = vunpack.c.h.b16 %v4620
        %v6888 = vunpack.c.l.b16 %v4621
        %v6889 = vunpack.c.h.b16 %v4621
        %v6890 = vunpack.c.l.b16 %v4622
        %v6891 = vunpack.c.h.b16 %v4622
        %v6892 = vunpack.c.l.b16 %v4623
        %v6893 = vunpack.c.h.b16 %v4623
        %v6894 = vunpack.c.l.b16 %v4624
        %v6895 = vunpack.c.h.b16 %v4624
        %v6896 = vunpack.c.l.b16 %v4625
        %v6897 = vunpack.c.h.b16 %v4625
        %v6898 = vunpack.c.l.b16 %v4626
        %v6899 = vunpack.c.h.b16 %v4626
        %v6900 = vunpack.c.l.b16 %v4627
        %v6901 = vunpack.c.h.b16 %v4627
        %v6902 = vunpack.c.l.b16 %v4628
        %v6903 = vunpack.c.h.b16 %v4628
        %v6904 = vunpack.c.l.b16 %v4629
        %v6905 = vunpack.c.h.b16 %v4629
        %v6906 = vunpack.c.l.b16 %v4630
        %v6907 = vunpack.c.h.b16 %v4630
        %v6908 = vunpack.c.l.b16 %v4631
        %v6909 = vunpack.c.h.b16 %v4631
        %v6910 = vunpack.c.l.b16 %v4632
        %v6911 = vunpack.c.h.b16 %v4632
        %v6912 = vunpack.c.l.b16 %v4633
        %v6913 = vunpack.c.h.b16 %v4633
        %v6914 = vunpack.c.l.b16 %v4634
        %v6915 = vunpack.c.h.b16 %v4634
        %v6916 = vunpack.c.l.b16 %v4635
        %v6917 = vunpack.c.h.b16 %v4635
        %v6918 = vunpack.c.l.b16 %v4636
        %v6919 = vunpack.c.h.b16 %v4636
        %v6920 = vunpack.c.l.b16 %v4637
        %v6921 = vunpack.c.h.b16 %v4637
        %v6922 = vunpack.c.l.b16 %v4638
        %v6923 = vunpack.c.h.b16 %v4638
        %v6924 = vunpack.c.l.b16 %v4639
        %v6925 = vunpack.c.h.b16 %v4639
        %v6926 = vunpack.c.l.b16 %v4640
        %v6927 = vunpack.c.h.b16 %v4640
        %v6928 = vunpack.c.l.b16 %v4641
        %v6929 = vunpack.c.h.b16 %v4641
        %v6930 = vunpack.c.l.b16 %v4642
        %v6931 = vunpack.c.h.b16 %v4642
        %v6932 = vunpack.c.l.b16 %v4643
        %v6933 = vunpack.c.h.b16 %v4643
        %v6934 = vunpack.c.l.b16 %v4644
        %v6935 = vunpack.c.h.b16 %v4644
        %v6936 = vunpack.c.l.b16 %v4645
        %v6937 = vunpack.c.h.b16 %v4645
        %v6938 = vunpack.c.l.b16 %v4646
        %v6939 = vunpack.c.h.b16 %v4646
        %v6940 = vunpack.c.l.b16 %v4647
        %v6941 = vunpack.c.h.b16 %v4647
        %v6942 = vunpack.c.l.b16 %v4648
        %v6943 = vunpack.c.h.b16 %v4648
        %v6944 = vunpack.c.l.b16 %v4649
        %v6945 = vunpack.c.h.b16 %v4649
        %v6946 = vunpack.c.l.b16 %v4650
        %v6947 = vunpack.c.h.b16 %v4650
        %v6948 = vunpack.c.l.b16 %v4651
        %v6949 = vunpack.c.h.b16 %v4651
        %v6950 = vunpack.c.l.b16 %v4652
        %v6951 = vunpack.c.h.b16 %v4652
        %v6952 = vunpack.c.l.b16 %v4653
        %v6953 = vunpack.c.h.b16 %v4653
        %v6954 = vunpack.c.l.b16 %v4654
        %v6955 = vunpack.c.h.b16 %v4654
        %v6956 = vunpack.c.l.b16 %v4655
        %v6957 = vunpack.c.h.b16 %v4655
        %v6958 = vunpack.c.l.b16 %v4656
        %v6959 = vunpack.c.h.b16 %v4656
        %v6960 = vunpack.c.l.b16 %v4657
        %v6961 = vunpack.c.h.b16 %v4657
        %v6962 = vpack.c.b16 %v5438, %v5426
        %v6963 = vpack.c.b16 %v5439, %v5427
        %v6964 = vpack.c.b16 %v5440, %v5428
        %v6965 = vpack.c.b16 %v5441, %v5429
        %v6966 = vpack.c.b16 %v5442, %v5430
        %v6967 = vpack.c.b16 %v5443, %v5431
        %v6968 = vpack.c.b16 %v5444, %v5432
        %v6969 = vpack.c.b16 %v5445, %v5433
        %v6970 = vpack.c.b16 %v5446, %v5434
        %v6971 = vpack.c.b16 %v5447, %v5435
        %v6972 = vpack.c.b16 %v5448, %v5436
        %v6973 = vpack.c.b16 %v5449, %v5437
        %v6974 = vpack.c.b16 %v5462, %v5450
        %v6975 = vpack.c.b16 %v5463, %v5451
        %v6976 = vpack.c.b16 %v5464, %v5452
        %v6977 = vpack.c.b16 %v5465, %v5453
        %v6978 = vpack.c.b16 %v5466, %v5454
        %v6979 = vpack.c.b16 %v5467, %v5455
        %v6980 = vpack.c.b16 %v5468, %v5456
        %v6981 = vpack.c.b16 %v5469, %v5457
        %v6982 = vpack.c.b16 %v5470, %v5458
        %v6983 = vpack.c.b16 %v5471, %v5459
        %v6984 = vpack.c.b16 %v5472, %v5460
        %v6985 = vpack.c.b16 %v5473, %v5461
        %v6986 = vpack.c.b16 %v5486, %v5474
        %v6987 = vpack.c.b16 %v5487, %v5475
        %v6988 = vpack.c.b16 %v5488, %v5476
        %v6989 = vpack.c.b16 %v5489, %v5477
        %v6990 = vpack.c.b16 %v5490, %v5478
        %v6991 = vpack.c.b16 %v5491, %v5479
        %v6992 = vpack.c.b16 %v5492, %v5480
        %v6993 = vpack.c.b16 %v5493, %v5481
        %v6994 = vpack.c.b16 %v5494, %v5482
        %v6995 = vpack.c.b16 %v5495, %v5483
        %v6996 = vpack.c.b16 %v5496, %v5484
        %v6997 = vpack.c.b16 %v5497, %v5485
        %v6998 = vpack.c.b16 %v5510, %v5498
        %v6999 = vpack.c.b16 %v5511, %v5499
        %v7000 = vpack.c.b16 %v5512, %v5500
        %v7001 = vpack.c.b16 %v5513, %v5501
        %v7002 = vpack.c.b16 %v5514, %v5502
        %v7003 = vpack.c.b16 %v5515, %v5503
        %v7004 = vpack.c.b16 %v5516, %v5504
        %v7005 = vpack.c.b16 %v5517, %v5505
        %v7006 = vpack.c.b16 %v5518, %v5506
        %v7007 = vpack.c.b16 %v5519, %v5507
        %v7008 = vpack.c.b16 %v5520, %v5508
        %v7009 = vpack.c.b16 %v5521, %v5509
        %v7010 = vpack.c.b16 %v5534, %v5522
        %v7011 = vpack.c.b16 %v5535, %v5523
        %v7012 = vpack.c.b16 %v5536, %v5524
        %v7013 = vpack.c.b16 %v5537, %v5525
        %v7014 = vpack.c.b16 %v5538, %v5526
        %v7015 = vpack.c.b16 %v5539, %v5527
        %v7016 = vpack.c.b16 %v5540, %v5528
        %v7017 = vpack.c.b16 %v5541, %v5529
        %v7018 = vpack.c.b16 %v5542, %v5530
        %v7019 = vpack.c.b16 %v5543, %v5531
        %v7020 = vpack.c.b16 %v5544, %v5532
        %v7021 = vpack.c.b16 %v5545, %v5533
        %v7022 = vpack.c.b16 %v5558, %v5546
        %v7023 = vpack.c.b16 %v5559, %v5547
        %v7024 = vpack.c.b16 %v5560, %v5548
        %v7025 = vpack.c.b16 %v5561, %v5549
        %v7026 = vpack.c.b16 %v5562, %v5550
        %v7027 = vpack.c.b16 %v5563, %v5551
        %v7028 = vpack.c.b16 %v5564, %v5552
        %v7029 = vpack.c.b16 %v5565, %v5553
        %v7030 = vpack.c.b16 %v5566, %v5554
        %v7031 = vpack.c.b16 %v5567, %v5555
        %v7032 = vpack.c.b16 %v5568, %v5556
        %v7033 = vpack.c.b16 %v5569, %v5557
        %v7034 = vpack.c.b16 %v5582, %v5570
        %v7035 = vpack.c.b16 %v5583, %v5571
        %v7036 = vpack.c.b16 %v5584, %v5572
        %v7037 = vpack.c.b16 %v5585, %v5573
        %v7038 = vpack.c.b16 %v5586, %v5574
        %v7039 = vpack.c.b16 %v5587, %v5575
        %v7040 = vpack.c.b16 %v5588, %v5576
        %v7041 = vpack.c.b16 %v5589, %v5577
        %v7042 = vpack.c.b16 %v5590, %v5578
        %v7043 = vpack.c.b16 %v5591, %v5579
        %v7044 = vpack.c.b16 %v5592, %v5580
        %v7045 = vpack.c.b16 %v5593, %v5581
        %v7046 = vpack.c.b16 %v5606, %v5594
        %v7047 = vpack.c.b16 %v5607, %v5595
        %v7048 = vpack.c.b16 %v5608, %v5596
        %v7049 = vpack.c.b16 %v5609, %v5597
        %v7050 = vpack.c.b16 %v5610, %v5598
        %v7051 = vpack.c.b16 %v5611, %v5599
        %v7052 = vpack.c.b16 %v5612, %v5600
        %v7053 = vpack.c.b16 %v5613, %v5601
        %v7054 = vpack.c.b16 %v5614, %v5602
        %v7055 = vpack.c.b16 %v5615, %v5603
        %v7056 = vpack.c.b16 %v5616, %v5604
        %v7057 = vpack.c.b16 %v5617, %v5605
        %v7058 = vpack.c.b16 %v5630, %v5618
        %v7059 = vpack.c.b16 %v5631, %v5619
        %v7060 = vpack.c.b16 %v5632, %v5620
        %v7061 = vpack.c.b16 %v5633, %v5621
        %v7062 = vpack.c.b16 %v5634, %v5622
        %v7063 = vpack.c.b16 %v5635, %v5623
        %v7064 = vpack.c.b16 %v5636, %v5624
        %v7065 = vpack.c.b16 %v5637, %v5625
        %v7066 = vpack.c.b16 %v5638, %v5626
        %v7067 = vpack.c.b16 %v5639, %v5627
        %v7068 = vpack.c.b16 %v5640, %v5628
        %v7069 = vpack.c.b16 %v5641, %v5629
        %v7070 = vpack.c.b16 %v5654, %v5642
        %v7071 = vpack.c.b16 %v5655, %v5643
        %v7072 = vpack.c.b16 %v5656, %v5644
        %v7073 = vpack.c.b16 %v5657, %v5645
        %v7074 = vpack.c.b16 %v5658, %v5646
        %v7075 = vpack.c.b16 %v5659, %v5647
        %v7076 = vpack.c.b16 %v5660, %v5648
        %v7077 = vpack.c.b16 %v5661, %v5649
        %v7078 = vpack.c.b16 %v5662, %v5650
        %v7079 = vpack.c.b16 %v5663, %v5651
        %v7080 = vpack.c.b16 %v5664, %v5652
        %v7081 = vpack.c.b16 %v5665, %v5653
        %v7082 = vpack.c.b16 %v5678, %v5666
        %v7083 = vpack.c.b16 %v5679, %v5667
        %v7084 = vpack.c.b16 %v5680, %v5668
        %v7085 = vpack.c.b16 %v5681, %v5669
        %v7086 = vpack.c.b16 %v5682, %v5670
        %v7087 = vpack.c.b16 %v5683, %v5671
        %v7088 = vpack.c.b16 %v5684, %v5672
        %v7089 = vpack.c.b16 %v5685, %v5673
        %v7090 = vpack.c.b16 %v5686, %v5674
        %v7091 = vpack.c.b16 %v5687, %v5675
        %v7092 = vpack.c.b16 %v5688, %v5676
        %v7093 = vpack.c.b16 %v5689, %v5677
        %v7094 = vpack.c.b16 %v5702, %v5690
        %v7095 = vpack.c.b16 %v5703, %v5691
        %v7096 = vpack.c.b16 %v5704, %v5692
        %v7097 = vpack.c.b16 %v5705, %v5693
        %v7098 = vpack.c.b16 %v5706, %v5694
        %v7099 = vpack.c.b16 %v5707, %v5695
        %v7100 = vpack.c.b16 %v5708, %v5696
        %v7101 = vpack.c.b16 %v5709, %v5697
        %v7102 = vpack.c.b16 %v5710, %v5698
        %v7103 = vpack.c.b16 %v5711, %v5699
        %v7104 = vpack.c.b16 %v5712, %v5700
        %v7105 = vpack.c.b16 %v5713, %v5701
        %v7106 = vpack.c.b16 %v5726, %v5714
        %v7107 = vpack.c.b16 %v5727, %v5715
        %v7108 = vpack.c.b16 %v5728, %v5716
        %v7109 = vpack.c.b16 %v5729, %v5717
        %v7110 = vpack.c.b16 %v5730, %v5718
        %v7111 = vpack.c.b16 %v5731, %v5719
        %v7112 = vpack.c.b16 %v5732, %v5720
        %v7113 = vpack.c.b16 %v5733, %v5721
        %v7114 = vpack.c.b16 %v5734, %v5722
        %v7115 = vpack.c.b16 %v5735, %v5723
        %v7116 = vpack.c.b16 %v5736, %v5724
        %v7117 = vpack.c.b16 %v5737, %v5725
        %v7118 = vpack.c.b16 %v5750, %v5738
        %v7119 = vpack.c.b16 %v5751, %v5739
        %v7120 = vpack.c.b16 %v5752, %v5740
        %v7121 = vpack.c.b16 %v5753, %v5741
        %v7122 = vpack.c.b16 %v5754, %v5742
        %v7123 = vpack.c.b16 %v5755, %v5743
        %v7124 = vpack.c.b16 %v5756, %v5744
        %v7125 = vpack.c.b16 %v5757, %v5745
        %v7126 = vpack.c.b16 %v5758, %v5746
        %v7127 = vpack.c.b16 %v5759, %v5747
        %v7128 = vpack.c.b16 %v5760, %v5748
        %v7129 = vpack.c.b16 %v5761, %v5749
        %v7130 = vpack.c.b16 %v5774, %v5762
        %v7131 = vpack.c.b16 %v5775, %v5763
        %v7132 = vpack.c.b16 %v5776, %v5764
        %v7133 = vpack.c.b16 %v5777, %v5765
        %v7134 = vpack.c.b16 %v5778, %v5766
        %v7135 = vpack.c.b16 %v5779, %v5767
        %v7136 = vpack.c.b16 %v5780, %v5768
        %v7137 = vpack.c.b16 %v5781, %v5769
        %v7138 = vpack.c.b16 %v5782, %v5770
        %v7139 = vpack.c.b16 %v5783, %v5771
        %v7140 = vpack.c.b16 %v5784, %v5772
        %v7141 = vpack.c.b16 %v5785, %v5773
        %v7142 = vpack.c.b16 %v5798, %v5786
        %v7143 = vpack.c.b16 %v5799, %v5787
        %v7144 = vpack.c.b16 %v5800, %v5788
        %v7145 = vpack.c.b16 %v5801, %v5789
        %v7146 = vpack.c.b16 %v5802, %v5790
        %v7147 = vpack.c.b16 %v5803, %v5791
        %v7148 = vpack.c.b16 %v5804, %v5792
        %v7149 = vpack.c.b16 %v5805, %v5793
        %v7150 = vpack.c.b16 %v5806, %v5794
        %v7151 = vpack.c.b16 %v5807, %v5795
        %v7152 = vpack.c.b16 %v5808, %v5796
        %v7153 = vpack.c.b16 %v5809, %v5797
        %v7154 = vpack.c.b16 %v5822, %v5810
        %v7155 = vpack.c.b16 %v5823, %v5811
        %v7156 = vpack.c.b16 %v5824, %v5812
        %v7157 = vpack.c.b16 %v5825, %v5813
        %v7158 = vpack.c.b16 %v5826, %v5814
        %v7159 = vpack.c.b16 %v5827, %v5815
        %v7160 = vpack.c.b16 %v5828, %v5816
        %v7161 = vpack.c.b16 %v5829, %v5817
        %v7162 = vpack.c.b16 %v5830, %v5818
        %v7163 = vpack.c.b16 %v5831, %v5819
        %v7164 = vpack.c.b16 %v5832, %v5820
        %v7165 = vpack.c.b16 %v5833, %v5821
        %v7166 = vpack.c.b16 %v5846, %v5834
        %v7167 = vpack.c.b16 %v5847, %v5835
        %v7168 = vpack.c.b16 %v5848, %v5836
        %v7169 = vpack.c.b16 %v5849, %v5837
        %v7170 = vpack.c.b16 %v5850, %v5838
        %v7171 = vpack.c.b16 %v5851, %v5839
        %v7172 = vpack.c.b16 %v5852, %v5840
        %v7173 = vpack.c.b16 %v5853, %v5841
        %v7174 = vpack.c.b16 %v5854, %v5842
        %v7175 = vpack.c.b16 %v5855, %v5843
        %v7176 = vpack.c.b16 %v5856, %v5844
        %v7177 = vpack.c.b16 %v5857, %v5845
        %v7178 = vpack.c.b16 %v5870, %v5858
        %v7179 = vpack.c.b16 %v5871, %v5859
        %v7180 = vpack.c.b16 %v5872, %v5860
        %v7181 = vpack.c.b16 %v5873, %v5861
        %v7182 = vpack.c.b16 %v5874, %v5862
        %v7183 = vpack.c.b16 %v5875, %v5863
        %v7184 = vpack.c.b16 %v5876, %v5864
        %v7185 = vpack.c.b16 %v5877, %v5865
        %v7186 = vpack.c.b16 %v5878, %v5866
        %v7187 = vpack.c.b16 %v5879, %v5867
        %v7188 = vpack.c.b16 %v5880, %v5868
        %v7189 = vpack.c.b16 %v5881, %v5869
        %v7190 = vpack.c.b16 %v5894, %v5882
        %v7191 = vpack.c.b16 %v5895, %v5883
        %v7192 = vpack.c.b16 %v5896, %v5884
        %v7193 = vpack.c.b16 %v5897, %v5885
        %v7194 = vpack.c.b16 %v5898, %v5886
        %v7195 = vpack.c.b16 %v5899, %v5887
        %v7196 = vpack.c.b16 %v5900, %v5888
        %v7197 = vpack.c.b16 %v5901, %v5889
        %v7198 = vpack.c.b16 %v5902, %v5890
        %v7199 = vpack.c.b16 %v5903, %v5891
        %v7200 = vpack.c.b16 %v5904, %v5892
        %v7201 = vpack.c.b16 %v5905, %v5893
        %v7202 = vpack.c.b16 %v5918, %v5906
        %v7203 = vpack.c.b16 %v5919, %v5907
        %v7204 = vpack.c.b16 %v5920, %v5908
        %v7205 = vpack.c.b16 %v5921, %v5909
        %v7206 = vpack.c.b16 %v5922, %v5910
        %v7207 = vpack.c.b16 %v5923, %v5911
        %v7208 = vpack.c.b16 %v5924, %v5912
        %v7209 = vpack.c.b16 %v5925, %v5913
        %v7210 = vpack.c.b16 %v5926, %v5914
        %v7211 = vpack.c.b16 %v5927, %v5915
        %v7212 = vpack.c.b16 %v5928, %v5916
        %v7213 = vpack.c.b16 %v5929, %v5917
        %v7214 = vpack.c.b16 %v5942, %v5930
        %v7215 = vpack.c.b16 %v5943, %v5931
        %v7216 = vpack.c.b16 %v5944, %v5932
        %v7217 = vpack.c.b16 %v5945, %v5933
        %v7218 = vpack.c.b16 %v5946, %v5934
        %v7219 = vpack.c.b16 %v5947, %v5935
        %v7220 = vpack.c.b16 %v5948, %v5936
        %v7221 = vpack.c.b16 %v5949, %v5937
        %v7222 = vpack.c.b16 %v5950, %v5938
        %v7223 = vpack.c.b16 %v5951, %v5939
        %v7224 = vpack.c.b16 %v5952, %v5940
        %v7225 = vpack.c.b16 %v5953, %v5941
        %v7226 = vpack.c.b16 %v5966, %v5954
        %v7227 = vpack.c.b16 %v5967, %v5955
        %v7228 = vpack.c.b16 %v5968, %v5956
        %v7229 = vpack.c.b16 %v5969, %v5957
        %v7230 = vpack.c.b16 %v5970, %v5958
        %v7231 = vpack.c.b16 %v5971, %v5959
        %v7232 = vpack.c.b16 %v5972, %v5960
        %v7233 = vpack.c.b16 %v5973, %v5961
        %v7234 = vpack.c.b16 %v5974, %v5962
        %v7235 = vpack.c.b16 %v5975, %v5963
        %v7236 = vpack.c.b16 %v5976, %v5964
        %v7237 = vpack.c.b16 %v5977, %v5965
        %v7238 = vpack.c.b16 %v5990, %v5978
        %v7239 = vpack.c.b16 %v5991, %v5979
        %v7240 = vpack.c.b16 %v5992, %v5980
        %v7241 = vpack.c.b16 %v5993, %v5981
        %v7242 = vpack.c.b16 %v5994, %v5982
        %v7243 = vpack.c.b16 %v5995, %v5983
        %v7244 = vpack.c.b16 %v5996, %v5984
        %v7245 = vpack.c.b16 %v5997, %v5985
        %v7246 = vpack.c.b16 %v5998, %v5986
        %v7247 = vpack.c.b16 %v5999, %v5987
        %v7248 = vpack.c.b16 %v6000, %v5988
        %v7249 = vpack.c.b16 %v6001, %v5989
        %v7250 = vpack.c.b16 %v6014, %v6002
        %v7251 = vpack.c.b16 %v6015, %v6003
        %v7252 = vpack.c.b16 %v6016, %v6004
        %v7253 = vpack.c.b16 %v6017, %v6005
        %v7254 = vpack.c.b16 %v6018, %v6006
        %v7255 = vpack.c.b16 %v6019, %v6007
        %v7256 = vpack.c.b16 %v6020, %v6008
        %v7257 = vpack.c.b16 %v6021, %v6009
        %v7258 = vpack.c.b16 %v6022, %v6010
        %v7259 = vpack.c.b16 %v6023, %v6011
        %v7260 = vpack.c.b16 %v6024, %v6012
        %v7261 = vpack.c.b16 %v6025, %v6013
        %v7262 = vpack.c.b16 %v6038, %v6026
        %v7263 = vpack.c.b16 %v6039, %v6027
        %v7264 = vpack.c.b16 %v6040, %v6028
        %v7265 = vpack.c.b16 %v6041, %v6029
        %v7266 = vpack.c.b16 %v6042, %v6030
        %v7267 = vpack.c.b16 %v6043, %v6031
        %v7268 = vpack.c.b16 %v6044, %v6032
        %v7269 = vpack.c.b16 %v6045, %v6033
        %v7270 = vpack.c.b16 %v6046, %v6034
        %v7271 = vpack.c.b16 %v6047, %v6035
        %v7272 = vpack.c.b16 %v6048, %v6036
        %v7273 = vpack.c.b16 %v6049, %v6037
        %v7274 = vpack.c.b16 %v6062, %v6050
        %v7275 = vpack.c.b16 %v6063, %v6051
        %v7276 = vpack.c.b16 %v6064, %v6052
        %v7277 = vpack.c.b16 %v6065, %v6053
        %v7278 = vpack.c.b16 %v6066, %v6054
        %v7279 = vpack.c.b16 %v6067, %v6055
        %v7280 = vpack.c.b16 %v6068, %v6056
        %v7281 = vpack.c.b16 %v6069, %v6057
        %v7282 = vpack.c.b16 %v6070, %v6058
        %v7283 = vpack.c.b16 %v6071, %v6059
        %v7284 = vpack.c.b16 %v6072, %v6060
        %v7285 = vpack.c.b16 %v6073, %v6061
        %v7286 = vpack.c.b16 %v6086, %v6074
        %v7287 = vpack.c.b16 %v6087, %v6075
        %v7288 = vpack.c.b16 %v6088, %v6076
        %v7289 = vpack.c.b16 %v6089, %v6077
        %v7290 = vpack.c.b16 %v6090, %v6078
        %v7291 = vpack.c.b16 %v6091, %v6079
        %v7292 = vpack.c.b16 %v6092, %v6080
        %v7293 = vpack.c.b16 %v6093, %v6081
        %v7294 = vpack.c.b16 %v6094, %v6082
        %v7295 = vpack.c.b16 %v6095, %v6083
        %v7296 = vpack.c.b16 %v6096, %v6084
        %v7297 = vpack.c.b16 %v6097, %v6085
        %v7298 = vpack.c.b16 %v6110, %v6098
        %v7299 = vpack.c.b16 %v6111, %v6099
        %v7300 = vpack.c.b16 %v6112, %v6100
        %v7301 = vpack.c.b16 %v6113, %v6101
        %v7302 = vpack.c.b16 %v6114, %v6102
        %v7303 = vpack.c.b16 %v6115, %v6103
        %v7304 = vpack.c.b16 %v6116, %v6104
        %v7305 = vpack.c.b16 %v6117, %v6105
        %v7306 = vpack.c.b16 %v6118, %v6106
        %v7307 = vpack.c.b16 %v6119, %v6107
        %v7308 = vpack.c.b16 %v6120, %v6108
        %v7309 = vpack.c.b16 %v6121, %v6109
        %v7310 = vpack.c.b16 %v6134, %v6122
        %v7311 = vpack.c.b16 %v6135, %v6123
        %v7312 = vpack.c.b16 %v6136, %v6124
        %v7313 = vpack.c.b16 %v6137, %v6125
        %v7314 = vpack.c.b16 %v6138, %v6126
        %v7315 = vpack.c.b16 %v6139, %v6127
        %v7316 = vpack.c.b16 %v6140, %v6128
        %v7317 = vpack.c.b16 %v6141, %v6129
        %v7318 = vpack.c.b16 %v6142, %v6130
        %v7319 = vpack.c.b16 %v6143, %v6131
        %v7320 = vpack.c.b16 %v6144, %v6132
        %v7321 = vpack.c.b16 %v6145, %v6133
        %v7322 = vpack.c.b16 %v6158, %v6146
        %v7323 = vpack.c.b16 %v6159, %v6147
        %v7324 = vpack.c.b16 %v6160, %v6148
        %v7325 = vpack.c.b16 %v6161, %v6149
        %v7326 = vpack.c.b16 %v6162, %v6150
        %v7327 = vpack.c.b16 %v6163, %v6151
        %v7328 = vpack.c.b16 %v6164, %v6152
        %v7329 = vpack.c.b16 %v6165, %v6153
        %v7330 = vpack.c.b16 %v6166, %v6154
        %v7331 = vpack.c.b16 %v6167, %v6155
        %v7332 = vpack.c.b16 %v6168, %v6156
        %v7333 = vpack.c.b16 %v6169, %v6157
        %v7334 = vpack.c.b16 %v6182, %v6170
        %v7335 = vpack.c.b16 %v6183, %v6171
        %v7336 = vpack.c.b16 %v6184, %v6172
        %v7337 = vpack.c.b16 %v6185, %v6173
        %v7338 = vpack.c.b16 %v6186, %v6174
        %v7339 = vpack.c.b16 %v6187, %v6175
        %v7340 = vpack.c.b16 %v6188, %v6176
        %v7341 = vpack.c.b16 %v6189, %v6177
        %v7342 = vpack.c.b16 %v6190, %v6178
        %v7343 = vpack.c.b16 %v6191, %v6179
        %v7344 = vpack.c.b16 %v6192, %v6180
        %v7345 = vpack.c.b16 %v6193, %v6181
        %v7346 = vpack.c.b16 %v6206, %v6194
        %v7347 = vpack.c.b16 %v6207, %v6195
        %v7348 = vpack.c.b16 %v6208, %v6196
        %v7349 = vpack.c.b16 %v6209, %v6197
        %v7350 = vpack.c.b16 %v6210, %v6198
        %v7351 = vpack.c.b16 %v6211, %v6199
        %v7352 = vpack.c.b16 %v6212, %v6200
        %v7353 = vpack.c.b16 %v6213, %v6201
        %v7354 = vpack.c.b16 %v6214, %v6202
        %v7355 = vpack.c.b16 %v6215, %v6203
        %v7356 = vpack.c.b16 %v6216, %v6204
        %v7357 = vpack.c.b16 %v6217, %v6205
        %v7358 = vpack.c.b16 %v6230, %v6218
        %v7359 = vpack.c.b16 %v6231, %v6219
        %v7360 = vpack.c.b16 %v6232, %v6220
        %v7361 = vpack.c.b16 %v6233, %v6221
        %v7362 = vpack.c.b16 %v6234, %v6222
        %v7363 = vpack.c.b16 %v6235, %v6223
        %v7364 = vpack.c.b16 %v6236, %v6224
        %v7365 = vpack.c.b16 %v6237, %v6225
        %v7366 = vpack.c.b16 %v6238, %v6226
        %v7367 = vpack.c.b16 %v6239, %v6227
        %v7368 = vpack.c.b16 %v6240, %v6228
        %v7369 = vpack.c.b16 %v6241, %v6229
        %v7370 = vpack.c.b16 %v6254, %v6242
        %v7371 = vpack.c.b16 %v6255, %v6243
        %v7372 = vpack.c.b16 %v6256, %v6244
        %v7373 = vpack.c.b16 %v6257, %v6245
        %v7374 = vpack.c.b16 %v6258, %v6246
        %v7375 = vpack.c.b16 %v6259, %v6247
        %v7376 = vpack.c.b16 %v6260, %v6248
        %v7377 = vpack.c.b16 %v6261, %v6249
        %v7378 = vpack.c.b16 %v6262, %v6250
        %v7379 = vpack.c.b16 %v6263, %v6251
        %v7380 = vpack.c.b16 %v6264, %v6252
        %v7381 = vpack.c.b16 %v6265, %v6253
        %v7382 = vpack.c.b16 %v6278, %v6266
        %v7383 = vpack.c.b16 %v6279, %v6267
        %v7384 = vpack.c.b16 %v6280, %v6268
        %v7385 = vpack.c.b16 %v6281, %v6269
        %v7386 = vpack.c.b16 %v6282, %v6270
        %v7387 = vpack.c.b16 %v6283, %v6271
        %v7388 = vpack.c.b16 %v6284, %v6272
        %v7389 = vpack.c.b16 %v6285, %v6273
        %v7390 = vpack.c.b16 %v6286, %v6274
        %v7391 = vpack.c.b16 %v6287, %v6275
        %v7392 = vpack.c.b16 %v6288, %v6276
        %v7393 = vpack.c.b16 %v6289, %v6277
        %v7394 = vpack.c.b16 %v6302, %v6290
        %v7395 = vpack.c.b16 %v6303, %v6291
        %v7396 = vpack.c.b16 %v6304, %v6292
        %v7397 = vpack.c.b16 %v6305, %v6293
        %v7398 = vpack.c.b16 %v6306, %v6294
        %v7399 = vpack.c.b16 %v6307, %v6295
        %v7400 = vpack.c.b16 %v6308, %v6296
        %v7401 = vpack.c.b16 %v6309, %v6297
        %v7402 = vpack.c.b16 %v6310, %v6298
        %v7403 = vpack.c.b16 %v6311, %v6299
        %v7404 = vpack.c.b16 %v6312, %v6300
        %v7405 = vpack.c.b16 %v6313, %v6301
        %v7406 = vpack.c.b16 %v6326, %v6314
        %v7407 = vpack.c.b16 %v6327, %v6315
        %v7408 = vpack.c.b16 %v6328, %v6316
        %v7409 = vpack.c.b16 %v6329, %v6317
        %v7410 = vpack.c.b16 %v6330, %v6318
        %v7411 = vpack.c.b16 %v6331, %v6319
        %v7412 = vpack.c.b16 %v6332, %v6320
        %v7413 = vpack.c.b16 %v6333, %v6321
        %v7414 = vpack.c.b16 %v6334, %v6322
        %v7415 = vpack.c.b16 %v6335, %v6323
        %v7416 = vpack.c.b16 %v6336, %v6324
        %v7417 = vpack.c.b16 %v6337, %v6325
        %v7418 = vpack.c.b16 %v6350, %v6338
        %v7419 = vpack.c.b16 %v6351, %v6339
        %v7420 = vpack.c.b16 %v6352, %v6340
        %v7421 = vpack.c.b16 %v6353, %v6341
        %v7422 = vpack.c.b16 %v6354, %v6342
        %v7423 = vpack.c.b16 %v6355, %v6343
        %v7424 = vpack.c.b16 %v6356, %v6344
        %v7425 = vpack.c.b16 %v6357, %v6345
        %v7426 = vpack.c.b16 %v6358, %v6346
        %v7427 = vpack.c.b16 %v6359, %v6347
        %v7428 = vpack.c.b16 %v6360, %v6348
        %v7429 = vpack.c.b16 %v6361, %v6349
        %v7430 = vpack.c.b16 %v6374, %v6362
        %v7431 = vpack.c.b16 %v6375, %v6363
        %v7432 = vpack.c.b16 %v6376, %v6364
        %v7433 = vpack.c.b16 %v6377, %v6365
        %v7434 = vpack.c.b16 %v6378, %v6366
        %v7435 = vpack.c.b16 %v6379, %v6367
        %v7436 = vpack.c.b16 %v6380, %v6368
        %v7437 = vpack.c.b16 %v6381, %v6369
        %v7438 = vpack.c.b16 %v6382, %v6370
        %v7439 = vpack.c.b16 %v6383, %v6371
        %v7440 = vpack.c.b16 %v6384, %v6372
        %v7441 = vpack.c.b16 %v6385, %v6373
        %v7442 = vpack.c.b16 %v6398, %v6386
        %v7443 = vpack.c.b16 %v6399, %v6387
        %v7444 = vpack.c.b16 %v6400, %v6388
        %v7445 = vpack.c.b16 %v6401, %v6389
        %v7446 = vpack.c.b16 %v6402, %v6390
        %v7447 = vpack.c.b16 %v6403, %v6391
        %v7448 = vpack.c.b16 %v6404, %v6392
        %v7449 = vpack.c.b16 %v6405, %v6393
        %v7450 = vpack.c.b16 %v6406, %v6394
        %v7451 = vpack.c.b16 %v6407, %v6395
        %v7452 = vpack.c.b16 %v6408, %v6396
        %v7453 = vpack.c.b16 %v6409, %v6397
        %v7454 = vpack.c.b16 %v6422, %v6410
        %v7455 = vpack.c.b16 %v6423, %v6411
        %v7456 = vpack.c.b16 %v6424, %v6412
        %v7457 = vpack.c.b16 %v6425, %v6413
        %v7458 = vpack.c.b16 %v6426, %v6414
        %v7459 = vpack.c.b16 %v6427, %v6415
        %v7460 = vpack.c.b16 %v6428, %v6416
        %v7461 = vpack.c.b16 %v6429, %v6417
        %v7462 = vpack.c.b16 %v6430, %v6418
        %v7463 = vpack.c.b16 %v6431, %v6419
        %v7464 = vpack.c.b16 %v6432, %v6420
        %v7465 = vpack.c.b16 %v6433, %v6421
        %v7466 = vpack.c.b16 %v6446, %v6434
        %v7467 = vpack.c.b16 %v6447, %v6435
        %v7468 = vpack.c.b16 %v6448, %v6436
        %v7469 = vpack.c.b16 %v6449, %v6437
        %v7470 = vpack.c.b16 %v6450, %v6438
        %v7471 = vpack.c.b16 %v6451, %v6439
        %v7472 = vpack.c.b16 %v6452, %v6440
        %v7473 = vpack.c.b16 %v6453, %v6441
        %v7474 = vpack.c.b16 %v6454, %v6442
        %v7475 = vpack.c.b16 %v6455, %v6443
        %v7476 = vpack.c.b16 %v6456, %v6444
        %v7477 = vpack.c.b16 %v6457, %v6445
        %v7478 = vpack.c.b16 %v6470, %v6458
        %v7479 = vpack.c.b16 %v6471, %v6459
        %v7480 = vpack.c.b16 %v6472, %v6460
        %v7481 = vpack.c.b16 %v6473, %v6461
        %v7482 = vpack.c.b16 %v6474, %v6462
        %v7483 = vpack.c.b16 %v6475, %v6463
        %v7484 = vpack.c.b16 %v6476, %v6464
        %v7485 = vpack.c.b16 %v6477, %v6465
        %v7486 = vpack.c.b16 %v6478, %v6466
        %v7487 = vpack.c.b16 %v6479, %v6467
        %v7488 = vpack.c.b16 %v6480, %v6468
        %v7489 = vpack.c.b16 %v6481, %v6469
        %v7490 = vpack.c.b16 %v6494, %v6482
        %v7491 = vpack.c.b16 %v6495, %v6483
        %v7492 = vpack.c.b16 %v6496, %v6484
        %v7493 = vpack.c.b16 %v6497, %v6485
        %v7494 = vpack.c.b16 %v6498, %v6486
        %v7495 = vpack.c.b16 %v6499, %v6487
        %v7496 = vpack.c.b16 %v6500, %v6488
        %v7497 = vpack.c.b16 %v6501, %v6489
        %v7498 = vpack.c.b16 %v6502, %v6490
        %v7499 = vpack.c.b16 %v6503, %v6491
        %v7500 = vpack.c.b16 %v6504, %v6492
        %v7501 = vpack.c.b16 %v6505, %v6493
        %v7502 = vpack.c.b16 %v6518, %v6506
        %v7503 = vpack.c.b16 %v6519, %v6507
        %v7504 = vpack.c.b16 %v6520, %v6508
        %v7505 = vpack.c.b16 %v6521, %v6509
        %v7506 = vpack.c.b16 %v6522, %v6510
        %v7507 = vpack.c.b16 %v6523, %v6511
        %v7508 = vpack.c.b16 %v6524, %v6512
        %v7509 = vpack.c.b16 %v6525, %v6513
        %v7510 = vpack.c.b16 %v6526, %v6514
        %v7511 = vpack.c.b16 %v6527, %v6515
        %v7512 = vpack.c.b16 %v6528, %v6516
        %v7513 = vpack.c.b16 %v6529, %v6517
        %v7514 = vpack.c.b16 %v6542, %v6530
        %v7515 = vpack.c.b16 %v6543, %v6531
        %v7516 = vpack.c.b16 %v6544, %v6532
        %v7517 = vpack.c.b16 %v6545, %v6533
        %v7518 = vpack.c.b16 %v6546, %v6534
        %v7519 = vpack.c.b16 %v6547, %v6535
        %v7520 = vpack.c.b16 %v6548, %v6536
        %v7521 = vpack.c.b16 %v6549, %v6537
        %v7522 = vpack.c.b16 %v6550, %v6538
        %v7523 = vpack.c.b16 %v6551, %v6539
        %v7524 = vpack.c.b16 %v6552, %v6540
        %v7525 = vpack.c.b16 %v6553, %v6541
        %v7526 = vpack.c.b16 %v6566, %v6554
        %v7527 = vpack.c.b16 %v6567, %v6555
        %v7528 = vpack.c.b16 %v6568, %v6556
        %v7529 = vpack.c.b16 %v6569, %v6557
        %v7530 = vpack.c.b16 %v6570, %v6558
        %v7531 = vpack.c.b16 %v6571, %v6559
        %v7532 = vpack.c.b16 %v6572, %v6560
        %v7533 = vpack.c.b16 %v6573, %v6561
        %v7534 = vpack.c.b16 %v6574, %v6562
        %v7535 = vpack.c.b16 %v6575, %v6563
        %v7536 = vpack.c.b16 %v6576, %v6564
        %v7537 = vpack.c.b16 %v6577, %v6565
        %v7538 = vpack.c.b16 %v6590, %v6578
        %v7539 = vpack.c.b16 %v6591, %v6579
        %v7540 = vpack.c.b16 %v6592, %v6580
        %v7541 = vpack.c.b16 %v6593, %v6581
        %v7542 = vpack.c.b16 %v6594, %v6582
        %v7543 = vpack.c.b16 %v6595, %v6583
        %v7544 = vpack.c.b16 %v6596, %v6584
        %v7545 = vpack.c.b16 %v6597, %v6585
        %v7546 = vpack.c.b16 %v6598, %v6586
        %v7547 = vpack.c.b16 %v6599, %v6587
        %v7548 = vpack.c.b16 %v6600, %v6588
        %v7549 = vpack.c.b16 %v6601, %v6589
        %v7550 = vpack.c.b16 %v6614, %v6602
        %v7551 = vpack.c.b16 %v6615, %v6603
        %v7552 = vpack.c.b16 %v6616, %v6604
        %v7553 = vpack.c.b16 %v6617, %v6605
        %v7554 = vpack.c.b16 %v6618, %v6606
        %v7555 = vpack.c.b16 %v6619, %v6607
        %v7556 = vpack.c.b16 %v6620, %v6608
        %v7557 = vpack.c.b16 %v6621, %v6609
        %v7558 = vpack.c.b16 %v6622, %v6610
        %v7559 = vpack.c.b16 %v6623, %v6611
        %v7560 = vpack.c.b16 %v6624, %v6612
        %v7561 = vpack.c.b16 %v6625, %v6613
        %v7562 = vpack.c.b16 %v6638, %v6626
        %v7563 = vpack.c.b16 %v6639, %v6627
        %v7564 = vpack.c.b16 %v6640, %v6628
        %v7565 = vpack.c.b16 %v6641, %v6629
        %v7566 = vpack.c.b16 %v6642, %v6630
        %v7567 = vpack.c.b16 %v6643, %v6631
        %v7568 = vpack.c.b16 %v6644, %v6632
        %v7569 = vpack.c.b16 %v6645, %v6633
        %v7570 = vpack.c.b16 %v6646, %v6634
        %v7571 = vpack.c.b16 %v6647, %v6635
        %v7572 = vpack.c.b16 %v6648, %v6636
        %v7573 = vpack.c.b16 %v6649, %v6637
        %v7574 = vpack.c.b16 %v6662, %v6650
        %v7575 = vpack.c.b16 %v6663, %v6651
        %v7576 = vpack.c.b16 %v6664, %v6652
        %v7577 = vpack.c.b16 %v6665, %v6653
        %v7578 = vpack.c.b16 %v6666, %v6654
        %v7579 = vpack.c.b16 %v6667, %v6655
        %v7580 = vpack.c.b16 %v6668, %v6656
        %v7581 = vpack.c.b16 %v6669, %v6657
        %v7582 = vpack.c.b16 %v6670, %v6658
        %v7583 = vpack.c.b16 %v6671, %v6659
        %v7584 = vpack.c.b16 %v6672, %v6660
        %v7585 = vpack.c.b16 %v6673, %v6661
        %v7586 = vpack.c.b16 %v6686, %v6674
        %v7587 = vpack.c.b16 %v6687, %v6675
        %v7588 = vpack.c.b16 %v6688, %v6676
        %v7589 = vpack.c.b16 %v6689, %v6677
        %v7590 = vpack.c.b16 %v6690, %v6678
        %v7591 = vpack.c.b16 %v6691, %v6679
        %v7592 = vpack.c.b16 %v6692, %v6680
        %v7593 = vpack.c.b16 %v6693, %v6681
        %v7594 = vpack.c.b16 %v6694, %v6682
        %v7595 = vpack.c.b16 %v6695, %v6683
        %v7596 = vpack.c.b16 %v6696, %v6684
        %v7597 = vpack.c.b16 %v6697, %v6685
        %v7598 = vpack.c.b16 %v6710, %v6698
        %v7599 = vpack.c.b16 %v6711, %v6699
        %v7600 = vpack.c.b16 %v6712, %v6700
        %v7601 = vpack.c.b16 %v6713, %v6701
        %v7602 = vpack.c.b16 %v6714, %v6702
        %v7603 = vpack.c.b16 %v6715, %v6703
        %v7604 = vpack.c.b16 %v6716, %v6704
        %v7605 = vpack.c.b16 %v6717, %v6705
        %v7606 = vpack.c.b16 %v6718, %v6706
        %v7607 = vpack.c.b16 %v6719, %v6707
        %v7608 = vpack.c.b16 %v6720, %v6708
        %v7609 = vpack.c.b16 %v6721, %v6709
        %v7610 = vpack.c.b16 %v6734, %v6722
        %v7611 = vpack.c.b16 %v6735, %v6723
        %v7612 = vpack.c.b16 %v6736, %v6724
        %v7613 = vpack.c.b16 %v6737, %v6725
        %v7614 = vpack.c.b16 %v6738, %v6726
        %v7615 = vpack.c.b16 %v6739, %v6727
        %v7616 = vpack.c.b16 %v6740, %v6728
        %v7617 = vpack.c.b16 %v6741, %v6729
        %v7618 = vpack.c.b16 %v6742, %v6730
        %v7619 = vpack.c.b16 %v6743, %v6731
        %v7620 = vpack.c.b16 %v6744, %v6732
        %v7621 = vpack.c.b16 %v6745, %v6733
        %v7622 = vpack.c.b16 %v6758, %v6746
        %v7623 = vpack.c.b16 %v6759, %v6747
        %v7624 = vpack.c.b16 %v6760, %v6748
        %v7625 = vpack.c.b16 %v6761, %v6749
        %v7626 = vpack.c.b16 %v6762, %v6750
        %v7627 = vpack.c.b16 %v6763, %v6751
        %v7628 = vpack.c.b16 %v6764, %v6752
        %v7629 = vpack.c.b16 %v6765, %v6753
        %v7630 = vpack.c.b16 %v6766, %v6754
        %v7631 = vpack.c.b16 %v6767, %v6755
        %v7632 = vpack.c.b16 %v6768, %v6756
        %v7633 = vpack.c.b16 %v6769, %v6757
        %v7634 = vpack.c.b16 %v6782, %v6770
        %v7635 = vpack.c.b16 %v6783, %v6771
        %v7636 = vpack.c.b16 %v6784, %v6772
        %v7637 = vpack.c.b16 %v6785, %v6773
        %v7638 = vpack.c.b16 %v6786, %v6774
        %v7639 = vpack.c.b16 %v6787, %v6775
        %v7640 = vpack.c.b16 %v6788, %v6776
        %v7641 = vpack.c.b16 %v6789, %v6777
        %v7642 = vpack.c.b16 %v6790, %v6778
        %v7643 = vpack.c.b16 %v6791, %v6779
        %v7644 = vpack.c.b16 %v6792, %v6780
        %v7645 = vpack.c.b16 %v6793, %v6781
        %v7646 = vpack.c.b16 %v6806, %v6794
        %v7647 = vpack.c.b16 %v6807, %v6795
        %v7648 = vpack.c.b16 %v6808, %v6796
        %v7649 = vpack.c.b16 %v6809, %v6797
        %v7650 = vpack.c.b16 %v6810, %v6798
        %v7651 = vpack.c.b16 %v6811, %v6799
        %v7652 = vpack.c.b16 %v6812, %v6800
        %v7653 = vpack.c.b16 %v6813, %v6801
        %v7654 = vpack.c.b16 %v6814, %v6802
        %v7655 = vpack.c.b16 %v6815, %v6803
        %v7656 = vpack.c.b16 %v6816, %v6804
        %v7657 = vpack.c.b16 %v6817, %v6805
        %v7658 = vpack.c.b16 %v6830, %v6818
        %v7659 = vpack.c.b16 %v6831, %v6819
        %v7660 = vpack.c.b16 %v6832, %v6820
        %v7661 = vpack.c.b16 %v6833, %v6821
        %v7662 = vpack.c.b16 %v6834, %v6822
        %v7663 = vpack.c.b16 %v6835, %v6823
        %v7664 = vpack.c.b16 %v6836, %v6824
        %v7665 = vpack.c.b16 %v6837, %v6825
        %v7666 = vpack.c.b16 %v6838, %v6826
        %v7667 = vpack.c.b16 %v6839, %v6827
        %v7668 = vpack.c.b16 %v6840, %v6828
        %v7669 = vpack.c.b16 %v6841, %v6829
        %v7670 = vpack.c.b16 %v6854, %v6842
        %v7671 = vpack.c.b16 %v6855, %v6843
        %v7672 = vpack.c.b16 %v6856, %v6844
        %v7673 = vpack.c.b16 %v6857, %v6845
        %v7674 = vpack.c.b16 %v6858, %v6846
        %v7675 = vpack.c.b16 %v6859, %v6847
        %v7676 = vpack.c.b16 %v6860, %v6848
        %v7677 = vpack.c.b16 %v6861, %v6849
        %v7678 = vpack.c.b16 %v6862, %v6850
        %v7679 = vpack.c.b16 %v6863, %v6851
        %v7680 = vpack.c.b16 %v6864, %v6852
        %v7681 = vpack.c.b16 %v6865, %v6853
        %v7682 = vpack.c.b16 %v6878, %v6866
        %v7683 = vpack.c.b16 %v6879, %v6867
        %v7684 = vpack.c.b16 %v6880, %v6868
        %v7685 = vpack.c.b16 %v6881, %v6869
        %v7686 = vpack.c.b16 %v6882, %v6870
        %v7687 = vpack.c.b16 %v6883, %v6871
        %v7688 = vpack.c.b16 %v6884, %v6872
        %v7689 = vpack.c.b16 %v6885, %v6873
        %v7690 = vpack.c.b16 %v6886, %v6874
        %v7691 = vpack.c.b16 %v6887, %v6875
        %v7692 = vpack.c.b16 %v6888, %v6876
        %v7693 = vpack.c.b16 %v6889, %v6877
        %v7694 = vpack.c.b16 %v6902, %v6890
        %v7695 = vpack.c.b16 %v6903, %v6891
        %v7696 = vpack.c.b16 %v6904, %v6892
        %v7697 = vpack.c.b16 %v6905, %v6893
        %v7698 = vpack.c.b16 %v6906, %v6894
        %v7699 = vpack.c.b16 %v6907, %v6895
        %v7700 = vpack.c.b16 %v6908, %v6896
        %v7701 = vpack.c.b16 %v6909, %v6897
        %v7702 = vpack.c.b16 %v6910, %v6898
        %v7703 = vpack.c.b16 %v6911, %v6899
        %v7704 = vpack.c.b16 %v6912, %v6900
        %v7705 = vpack.c.b16 %v6913, %v6901
        %v7706 = vpack.c.b16 %v6926, %v6914
        %v7707 = vpack.c.b16 %v6927, %v6915
        %v7708 = vpack.c.b16 %v6928, %v6916
        %v7709 = vpack.c.b16 %v6929, %v6917
        %v7710 = vpack.c.b16 %v6930, %v6918
        %v7711 = vpack.c.b16 %v6931, %v6919
        %v7712 = vpack.c.b16 %v6932, %v6920
        %v7713 = vpack.c.b16 %v6933, %v6921
        %v7714 = vpack.c.b16 %v6934, %v6922
        %v7715 = vpack.c.b16 %v6935, %v6923
        %v7716 = vpack.c.b16 %v6936, %v6924
        %v7717 = vpack.c.b16 %v6937, %v6925
        %v7718 = vpack.c.b16 %v6950, %v6938
        %v7719 = vpack.c.b16 %v6951, %v6939
        %v7720 = vpack.c.b16 %v6952, %v6940
        %v7721 = vpack.c.b16 %v6953, %v6941
        %v7722 = vpack.c.b16 %v6954, %v6942
        %v7723 = vpack.c.b16 %v6955, %v6943
        %v7724 = vpack.c.b16 %v6956, %v6944
        %v7725 = vpack.c.b16 %v6957, %v6945
        %v7726 = vpack.c.b16 %v6958, %v6946
        %v7727 = vpack.c.b16 %v6959, %v6947
        %v7728 = vpack.c.b16 %v6960, %v6948
        %v7729 = vpack.c.b16 %v6961, %v6949
        %8498 = vmatprep.subr.bf16.mxu0 %v7047
        %8499 = vmatpush1.bf16.msra.mxu0 %v7046
        %8500 = vmatprep.subr.bf16.mxu0 %v7035
        %8501 = vmatpush1.bf16.msra.mxu0 %v7034
        %8502 = vmatprep.subr.bf16.mxu0 %v7023
        %8503 = vmatpush1.bf16.msra.mxu0 %v7022
        %8504 = vmatprep.subr.bf16.mxu0 %v7011
        %8505 = vmatpush1.bf16.msra.mxu0 %v7010
        %8506 = vmatprep.subr.bf16.mxu0 %v6999
        %8507 = vmatpush1.bf16.msra.mxu0 %v6998
        %8508 = vmatprep.subr.bf16.mxu0 %v6987
        %8509 = vmatpush1.bf16.msra.mxu0 %v6986
        %8510 = vmatprep.subr.bf16.mxu0 %v6975
        %8511 = vmatpush1.bf16.msra.mxu0 %v6974
        %8512 = vmatprep.subr.bf16.mxu0 %v6963
        %8513 = vmatpush1.bf16.msra.mxu0 %v6962
        %8514 = vmatprep.subr.bf16.mxu0 %v7143
        %8515 = vmatpush2.bf16.msra.mxu0 %v7142
        %8516 = vmatprep.subr.bf16.mxu0 %v7131
        %8517 = vmatpush2.bf16.msra.mxu0 %v7130
        %8518 = vmatprep.subr.bf16.mxu0 %v7119
        %8519 = vmatpush2.bf16.msra.mxu0 %v7118
        %8520 = vmatprep.subr.bf16.mxu0 %v7107
        %8521 = vmatpush2.bf16.msra.mxu0 %v7106
        %8522 = vmatprep.subr.bf16.mxu0 %v7095
        %8523 = vmatpush2.bf16.msra.mxu0 %v7094
        %8524 = vmatprep.subr.bf16.mxu0 %v7083
        %8525 = vmatpush2.bf16.msra.mxu0 %v7082
        %8526 = vmatprep.subr.bf16.mxu0 %v7071
        %8527 = vmatpush2.bf16.msra.mxu0 %v7070
        %8528 = vmatprep.subr.bf16.mxu0 %v7059
        %8529 = vmatpush2.bf16.msra.mxu0 %v7058
        %8530 = vmatprep.mubr.bf16.mxu0 %v3883
        %8531 = vmatmul.mubr.bf16.gmra.mxu0 %v3882
        %v8532 = vpop.f32.mrf.mxu0
        %v8533 = vadd.f32 0.0, %v8532
        %v8534 = vpop.f32.mrf.mxu0
        %v8535 = vadd.f32 0.0, %v8534
        %v8536 = vpop.f32.mrf.mxu0
        %v8537 = vpop.f32.mrf.mxu0
        %8538 = vdwg.mxu0
        %8539 = vmatprep.subr.bf16.mxu0 %v7239
        %8540 = vmatpush1.bf16.msra.mxu0 %v7238
        %8541 = vmatprep.subr.bf16.mxu0 %v7227
        %8542 = vmatpush1.bf16.msra.mxu0 %v7226
        %8543 = vmatprep.subr.bf16.mxu0 %v7215
        %8544 = vmatpush1.bf16.msra.mxu0 %v7214
        %8545 = vmatprep.subr.bf16.mxu0 %v7203
        %8546 = vmatpush1.bf16.msra.mxu0 %v7202
        %8547 = vmatprep.subr.bf16.mxu0 %v7191
        %8548 = vmatpush1.bf16.msra.mxu0 %v7190
        %8549 = vmatprep.subr.bf16.mxu0 %v7179
        %8550 = vmatpush1.bf16.msra.mxu0 %v7178
        %8551 = vmatprep.subr.bf16.mxu0 %v7167
        %8552 = vmatpush1.bf16.msra.mxu0 %v7166
        %8553 = vmatprep.subr.bf16.mxu0 %v7155
        %8554 = vmatpush1.bf16.msra.mxu0 %v7154
        %8555 = vmatprep.subr.bf16.mxu0 %v7335
        %8556 = vmatpush2.bf16.msra.mxu0 %v7334
        %8557 = vmatprep.subr.bf16.mxu0 %v7323
        %8558 = vmatpush2.bf16.msra.mxu0 %v7322
        %8559 = vmatprep.subr.bf16.mxu0 %v7311
        %8560 = vmatpush2.bf16.msra.mxu0 %v7310
        %8561 = vmatprep.subr.bf16.mxu0 %v7299
        %8562 = vmatpush2.bf16.msra.mxu0 %v7298
        %8563 = vmatprep.subr.bf16.mxu0 %v7287
        %8564 = vmatpush2.bf16.msra.mxu0 %v7286
        %8565 = vmatprep.subr.bf16.mxu0 %v7275
        %8566 = vmatpush2.bf16.msra.mxu0 %v7274
        %8567 = vmatprep.subr.bf16.mxu0 %v7263
        %8568 = vmatpush2.bf16.msra.mxu0 %v7262
        %8569 = vmatprep.subr.bf16.mxu0 %v7251
        %8570 = vmatpush2.bf16.msra.mxu0 %v7250
        %8571 = vmatprep.mubr.bf16.mxu0 %v3885
        %8572 = vmatmul.mubr.bf16.gmra.mxu0 %v3884
        %v8573 = vpop.f32.mrf.mxu0
        %v8574 = vadd.f32 %v8533, %v8573
        %v8575 = vpop.f32.mrf.mxu0
        %v8576 = vadd.f32 %v8535, %v8575
        %v8577 = vpop.f32.mrf.mxu0
        %v8578 = vpop.f32.mrf.mxu0
        %8579 = vdwg.mxu0
        %8580 = vmatprep.subr.bf16.mxu0 %v7431
        %8581 = vmatpush1.bf16.msra.mxu0 %v7430
        %8582 = vmatprep.subr.bf16.mxu0 %v7419
        %8583 = vmatpush1.bf16.msra.mxu0 %v7418
        %8584 = vmatprep.subr.bf16.mxu0 %v7407
        %8585 = vmatpush1.bf16.msra.mxu0 %v7406
        %8586 = vmatprep.subr.bf16.mxu0 %v7395
        %8587 = vmatpush1.bf16.msra.mxu0 %v7394
        %8588 = vmatprep.subr.bf16.mxu0 %v7383
        %8589 = vmatpush1.bf16.msra.mxu0 %v7382
        %8590 = vmatprep.subr.bf16.mxu0 %v7371
        %8591 = vmatpush1.bf16.msra.mxu0 %v7370
        %8592 = vmatprep.subr.bf16.mxu0 %v7359
        %8593 = vmatpush1.bf16.msra.mxu0 %v7358
        %8594 = vmatprep.subr.bf16.mxu0 %v7347
        %8595 = vmatpush1.bf16.msra.mxu0 %v7346
        %8596 = vmatprep.subr.bf16.mxu0 %v7527
        %8597 = vmatpush2.bf16.msra.mxu0 %v7526
        %8598 = vmatprep.subr.bf16.mxu0 %v7515
        %8599 = vmatpush2.bf16.msra.mxu0 %v7514
        %8600 = vmatprep.subr.bf16.mxu0 %v7503
        %8601 = vmatpush2.bf16.msra.mxu0 %v7502
        %8602 = vmatprep.subr.bf16.mxu0 %v7491
        %8603 = vmatpush2.bf16.msra.mxu0 %v7490
        %8604 = vmatprep.subr.bf16.mxu0 %v7479
        %8605 = vmatpush2.bf16.msra.mxu0 %v7478
        %8606 = vmatprep.subr.bf16.mxu0 %v7467
        %8607 = vmatpush2.bf16.msra.mxu0 %v7466
        %8608 = vmatprep.subr.bf16.mxu0 %v7455
        %8609 = vmatpush2.bf16.msra.mxu0 %v7454
        %8610 = vmatprep.subr.bf16.mxu0 %v7443
        %8611 = vmatpush2.bf16.msra.mxu0 %v7442
        %8612 = vmatprep.mubr.bf16.mxu0 %v3887
        %8613 = vmatmul.mubr.bf16.gmra.mxu0 %v3886
        %v8614 = vpop.f32.mrf.mxu0
        %v8615 = vadd.f32 %v8574, %v8614
        %v8616 = vpop.f32.mrf.mxu0
        %v8617 = vadd.f32 %v8576, %v8616
        %v8618 = vpop.f32.mrf.mxu0
        %v8619 = vpop.f32.mrf.mxu0
        %8620 = vdwg.mxu0
        %8621 = vmatprep.subr.bf16.mxu0 %v7623
        %8622 = vmatpush1.bf16.msra.mxu0 %v7622
        %8623 = vmatprep.subr.bf16.mxu0 %v7611
        %8624 = vmatpush1.bf16.msra.mxu0 %v7610
        %8625 = vmatprep.subr.bf16.mxu0 %v7599
        %8626 = vmatpush1.bf16.msra.mxu0 %v7598
        %8627 = vmatprep.subr.bf16.mxu0 %v7587
        %8628 = vmatpush1.bf16.msra.mxu0 %v7586
        %8629 = vmatprep.subr.bf16.mxu0 %v7575
        %8630 = vmatpush1.bf16.msra.mxu0 %v7574
        %8631 = vmatprep.subr.bf16.mxu0 %v7563
        %8632 = vmatpush1.bf16.msra.mxu0 %v7562
        %8633 = vmatprep.subr.bf16.mxu0 %v7551
        %8634 = vmatpush1.bf16.msra.mxu0 %v7550
        %8635 = vmatprep.subr.bf16.mxu0 %v7539
        %8636 = vmatpush1.bf16.msra.mxu0 %v7538
        %8637 = vmatprep.subr.bf16.mxu0 %v7719
        %8638 = vmatpush2.bf16.msra.mxu0 %v7718
        %8639 = vmatprep.subr.bf16.mxu0 %v7707
        %8640 = vmatpush2.bf16.msra.mxu0 %v7706
        %8641 = vmatprep.subr.bf16.mxu0 %v7695
        %8642 = vmatpush2.bf16.msra.mxu0 %v7694
        %8643 = vmatprep.subr.bf16.mxu0 %v7683
        %8644 = vmatpush2.bf16.msra.mxu0 %v7682
        %8645 = vmatprep.subr.bf16.mxu0 %v7671
        %8646 = vmatpush2.bf16.msra.mxu0 %v7670
        %8647 = vmatprep.subr.bf16.mxu0 %v7659
        %8648 = vmatpush2.bf16.msra.mxu0 %v7658
        %8649 = vmatprep.subr.bf16.mxu0 %v7647
        %8650 = vmatpush2.bf16.msra.mxu0 %v7646
        %8651 = vmatprep.subr.bf16.mxu0 %v7635
        %8652 = vmatpush2.bf16.msra.mxu0 %v7634
        %8653 = vmatprep.mubr.bf16.mxu0 %v3889
        %8654 = vmatmul.mubr.bf16.gmra.mxu0 %v3888
        %v8655 = vpop.f32.mrf.mxu0
        %v8656 = vadd.f32 %v8615, %v8655
        %v8657 = vpop.f32.mrf.mxu0
        %v8658 = vadd.f32 %v8617, %v8657
        %v8659 = vpop.f32.mrf.mxu0
        %v8660 = vpop.f32.mrf.mxu0
        %8661 = vdwg.mxu0
        %8662 = vmatprep.subr.bf16.mxu0 %v7049
        %8663 = vmatpush1.bf16.msra.mxu0 %v7048
        %8664 = vmatprep.subr.bf16.mxu0 %v7037
        %8665 = vmatpush1.bf16.msra.mxu0 %v7036
        %8666 = vmatprep.subr.bf16.mxu0 %v7025
        %8667 = vmatpush1.bf16.msra.mxu0 %v7024
        %8668 = vmatprep.subr.bf16.mxu0 %v7013
        %8669 = vmatpush1.bf16.msra.mxu0 %v7012
        %8670 = vmatprep.subr.bf16.mxu0 %v7001
        %8671 = vmatpush1.bf16.msra.mxu0 %v7000
        %8672 = vmatprep.subr.bf16.mxu0 %v6989
        %8673 = vmatpush1.bf16.msra.mxu0 %v6988
        %8674 = vmatprep.subr.bf16.mxu0 %v6977
        %8675 = vmatpush1.bf16.msra.mxu0 %v6976
        %8676 = vmatprep.subr.bf16.mxu0 %v6965
        %8677 = vmatpush1.bf16.msra.mxu0 %v6964
        %8678 = vmatprep.subr.bf16.mxu0 %v7145
        %8679 = vmatpush2.bf16.msra.mxu0 %v7144
        %8680 = vmatprep.subr.bf16.mxu0 %v7133
        %8681 = vmatpush2.bf16.msra.mxu0 %v7132
        %8682 = vmatprep.subr.bf16.mxu0 %v7121
        %8683 = vmatpush2.bf16.msra.mxu0 %v7120
        %8684 = vmatprep.subr.bf16.mxu0 %v7109
        %8685 = vmatpush2.bf16.msra.mxu0 %v7108
        %8686 = vmatprep.subr.bf16.mxu0 %v7097
        %8687 = vmatpush2.bf16.msra.mxu0 %v7096
        %8688 = vmatprep.subr.bf16.mxu0 %v7085
        %8689 = vmatpush2.bf16.msra.mxu0 %v7084
        %8690 = vmatprep.subr.bf16.mxu0 %v7073
        %8691 = vmatpush2.bf16.msra.mxu0 %v7072
        %8692 = vmatprep.subr.bf16.mxu0 %v7061
        %8693 = vmatpush2.bf16.msra.mxu0 %v7060
        %8694 = vmatprep.mubr.bf16.mxu0 %v3883
        %8695 = vmatmul.mubr.bf16.gmra.mxu0 %v3882
        %v8696 = vpop.f32.mrf.mxu0
        %v8697 = vadd.f32 0.0, %v8696
        %v8698 = vpop.f32.mrf.mxu0
        %v8699 = vadd.f32 0.0, %v8698
        %v8700 = vpop.f32.mrf.mxu0
        %v8701 = vpop.f32.mrf.mxu0
        %8702 = vdwg.mxu0
        %8703 = vmatprep.subr.bf16.mxu0 %v7241
        %8704 = vmatpush1.bf16.msra.mxu0 %v7240
        %8705 = vmatprep.subr.bf16.mxu0 %v7229
        %8706 = vmatpush1.bf16.msra.mxu0 %v7228
        %8707 = vmatprep.subr.bf16.mxu0 %v7217
        %8708 = vmatpush1.bf16.msra.mxu0 %v7216
        %8709 = vmatprep.subr.bf16.mxu0 %v7205
        %8710 = vmatpush1.bf16.msra.mxu0 %v7204
        %8711 = vmatprep.subr.bf16.mxu0 %v7193
        %8712 = vmatpush1.bf16.msra.mxu0 %v7192
        %8713 = vmatprep.subr.bf16.mxu0 %v7181
        %8714 = vmatpush1.bf16.msra.mxu0 %v7180
        %8715 = vmatprep.subr.bf16.mxu0 %v7169
        %8716 = vmatpush1.bf16.msra.mxu0 %v7168
        %8717 = vmatprep.subr.bf16.mxu0 %v7157
        %8718 = vmatpush1.bf16.msra.mxu0 %v7156
        %8719 = vmatprep.subr.bf16.mxu0 %v7337
        %8720 = vmatpush2.bf16.msra.mxu0 %v7336
        %8721 = vmatprep.subr.bf16.mxu0 %v7325
        %8722 = vmatpush2.bf16.msra.mxu0 %v7324
        %8723 = vmatprep.subr.bf16.mxu0 %v7313
        %8724 = vmatpush2.bf16.msra.mxu0 %v7312
        %8725 = vmatprep.subr.bf16.mxu0 %v7301
        %8726 = vmatpush2.bf16.msra.mxu0 %v7300
        %8727 = vmatprep.subr.bf16.mxu0 %v7289
        %8728 = vmatpush2.bf16.msra.mxu0 %v7288
        %8729 = vmatprep.subr.bf16.mxu0 %v7277
        %8730 = vmatpush2.bf16.msra.mxu0 %v7276
        %8731 = vmatprep.subr.bf16.mxu0 %v7265
        %8732 = vmatpush2.bf16.msra.mxu0 %v7264
        %8733 = vmatprep.subr.bf16.mxu0 %v7253
        %8734 = vmatpush2.bf16.msra.mxu0 %v7252
        %8735 = vmatprep.mubr.bf16.mxu0 %v3885
        %8736 = vmatmul.mubr.bf16.gmra.mxu0 %v3884
        %v8737 = vpop.f32.mrf.mxu0
        %v8738 = vadd.f32 %v8697, %v8737
        %v8739 = vpop.f32.mrf.mxu0
        %v8740 = vadd.f32 %v8699, %v8739
        %v8741 = vpop.f32.mrf.mxu0
        %v8742 = vpop.f32.mrf.mxu0
        %8743 = vdwg.mxu0
        %8744 = vmatprep.subr.bf16.mxu0 %v7433
        %8745 = vmatpush1.bf16.msra.mxu0 %v7432
        %8746 = vmatprep.subr.bf16.mxu0 %v7421
        %8747 = vmatpush1.bf16.msra.mxu0 %v7420
        %8748 = vmatprep.subr.bf16.mxu0 %v7409
        %8749 = vmatpush1.bf16.msra.mxu0 %v7408
        %8750 = vmatprep.subr.bf16.mxu0 %v7397
        %8751 = vmatpush1.bf16.msra.mxu0 %v7396
        %8752 = vmatprep.subr.bf16.mxu0 %v7385
        %8753 = vmatpush1.bf16.msra.mxu0 %v7384
        %8754 = vmatprep.subr.bf16.mxu0 %v7373
        %8755 = vmatpush1.bf16.msra.mxu0 %v7372
        %8756 = vmatprep.subr.bf16.mxu0 %v7361
        %8757 = vmatpush1.bf16.msra.mxu0 %v7360
        %8758 = vmatprep.subr.bf16.mxu0 %v7349
        %8759 = vmatpush1.bf16.msra.mxu0 %v7348
        %8760 = vmatprep.subr.bf16.mxu0 %v7529
        %8761 = vmatpush2.bf16.msra.mxu0 %v7528
        %8762 = vmatprep.subr.bf16.mxu0 %v7517
        %8763 = vmatpush2.bf16.msra.mxu0 %v7516
        %8764 = vmatprep.subr.bf16.mxu0 %v7505
        %8765 = vmatpush2.bf16.msra.mxu0 %v7504
        %8766 = vmatprep.subr.bf16.mxu0 %v7493
        %8767 = vmatpush2.bf16.msra.mxu0 %v7492
        %8768 = vmatprep.subr.bf16.mxu0 %v7481
        %8769 = vmatpush2.bf16.msra.mxu0 %v7480
        %8770 = vmatprep.subr.bf16.mxu0 %v7469
        %8771 = vmatpush2.bf16.msra.mxu0 %v7468
        %8772 = vmatprep.subr.bf16.mxu0 %v7457
        %8773 = vmatpush2.bf16.msra.mxu0 %v7456
        %8774 = vmatprep.subr.bf16.mxu0 %v7445
        %8775 = vmatpush2.bf16.msra.mxu0 %v7444
        %8776 = vmatprep.mubr.bf16.mxu0 %v3887
        %8777 = vmatmul.mubr.bf16.gmra.mxu0 %v3886
        %v8778 = vpop.f32.mrf.mxu0
        %v8779 = vadd.f32 %v8738, %v8778
        %v8780 = vpop.f32.mrf.mxu0
        %v8781 = vadd.f32 %v8740, %v8780
        %v8782 = vpop.f32.mrf.mxu0
        %v8783 = vpop.f32.mrf.mxu0
        %8784 = vdwg.mxu0
        %8785 = vmatprep.subr.bf16.mxu0 %v7625
        %8786 = vmatpush1.bf16.msra.mxu0 %v7624
        %8787 = vmatprep.subr.bf16.mxu0 %v7613
        %8788 = vmatpush1.bf16.msra.mxu0 %v7612
        %8789 = vmatprep.subr.bf16.mxu0 %v7601
        %8790 = vmatpush1.bf16.msra.mxu0 %v7600
        %8791 = vmatprep.subr.bf16.mxu0 %v7589
        %8792 = vmatpush1.bf16.msra.mxu0 %v7588
        %8793 = vmatprep.subr.bf16.mxu0 %v7577
        %8794 = vmatpush1.bf16.msra.mxu0 %v7576
        %8795 = vmatprep.subr.bf16.mxu0 %v7565
        %8796 = vmatpush1.bf16.msra.mxu0 %v7564
        %8797 = vmatprep.subr.bf16.mxu0 %v7553
        %8798 = vmatpush1.bf16.msra.mxu0 %v7552
        %8799 = vmatprep.subr.bf16.mxu0 %v7541
        %8800 = vmatpush1.bf16.msra.mxu0 %v7540
        %8801 = vmatprep.subr.bf16.mxu0 %v7721
        %8802 = vmatpush2.bf16.msra.mxu0 %v7720
        %8803 = vmatprep.subr.bf16.mxu0 %v7709
        %8804 = vmatpush2.bf16.msra.mxu0 %v7708
        %8805 = vmatprep.subr.bf16.mxu0 %v7697
        %8806 = vmatpush2.bf16.msra.mxu0 %v7696
        %8807 = vmatprep.subr.bf16.mxu0 %v7685
        %8808 = vmatpush2.bf16.msra.mxu0 %v7684
        %8809 = vmatprep.subr.bf16.mxu0 %v7673
        %8810 = vmatpush2.bf16.msra.mxu0 %v7672
        %8811 = vmatprep.subr.bf16.mxu0 %v7661
        %8812 = vmatpush2.bf16.msra.mxu0 %v7660
        %8813 = vmatprep.subr.bf16.mxu0 %v7649
        %8814 = vmatpush2.bf16.msra.mxu0 %v7648
        %8815 = vmatprep.subr.bf16.mxu0 %v7637
        %8816 = vmatpush2.bf16.msra.mxu0 %v7636
        %8817 = vmatprep.mubr.bf16.mxu0 %v3889
        %8818 = vmatmul.mubr.bf16.gmra.mxu0 %v3888
        %v8819 = vpop.f32.mrf.mxu0
        %v8820 = vadd.f32 %v8779, %v8819
        %v8821 = vpop.f32.mrf.mxu0
        %v8822 = vadd.f32 %v8781, %v8821
        %v8823 = vpop.f32.mrf.mxu0
        %v8824 = vpop.f32.mrf.mxu0
        %8825 = vdwg.mxu0
        %8826 = vmatprep.subr.bf16.mxu0 %v7051
        %8827 = vmatpush1.bf16.msra.mxu0 %v7050
        %8828 = vmatprep.subr.bf16.mxu0 %v7039
        %8829 = vmatpush1.bf16.msra.mxu0 %v7038
        %8830 = vmatprep.subr.bf16.mxu0 %v7027
        %8831 = vmatpush1.bf16.msra.mxu0 %v7026
        %8832 = vmatprep.subr.bf16.mxu0 %v7015
        %8833 = vmatpush1.bf16.msra.mxu0 %v7014
        %8834 = vmatprep.subr.bf16.mxu0 %v7003
        %8835 = vmatpush1.bf16.msra.mxu0 %v7002
        %8836 = vmatprep.subr.bf16.mxu0 %v6991
        %8837 = vmatpush1.bf16.msra.mxu0 %v6990
        %8838 = vmatprep.subr.bf16.mxu0 %v6979
        %8839 = vmatpush1.bf16.msra.mxu0 %v6978
        %8840 = vmatprep.subr.bf16.mxu0 %v6967
        %8841 = vmatpush1.bf16.msra.mxu0 %v6966
        %8842 = vmatprep.subr.bf16.mxu0 %v7147
        %8843 = vmatpush2.bf16.msra.mxu0 %v7146
        %8844 = vmatprep.subr.bf16.mxu0 %v7135
        %8845 = vmatpush2.bf16.msra.mxu0 %v7134
        %8846 = vmatprep.subr.bf16.mxu0 %v7123
        %8847 = vmatpush2.bf16.msra.mxu0 %v7122
        %8848 = vmatprep.subr.bf16.mxu0 %v7111
        %8849 = vmatpush2.bf16.msra.mxu0 %v7110
        %8850 = vmatprep.subr.bf16.mxu0 %v7099
        %8851 = vmatpush2.bf16.msra.mxu0 %v7098
        %8852 = vmatprep.subr.bf16.mxu0 %v7087
        %8853 = vmatpush2.bf16.msra.mxu0 %v7086
        %8854 = vmatprep.subr.bf16.mxu0 %v7075
        %8855 = vmatpush2.bf16.msra.mxu0 %v7074
        %8856 = vmatprep.subr.bf16.mxu0 %v7063
        %8857 = vmatpush2.bf16.msra.mxu0 %v7062
        %8858 = vmatprep.mubr.bf16.mxu0 %v3883
        %8859 = vmatmul.mubr.bf16.gmra.mxu0 %v3882
        %v8860 = vpop.f32.mrf.mxu0
        %v8861 = vadd.f32 0.0, %v8860
        %v8862 = vpop.f32.mrf.mxu0
        %v8863 = vadd.f32 0.0, %v8862
        %v8864 = vpop.f32.mrf.mxu0
        %v8865 = vpop.f32.mrf.mxu0
        %8866 = vdwg.mxu0
        %8867 = vmatprep.subr.bf16.mxu0 %v7243
        %8868 = vmatpush1.bf16.msra.mxu0 %v7242
        %8869 = vmatprep.subr.bf16.mxu0 %v7231
        %8870 = vmatpush1.bf16.msra.mxu0 %v7230
        %8871 = vmatprep.subr.bf16.mxu0 %v7219
        %8872 = vmatpush1.bf16.msra.mxu0 %v7218
        %8873 = vmatprep.subr.bf16.mxu0 %v7207
        %8874 = vmatpush1.bf16.msra.mxu0 %v7206
        %8875 = vmatprep.subr.bf16.mxu0 %v7195
        %8876 = vmatpush1.bf16.msra.mxu0 %v7194
        %8877 = vmatprep.subr.bf16.mxu0 %v7183
        %8878 = vmatpush1.bf16.msra.mxu0 %v7182
        %8879 = vmatprep.subr.bf16.mxu0 %v7171
        %8880 = vmatpush1.bf16.msra.mxu0 %v7170
        %8881 = vmatprep.subr.bf16.mxu0 %v7159
        %8882 = vmatpush1.bf16.msra.mxu0 %v7158
        %8883 = vmatprep.subr.bf16.mxu0 %v7339
        %8884 = vmatpush2.bf16.msra.mxu0 %v7338
        %8885 = vmatprep.subr.bf16.mxu0 %v7327
        %8886 = vmatpush2.bf16.msra.mxu0 %v7326
        %8887 = vmatprep.subr.bf16.mxu0 %v7315
        %8888 = vmatpush2.bf16.msra.mxu0 %v7314
        %8889 = vmatprep.subr.bf16.mxu0 %v7303
        %8890 = vmatpush2.bf16.msra.mxu0 %v7302
        %8891 = vmatprep.subr.bf16.mxu0 %v7291
        %8892 = vmatpush2.bf16.msra.mxu0 %v7290
        %8893 = vmatprep.subr.bf16.mxu0 %v7279
        %8894 = vmatpush2.bf16.msra.mxu0 %v7278
        %8895 = vmatprep.subr.bf16.mxu0 %v7267
        %8896 = vmatpush2.bf16.msra.mxu0 %v7266
        %8897 = vmatprep.subr.bf16.mxu0 %v7255
        %8898 = vmatpush2.bf16.msra.mxu0 %v7254
        %8899 = vmatprep.mubr.bf16.mxu0 %v3885
        %8900 = vmatmul.mubr.bf16.gmra.mxu0 %v3884
        %v8901 = vpop.f32.mrf.mxu0
        %v8902 = vadd.f32 %v8861, %v8901
        %v8903 = vpop.f32.mrf.mxu0
        %v8904 = vadd.f32 %v8863, %v8903
        %v8905 = vpop.f32.mrf.mxu0
        %v8906 = vpop.f32.mrf.mxu0
        %8907 = vdwg.mxu0
        %8908 = vmatprep.subr.bf16.mxu0 %v7435
        %8909 = vmatpush1.bf16.msra.mxu0 %v7434
        %8910 = vmatprep.subr.bf16.mxu0 %v7423
        %8911 = vmatpush1.bf16.msra.mxu0 %v7422
        %8912 = vmatprep.subr.bf16.mxu0 %v7411
        %8913 = vmatpush1.bf16.msra.mxu0 %v7410
        %8914 = vmatprep.subr.bf16.mxu0 %v7399
        %8915 = vmatpush1.bf16.msra.mxu0 %v7398
        %8916 = vmatprep.subr.bf16.mxu0 %v7387
        %8917 = vmatpush1.bf16.msra.mxu0 %v7386
        %8918 = vmatprep.subr.bf16.mxu0 %v7375
        %8919 = vmatpush1.bf16.msra.mxu0 %v7374
        %8920 = vmatprep.subr.bf16.mxu0 %v7363
        %8921 = vmatpush1.bf16.msra.mxu0 %v7362
        %8922 = vmatprep.subr.bf16.mxu0 %v7351
        %8923 = vmatpush1.bf16.msra.mxu0 %v7350
        %8924 = vmatprep.subr.bf16.mxu0 %v7531
        %8925 = vmatpush2.bf16.msra.mxu0 %v7530
        %8926 = vmatprep.subr.bf16.mxu0 %v7519
        %8927 = vmatpush2.bf16.msra.mxu0 %v7518
        %8928 = vmatprep.subr.bf16.mxu0 %v7507
        %8929 = vmatpush2.bf16.msra.mxu0 %v7506
        %8930 = vmatprep.subr.bf16.mxu0 %v7495
        %8931 = vmatpush2.bf16.msra.mxu0 %v7494
        %8932 = vmatprep.subr.bf16.mxu0 %v7483
        %8933 = vmatpush2.bf16.msra.mxu0 %v7482
        %8934 = vmatprep.subr.bf16.mxu0 %v7471
        %8935 = vmatpush2.bf16.msra.mxu0 %v7470
        %8936 = vmatprep.subr.bf16.mxu0 %v7459
        %8937 = vmatpush2.bf16.msra.mxu0 %v7458
        %8938 = vmatprep.subr.bf16.mxu0 %v7447
        %8939 = vmatpush2.bf16.msra.mxu0 %v7446
        %8940 = vmatprep.mubr.bf16.mxu0 %v3887
        %8941 = vmatmul.mubr.bf16.gmra.mxu0 %v3886
        %v8942 = vpop.f32.mrf.mxu0
        %v8943 = vadd.f32 %v8902, %v8942
        %v8944 = vpop.f32.mrf.mxu0
        %v8945 = vadd.f32 %v8904, %v8944
        %v8946 = vpop.f32.mrf.mxu0
        %v8947 = vpop.f32.mrf.mxu0
        %8948 = vdwg.mxu0
        %8949 = vmatprep.subr.bf16.mxu0 %v7627
        %8950 = vmatpush1.bf16.msra.mxu0 %v7626
        %8951 = vmatprep.subr.bf16.mxu0 %v7615
        %8952 = vmatpush1.bf16.msra.mxu0 %v7614
        %8953 = vmatprep.subr.bf16.mxu0 %v7603
        %8954 = vmatpush1.bf16.msra.mxu0 %v7602
        %8955 = vmatprep.subr.bf16.mxu0 %v7591
        %8956 = vmatpush1.bf16.msra.mxu0 %v7590
        %8957 = vmatprep.subr.bf16.mxu0 %v7579
        %8958 = vmatpush1.bf16.msra.mxu0 %v7578
        %8959 = vmatprep.subr.bf16.mxu0 %v7567
        %8960 = vmatpush1.bf16.msra.mxu0 %v7566
        %8961 = vmatprep.subr.bf16.mxu0 %v7555
        %8962 = vmatpush1.bf16.msra.mxu0 %v7554
        %8963 = vmatprep.subr.bf16.mxu0 %v7543
        %8964 = vmatpush1.bf16.msra.mxu0 %v7542
        %8965 = vmatprep.subr.bf16.mxu0 %v7723
        %8966 = vmatpush2.bf16.msra.mxu0 %v7722
        %8967 = vmatprep.subr.bf16.mxu0 %v7711
        %8968 = vmatpush2.bf16.msra.mxu0 %v7710
        %8969 = vmatprep.subr.bf16.mxu0 %v7699
        %8970 = vmatpush2.bf16.msra.mxu0 %v7698
        %8971 = vmatprep.subr.bf16.mxu0 %v7687
        %8972 = vmatpush2.bf16.msra.mxu0 %v7686
        %8973 = vmatprep.subr.bf16.mxu0 %v7675
        %8974 = vmatpush2.bf16.msra.mxu0 %v7674
        %8975 = vmatprep.subr.bf16.mxu0 %v7663
        %8976 = vmatpush2.bf16.msra.mxu0 %v7662
        %8977 = vmatprep.subr.bf16.mxu0 %v7651
        %8978 = vmatpush2.bf16.msra.mxu0 %v7650
        %8979 = vmatprep.subr.bf16.mxu0 %v7639
        %8980 = vmatpush2.bf16.msra.mxu0 %v7638
        %8981 = vmatprep.mubr.bf16.mxu0 %v3889
        %8982 = vmatmul.mubr.bf16.gmra.mxu0 %v3888
        %v8983 = vpop.f32.mrf.mxu0
        %v8984 = vadd.f32 %v8943, %v8983
        %v8985 = vpop.f32.mrf.mxu0
        %v8986 = vadd.f32 %v8945, %v8985
        %v8987 = vpop.f32.mrf.mxu0
        %v8988 = vpop.f32.mrf.mxu0
        %8989 = vdwg.mxu0
        %8990 = vmatprep.subr.bf16.mxu0 %v7053
        %8991 = vmatpush1.bf16.msra.mxu0 %v7052
        %8992 = vmatprep.subr.bf16.mxu0 %v7041
        %8993 = vmatpush1.bf16.msra.mxu0 %v7040
        %8994 = vmatprep.subr.bf16.mxu0 %v7029
        %8995 = vmatpush1.bf16.msra.mxu0 %v7028
        %8996 = vmatprep.subr.bf16.mxu0 %v7017
        %8997 = vmatpush1.bf16.msra.mxu0 %v7016
        %8998 = vmatprep.subr.bf16.mxu0 %v7005
        %8999 = vmatpush1.bf16.msra.mxu0 %v7004
        %9000 = vmatprep.subr.bf16.mxu0 %v6993
        %9001 = vmatpush1.bf16.msra.mxu0 %v6992
        %9002 = vmatprep.subr.bf16.mxu0 %v6981
        %9003 = vmatpush1.bf16.msra.mxu0 %v6980
        %9004 = vmatprep.subr.bf16.mxu0 %v6969
        %9005 = vmatpush1.bf16.msra.mxu0 %v6968
        %9006 = vmatprep.subr.bf16.mxu0 %v7149
        %9007 = vmatpush2.bf16.msra.mxu0 %v7148
        %9008 = vmatprep.subr.bf16.mxu0 %v7137
        %9009 = vmatpush2.bf16.msra.mxu0 %v7136
        %9010 = vmatprep.subr.bf16.mxu0 %v7125
        %9011 = vmatpush2.bf16.msra.mxu0 %v7124
        %9012 = vmatprep.subr.bf16.mxu0 %v7113
        %9013 = vmatpush2.bf16.msra.mxu0 %v7112
        %9014 = vmatprep.subr.bf16.mxu0 %v7101
        %9015 = vmatpush2.bf16.msra.mxu0 %v7100
        %9016 = vmatprep.subr.bf16.mxu0 %v7089
        %9017 = vmatpush2.bf16.msra.mxu0 %v7088
        %9018 = vmatprep.subr.bf16.mxu0 %v7077
        %9019 = vmatpush2.bf16.msra.mxu0 %v7076
        %9020 = vmatprep.subr.bf16.mxu0 %v7065
        %9021 = vmatpush2.bf16.msra.mxu0 %v7064
        %9022 = vmatprep.mubr.bf16.mxu0 %v3883
        %9023 = vmatmul.mubr.bf16.gmra.mxu0 %v3882
        %v9024 = vpop.f32.mrf.mxu0
        %v9025 = vadd.f32 0.0, %v9024
        %v9026 = vpop.f32.mrf.mxu0
        %v9027 = vadd.f32 0.0, %v9026
        %v9028 = vpop.f32.mrf.mxu0
        %v9029 = vpop.f32.mrf.mxu0
        %9030 = vdwg.mxu0
        %9031 = vmatprep.subr.bf16.mxu0 %v7245
        %9032 = vmatpush1.bf16.msra.mxu0 %v7244
        %9033 = vmatprep.subr.bf16.mxu0 %v7233
        %9034 = vmatpush1.bf16.msra.mxu0 %v7232
        %9035 = vmatprep.subr.bf16.mxu0 %v7221
        %9036 = vmatpush1.bf16.msra.mxu0 %v7220
        %9037 = vmatprep.subr.bf16.mxu0 %v7209
        %9038 = vmatpush1.bf16.msra.mxu0 %v7208
        %9039 = vmatprep.subr.bf16.mxu0 %v7197
        %9040 = vmatpush1.bf16.msra.mxu0 %v7196
        %9041 = vmatprep.subr.bf16.mxu0 %v7185
        %9042 = vmatpush1.bf16.msra.mxu0 %v7184
        %9043 = vmatprep.subr.bf16.mxu0 %v7173
        %9044 = vmatpush1.bf16.msra.mxu0 %v7172
        %9045 = vmatprep.subr.bf16.mxu0 %v7161
        %9046 = vmatpush1.bf16.msra.mxu0 %v7160
        %9047 = vmatprep.subr.bf16.mxu0 %v7341
        %9048 = vmatpush2.bf16.msra.mxu0 %v7340
        %9049 = vmatprep.subr.bf16.mxu0 %v7329
        %9050 = vmatpush2.bf16.msra.mxu0 %v7328
        %9051 = vmatprep.subr.bf16.mxu0 %v7317
        %9052 = vmatpush2.bf16.msra.mxu0 %v7316
        %9053 = vmatprep.subr.bf16.mxu0 %v7305
        %9054 = vmatpush2.bf16.msra.mxu0 %v7304
        %9055 = vmatprep.subr.bf16.mxu0 %v7293
        %9056 = vmatpush2.bf16.msra.mxu0 %v7292
        %9057 = vmatprep.subr.bf16.mxu0 %v7281
        %9058 = vmatpush2.bf16.msra.mxu0 %v7280
        %9059 = vmatprep.subr.bf16.mxu0 %v7269
        %9060 = vmatpush2.bf16.msra.mxu0 %v7268
        %9061 = vmatprep.subr.bf16.mxu0 %v7257
        %9062 = vmatpush2.bf16.msra.mxu0 %v7256
        %9063 = vmatprep.mubr.bf16.mxu0 %v3885
        %9064 = vmatmul.mubr.bf16.gmra.mxu0 %v3884
        %v9065 = vpop.f32.mrf.mxu0
        %v9066 = vadd.f32 %v9025, %v9065
        %v9067 = vpop.f32.mrf.mxu0
        %v9068 = vadd.f32 %v9027, %v9067
        %v9069 = vpop.f32.mrf.mxu0
        %v9070 = vpop.f32.mrf.mxu0
        %9071 = vdwg.mxu0
        %9072 = vmatprep.subr.bf16.mxu0 %v7437
        %9073 = vmatpush1.bf16.msra.mxu0 %v7436
        %9074 = vmatprep.subr.bf16.mxu0 %v7425
        %9075 = vmatpush1.bf16.msra.mxu0 %v7424
        %9076 = vmatprep.subr.bf16.mxu0 %v7413
        %9077 = vmatpush1.bf16.msra.mxu0 %v7412
        %9078 = vmatprep.subr.bf16.mxu0 %v7401
        %9079 = vmatpush1.bf16.msra.mxu0 %v7400
        %9080 = vmatprep.subr.bf16.mxu0 %v7389
        %9081 = vmatpush1.bf16.msra.mxu0 %v7388
        %9082 = vmatprep.subr.bf16.mxu0 %v7377
        %9083 = vmatpush1.bf16.msra.mxu0 %v7376
        %9084 = vmatprep.subr.bf16.mxu0 %v7365
        %9085 = vmatpush1.bf16.msra.mxu0 %v7364
        %9086 = vmatprep.subr.bf16.mxu0 %v7353
        %9087 = vmatpush1.bf16.msra.mxu0 %v7352
        %9088 = vmatprep.subr.bf16.mxu0 %v7533
        %9089 = vmatpush2.bf16.msra.mxu0 %v7532
        %9090 = vmatprep.subr.bf16.mxu0 %v7521
        %9091 = vmatpush2.bf16.msra.mxu0 %v7520
        %9092 = vmatprep.subr.bf16.mxu0 %v7509
        %9093 = vmatpush2.bf16.msra.mxu0 %v7508
        %9094 = vmatprep.subr.bf16.mxu0 %v7497
        %9095 = vmatpush2.bf16.msra.mxu0 %v7496
        %9096 = vmatprep.subr.bf16.mxu0 %v7485
        %9097 = vmatpush2.bf16.msra.mxu0 %v7484
        %9098 = vmatprep.subr.bf16.mxu0 %v7473
        %9099 = vmatpush2.bf16.msra.mxu0 %v7472
        %9100 = vmatprep.subr.bf16.mxu0 %v7461
        %9101 = vmatpush2.bf16.msra.mxu0 %v7460
        %9102 = vmatprep.subr.bf16.mxu0 %v7449
        %9103 = vmatpush2.bf16.msra.mxu0 %v7448
        %9104 = vmatprep.mubr.bf16.mxu0 %v3887
        %9105 = vmatmul.mubr.bf16.gmra.mxu0 %v3886
        %v9106 = vpop.f32.mrf.mxu0
        %v9107 = vadd.f32 %v9066, %v9106
        %v9108 = vpop.f32.mrf.mxu0
        %v9109 = vadd.f32 %v9068, %v9108
        %v9110 = vpop.f32.mrf.mxu0
        %v9111 = vpop.f32.mrf.mxu0
        %9112 = vdwg.mxu0
        %9113 = vmatprep.subr.bf16.mxu0 %v7629
        %9114 = vmatpush1.bf16.msra.mxu0 %v7628
        %9115 = vmatprep.subr.bf16.mxu0 %v7617
        %9116 = vmatpush1.bf16.msra.mxu0 %v7616
        %9117 = vmatprep.subr.bf16.mxu0 %v7605
        %9118 = vmatpush1.bf16.msra.mxu0 %v7604
        %9119 = vmatprep.subr.bf16.mxu0 %v7593
        %9120 = vmatpush1.bf16.msra.mxu0 %v7592
        %9121 = vmatprep.subr.bf16.mxu0 %v7581
        %9122 = vmatpush1.bf16.msra.mxu0 %v7580
        %9123 = vmatprep.subr.bf16.mxu0 %v7569
        %9124 = vmatpush1.bf16.msra.mxu0 %v7568
        %9125 = vmatprep.subr.bf16.mxu0 %v7557
        %9126 = vmatpush1.bf16.msra.mxu0 %v7556
        %9127 = vmatprep.subr.bf16.mxu0 %v7545
        %9128 = vmatpush1.bf16.msra.mxu0 %v7544
        %9129 = vmatprep.subr.bf16.mxu0 %v7725
        %9130 = vmatpush2.bf16.msra.mxu0 %v7724
        %9131 = vmatprep.subr.bf16.mxu0 %v7713
        %9132 = vmatpush2.bf16.msra.mxu0 %v7712
        %9133 = vmatprep.subr.bf16.mxu0 %v7701
        %9134 = vmatpush2.bf16.msra.mxu0 %v7700
        %9135 = vmatprep.subr.bf16.mxu0 %v7689
        %9136 = vmatpush2.bf16.msra.mxu0 %v7688
        %9137 = vmatprep.subr.bf16.mxu0 %v7677
        %9138 = vmatpush2.bf16.msra.mxu0 %v7676
        %9139 = vmatprep.subr.bf16.mxu0 %v7665
        %9140 = vmatpush2.bf16.msra.mxu0 %v7664
        %9141 = vmatprep.subr.bf16.mxu0 %v7653
        %9142 = vmatpush2.bf16.msra.mxu0 %v7652
        %9143 = vmatprep.subr.bf16.mxu0 %v7641
        %9144 = vmatpush2.bf16.msra.mxu0 %v7640
        %9145 = vmatprep.mubr.bf16.mxu0 %v3889
        %9146 = vmatmul.mubr.bf16.gmra.mxu0 %v3888
        %v9147 = vpop.f32.mrf.mxu0
        %v9148 = vadd.f32 %v9107, %v9147
        %v9149 = vpop.f32.mrf.mxu0
        %v9150 = vadd.f32 %v9109, %v9149
        %v9151 = vpop.f32.mrf.mxu0
        %v9152 = vpop.f32.mrf.mxu0
        %9153 = vdwg.mxu0
        %9154 = vmatprep.subr.bf16.mxu0 %v7055
        %9155 = vmatpush1.bf16.msra.mxu0 %v7054
        %9156 = vmatprep.subr.bf16.mxu0 %v7043
        %9157 = vmatpush1.bf16.msra.mxu0 %v7042
        %9158 = vmatprep.subr.bf16.mxu0 %v7031
        %9159 = vmatpush1.bf16.msra.mxu0 %v7030
        %9160 = vmatprep.subr.bf16.mxu0 %v7019
        %9161 = vmatpush1.bf16.msra.mxu0 %v7018
        %9162 = vmatprep.subr.bf16.mxu0 %v7007
        %9163 = vmatpush1.bf16.msra.mxu0 %v7006
        %9164 = vmatprep.subr.bf16.mxu0 %v6995
        %9165 = vmatpush1.bf16.msra.mxu0 %v6994
        %9166 = vmatprep.subr.bf16.mxu0 %v6983
        %9167 = vmatpush1.bf16.msra.mxu0 %v6982
        %9168 = vmatprep.subr.bf16.mxu0 %v6971
        %9169 = vmatpush1.bf16.msra.mxu0 %v6970
        %9170 = vmatprep.subr.bf16.mxu0 %v7151
        %9171 = vmatpush2.bf16.msra.mxu0 %v7150
        %9172 = vmatprep.subr.bf16.mxu0 %v7139
        %9173 = vmatpush2.bf16.msra.mxu0 %v7138
        %9174 = vmatprep.subr.bf16.mxu0 %v7127
        %9175 = vmatpush2.bf16.msra.mxu0 %v7126
        %9176 = vmatprep.subr.bf16.mxu0 %v7115
        %9177 = vmatpush2.bf16.msra.mxu0 %v7114
        %9178 = vmatprep.subr.bf16.mxu0 %v7103
        %9179 = vmatpush2.bf16.msra.mxu0 %v7102
        %9180 = vmatprep.subr.bf16.mxu0 %v7091
        %9181 = vmatpush2.bf16.msra.mxu0 %v7090
        %9182 = vmatprep.subr.bf16.mxu0 %v7079
        %9183 = vmatpush2.bf16.msra.mxu0 %v7078
        %9184 = vmatprep.subr.bf16.mxu0 %v7067
        %9185 = vmatpush2.bf16.msra.mxu0 %v7066
        %9186 = vmatprep.mubr.bf16.mxu0 %v3883
        %9187 = vmatmul.mubr.bf16.gmra.mxu0 %v3882
        %v9188 = vpop.f32.mrf.mxu0
        %v9189 = vadd.f32 0.0, %v9188
        %v9190 = vpop.f32.mrf.mxu0
        %v9191 = vadd.f32 0.0, %v9190
        %v9192 = vpop.f32.mrf.mxu0
        %v9193 = vpop.f32.mrf.mxu0
        %9194 = vdwg.mxu0
        %9195 = vmatprep.subr.bf16.mxu0 %v7247
        %9196 = vmatpush1.bf16.msra.mxu0 %v7246
        %9197 = vmatprep.subr.bf16.mxu0 %v7235
        %9198 = vmatpush1.bf16.msra.mxu0 %v7234
        %9199 = vmatprep.subr.bf16.mxu0 %v7223
        %9200 = vmatpush1.bf16.msra.mxu0 %v7222
        %9201 = vmatprep.subr.bf16.mxu0 %v7211
        %9202 = vmatpush1.bf16.msra.mxu0 %v7210
        %9203 = vmatprep.subr.bf16.mxu0 %v7199
        %9204 = vmatpush1.bf16.msra.mxu0 %v7198
        %9205 = vmatprep.subr.bf16.mxu0 %v7187
        %9206 = vmatpush1.bf16.msra.mxu0 %v7186
        %9207 = vmatprep.subr.bf16.mxu0 %v7175
        %9208 = vmatpush1.bf16.msra.mxu0 %v7174
        %9209 = vmatprep.subr.bf16.mxu0 %v7163
        %9210 = vmatpush1.bf16.msra.mxu0 %v7162
        %9211 = vmatprep.subr.bf16.mxu0 %v7343
        %9212 = vmatpush2.bf16.msra.mxu0 %v7342
        %9213 = vmatprep.subr.bf16.mxu0 %v7331
        %9214 = vmatpush2.bf16.msra.mxu0 %v7330
        %9215 = vmatprep.subr.bf16.mxu0 %v7319
        %9216 = vmatpush2.bf16.msra.mxu0 %v7318
        %9217 = vmatprep.subr.bf16.mxu0 %v7307
        %9218 = vmatpush2.bf16.msra.mxu0 %v7306
        %9219 = vmatprep.subr.bf16.mxu0 %v7295
        %9220 = vmatpush2.bf16.msra.mxu0 %v7294
        %9221 = vmatprep.subr.bf16.mxu0 %v7283
        %9222 = vmatpush2.bf16.msra.mxu0 %v7282
        %9223 = vmatprep.subr.bf16.mxu0 %v7271
        %9224 = vmatpush2.bf16.msra.mxu0 %v7270
        %9225 = vmatprep.subr.bf16.mxu0 %v7259
        %9226 = vmatpush2.bf16.msra.mxu0 %v7258
        %9227 = vmatprep.mubr.bf16.mxu0 %v3885
        %9228 = vmatmul.mubr.bf16.gmra.mxu0 %v3884
        %v9229 = vpop.f32.mrf.mxu0
        %v9230 = vadd.f32 %v9189, %v9229
        %v9231 = vpop.f32.mrf.mxu0
        %v9232 = vadd.f32 %v9191, %v9231
        %v9233 = vpop.f32.mrf.mxu0
        %v9234 = vpop.f32.mrf.mxu0
        %9235 = vdwg.mxu0
        %9236 = vmatprep.subr.bf16.mxu0 %v7439
        %9237 = vmatpush1.bf16.msra.mxu0 %v7438
        %9238 = vmatprep.subr.bf16.mxu0 %v7427
        %9239 = vmatpush1.bf16.msra.mxu0 %v7426
        %9240 = vmatprep.subr.bf16.mxu0 %v7415
        %9241 = vmatpush1.bf16.msra.mxu0 %v7414
        %9242 = vmatprep.subr.bf16.mxu0 %v7403
        %9243 = vmatpush1.bf16.msra.mxu0 %v7402
        %9244 = vmatprep.subr.bf16.mxu0 %v7391
        %9245 = vmatpush1.bf16.msra.mxu0 %v7390
        %9246 = vmatprep.subr.bf16.mxu0 %v7379
        %9247 = vmatpush1.bf16.msra.mxu0 %v7378
        %9248 = vmatprep.subr.bf16.mxu0 %v7367
        %9249 = vmatpush1.bf16.msra.mxu0 %v7366
        %9250 = vmatprep.subr.bf16.mxu0 %v7355
        %9251 = vmatpush1.bf16.msra.mxu0 %v7354
        %9252 = vmatprep.subr.bf16.mxu0 %v7535
        %9253 = vmatpush2.bf16.msra.mxu0 %v7534
        %9254 = vmatprep.subr.bf16.mxu0 %v7523
        %9255 = vmatpush2.bf16.msra.mxu0 %v7522
        %9256 = vmatprep.subr.bf16.mxu0 %v7511
        %9257 = vmatpush2.bf16.msra.mxu0 %v7510
        %9258 = vmatprep.subr.bf16.mxu0 %v7499
        %9259 = vmatpush2.bf16.msra.mxu0 %v7498
        %9260 = vmatprep.subr.bf16.mxu0 %v7487
        %9261 = vmatpush2.bf16.msra.mxu0 %v7486
        %9262 = vmatprep.subr.bf16.mxu0 %v7475
        %9263 = vmatpush2.bf16.msra.mxu0 %v7474
        %9264 = vmatprep.subr.bf16.mxu0 %v7463
        %9265 = vmatpush2.bf16.msra.mxu0 %v7462
        %9266 = vmatprep.subr.bf16.mxu0 %v7451
        %9267 = vmatpush2.bf16.msra.mxu0 %v7450
        %9268 = vmatprep.mubr.bf16.mxu0 %v3887
        %9269 = vmatmul.mubr.bf16.gmra.mxu0 %v3886
        %v9270 = vpop.f32.mrf.mxu0
        %v9271 = vadd.f32 %v9230, %v9270
        %v9272 = vpop.f32.mrf.mxu0
        %v9273 = vadd.f32 %v9232, %v9272
        %v9274 = vpop.f32.mrf.mxu0
        %v9275 = vpop.f32.mrf.mxu0
        %9276 = vdwg.mxu0
        %9277 = vmatprep.subr.bf16.mxu0 %v7631
        %9278 = vmatpush1.bf16.msra.mxu0 %v7630
        %9279 = vmatprep.subr.bf16.mxu0 %v7619
        %9280 = vmatpush1.bf16.msra.mxu0 %v7618
        %9281 = vmatprep.subr.bf16.mxu0 %v7607
        %9282 = vmatpush1.bf16.msra.mxu0 %v7606
        %9283 = vmatprep.subr.bf16.mxu0 %v7595
        %9284 = vmatpush1.bf16.msra.mxu0 %v7594
        %9285 = vmatprep.subr.bf16.mxu0 %v7583
        %9286 = vmatpush1.bf16.msra.mxu0 %v7582
        %9287 = vmatprep.subr.bf16.mxu0 %v7571
        %9288 = vmatpush1.bf16.msra.mxu0 %v7570
        %9289 = vmatprep.subr.bf16.mxu0 %v7559
        %9290 = vmatpush1.bf16.msra.mxu0 %v7558
        %9291 = vmatprep.subr.bf16.mxu0 %v7547
        %9292 = vmatpush1.bf16.msra.mxu0 %v7546
        %9293 = vmatprep.subr.bf16.mxu0 %v7727
        %9294 = vmatpush2.bf16.msra.mxu0 %v7726
        %9295 = vmatprep.subr.bf16.mxu0 %v7715
        %9296 = vmatpush2.bf16.msra.mxu0 %v7714
        %9297 = vmatprep.subr.bf16.mxu0 %v7703
        %9298 = vmatpush2.bf16.msra.mxu0 %v7702
        %9299 = vmatprep.subr.bf16.mxu0 %v7691
        %9300 = vmatpush2.bf16.msra.mxu0 %v7690
        %9301 = vmatprep.subr.bf16.mxu0 %v7679
        %9302 = vmatpush2.bf16.msra.mxu0 %v7678
        %9303 = vmatprep.subr.bf16.mxu0 %v7667
        %9304 = vmatpush2.bf16.msra.mxu0 %v7666
        %9305 = vmatprep.subr.bf16.mxu0 %v7655
        %9306 = vmatpush2.bf16.msra.mxu0 %v7654
        %9307 = vmatprep.subr.bf16.mxu0 %v7643
        %9308 = vmatpush2.bf16.msra.mxu0 %v7642
        %9309 = vmatprep.mubr.bf16.mxu0 %v3889
        %9310 = vmatmul.mubr.bf16.gmra.mxu0 %v3888
        %v9311 = vpop.f32.mrf.mxu0
        %v9312 = vadd.f32 %v9271, %v9311
        %v9313 = vpop.f32.mrf.mxu0
        %v9314 = vadd.f32 %v9273, %v9313
        %v9315 = vpop.f32.mrf.mxu0
        %v9316 = vpop.f32.mrf.mxu0
        %9317 = vdwg.mxu0
        %9318 = vmatprep.subr.bf16.mxu0 %v7057
        %9319 = vmatpush1.bf16.msra.mxu0 %v7056
        %9320 = vmatprep.subr.bf16.mxu0 %v7045
        %9321 = vmatpush1.bf16.msra.mxu0 %v7044
        %9322 = vmatprep.subr.bf16.mxu0 %v7033
        %9323 = vmatpush1.bf16.msra.mxu0 %v7032
        %9324 = vmatprep.subr.bf16.mxu0 %v7021
        %9325 = vmatpush1.bf16.msra.mxu0 %v7020
        %9326 = vmatprep.subr.bf16.mxu0 %v7009
        %9327 = vmatpush1.bf16.msra.mxu0 %v7008
        %9328 = vmatprep.subr.bf16.mxu0 %v6997
        %9329 = vmatpush1.bf16.msra.mxu0 %v6996
        %9330 = vmatprep.subr.bf16.mxu0 %v6985
        %9331 = vmatpush1.bf16.msra.mxu0 %v6984
        %9332 = vmatprep.subr.bf16.mxu0 %v6973
        %9333 = vmatpush1.bf16.msra.mxu0 %v6972
        %9334 = vmatprep.subr.bf16.mxu0 %v7153
        %9335 = vmatpush2.bf16.msra.mxu0 %v7152
        %9336 = vmatprep.subr.bf16.mxu0 %v7141
        %9337 = vmatpush2.bf16.msra.mxu0 %v7140
        %9338 = vmatprep.subr.bf16.mxu0 %v7129
        %9339 = vmatpush2.bf16.msra.mxu0 %v7128
        %9340 = vmatprep.subr.bf16.mxu0 %v7117
        %9341 = vmatpush2.bf16.msra.mxu0 %v7116
        %9342 = vmatprep.subr.bf16.mxu0 %v7105
        %9343 = vmatpush2.bf16.msra.mxu0 %v7104
        %9344 = vmatprep.subr.bf16.mxu0 %v7093
        %9345 = vmatpush2.bf16.msra.mxu0 %v7092
        %9346 = vmatprep.subr.bf16.mxu0 %v7081
        %9347 = vmatpush2.bf16.msra.mxu0 %v7080
        %9348 = vmatprep.subr.bf16.mxu0 %v7069
        %9349 = vmatpush2.bf16.msra.mxu0 %v7068
        %9350 = vmatprep.mubr.bf16.mxu0 %v3883
        %9351 = vmatmul.mubr.bf16.gmra.mxu0 %v3882
        %v9352 = vpop.f32.mrf.mxu0
        %v9353 = vadd.f32 0.0, %v9352
        %v9354 = vpop.f32.mrf.mxu0
        %v9355 = vadd.f32 0.0, %v9354
        %v9356 = vpop.f32.mrf.mxu0
        %v9357 = vpop.f32.mrf.mxu0
        %9358 = vdwg.mxu0
        %9359 = vmatprep.subr.bf16.mxu0 %v7249
        %9360 = vmatpush1.bf16.msra.mxu0 %v7248
        %9361 = vmatprep.subr.bf16.mxu0 %v7237
        %9362 = vmatpush1.bf16.msra.mxu0 %v7236
        %9363 = vmatprep.subr.bf16.mxu0 %v7225
        %9364 = vmatpush1.bf16.msra.mxu0 %v7224
        %9365 = vmatprep.subr.bf16.mxu0 %v7213
        %9366 = vmatpush1.bf16.msra.mxu0 %v7212
        %9367 = vmatprep.subr.bf16.mxu0 %v7201
        %9368 = vmatpush1.bf16.msra.mxu0 %v7200
        %9369 = vmatprep.subr.bf16.mxu0 %v7189
        %9370 = vmatpush1.bf16.msra.mxu0 %v7188
        %9371 = vmatprep.subr.bf16.mxu0 %v7177
        %9372 = vmatpush1.bf16.msra.mxu0 %v7176
        %9373 = vmatprep.subr.bf16.mxu0 %v7165
        %9374 = vmatpush1.bf16.msra.mxu0 %v7164
        %9375 = vmatprep.subr.bf16.mxu0 %v7345
        %9376 = vmatpush2.bf16.msra.mxu0 %v7344
        %9377 = vmatprep.subr.bf16.mxu0 %v7333
        %9378 = vmatpush2.bf16.msra.mxu0 %v7332
        %9379 = vmatprep.subr.bf16.mxu0 %v7321
        %9380 = vmatpush2.bf16.msra.mxu0 %v7320
        %9381 = vmatprep.subr.bf16.mxu0 %v7309
        %9382 = vmatpush2.bf16.msra.mxu0 %v7308
        %9383 = vmatprep.subr.bf16.mxu0 %v7297
        %9384 = vmatpush2.bf16.msra.mxu0 %v7296
        %9385 = vmatprep.subr.bf16.mxu0 %v7285
        %9386 = vmatpush2.bf16.msra.mxu0 %v7284
        %9387 = vmatprep.subr.bf16.mxu0 %v7273
        %9388 = vmatpush2.bf16.msra.mxu0 %v7272
        %9389 = vmatprep.subr.bf16.mxu0 %v7261
        %9390 = vmatpush2.bf16.msra.mxu0 %v7260
        %9391 = vmatprep.mubr.bf16.mxu0 %v3885
        %9392 = vmatmul.mubr.bf16.gmra.mxu0 %v3884
        %v9393 = vpop.f32.mrf.mxu0
        %v9394 = vadd.f32 %v9353, %v9393
        %v9395 = vpop.f32.mrf.mxu0
        %v9396 = vadd.f32 %v9355, %v9395
        %v9397 = vpop.f32.mrf.mxu0
        %v9398 = vpop.f32.mrf.mxu0
        %9399 = vdwg.mxu0
        %9400 = vmatprep.subr.bf16.mxu0 %v7441
        %9401 = vmatpush1.bf16.msra.mxu0 %v7440
        %9402 = vmatprep.subr.bf16.mxu0 %v7429
        %9403 = vmatpush1.bf16.msra.mxu0 %v7428
        %9404 = vmatprep.subr.bf16.mxu0 %v7417
        %9405 = vmatpush1.bf16.msra.mxu0 %v7416
        %9406 = vmatprep.subr.bf16.mxu0 %v7405
        %9407 = vmatpush1.bf16.msra.mxu0 %v7404
        %9408 = vmatprep.subr.bf16.mxu0 %v7393
        %9409 = vmatpush1.bf16.msra.mxu0 %v7392
        %9410 = vmatprep.subr.bf16.mxu0 %v7381
        %9411 = vmatpush1.bf16.msra.mxu0 %v7380
        %9412 = vmatprep.subr.bf16.mxu0 %v7369
        %9413 = vmatpush1.bf16.msra.mxu0 %v7368
        %9414 = vmatprep.subr.bf16.mxu0 %v7357
        %9415 = vmatpush1.bf16.msra.mxu0 %v7356
        %9416 = vmatprep.subr.bf16.mxu0 %v7537
        %9417 = vmatpush2.bf16.msra.mxu0 %v7536
        %9418 = vmatprep.subr.bf16.mxu0 %v7525
        %9419 = vmatpush2.bf16.msra.mxu0 %v7524
        %9420 = vmatprep.subr.bf16.mxu0 %v7513
        %9421 = vmatpush2.bf16.msra.mxu0 %v7512
        %9422 = vmatprep.subr.bf16.mxu0 %v7501
        %9423 = vmatpush2.bf16.msra.mxu0 %v7500
        %9424 = vmatprep.subr.bf16.mxu0 %v7489
        %9425 = vmatpush2.bf16.msra.mxu0 %v7488
        %9426 = vmatprep.subr.bf16.mxu0 %v7477
        %9427 = vmatpush2.bf16.msra.mxu0 %v7476
        %9428 = vmatprep.subr.bf16.mxu0 %v7465
        %9429 = vmatpush2.bf16.msra.mxu0 %v7464
        %9430 = vmatprep.subr.bf16.mxu0 %v7453
        %9431 = vmatpush2.bf16.msra.mxu0 %v7452
        %9432 = vmatprep.mubr.bf16.mxu0 %v3887
        %9433 = vmatmul.mubr.bf16.gmra.mxu0 %v3886
        %v9434 = vpop.f32.mrf.mxu0
        %v9435 = vadd.f32 %v9394, %v9434
        %v9436 = vpop.f32.mrf.mxu0
        %v9437 = vadd.f32 %v9396, %v9436
        %v9438 = vpop.f32.mrf.mxu0
        %v9439 = vpop.f32.mrf.mxu0
        %9440 = vdwg.mxu0
        %9441 = vmatprep.subr.bf16.mxu0 %v7633
        %9442 = vmatpush1.bf16.msra.mxu0 %v7632
        %9443 = vmatprep.subr.bf16.mxu0 %v7621
        %9444 = vmatpush1.bf16.msra.mxu0 %v7620
        %9445 = vmatprep.subr.bf16.mxu0 %v7609
        %9446 = vmatpush1.bf16.msra.mxu0 %v7608
        %9447 = vmatprep.subr.bf16.mxu0 %v7597
        %9448 = vmatpush1.bf16.msra.mxu0 %v7596
        %9449 = vmatprep.subr.bf16.mxu0 %v7585
        %9450 = vmatpush1.bf16.msra.mxu0 %v7584
        %9451 = vmatprep.subr.bf16.mxu0 %v7573
        %9452 = vmatpush1.bf16.msra.mxu0 %v7572
        %9453 = vmatprep.subr.bf16.mxu0 %v7561
        %9454 = vmatpush1.bf16.msra.mxu0 %v7560
        %9455 = vmatprep.subr.bf16.mxu0 %v7549
        %9456 = vmatpush1.bf16.msra.mxu0 %v7548
        %9457 = vmatprep.subr.bf16.mxu0 %v7729
        %9458 = vmatpush2.bf16.msra.mxu0 %v7728
        %9459 = vmatprep.subr.bf16.mxu0 %v7717
        %9460 = vmatpush2.bf16.msra.mxu0 %v7716
        %9461 = vmatprep.subr.bf16.mxu0 %v7705
        %9462 = vmatpush2.bf16.msra.mxu0 %v7704
        %9463 = vmatprep.subr.bf16.mxu0 %v7693
        %9464 = vmatpush2.bf16.msra.mxu0 %v7692
        %9465 = vmatprep.subr.bf16.mxu0 %v7681
        %9466 = vmatpush2.bf16.msra.mxu0 %v7680
        %9467 = vmatprep.subr.bf16.mxu0 %v7669
        %9468 = vmatpush2.bf16.msra.mxu0 %v7668
        %9469 = vmatprep.subr.bf16.mxu0 %v7657
        %9470 = vmatpush2.bf16.msra.mxu0 %v7656
        %9471 = vmatprep.subr.bf16.mxu0 %v7645
        %9472 = vmatpush2.bf16.msra.mxu0 %v7644
        %9473 = vmatprep.mubr.bf16.mxu0 %v3889
        %9474 = vmatmul.mubr.bf16.gmra.mxu0 %v3888
        %v9475 = vpop.f32.mrf.mxu0
        %v9476 = vadd.f32 %v9435, %v9475
        %v9477 = vpop.f32.mrf.mxu0
        %v9478 = vadd.f32 %v9437, %v9477
        %v9479 = vpop.f32.mrf.mxu0
        %v9480 = vpop.f32.mrf.mxu0
        %9481 = vdwg.mxu0
        %v9482 = vld [vmem:[%s716] sm:$0xff]
        %v9483 = vld [vmem:[%s716 + $0x8] sm:$0xf]
        %v9484 = vld [vmem:[%s725] sm:$0xff]
        %v9485 = vld [vmem:[%s725 + $0x8] sm:$0xf]
        %v9486 = vsel %vm852, %v8656, 0.0
        %v9487 = vrot.slane %v9486, 4
        %v9488 = vadd.f32 %v9486, %v9487
        %v9489 = vrot.slane %v9488, 2
        %v9490 = vadd.f32 %v9488, %v9489
        %v9491 = vrot.slane %v9490, 1
        %v9492 = vadd.f32 %v9490, %v9491
        %v9493 = vsel %vm852, %v8658, 0.0
        %v9494 = vrot.slane %v9493, 4
        %v9495 = vadd.f32 %v9493, %v9494
        %v9496 = vrot.slane %v9495, 2
        %v9497 = vadd.f32 %v9495, %v9496
        %v9498 = vrot.slane %v9497, 1
        %v9499 = vadd.f32 %v9497, %v9498
        %v9500 = vsel %vm852, %v8820, 0.0
        %v9501 = vrot.slane %v9500, 4
        %v9502 = vadd.f32 %v9500, %v9501
        %v9503 = vrot.slane %v9502, 2
        %v9504 = vadd.f32 %v9502, %v9503
        %v9505 = vrot.slane %v9504, 1
        %v9506 = vadd.f32 %v9504, %v9505
        %v9507 = vsel %vm852, %v8822, 0.0
        %v9508 = vrot.slane %v9507, 4
        %v9509 = vadd.f32 %v9507, %v9508
        %v9510 = vrot.slane %v9509, 2
        %v9511 = vadd.f32 %v9509, %v9510
        %v9512 = vrot.slane %v9511, 1
        %v9513 = vadd.f32 %v9511, %v9512
        %v9514 = vsel %vm852, %v8984, 0.0
        %v9515 = vrot.slane %v9514, 4
        %v9516 = vadd.f32 %v9514, %v9515
        %v9517 = vrot.slane %v9516, 2
        %v9518 = vadd.f32 %v9516, %v9517
        %v9519 = vrot.slane %v9518, 1
        %v9520 = vadd.f32 %v9518, %v9519
        %v9521 = vsel %vm852, %v8986, 0.0
        %v9522 = vrot.slane %v9521, 4
        %v9523 = vadd.f32 %v9521, %v9522
        %v9524 = vrot.slane %v9523, 2
        %v9525 = vadd.f32 %v9523, %v9524
        %v9526 = vrot.slane %v9525, 1
        %v9527 = vadd.f32 %v9525, %v9526
        %v9528 = vsel %vm852, %v9148, 0.0
        %v9529 = vrot.slane %v9528, 4
        %v9530 = vadd.f32 %v9528, %v9529
        %v9531 = vrot.slane %v9530, 2
        %v9532 = vadd.f32 %v9530, %v9531
        %v9533 = vrot.slane %v9532, 1
        %v9534 = vadd.f32 %v9532, %v9533
        %v9535 = vsel %vm852, %v9150, 0.0
        %v9536 = vrot.slane %v9535, 4
        %v9537 = vadd.f32 %v9535, %v9536
        %v9538 = vrot.slane %v9537, 2
        %v9539 = vadd.f32 %v9537, %v9538
        %v9540 = vrot.slane %v9539, 1
        %v9541 = vadd.f32 %v9539, %v9540
        %v9542 = vsel %vm852, %v9312, 0.0
        %v9543 = vrot.slane %v9542, 4
        %v9544 = vadd.f32 %v9542, %v9543
        %v9545 = vrot.slane %v9544, 2
        %v9546 = vadd.f32 %v9544, %v9545
        %v9547 = vrot.slane %v9546, 1
        %v9548 = vadd.f32 %v9546, %v9547
        %v9549 = vsel %vm852, %v9314, 0.0
        %v9550 = vrot.slane %v9549, 4
        %v9551 = vadd.f32 %v9549, %v9550
        %v9552 = vrot.slane %v9551, 2
        %v9553 = vadd.f32 %v9551, %v9552
        %v9554 = vrot.slane %v9553, 1
        %v9555 = vadd.f32 %v9553, %v9554
        %v9556 = vsel %vm852, %v9476, 0.0
        %v9557 = vrot.slane %v9556, 4
        %v9558 = vadd.f32 %v9556, %v9557
        %v9559 = vrot.slane %v9558, 2
        %v9560 = vadd.f32 %v9558, %v9559
        %v9561 = vrot.slane %v9560, 1
        %v9562 = vadd.f32 %v9560, %v9561
        %v9563 = vsel %vm852, %v9478, 0.0
        %v9564 = vrot.slane %v9563, 4
        %v9565 = vadd.f32 %v9563, %v9564
        %v9566 = vrot.slane %v9565, 2
        %v9567 = vadd.f32 %v9565, %v9566
        %v9568 = vrot.slane %v9567, 1
        %v9569 = vadd.f32 %v9567, %v9568
        %v9570 = vmul.f32 %v9492, %v860
        %v9571 = vmul.f32 %v9499, %v860
        %v9572 = vmul.f32 %v9506, %v860
        %v9573 = vmul.f32 %v9513, %v860
        %v9574 = vmul.f32 %v9520, %v860
        %v9575 = vmul.f32 %v9527, %v860
        %v9576 = vmul.f32 %v9534, %v860
        %v9577 = vmul.f32 %v9541, %v860
        %v9578 = vmul.f32 %v9548, %v860
        %v9579 = vmul.f32 %v9555, %v860
        %v9580 = vmul.f32 %v9562, %v860
        %v9581 = vmul.f32 %v9569, %v860
        %v9582 = vsub.f32 %v8656, %v9570
        %v9583 = vsub.f32 %v8658, %v9571
        %v9584 = vsub.f32 %v8820, %v9572
        %v9585 = vsub.f32 %v8822, %v9573
        %v9586 = vsub.f32 %v8984, %v9574
        %v9587 = vsub.f32 %v8986, %v9575
        %v9588 = vsub.f32 %v9148, %v9576
        %v9589 = vsub.f32 %v9150, %v9577
        %v9590 = vsub.f32 %v9312, %v9578
        %v9591 = vsub.f32 %v9314, %v9579
        %v9592 = vsub.f32 %v9476, %v9580
        %v9593 = vsub.f32 %v9478, %v9581
        %v9594 = vmul.f32 %v9582, %v9582
        %v9595 = vmul.f32 %v9583, %v9583
        %v9596 = vmul.f32 %v9584, %v9584
        %v9597 = vmul.f32 %v9585, %v9585
        %v9598 = vmul.f32 %v9586, %v9586
        %v9599 = vmul.f32 %v9587, %v9587
        %v9600 = vmul.f32 %v9588, %v9588
        %v9601 = vmul.f32 %v9589, %v9589
        %v9602 = vmul.f32 %v9590, %v9590
        %v9603 = vmul.f32 %v9591, %v9591
        %v9604 = vmul.f32 %v9592, %v9592
        %v9605 = vmul.f32 %v9593, %v9593
        %v9606 = vsel %vm852, %v9594, 0.0
        %v9607 = vrot.slane %v9606, 4
        %v9608 = vadd.f32 %v9606, %v9607
        %v9609 = vrot.slane %v9608, 2
        %v9610 = vadd.f32 %v9608, %v9609
        %v9611 = vrot.slane %v9610, 1
        %v9612 = vadd.f32 %v9610, %v9611
        %v9613 = vsel %vm852, %v9595, 0.0
        %v9614 = vrot.slane %v9613, 4
        %v9615 = vadd.f32 %v9613, %v9614
        %v9616 = vrot.slane %v9615, 2
        %v9617 = vadd.f32 %v9615, %v9616
        %v9618 = vrot.slane %v9617, 1
        %v9619 = vadd.f32 %v9617, %v9618
        %v9620 = vsel %vm852, %v9596, 0.0
        %v9621 = vrot.slane %v9620, 4
        %v9622 = vadd.f32 %v9620, %v9621
        %v9623 = vrot.slane %v9622, 2
        %v9624 = vadd.f32 %v9622, %v9623
        %v9625 = vrot.slane %v9624, 1
        %v9626 = vadd.f32 %v9624, %v9625
        %v9627 = vsel %vm852, %v9597, 0.0
        %v9628 = vrot.slane %v9627, 4
        %v9629 = vadd.f32 %v9627, %v9628
        %v9630 = vrot.slane %v9629, 2
        %v9631 = vadd.f32 %v9629, %v9630
        %v9632 = vrot.slane %v9631, 1
        %v9633 = vadd.f32 %v9631, %v9632
        %v9634 = vsel %vm852, %v9598, 0.0
        %v9635 = vrot.slane %v9634, 4
        %v9636 = vadd.f32 %v9634, %v9635
        %v9637 = vrot.slane %v9636, 2
        %v9638 = vadd.f32 %v9636, %v9637
        %v9639 = vrot.slane %v9638, 1
        %v9640 = vadd.f32 %v9638, %v9639
        %v9641 = vsel %vm852, %v9599, 0.0
        %v9642 = vrot.slane %v9641, 4
        %v9643 = vadd.f32 %v9641, %v9642
        %v9644 = vrot.slane %v9643, 2
        %v9645 = vadd.f32 %v9643, %v9644
        %v9646 = vrot.slane %v9645, 1
        %v9647 = vadd.f32 %v9645, %v9646
        %v9648 = vsel %vm852, %v9600, 0.0
        %v9649 = vrot.slane %v9648, 4
        %v9650 = vadd.f32 %v9648, %v9649
        %v9651 = vrot.slane %v9650, 2
        %v9652 = vadd.f32 %v9650, %v9651
        %v9653 = vrot.slane %v9652, 1
        %v9654 = vadd.f32 %v9652, %v9653
        %v9655 = vsel %vm852, %v9601, 0.0
        %v9656 = vrot.slane %v9655, 4
        %v9657 = vadd.f32 %v9655, %v9656
        %v9658 = vrot.slane %v9657, 2
        %v9659 = vadd.f32 %v9657, %v9658
        %v9660 = vrot.slane %v9659, 1
        %v9661 = vadd.f32 %v9659, %v9660
        %v9662 = vsel %vm852, %v9602, 0.0
        %v9663 = vrot.slane %v9662, 4
        %v9664 = vadd.f32 %v9662, %v9663
        %v9665 = vrot.slane %v9664, 2
        %v9666 = vadd.f32 %v9664, %v9665
        %v9667 = vrot.slane %v9666, 1
        %v9668 = vadd.f32 %v9666, %v9667
        %v9669 = vsel %vm852, %v9603, 0.0
        %v9670 = vrot.slane %v9669, 4
        %v9671 = vadd.f32 %v9669, %v9670
        %v9672 = vrot.slane %v9671, 2
        %v9673 = vadd.f32 %v9671, %v9672
        %v9674 = vrot.slane %v9673, 1
        %v9675 = vadd.f32 %v9673, %v9674
        %v9676 = vsel %vm852, %v9604, 0.0
        %v9677 = vrot.slane %v9676, 4
        %v9678 = vadd.f32 %v9676, %v9677
        %v9679 = vrot.slane %v9678, 2
        %v9680 = vadd.f32 %v9678, %v9679
        %v9681 = vrot.slane %v9680, 1
        %v9682 = vadd.f32 %v9680, %v9681
        %v9683 = vsel %vm852, %v9605, 0.0
        %v9684 = vrot.slane %v9683, 4
        %v9685 = vadd.f32 %v9683, %v9684
        %v9686 = vrot.slane %v9685, 2
        %v9687 = vadd.f32 %v9685, %v9686
        %v9688 = vrot.slane %v9687, 1
        %v9689 = vadd.f32 %v9687, %v9688
        %v9690 = vmul.f32 %v9612, %v860
        %v9691 = vmul.f32 %v9619, %v860
        %v9692 = vmul.f32 %v9626, %v860
        %v9693 = vmul.f32 %v9633, %v860
        %v9694 = vmul.f32 %v9640, %v860
        %v9695 = vmul.f32 %v9647, %v860
        %v9696 = vmul.f32 %v9654, %v860
        %v9697 = vmul.f32 %v9661, %v860
        %v9698 = vmul.f32 %v9668, %v860
        %v9699 = vmul.f32 %v9675, %v860
        %v9700 = vmul.f32 %v9682, %v860
        %v9701 = vmul.f32 %v9689, %v860
        %v9702 = vadd.f32 %v9690, 1e-05
        %v9703 = vadd.f32 %v9691, 1e-05
        %v9704 = vadd.f32 %v9692, 1e-05
        %v9705 = vadd.f32 %v9693, 1e-05
        %v9706 = vadd.f32 %v9694, 1e-05
        %v9707 = vadd.f32 %v9695, 1e-05
        %v9708 = vadd.f32 %v9696, 1e-05
        %v9709 = vadd.f32 %v9697, 1e-05
        %v9710 = vadd.f32 %v9698, 1e-05
        %v9711 = vadd.f32 %v9699, 1e-05
        %v9712 = vadd.f32 %v9700, 1e-05
        %v9713 = vadd.f32 %v9701, 1e-05
        %v9714 = vrsqrt.pop %v9702
        %v9715 = vrsqrt.pop %v9703
        %v9716 = vrsqrt.pop %v9704
        %v9717 = vrsqrt.pop %v9705
        %v9718 = vrsqrt.pop %v9706
        %v9719 = vrsqrt.pop %v9707
        %v9720 = vrsqrt.pop %v9708
        %v9721 = vrsqrt.pop %v9709
        %v9722 = vrsqrt.pop %v9710
        %v9723 = vrsqrt.pop %v9711
        %v9724 = vrsqrt.pop %v9712
        %v9725 = vrsqrt.pop %v9713
        %v9726 = vmul.f32 %v9582, %v9714
        %v9727 = vmul.f32 %v9583, %v9715
        %v9728 = vmul.f32 %v9584, %v9716
        %v9729 = vmul.f32 %v9585, %v9717
        %v9730 = vmul.f32 %v9586, %v9718
        %v9731 = vmul.f32 %v9587, %v9719
        %v9732 = vmul.f32 %v9588, %v9720
        %v9733 = vmul.f32 %v9589, %v9721
        %v9734 = vmul.f32 %v9590, %v9722
        %v9735 = vmul.f32 %v9591, %v9723
        %v9736 = vmul.f32 %v9592, %v9724
        %v9737 = vmul.f32 %v9593, %v9725
        %v9740 = vlaneseq
        %v9741 = vshrl.u32 %v9740, 7
        %v9742 = vsub.s32 0, %v9741
        %v9743 = vrot.slane %v9482, %v9742
        %v9744 = vlaneseq
        %v9745 = vshrl.u32 %v9744, 7
        %v9746 = vsub.s32 1, %v9745
        %v9747 = vrot.slane %v9482, %v9746
        %v9748 = vlaneseq
        %v9749 = vshrl.u32 %v9748, 7
        %v9750 = vsub.s32 2, %v9749
        %v9751 = vrot.slane %v9482, %v9750
        %v9752 = vlaneseq
        %v9753 = vshrl.u32 %v9752, 7
        %v9754 = vsub.s32 3, %v9753
        %v9755 = vrot.slane %v9482, %v9754
        %v9756 = vlaneseq
        %v9757 = vshrl.u32 %v9756, 7
        %v9758 = vsub.s32 4, %v9757
        %v9759 = vrot.slane %v9482, %v9758
        %v9760 = vlaneseq
        %v9761 = vshrl.u32 %v9760, 7
        %v9762 = vsub.s32 5, %v9761
        %v9763 = vrot.slane %v9482, %v9762
        %v9764 = vlaneseq
        %v9765 = vshrl.u32 %v9764, 7
        %v9766 = vsub.s32 6, %v9765
        %v9767 = vrot.slane %v9482, %v9766
        %v9768 = vlaneseq
        %v9769 = vshrl.u32 %v9768, 7
        %v9770 = vsub.s32 7, %v9769
        %v9771 = vrot.slane %v9482, %v9770
        %v9772 = vlaneseq
        %v9773 = vshrl.u32 %v9772, 7
        %v9774 = vsub.s32 0, %v9773
        %v9775 = vrot.slane %v9483, %v9774
        %v9776 = vlaneseq
        %v9777 = vshrl.u32 %v9776, 7
        %v9778 = vsub.s32 1, %v9777
        %v9779 = vrot.slane %v9483, %v9778
        %v9780 = vlaneseq
        %v9781 = vshrl.u32 %v9780, 7
        %v9782 = vsub.s32 2, %v9781
        %v9783 = vrot.slane %v9483, %v9782
        %v9784 = vlaneseq
        %v9785 = vshrl.u32 %v9784, 7
        %v9786 = vsub.s32 3, %v9785
        %v9787 = vrot.slane %v9483, %v9786
        %v9800 = vmul.f32 %v9743, %v9726
        %v9801 = vmul.f32 %v9747, %v9727
        %v9802 = vmul.f32 %v9751, %v9728
        %v9803 = vmul.f32 %v9755, %v9729
        %v9804 = vmul.f32 %v9759, %v9730
        %v9805 = vmul.f32 %v9763, %v9731
        %v9806 = vmul.f32 %v9767, %v9732
        %v9807 = vmul.f32 %v9771, %v9733
        %v9808 = vmul.f32 %v9775, %v9734
        %v9809 = vmul.f32 %v9779, %v9735
        %v9810 = vmul.f32 %v9783, %v9736
        %v9811 = vmul.f32 %v9787, %v9737
        %v9814 = vlaneseq
        %v9815 = vshrl.u32 %v9814, 7
        %v9816 = vsub.s32 0, %v9815
        %v9817 = vrot.slane %v9484, %v9816
        %v9818 = vlaneseq
        %v9819 = vshrl.u32 %v9818, 7
        %v9820 = vsub.s32 1, %v9819
        %v9821 = vrot.slane %v9484, %v9820
        %v9822 = vlaneseq
        %v9823 = vshrl.u32 %v9822, 7
        %v9824 = vsub.s32 2, %v9823
        %v9825 = vrot.slane %v9484, %v9824
        %v9826 = vlaneseq
        %v9827 = vshrl.u32 %v9826, 7
        %v9828 = vsub.s32 3, %v9827
        %v9829 = vrot.slane %v9484, %v9828
        %v9830 = vlaneseq
        %v9831 = vshrl.u32 %v9830, 7
        %v9832 = vsub.s32 4, %v9831
        %v9833 = vrot.slane %v9484, %v9832
        %v9834 = vlaneseq
        %v9835 = vshrl.u32 %v9834, 7
        %v9836 = vsub.s32 5, %v9835
        %v9837 = vrot.slane %v9484, %v9836
        %v9838 = vlaneseq
        %v9839 = vshrl.u32 %v9838, 7
        %v9840 = vsub.s32 6, %v9839
        %v9841 = vrot.slane %v9484, %v9840
        %v9842 = vlaneseq
        %v9843 = vshrl.u32 %v9842, 7
        %v9844 = vsub.s32 7, %v9843
        %v9845 = vrot.slane %v9484, %v9844
        %v9846 = vlaneseq
        %v9847 = vshrl.u32 %v9846, 7
        %v9848 = vsub.s32 0, %v9847
        %v9849 = vrot.slane %v9485, %v9848
        %v9850 = vlaneseq
        %v9851 = vshrl.u32 %v9850, 7
        %v9852 = vsub.s32 1, %v9851
        %v9853 = vrot.slane %v9485, %v9852
        %v9854 = vlaneseq
        %v9855 = vshrl.u32 %v9854, 7
        %v9856 = vsub.s32 2, %v9855
        %v9857 = vrot.slane %v9485, %v9856
        %v9858 = vlaneseq
        %v9859 = vshrl.u32 %v9858, 7
        %v9860 = vsub.s32 3, %v9859
        %v9861 = vrot.slane %v9485, %v9860
        %v9874 = vadd.f32 %v9800, %v9817
        %v9875 = vadd.f32 %v9801, %v9821
        %v9876 = vadd.f32 %v9802, %v9825
        %v9877 = vadd.f32 %v9803, %v9829
        %v9878 = vadd.f32 %v9804, %v9833
        %v9879 = vadd.f32 %v9805, %v9837
        %v9880 = vadd.f32 %v9806, %v9841
        %v9881 = vadd.f32 %v9807, %v9845
        %v9882 = vadd.f32 %v9808, %v9849
        %v9883 = vadd.f32 %v9809, %v9853
        %v9884 = vadd.f32 %v9810, %v9857
        %v9885 = vadd.f32 %v9811, %v9861
        %vm9886 = vcmp.ge.f32.partialorder %v9874, 0.0
        %vm9887 = vcmp.ge.f32.partialorder %v9875, 0.0
        %vm9888 = vcmp.ge.f32.partialorder %v9876, 0.0
        %vm9889 = vcmp.ge.f32.partialorder %v9877, 0.0
        %vm9890 = vcmp.ge.f32.partialorder %v9878, 0.0
        %vm9891 = vcmp.ge.f32.partialorder %v9879, 0.0
        %vm9892 = vcmp.ge.f32.partialorder %v9880, 0.0
        %vm9893 = vcmp.ge.f32.partialorder %v9881, 0.0
        %vm9894 = vcmp.ge.f32.partialorder %v9882, 0.0
        %vm9895 = vcmp.ge.f32.partialorder %v9883, 0.0
        %vm9896 = vcmp.ge.f32.partialorder %v9884, 0.0
        %vm9897 = vcmp.ge.f32.partialorder %v9885, 0.0
        %v9898 = vmul.f32 %v9874, 0.01
        %v9899 = vmul.f32 %v9875, 0.01
        %v9900 = vmul.f32 %v9876, 0.01
        %v9901 = vmul.f32 %v9877, 0.01
        %v9902 = vmul.f32 %v9878, 0.01
        %v9903 = vmul.f32 %v9879, 0.01
        %v9904 = vmul.f32 %v9880, 0.01
        %v9905 = vmul.f32 %v9881, 0.01
        %v9906 = vmul.f32 %v9882, 0.01
        %v9907 = vmul.f32 %v9883, 0.01
        %v9908 = vmul.f32 %v9884, 0.01
        %v9909 = vmul.f32 %v9885, 0.01
        %v9910 = vsel %vm9886, %v9874, %v9898
        %v9911 = vsel %vm9887, %v9875, %v9899
        %v9912 = vsel %vm9888, %v9876, %v9900
        %v9913 = vsel %vm9889, %v9877, %v9901
        %v9914 = vsel %vm9890, %v9878, %v9902
        %v9915 = vsel %vm9891, %v9879, %v9903
        %v9916 = vsel %vm9892, %v9880, %v9904
        %v9917 = vsel %vm9893, %v9881, %v9905
        %v9918 = vsel %vm9894, %v9882, %v9906
        %v9919 = vsel %vm9895, %v9883, %v9907
        %v9920 = vsel %vm9896, %v9884, %v9908
        %v9921 = vsel %vm9897, %v9885, %v9909
        %v9922 = vpack.c.bf16 %v9910, %v9910
        %v9923 = vpack.c.bf16 %v9911, %v9911
        %v9924 = vpack.c.bf16 %v9912, %v9912
        %v9925 = vpack.c.bf16 %v9913, %v9913
        %v9926 = vpack.c.bf16 %v9914, %v9914
        %v9927 = vpack.c.bf16 %v9915, %v9915
        %v9928 = vpack.c.bf16 %v9916, %v9916
        %v9929 = vpack.c.bf16 %v9917, %v9917
        %v9930 = vpack.c.bf16 %v9918, %v9918
        %v9931 = vpack.c.bf16 %v9919, %v9919
        %v9932 = vpack.c.bf16 %v9920, %v9920
        %v9933 = vpack.c.bf16 %v9921, %v9921
        %v9946 = vcombine.low %v9922, %v9923
        %v9947 = vcombine.low %v9924, %v9925
        %v9949 = vunpack.c.l.s4 1983009808
        %v9950 = vunpack.c.0.s8 %v9949
        %v9951 = vlaneseq
        %v9952 = vshrl.u32 %v9951, 7
        %v9953 = vsub.s32 %v9950, %v9952
        %v9954 = vrot.slane %v9946, %v9953
        %v9956 = vunpack.c.l.s4 1983009808
        %v9957 = vunpack.c.0.s8 %v9956
        %v9958 = vlaneseq
        %v9959 = vshrl.u32 %v9958, 7
        %v9960 = vsub.s32 %v9957, %v9959
        %v9961 = vrot.slane %v9947, %v9960
        %v9962 = vcombine.low %v9954, %v9961
        %v9963 = vcombine.low %v9926, %v9927
        %v9964 = vcombine.low %v9928, %v9929
        %v9966 = vunpack.c.l.s4 1983009808
        %v9967 = vunpack.c.0.s8 %v9966
        %v9968 = vlaneseq
        %v9969 = vshrl.u32 %v9968, 7
        %v9970 = vsub.s32 %v9967, %v9969
        %v9971 = vrot.slane %v9963, %v9970
        %v9973 = vunpack.c.l.s4 1983009808
        %v9974 = vunpack.c.0.s8 %v9973
        %v9975 = vlaneseq
        %v9976 = vshrl.u32 %v9975, 7
        %v9977 = vsub.s32 %v9974, %v9976
        %v9978 = vrot.slane %v9964, %v9977
        %v9979 = vcombine.low %v9971, %v9978
        %v9980 = vcombine.low %v9930, %v9931
        %v9981 = vcombine.low %v9932, %v9933
        %v9983 = vunpack.c.l.s4 1983009808
        %v9984 = vunpack.c.0.s8 %v9983
        %v9985 = vlaneseq
        %v9986 = vshrl.u32 %v9985, 7
        %v9987 = vsub.s32 %v9984, %v9986
        %v9988 = vrot.slane %v9980, %v9987
        %v9990 = vunpack.c.l.s4 1983009808
        %v9991 = vunpack.c.0.s8 %v9990
        %v9992 = vlaneseq
        %v9993 = vshrl.u32 %v9992, 7
        %v9994 = vsub.s32 %v9991, %v9993
        %v9995 = vrot.slane %v9981, %v9994
        %v9996 = vcombine.low %v9988, %v9995
        %10000 = vst [vmem:[%s783] sm:$0xff] %v9962
        %10001 = vst [vmem:[%s783 + $0x8] sm:$0xff] %v9979
        %10002 = vst [vmem:[%s783 + $0x10] sm:$0xff] %v9996
        %s10003 = sand.u32 %s402, 1
        %s10004 = scalar_lea.sflag [#allocation4], %s10003
        %s10005 = sand.u32 %s402, 1
        %s10006 = smul.addr %s10005, 24
        %s10007 = scalar_lea.vmem [#allocation28], %s10006
        // Predicated region
        $region149: #{tpu_custom_call.1} parent=83 // pred_check
          %p10008 = pneg %p412
        $region150: #{tpu_custom_call.1} parent=83 // pred_check_branch
          %10010 = sbr.rel (%p10008) target = $region152
        $region151: #{tpu_custom_call.1} parent=83 // pred_region
          %s10011 = smul.u32 12, %s43
          %s10013 = ssub.s32 384, 384
          %10014 = vsyncadd %s10004, %s10013
          %s10015 = smul.addr %s10011, 32
          %s10016 = scalar_lea.hbm %s16, %s10015
          %s10018 = sshll.u32 %s10007, 4
          %s10019 = int_to_ptr.vmem [resolvable:$true] %s10018
          %10021 = dma.vmem_to_hbm [thread:$0]  %s10019, 384, %s10016, %s10004
        $region152: #{tpu_custom_call.1} parent=83 // pred_fallthru
          _
      $region84: #{tpu_custom_call.1} parent=5 // pred_fallthru
        _
      %p10022 = scmp.le.s32.totalorder 2, %s38
      // Predicated region
      $region153: #{tpu_custom_call.1} parent=5 // pred_check
        %p10023 = pneg %p10022
      $region154: #{tpu_custom_call.1} parent=5 // pred_check_branch
        %10025 = sbr.rel (%p10023) target = $region156
      $region155: #{tpu_custom_call.1} parent=5 // pred_region
        %s10026 = ssub.s32 %s38, 2
        // Predicated region
        $region157: #{tpu_custom_call.1} parent=155 // pred_check
          %p10027 = pneg %p418
        $region158: #{tpu_custom_call.1} parent=155 // pred_check_branch
          %10029 = sbr.rel (%p10027) target = $region160
        $region159: #{tpu_custom_call.1} parent=155 // pred_region
          %s10030 = sand.u32 %s403, 1
          %s10031 = scalar_lea.sflag [#allocation4], %s10030
          %s10032 = sand.u32 %s403, 1
          %s10033 = smul.addr %s10032, 24
          %s10034 = scalar_lea.vmem [#allocation28], %s10033
          %10035 = dma.done %s10031, 384
        $region160: #{tpu_custom_call.1} parent=155 // pred_fallthru
          _
      $region156: #{tpu_custom_call.1} parent=5 // pred_fallthru
        _
    $region6: #{tpu_custom_call.1} parent=1 // loop_footer
      %s42 = sadd.s32 1, %s38
    $region7: #{tpu_custom_call.1} parent=1 // loop_footer_branch
      %37 = sbr.rel target = $region3
    $region8: #{tpu_custom_call.1} parent=1 // loop_exit
      _
    %10036 = vsyncpa [#allocation3], 1
    %s10037 = scalar_lea.sflag [#allocation3], 1
    %10038 = vsyncpa %s10037, 1
    %10039 = vsyncpa [#allocation6], 1
    %10040 = vsyncpa [#allocation9], 1
    %10041 = vsyncpa [#allocation12], 1
    %10042 = vsyncpa [#allocation15], 1
    %10043 = vsyncpa [#allocation18], 1
    %10044 = vsyncpa [#allocation21], 1
    %10045 = vsyncpa [#allocation24], 1
    %s10046 = scalar_lea.sflag [#allocation24], 1
    %10047 = vsyncpa %s10046, 1
    %10048 = vsyncpa [#allocation27], 1
    %s10049 = scalar_lea.sflag [#allocation27], 1
    %10050 = vsyncpa %s10049, 1
    %10051 = vsyncpa [#allocation4], 1
    %s10052 = scalar_lea.sflag [#allocation4], 1
    %10053 = vsyncpa %s10052, 1

</llo_original>
